<compile_context>
chip_gen: v5e
topology: v5e:2x2
jax: 0.10.0
libtpu: 0.0.40
codegen_flags: <defaults>
</compile_context>

<pallas_src>
import functools

import jax
import jax.numpy as jnp
from jax.experimental import pallas as pl
from jax.experimental.pallas import tpu as pltpu

EPS = 1e-5
LANES = 128
REF_PREC = jax.lax.Precision.HIGHEST      # used only by the pure-JAX reference


def _round_up(x, m):
    return (x + m - 1) // m * m


def _zero_map(ndim, i):
    return (0,) * ndim


# ----------------------------------------------------------------------------
# Fused ResNeXt block kernel
# ----------------------------------------------------------------------------
def make_resnext_block_kernel(n, h, w, cin, cmid, cout_p, stride,
                              has_downsample):
    hp = h + 2                          # spatial pad = 1 on each side
    wp8 = _round_up(w + 2, 8)           # width padded for trivial reshapes
    hout = (h - 1) // stride + 1
    wout = (w - 1) // stride + 1
    hs = (hout - 1) * stride + 1
    ws = (wout - 1) * stride + 1
    m_pad = n * hp * wp8                # rows of the padded image
    m_in = n * h * w                    # real rows (BN1 count)
    m_out = n * hout * wout             # rows of the block output
    cx = cin + 1                        # input channels + interior-mask chan

    bf16 = jnp.bfloat16
    f32 = jnp.float32

    def bn_scale_shift(s1, s2, gamma, beta, count):
        # training-mode BN (batch stats, biased variance) as an affine map
        mean = s1 * (1.0 / count)
        var = jnp.maximum(s2 * (1.0 / count) - mean * mean, 0.0)
        scale = gamma * jax.lax.rsqrt(var + EPS)
        return scale, beta - mean * scale

    def bn(y, gamma, beta, count):
        s1 = jnp.sum(y, axis=0, keepdims=True)
        s2 = jnp.sum(y * y, axis=0, keepdims=True)
        scale, shift = bn_scale_shift(s1, s2, gamma, beta, count)
        return y * scale + shift

    def kernel(x_ref, w1_ref, g1_ref, b1_ref, w2_ref, g2_ref, b2_ref,
               w3_ref, g3_ref, b3_ref, *rest):
        if has_downsample:
            wd_ref, gd_ref, bd_ref, o_ref = rest
        else:
            (o_ref,) = rest

        x4 = x_ref[...]                               # (n, hp, wp8, cx)
        x2 = x4.reshape(m_pad, cx)
        x2b = x2.astype(bf16)
        mask2 = x2[:, cin:cin + 1].astype(f32)        # 1.0 interior / 0.0 pad

        # ---- conv1 (1x1) + BN1 + ReLU, computed ONCE over the padded image.
        #      Padded rows of x are exactly zero and there is no conv bias,
        #      so plain sums over all m_pad rows ARE the interior batch
        #      statistics (count = N*H*W).  w1 has a zero row for the mask
        #      channel.
        y1 = jnp.dot(x2b, w1_ref[...], preferred_element_type=f32)
        s1 = jnp.sum(y1, axis=0, keepdims=True)
        s2 = jnp.sum(y1 * y1, axis=0, keepdims=True)
        scale1, shift1 = bn_scale_shift(s1, s2, g1_ref[...], b1_ref[...], m_in)
        # the mask re-zeroes padding rows (BN shift / ReLU made them nonzero)
        y1 = jnp.maximum(y1 * scale1 + shift1, 0.0) * mask2
        y1_4d = y1.astype(bf16).reshape(n, hp, wp8, cmid)

        # ---- grouped 3x3 conv as ONE matmul: nine tap windows stacked along
        #      K against a block-structured (9*cmid, cmid) weight.
        taps = []
        for kh in range(3):
            for kw in range(3):
                t = y1_4d[:, kh:kh + hs:stride, kw:kw + ws:stride, :]
                taps.append(t.reshape(m_out, cmid))
        tap_k = jnp.concatenate(taps, axis=-1)        # (m_out, 9*cmid) bf16
        y2 = jnp.dot(tap_k, w2_ref[...], preferred_element_type=f32)
        y2 = jnp.maximum(bn(y2, g2_ref[...], b2_ref[...], m_out), 0.0)

        # ---- dense 1x1 conv3 + BN3 onto the lane-dense padded output width.
        y3 = jnp.dot(y2.astype(bf16), w3_ref[...], preferred_element_type=f32)
        y3 = bn(y3, g3_ref[...], b3_ref[...], m_out)

        # ---- identity / downsample path (strided interior slice of x)
        xi = x4[:, 1:1 + hs:stride, 1:1 + ws:stride, :]
        if has_downsample:
            xi2 = xi.reshape(m_out, cx).astype(bf16)  # mask chan hits zero row
            idn = jnp.dot(xi2, wd_ref[...], preferred_element_type=f32)
            idn = bn(idn, gd_ref[...], bd_ref[...], m_out)
        else:
            # raw f32 residual (no bf16 rounding, no matmul), lane-padded
            xi2 = xi[..., :cin].reshape(m_out, cin).astype(f32)
            if cout_p > cin:
                idn = jnp.concatenate(
                    [xi2, jnp.zeros((m_out, cout_p - cin), f32)], axis=-1)
            else:
                idn = xi2

        # TODO(synk): store bf16 here (halves the only HBM write) once the
        #             consumer of this block accepts bf16 activations.
        o_ref[...] = y3 + idn                         # (m_out, cout_p) f32

    return kernel


# ----------------------------------------------------------------------------
# Wrapper: parameter plumbing + single pallas_call
# ----------------------------------------------------------------------------
def resnext_block_forward(x_nhwc, params, *, stride, cardinality, out_channels):
    n, h, w, cin = x_nhwc.shape
    cmid = params["w1"].shape[1]
    cpg = cmid // cardinality
    hout = (h - 1) // stride + 1
    wout = (w - 1) // stride + 1
    m_out = n * hout * wout
    cout_p = _round_up(out_channels, LANES)
    has_downsample = (stride != 1) or (out_channels != cin)

    f32, bf16 = jnp.float32, jnp.bfloat16
    wp8 = _round_up(w + 2, 8)
    pad_w_hi = wp8 - w - 1              # 1 real pad column + alignment columns

    # Input shipped bf16 (halves DMA); kept f32 when the skip path is an
    # identity so the residual add matches the reference bit-for-bit in f32.
    x_dt = bf16 if has_downsample else f32
    # interior mask rides as one extra channel (shares x's lane padding / DMA)
    x_aug = jnp.concatenate(
        [x_nhwc.astype(x_dt), jnp.ones((n, h, w, 1), x_dt)], axis=-1)
    xpad = jnp.pad(x_aug, ((0, 0), (1, 1), (1, pad_w_hi), (0, 0)))

    def pad_lanes(a):                   # pad trailing dim to 128 lanes
        return jnp.pad(a, ((0, 0),) * (a.ndim - 1)
                       + ((0, cout_p - a.shape[-1]),))

    # conv1 weight: extra zero row for the mask channel
    w1 = jnp.pad(params["w1"], ((0, 1), (0, 0))).astype(bf16)

    # grouped 3x3 weight -> block-structured (9*cmid, cmid) for the single
    # tap-stacked matmul: row t*cmid + g*cpg + ci, col g*cpg + co.
    w2g = params["w2g"].reshape(9, cardinality, cpg, cpg)      # (t, g, ci, co)
    w2 = jnp.einsum("tgio,gh->tgiho", w2g,
                    jnp.eye(cardinality, dtype=w2g.dtype))
    w2 = w2.reshape(9 * cmid, cmid).astype(bf16)

    w3 = pad_lanes(params["w3"]).astype(bf16)
    g1, b1 = params["g1"], params["bt1"]
    g2, b2 = params["g2"], params["bt2"]
    g3, b3 = pad_lanes(params["g3"]), pad_lanes(params["bt3"])

    args = [xpad, w1, g1, b1, w2, g2, b2, w3, g3, b3]
    if has_downsample:
        wd = jnp.pad(pad_lanes(params["wd"]), ((0, 1), (0, 0))).astype(bf16)
        gd, bd = pad_lanes(params["gd"]), pad_lanes(params["btd"])
        args += [wd, gd, bd]

    kernel = make_resnext_block_kernel(n, h, w, cin, cmid, cout_p, stride,
                                       has_downsample)
    out = pl.pallas_call(
        kernel,
        out_shape=jax.ShapeDtypeStruct((m_out, cout_p), f32),
        grid=(1,),
        in_specs=[pl.BlockSpec(a.shape, functools.partial(_zero_map, a.ndim))
                  for a in args],
        out_specs=pl.BlockSpec((m_out, cout_p), functools.partial(_zero_map, 2)),
        compiler_params=pltpu.CompilerParams(
            dimension_semantics=("arbitrary",),
            vmem_limit_bytes=32 * 1024 * 1024),
    )(*args)
    return out.reshape(n, hout, wout, cout_p)[..., :out_channels]


# ----------------------------------------------------------------------------
# Parameters (deterministic synthetic init, shapes match the nn.Module)
# ----------------------------------------------------------------------------
def init_params(key, in_channels, out_channels, bottleneck_width, cardinality):
    cmid = bottleneck_width * cardinality
    cpg = cmid // cardinality
    ks = jax.random.split(key, 16)

    def wn(k, shape, scale=0.1):
        return (scale * jax.random.normal(k, shape)).astype(jnp.float32)

    return {
        "w1": wn(ks[0], (in_channels, cmid)),
        "b1": wn(ks[1], (1, cmid)),
        "g1": 1.0 + wn(ks[2], (1, cmid)),
        "bt1": wn(ks[3], (1, cmid)),
        # grouped 3x3 conv weight: (kh, kw, group, in_per_group, out_per_group)
        "w2g": wn(ks[4], (3, 3, cardinality, cpg, cpg)),
        "b2": wn(ks[5], (1, cmid)),
        "g2": 1.0 + wn(ks[6], (1, cmid)),
        "bt2": wn(ks[7], (1, cmid)),
        "w3": wn(ks[8], (cmid, out_channels)),
        "b3": wn(ks[9], (1, out_channels)),
        "g3": 1.0 + wn(ks[10], (1, out_channels)),
        "bt3": wn(ks[11], (1, out_channels)),
        "wd": wn(ks[12], (in_channels, out_channels)),
        "bd": wn(ks[13], (1, out_channels)),
        "gd": 1.0 + wn(ks[14], (1, out_channels)),
        "btd": wn(ks[15], (1, out_channels)),
    }


# ----------------------------------------------------------------------------
# Pure-JAX reference (f32, includes the conv biases the kernel folds away)
# ----------------------------------------------------------------------------
def reference_forward(x, params, *, stride, cardinality, out_channels):
    dn = ("NHWC", "HWIO", "NHWC")

    def bn(y, g, b):
        mean = jnp.mean(y, axis=(0, 1, 2), keepdims=True)
        var = jnp.mean(jnp.square(y - mean), axis=(0, 1, 2), keepdims=True)
        return (g.reshape(1, 1, 1, -1) * (y - mean) * jax.lax.rsqrt(var + EPS)
                + b.reshape(1, 1, 1, -1))

    y = jax.lax.conv_general_dilated(x, params["w1"][None, None], (1, 1), "VALID",
                                     dimension_numbers=dn, precision=REF_PREC)
    y = y + params["b1"].reshape(1, 1, 1, -1)
    y = jnp.maximum(bn(y, params["g1"], params["bt1"]), 0.0)

    cmid = y.shape[-1]
    cpg = cmid // cardinality
    w2 = jnp.transpose(params["w2g"], (0, 1, 3, 2, 4)).reshape(3, 3, cpg, cmid)
    y = jax.lax.conv_general_dilated(y, w2, (stride, stride), ((1, 1), (1, 1)),
                                     dimension_numbers=dn,
                                     feature_group_count=cardinality,
                                     precision=REF_PREC)
    y = y + params["b2"].reshape(1, 1, 1, -1)
    y = jnp.maximum(bn(y, params["g2"], params["bt2"]), 0.0)

    y = jax.lax.conv_general_dilated(y, params["w3"][None, None], (1, 1), "VALID",
                                     dimension_numbers=dn, precision=REF_PREC)
    y = y + params["b3"].reshape(1, 1, 1, -1)
    y = bn(y, params["g3"], params["bt3"])

    if stride != 1 or out_channels != x.shape[-1]:
        idn = jax.lax.conv_general_dilated(x, params["wd"][None, None],
                                           (stride, stride), "VALID",
                                           dimension_numbers=dn,
                                           precision=REF_PREC)
        idn = idn + params["bd"].reshape(1, 1, 1, -1)
        idn = bn(idn, params["gd"], params["btd"])
    else:
        idn = x
    return y + idn


# ----------------------------------------------------------------------------
if __name__ == "__main__":
    # module config: in_channels=8, out_channels=16, bottleneck_width=2,
    # cardinality=4 -> intermediate_channels=8, stride=1.
    N, H, W = 2, 16, 16
    IN_C, OUT_C = 8, 16
    BW, CARD, STRIDE = 2, 4, 1

    key = jax.random.PRNGKey(0)
    kx, kp = jax.random.split(key)
    # PyTorch input would be NCHW (2, 8, 16, 16); kernels operate NHWC.
    x = jax.random.normal(kx, (N, H, W, IN_C), dtype=jnp.float32)
    params = init_params(kp, IN_C, OUT_C, BW, CARD)

    out = resnext_block_forward(x, params, stride=STRIDE, cardinality=CARD,
                                out_channels=OUT_C)
    out = jax.block_until_ready(out)

    ref = jax.block_until_ready(
        reference_forward(x, params, stride=STRIDE, cardinality=CARD,
                          out_channels=OUT_C))

    assert out.shape == (N, H // STRIDE, W // STRIDE, OUT_C)
    max_diff = float(jnp.max(jnp.abs(out - ref)))
    assert jnp.allclose(out, ref, rtol=3e-2, atol=3e-2), f"max_diff={max_diff}"

    print("KERNEL_OK")
</pallas_src>

<mosaic_0001>
module attributes {stable_mosaic.version = 11 : i64} {
  func.func @kernel(%arg0: i32, %arg1: memref<2x18x24x9xbf16, #tpu.memory_space<vmem>>, %arg2: memref<9x8xbf16, #tpu.memory_space<vmem>>, %arg3: memref<1x8xf32, #tpu.memory_space<vmem>>, %arg4: memref<1x8xf32, #tpu.memory_space<vmem>>, %arg5: memref<72x8xbf16, #tpu.memory_space<vmem>>, %arg6: memref<1x8xf32, #tpu.memory_space<vmem>>, %arg7: memref<1x8xf32, #tpu.memory_space<vmem>>, %arg8: memref<8x128xbf16, #tpu.memory_space<vmem>>, %arg9: memref<1x128xf32, #tpu.memory_space<vmem>>, %arg10: memref<1x128xf32, #tpu.memory_space<vmem>>, %arg11: memref<9x128xbf16, #tpu.memory_space<vmem>>, %arg12: memref<1x128xf32, #tpu.memory_space<vmem>>, %arg13: memref<1x128xf32, #tpu.memory_space<vmem>>, %arg14: memref<512x128xf32, #tpu.memory_space<vmem>>) attributes {dimension_semantics = [#tpu.dimension_semantics<arbitrary>], iteration_bounds = array<i64: 1>, scalar_prefetch = 0 : i64, scratch_operands = 0 : i64, tpu.core_type = #tpu.core_type<tc>, window_params = [{pipeline_mode = #tpu.pipeline_mode<synchronous>, transform_indices = @transform_0, window_bounds = array<i64: 2, 18, 24, 9>}, {pipeline_mode = #tpu.pipeline_mode<synchronous>, transform_indices = @transform_1, window_bounds = array<i64: 9, 8>}, {pipeline_mode = #tpu.pipeline_mode<synchronous>, transform_indices = @transform_2, window_bounds = array<i64: 1, 8>}, {pipeline_mode = #tpu.pipeline_mode<synchronous>, transform_indices = @transform_3, window_bounds = array<i64: 1, 8>}, {pipeline_mode = #tpu.pipeline_mode<synchronous>, transform_indices = @transform_4, window_bounds = array<i64: 72, 8>}, {pipeline_mode = #tpu.pipeline_mode<synchronous>, transform_indices = @transform_5, window_bounds = array<i64: 1, 8>}, {pipeline_mode = #tpu.pipeline_mode<synchronous>, transform_indices = @transform_6, window_bounds = array<i64: 1, 8>}, {pipeline_mode = #tpu.pipeline_mode<synchronous>, transform_indices = @transform_7, window_bounds = array<i64: 8, 128>}, {pipeline_mode = #tpu.pipeline_mode<synchronous>, transform_indices = @transform_8, window_bounds = array<i64: 1, 128>}, {pipeline_mode = #tpu.pipeline_mode<synchronous>, transform_indices = @transform_9, window_bounds = array<i64: 1, 128>}, {pipeline_mode = #tpu.pipeline_mode<synchronous>, transform_indices = @transform_10, window_bounds = array<i64: 9, 128>}, {pipeline_mode = #tpu.pipeline_mode<synchronous>, transform_indices = @transform_11, window_bounds = array<i64: 1, 128>}, {pipeline_mode = #tpu.pipeline_mode<synchronous>, transform_indices = @transform_12, window_bounds = array<i64: 1, 128>}, {pipeline_mode = #tpu.pipeline_mode<synchronous>, transform_indices = @transform_13, window_bounds = array<i64: 512, 128>}]} {
    %c0 = arith.constant 0 : index
    %c0_0 = arith.constant 0 : index
    %c0_1 = arith.constant 0 : index
    %c0_2 = arith.constant 0 : index
    %0 = vector.load %arg1[%c0, %c0_0, %c0_1, %c0_2] : memref<2x18x24x9xbf16, #tpu.memory_space<vmem>>, vector<2x18x24x9xbf16>
    %1 = vector.shape_cast %0 : vector<2x18x24x9xbf16> to vector<864x9xbf16>
    %2 = vector.extract_strided_slice %1 {offsets = [0, 8], sizes = [864, 1], strides = [1, 1]} : vector<864x9xbf16> to vector<864x1xbf16>
    %3 = arith.extf %2 : vector<864x1xbf16> to vector<864x1xf32>
    %c0_3 = arith.constant 0 : index
    %c0_4 = arith.constant 0 : index
    %4 = vector.load %arg2[%c0_3, %c0_4] : memref<9x8xbf16, #tpu.memory_space<vmem>>, vector<9x8xbf16>
    %cst = arith.constant dense<0.000000e+00> : vector<864x8xf32>
    %5 = tpu.matmul %1, %4, %cst {dimension_numbers = #tpu.dot_dimension_numbers<[1], [0], [0], [1], [0, 0, 1, 1], [], []>} : vector<864x9xbf16>, vector<9x8xbf16>, vector<864x8xf32> -> vector<864x8xf32>
    %cst_5 = arith.constant dense<0.000000e+00> : vector<8xf32>
    %6 = vector.multi_reduction <add>, %5, %cst_5 [0] : vector<864x8xf32> to vector<8xf32>
    %7 = vector.shape_cast %6 : vector<8xf32> to vector<1x8xf32>
    %8 = arith.mulf %5, %5 : vector<864x8xf32>
    %cst_6 = arith.constant dense<0.000000e+00> : vector<8xf32>
    %9 = vector.multi_reduction <add>, %8, %cst_6 [0] : vector<864x8xf32> to vector<8xf32>
    %10 = vector.shape_cast %9 : vector<8xf32> to vector<1x8xf32>
    %c0_7 = arith.constant 0 : index
    %c0_8 = arith.constant 0 : index
    %11 = vector.load %arg3[%c0_7, %c0_8] : memref<1x8xf32, #tpu.memory_space<vmem>>, vector<1x8xf32>
    %c0_9 = arith.constant 0 : index
    %c0_10 = arith.constant 0 : index
    %12 = vector.load %arg4[%c0_9, %c0_10] : memref<1x8xf32, #tpu.memory_space<vmem>>, vector<1x8xf32>
    %cst_11 = arith.constant 0.001953125 : f32
    %13 = vector.broadcast %cst_11 : f32 to vector<1x8xf32>
    %14 = arith.mulf %7, %13 : vector<1x8xf32>
    %cst_12 = arith.constant 0.001953125 : f32
    %15 = vector.broadcast %cst_12 : f32 to vector<1x8xf32>
    %16 = arith.mulf %10, %15 : vector<1x8xf32>
    %17 = arith.mulf %14, %14 : vector<1x8xf32>
    %18 = arith.subf %16, %17 : vector<1x8xf32>
    %cst_13 = arith.constant 0.000000e+00 : f32
    %19 = vector.broadcast %cst_13 : f32 to vector<1x8xf32>
    %20 = arith.maximumf %18, %19 : vector<1x8xf32>
    %cst_14 = arith.constant 9.99999974E-6 : f32
    %21 = vector.broadcast %cst_14 : f32 to vector<1x8xf32>
    %22 = arith.addf %20, %21 : vector<1x8xf32>
    %23 = math.rsqrt %22 : vector<1x8xf32>
    %24 = arith.mulf %11, %23 : vector<1x8xf32>
    %25 = arith.mulf %14, %24 : vector<1x8xf32>
    %26 = arith.subf %12, %25 : vector<1x8xf32>
    %27 = vector.broadcast %24 : vector<1x8xf32> to vector<864x8xf32>
    %28 = arith.mulf %5, %27 : vector<864x8xf32>
    %29 = vector.broadcast %26 : vector<1x8xf32> to vector<864x8xf32>
    %30 = arith.addf %28, %29 : vector<864x8xf32>
    %cst_15 = arith.constant 0.000000e+00 : f32
    %31 = vector.broadcast %cst_15 : f32 to vector<864x8xf32>
    %32 = arith.maximumf %30, %31 : vector<864x8xf32>
    %33 = vector.broadcast %3 : vector<864x1xf32> to vector<864x8xf32>
    %34 = arith.mulf %32, %33 : vector<864x8xf32>
    %35 = arith.truncf %34 : vector<864x8xf32> to vector<864x8xbf16>
    %36 = vector.shape_cast %35 : vector<864x8xbf16> to vector<2x18x24x8xbf16>
    %37 = vector.extract_strided_slice %36 {offsets = [0, 0, 0, 0], sizes = [2, 16, 16, 8], strides = [1, 1, 1, 1]} : vector<2x18x24x8xbf16> to vector<2x16x16x8xbf16>
    %38 = vector.shape_cast %37 : vector<2x16x16x8xbf16> to vector<512x8xbf16>
    %39 = vector.extract_strided_slice %36 {offsets = [0, 0, 1, 0], sizes = [2, 16, 16, 8], strides = [1, 1, 1, 1]} : vector<2x18x24x8xbf16> to vector<2x16x16x8xbf16>
    %40 = vector.shape_cast %39 : vector<2x16x16x8xbf16> to vector<512x8xbf16>
    %41 = vector.extract_strided_slice %36 {offsets = [0, 0, 2, 0], sizes = [2, 16, 16, 8], strides = [1, 1, 1, 1]} : vector<2x18x24x8xbf16> to vector<2x16x16x8xbf16>
    %42 = vector.shape_cast %41 : vector<2x16x16x8xbf16> to vector<512x8xbf16>
    %43 = vector.extract_strided_slice %36 {offsets = [0, 1, 0, 0], sizes = [2, 16, 16, 8], strides = [1, 1, 1, 1]} : vector<2x18x24x8xbf16> to vector<2x16x16x8xbf16>
    %44 = vector.shape_cast %43 : vector<2x16x16x8xbf16> to vector<512x8xbf16>
    %45 = vector.extract_strided_slice %36 {offsets = [0, 1, 1, 0], sizes = [2, 16, 16, 8], strides = [1, 1, 1, 1]} : vector<2x18x24x8xbf16> to vector<2x16x16x8xbf16>
    %46 = vector.shape_cast %45 : vector<2x16x16x8xbf16> to vector<512x8xbf16>
    %47 = vector.extract_strided_slice %36 {offsets = [0, 1, 2, 0], sizes = [2, 16, 16, 8], strides = [1, 1, 1, 1]} : vector<2x18x24x8xbf16> to vector<2x16x16x8xbf16>
    %48 = vector.shape_cast %47 : vector<2x16x16x8xbf16> to vector<512x8xbf16>
    %49 = vector.extract_strided_slice %36 {offsets = [0, 2, 0, 0], sizes = [2, 16, 16, 8], strides = [1, 1, 1, 1]} : vector<2x18x24x8xbf16> to vector<2x16x16x8xbf16>
    %50 = vector.shape_cast %49 : vector<2x16x16x8xbf16> to vector<512x8xbf16>
    %51 = vector.extract_strided_slice %36 {offsets = [0, 2, 1, 0], sizes = [2, 16, 16, 8], strides = [1, 1, 1, 1]} : vector<2x18x24x8xbf16> to vector<2x16x16x8xbf16>
    %52 = vector.shape_cast %51 : vector<2x16x16x8xbf16> to vector<512x8xbf16>
    %53 = vector.extract_strided_slice %36 {offsets = [0, 2, 2, 0], sizes = [2, 16, 16, 8], strides = [1, 1, 1, 1]} : vector<2x18x24x8xbf16> to vector<2x16x16x8xbf16>
    %54 = vector.shape_cast %53 : vector<2x16x16x8xbf16> to vector<512x8xbf16>
    %55 = tpu.concatenate %38, %40, %42, %44, %46, %48, %50, %52, %54 in 1 : vector<512x8xbf16>, vector<512x8xbf16>, vector<512x8xbf16>, vector<512x8xbf16>, vector<512x8xbf16>, vector<512x8xbf16>, vector<512x8xbf16>, vector<512x8xbf16>, vector<512x8xbf16> -> vector<512x72xbf16>
    %c0_16 = arith.constant 0 : index
    %c0_17 = arith.constant 0 : index
    %56 = vector.load %arg5[%c0_16, %c0_17] : memref<72x8xbf16, #tpu.memory_space<vmem>>, vector<72x8xbf16>
    %cst_18 = arith.constant dense<0.000000e+00> : vector<512x8xf32>
    %57 = tpu.matmul %55, %56, %cst_18 {dimension_numbers = #tpu.dot_dimension_numbers<[1], [0], [0], [1], [0, 0, 1, 1], [], []>} : vector<512x72xbf16>, vector<72x8xbf16>, vector<512x8xf32> -> vector<512x8xf32>
    %c0_19 = arith.constant 0 : index
    %c0_20 = arith.constant 0 : index
    %58 = vector.load %arg6[%c0_19, %c0_20] : memref<1x8xf32, #tpu.memory_space<vmem>>, vector<1x8xf32>
    %c0_21 = arith.constant 0 : index
    %c0_22 = arith.constant 0 : index
    %59 = vector.load %arg7[%c0_21, %c0_22] : memref<1x8xf32, #tpu.memory_space<vmem>>, vector<1x8xf32>
    %cst_23 = arith.constant dense<0.000000e+00> : vector<8xf32>
    %60 = vector.multi_reduction <add>, %57, %cst_23 [0] : vector<512x8xf32> to vector<8xf32>
    %61 = vector.shape_cast %60 : vector<8xf32> to vector<1x8xf32>
    %62 = arith.mulf %57, %57 : vector<512x8xf32>
    %cst_24 = arith.constant dense<0.000000e+00> : vector<8xf32>
    %63 = vector.multi_reduction <add>, %62, %cst_24 [0] : vector<512x8xf32> to vector<8xf32>
    %64 = vector.shape_cast %63 : vector<8xf32> to vector<1x8xf32>
    %cst_25 = arith.constant 0.001953125 : f32
    %65 = vector.broadcast %cst_25 : f32 to vector<1x8xf32>
    %66 = arith.mulf %61, %65 : vector<1x8xf32>
    %cst_26 = arith.constant 0.001953125 : f32
    %67 = vector.broadcast %cst_26 : f32 to vector<1x8xf32>
    %68 = arith.mulf %64, %67 : vector<1x8xf32>
    %69 = arith.mulf %66, %66 : vector<1x8xf32>
    %70 = arith.subf %68, %69 : vector<1x8xf32>
    %cst_27 = arith.constant 0.000000e+00 : f32
    %71 = vector.broadcast %cst_27 : f32 to vector<1x8xf32>
    %72 = arith.maximumf %70, %71 : vector<1x8xf32>
    %cst_28 = arith.constant 9.99999974E-6 : f32
    %73 = vector.broadcast %cst_28 : f32 to vector<1x8xf32>
    %74 = arith.addf %72, %73 : vector<1x8xf32>
    %75 = math.rsqrt %74 : vector<1x8xf32>
    %76 = arith.mulf %58, %75 : vector<1x8xf32>
    %77 = arith.mulf %66, %76 : vector<1x8xf32>
    %78 = arith.subf %59, %77 : vector<1x8xf32>
    %79 = vector.broadcast %76 : vector<1x8xf32> to vector<512x8xf32>
    %80 = arith.mulf %57, %79 : vector<512x8xf32>
    %81 = vector.broadcast %78 : vector<1x8xf32> to vector<512x8xf32>
    %82 = arith.addf %80, %81 : vector<512x8xf32>
    %cst_29 = arith.constant 0.000000e+00 : f32
    %83 = vector.broadcast %cst_29 : f32 to vector<512x8xf32>
    %84 = arith.maximumf %82, %83 : vector<512x8xf32>
    %85 = arith.truncf %84 : vector<512x8xf32> to vector<512x8xbf16>
    %c0_30 = arith.constant 0 : index
    %c0_31 = arith.constant 0 : index
    %86 = vector.load %arg8[%c0_30, %c0_31] : memref<8x128xbf16, #tpu.memory_space<vmem>>, vector<8x128xbf16>
    %cst_32 = arith.constant dense<0.000000e+00> : vector<512x128xf32>
    %87 = tpu.matmul %85, %86, %cst_32 {dimension_numbers = #tpu.dot_dimension_numbers<[1], [0], [0], [1], [0, 0, 1, 1], [], []>} : vector<512x8xbf16>, vector<8x128xbf16>, vector<512x128xf32> -> vector<512x128xf32>
    %c0_33 = arith.constant 0 : index
    %c0_34 = arith.constant 0 : index
    %88 = vector.load %arg9[%c0_33, %c0_34] : memref<1x128xf32, #tpu.memory_space<vmem>>, vector<1x128xf32>
    %c0_35 = arith.constant 0 : index
    %c0_36 = arith.constant 0 : index
    %89 = vector.load %arg10[%c0_35, %c0_36] : memref<1x128xf32, #tpu.memory_space<vmem>>, vector<1x128xf32>
    %cst_37 = arith.constant dense<0.000000e+00> : vector<128xf32>
    %90 = vector.multi_reduction <add>, %87, %cst_37 [0] : vector<512x128xf32> to vector<128xf32>
    %91 = vector.shape_cast %90 : vector<128xf32> to vector<1x128xf32>
    %92 = arith.mulf %87, %87 : vector<512x128xf32>
    %cst_38 = arith.constant dense<0.000000e+00> : vector<128xf32>
    %93 = vector.multi_reduction <add>, %92, %cst_38 [0] : vector<512x128xf32> to vector<128xf32>
    %94 = vector.shape_cast %93 : vector<128xf32> to vector<1x128xf32>
    %cst_39 = arith.constant 0.001953125 : f32
    %95 = vector.broadcast %cst_39 : f32 to vector<1x128xf32>
    %96 = arith.mulf %91, %95 : vector<1x128xf32>
    %cst_40 = arith.constant 0.001953125 : f32
    %97 = vector.broadcast %cst_40 : f32 to vector<1x128xf32>
    %98 = arith.mulf %94, %97 : vector<1x128xf32>
    %99 = arith.mulf %96, %96 : vector<1x128xf32>
    %100 = arith.subf %98, %99 : vector<1x128xf32>
    %cst_41 = arith.constant 0.000000e+00 : f32
    %101 = vector.broadcast %cst_41 : f32 to vector<1x128xf32>
    %102 = arith.maximumf %100, %101 : vector<1x128xf32>
    %cst_42 = arith.constant 9.99999974E-6 : f32
    %103 = vector.broadcast %cst_42 : f32 to vector<1x128xf32>
    %104 = arith.addf %102, %103 : vector<1x128xf32>
    %105 = math.rsqrt %104 : vector<1x128xf32>
    %106 = arith.mulf %88, %105 : vector<1x128xf32>
    %107 = arith.mulf %96, %106 : vector<1x128xf32>
    %108 = arith.subf %89, %107 : vector<1x128xf32>
    %109 = vector.broadcast %106 : vector<1x128xf32> to vector<512x128xf32>
    %110 = arith.mulf %87, %109 : vector<512x128xf32>
    %111 = vector.broadcast %108 : vector<1x128xf32> to vector<512x128xf32>
    %112 = arith.addf %110, %111 : vector<512x128xf32>
    %113 = vector.extract_strided_slice %0 {offsets = [0, 1, 1, 0], sizes = [2, 16, 16, 9], strides = [1, 1, 1, 1]} : vector<2x18x24x9xbf16> to vector<2x16x16x9xbf16>
    %114 = vector.shape_cast %113 : vector<2x16x16x9xbf16> to vector<512x9xbf16>
    %c0_43 = arith.constant 0 : index
    %c0_44 = arith.constant 0 : index
    %115 = vector.load %arg11[%c0_43, %c0_44] : memref<9x128xbf16, #tpu.memory_space<vmem>>, vector<9x128xbf16>
    %cst_45 = arith.constant dense<0.000000e+00> : vector<512x128xf32>
    %116 = tpu.matmul %114, %115, %cst_45 {dimension_numbers = #tpu.dot_dimension_numbers<[1], [0], [0], [1], [0, 0, 1, 1], [], []>} : vector<512x9xbf16>, vector<9x128xbf16>, vector<512x128xf32> -> vector<512x128xf32>
    %c0_46 = arith.constant 0 : index
    %c0_47 = arith.constant 0 : index
    %117 = vector.load %arg12[%c0_46, %c0_47] : memref<1x128xf32, #tpu.memory_space<vmem>>, vector<1x128xf32>
    %c0_48 = arith.constant 0 : index
    %c0_49 = arith.constant 0 : index
    %118 = vector.load %arg13[%c0_48, %c0_49] : memref<1x128xf32, #tpu.memory_space<vmem>>, vector<1x128xf32>
    %cst_50 = arith.constant dense<0.000000e+00> : vector<128xf32>
    %119 = vector.multi_reduction <add>, %116, %cst_50 [0] : vector<512x128xf32> to vector<128xf32>
    %120 = vector.shape_cast %119 : vector<128xf32> to vector<1x128xf32>
    %121 = arith.mulf %116, %116 : vector<512x128xf32>
    %cst_51 = arith.constant dense<0.000000e+00> : vector<128xf32>
    %122 = vector.multi_reduction <add>, %121, %cst_51 [0] : vector<512x128xf32> to vector<128xf32>
    %123 = vector.shape_cast %122 : vector<128xf32> to vector<1x128xf32>
    %cst_52 = arith.constant 0.001953125 : f32
    %124 = vector.broadcast %cst_52 : f32 to vector<1x128xf32>
    %125 = arith.mulf %120, %124 : vector<1x128xf32>
    %cst_53 = arith.constant 0.001953125 : f32
    %126 = vector.broadcast %cst_53 : f32 to vector<1x128xf32>
    %127 = arith.mulf %123, %126 : vector<1x128xf32>
    %128 = arith.mulf %125, %125 : vector<1x128xf32>
    %129 = arith.subf %127, %128 : vector<1x128xf32>
    %cst_54 = arith.constant 0.000000e+00 : f32
    %130 = vector.broadcast %cst_54 : f32 to vector<1x128xf32>
    %131 = arith.maximumf %129, %130 : vector<1x128xf32>
    %cst_55 = arith.constant 9.99999974E-6 : f32
    %132 = vector.broadcast %cst_55 : f32 to vector<1x128xf32>
    %133 = arith.addf %131, %132 : vector<1x128xf32>
    %134 = math.rsqrt %133 : vector<1x128xf32>
    %135 = arith.mulf %117, %134 : vector<1x128xf32>
    %136 = arith.mulf %125, %135 : vector<1x128xf32>
    %137 = arith.subf %118, %136 : vector<1x128xf32>
    %138 = vector.broadcast %135 : vector<1x128xf32> to vector<512x128xf32>
    %139 = arith.mulf %116, %138 : vector<512x128xf32>
    %140 = vector.broadcast %137 : vector<1x128xf32> to vector<512x128xf32>
    %141 = arith.addf %139, %140 : vector<512x128xf32>
    %142 = arith.addf %112, %141 : vector<512x128xf32>
    %c0_56 = arith.constant 0 : index
    %c0_57 = arith.constant 0 : index
    %143 = vector.load %arg14[%c0_56, %c0_57] : memref<512x128xf32, #tpu.memory_space<vmem>>, vector<512x128xf32>
    tpu.vector_store %arg14[%c0_56, %c0_57], %142 {strides = array<i32>} : memref<512x128xf32, #tpu.memory_space<vmem>>, vector<512x128xf32>,
    return
  }
  func.func @transform_0(%arg0: i32) -> (i32, i32, i32, i32) {
    %c0_i32 = arith.constant 0 : i32
    %c0_i32_0 = arith.constant 0 : i32
    %c0_i32_1 = arith.constant 0 : i32
    %c0_i32_2 = arith.constant 0 : i32
    %c0_i32_3 = arith.constant 0 : i32
    return %c0_i32, %c0_i32_0, %c0_i32_1, %c0_i32_2 : i32, i32, i32, i32
  }
  func.func @transform_1(%arg0: i32) -> (i32, i32) {
    %c0_i32 = arith.constant 0 : i32
    %c0_i32_0 = arith.constant 0 : i32
    %c0_i32_1 = arith.constant 0 : i32
    return %c0_i32, %c0_i32_0 : i32, i32
  }
  func.func @transform_2(%arg0: i32) -> (i32, i32) {
    %c0_i32 = arith.constant 0 : i32
    %c0_i32_0 = arith.constant 0 : i32
    %c0_i32_1 = arith.constant 0 : i32
    return %c0_i32, %c0_i32_0 : i32, i32
  }
  func.func @transform_3(%arg0: i32) -> (i32, i32) {
    %c0_i32 = arith.constant 0 : i32
    %c0_i32_0 = arith.constant 0 : i32
    %c0_i32_1 = arith.constant 0 : i32
    return %c0_i32, %c0_i32_0 : i32, i32
  }
  func.func @transform_4(%arg0: i32) -> (i32, i32) {
    %c0_i32 = arith.constant 0 : i32
    %c0_i32_0 = arith.constant 0 : i32
    %c0_i32_1 = arith.constant 0 : i32
    return %c0_i32, %c0_i32_0 : i32, i32
  }
  func.func @transform_5(%arg0: i32) -> (i32, i32) {
    %c0_i32 = arith.constant 0 : i32
    %c0_i32_0 = arith.constant 0 : i32
    %c0_i32_1 = arith.constant 0 : i32
    return %c0_i32, %c0_i32_0 : i32, i32
  }
  func.func @transform_6(%arg0: i32) -> (i32, i32) {
    %c0_i32 = arith.constant 0 : i32
    %c0_i32_0 = arith.constant 0 : i32
    %c0_i32_1 = arith.constant 0 : i32
    return %c0_i32, %c0_i32_0 : i32, i32
  }
  func.func @transform_7(%arg0: i32) -> (i32, i32) {
    %c0_i32 = arith.constant 0 : i32
    %c0_i32_0 = arith.constant 0 : i32
    %c0_i32_1 = arith.constant 0 : i32
    return %c0_i32, %c0_i32_0 : i32, i32
  }
  func.func @transform_8(%arg0: i32) -> (i32, i32) {
    %c0_i32 = arith.constant 0 : i32
    %c0_i32_0 = arith.constant 0 : i32
    %c0_i32_1 = arith.constant 0 : i32
    return %c0_i32, %c0_i32_0 : i32, i32
  }
  func.func @transform_9(%arg0: i32) -> (i32, i32) {
    %c0_i32 = arith.constant 0 : i32
    %c0_i32_0 = arith.constant 0 : i32
    %c0_i32_1 = arith.constant 0 : i32
    return %c0_i32, %c0_i32_0 : i32, i32
  }
  func.func @transform_10(%arg0: i32) -> (i32, i32) {
    %c0_i32 = arith.constant 0 : i32
    %c0_i32_0 = arith.constant 0 : i32
    %c0_i32_1 = arith.constant 0 : i32
    return %c0_i32, %c0_i32_0 : i32, i32
  }
  func.func @transform_11(%arg0: i32) -> (i32, i32) {
    %c0_i32 = arith.constant 0 : i32
    %c0_i32_0 = arith.constant 0 : i32
    %c0_i32_1 = arith.constant 0 : i32
    return %c0_i32, %c0_i32_0 : i32, i32
  }
  func.func @transform_12(%arg0: i32) -> (i32, i32) {
    %c0_i32 = arith.constant 0 : i32
    %c0_i32_0 = arith.constant 0 : i32
    %c0_i32_1 = arith.constant 0 : i32
    return %c0_i32, %c0_i32_0 : i32, i32
  }
  func.func @transform_13(%arg0: i32) -> (i32, i32) {
    %c0_i32 = arith.constant 0 : i32
    %c0_i32_0 = arith.constant 0 : i32
    %c0_i32_1 = arith.constant 0 : i32
    return %c0_i32, %c0_i32_0 : i32, i32
  }
}

</mosaic_0001>

<llo_original>
// kernel: tpu_custom_call.1
$region0: #{tpu_custom_call.1}
  #allocation0 [shape = 'u32[]', space=smem, size = 0x4, offset = 0x4, fixed_abs, tag = 'smem constant byte address 0x4 - core index']
  #allocation1 [shape = 'u32[72,128]{1,0:T(1,128)}', space=vmem, size = 0x9000, scoped, tag = 'internal scratch']
  %s0 = inlined_call_operand.vmem [shape: bf16[2,18,24,9], index: 0, kind: input, shape index: {}]
  %s1 = inlined_call_operand.vmem [shape: bf16[9,8], index: 1, kind: input, shape index: {}]
  %s2 = inlined_call_operand.vmem [shape: f32[1,8], index: 2, kind: input, shape index: {}]
  %s3 = inlined_call_operand.vmem [shape: f32[1,8], index: 3, kind: input, shape index: {}]
  %s4 = inlined_call_operand.vmem [shape: bf16[72,8], index: 4, kind: input, shape index: {}]
  %s5 = inlined_call_operand.vmem [shape: f32[1,8], index: 5, kind: input, shape index: {}]
  %s6 = inlined_call_operand.vmem [shape: f32[1,8], index: 6, kind: input, shape index: {}]
  %s7 = inlined_call_operand.vmem [shape: bf16[8,128], index: 7, kind: input, shape index: {}]
  %s8 = inlined_call_operand.vmem [shape: f32[1,128], index: 8, kind: input, shape index: {}]
  %s9 = inlined_call_operand.vmem [shape: f32[1,128], index: 9, kind: input, shape index: {}]
  %s10 = inlined_call_operand.vmem [shape: bf16[9,128], index: 10, kind: input, shape index: {}]
  %s11 = inlined_call_operand.vmem [shape: f32[1,128], index: 11, kind: input, shape index: {}]
  %s12 = inlined_call_operand.vmem [shape: f32[1,128], index: 12, kind: input, shape index: {}]
  %s13 = inlined_call_operand.hbm [shape: f32[512,128], index: 13, kind: output, shape index: {}]
  %s14 = sld [smem:[#allocation0]]
  $region62: #{tpu_custom_call.1} parent=0
    _
  %s16 = ssub.s32 1, %s14
  %s17 = scalar_select 0, %s16, %s14
  $region1: #{tpu_custom_call.1} parent=0
    #allocation2 [shape = 'u8[262144]{0}', space=vmem, size = 0x40000, scoped, tag = 'output window, operand 0, single buffered']
    #allocation3 [shape = 's32[1]{0}', space=sflag, size = 0x4, scoped, tag = 'scoped memory for tpu_custom_call.1']
    %18 = vsyncpa [#allocation3], 0
    // Predicated region
    $region2: #{tpu_custom_call.1} parent=1 // pred_check
      _
    $region3: #{tpu_custom_call.1} parent=1 // pred_check_branch
      %20 = sbr.rel (0) target = $region5
    $region4: #{tpu_custom_call.1} parent=1 // pred_region
      _
    $region5: #{tpu_custom_call.1} parent=1 // pred_fallthru
      _
    // Predicated region
    $region6: #{tpu_custom_call.1} parent=1 // pred_check
      _
    $region7: #{tpu_custom_call.1} parent=1 // pred_check_branch
      %22 = sbr.rel (0) target = $region9
    $region8: #{tpu_custom_call.1} parent=1 // pred_region
      _
    $region9: #{tpu_custom_call.1} parent=1 // pred_fallthru
      _
    // Predicated region
    $region10: #{tpu_custom_call.1} parent=1 // pred_check
      _
    $region11: #{tpu_custom_call.1} parent=1 // pred_check_branch
      %24 = sbr.rel (0) target = $region13
    $region12: #{tpu_custom_call.1} parent=1 // pred_region
      _
    $region13: #{tpu_custom_call.1} parent=1 // pred_fallthru
      _
    // Predicated region
    $region14: #{tpu_custom_call.1} parent=1 // pred_check
      _
    $region15: #{tpu_custom_call.1} parent=1 // pred_check_branch
      %26 = sbr.rel (0) target = $region17
    $region16: #{tpu_custom_call.1} parent=1 // pred_region
      _
    $region17: #{tpu_custom_call.1} parent=1 // pred_fallthru
      _
    // Predicated region
    $region18: #{tpu_custom_call.1} parent=1 // pred_check
      _
    $region19: #{tpu_custom_call.1} parent=1 // pred_check_branch
      %28 = sbr.rel (0) target = $region21
    $region20: #{tpu_custom_call.1} parent=1 // pred_region
      _
    $region21: #{tpu_custom_call.1} parent=1 // pred_fallthru
      _
    // Predicated region
    $region22: #{tpu_custom_call.1} parent=1 // pred_check
      _
    $region23: #{tpu_custom_call.1} parent=1 // pred_check_branch
      %30 = sbr.rel (0) target = $region25
    $region24: #{tpu_custom_call.1} parent=1 // pred_region
      _
    $region25: #{tpu_custom_call.1} parent=1 // pred_fallthru
      _
    // Predicated region
    $region26: #{tpu_custom_call.1} parent=1 // pred_check
      _
    $region27: #{tpu_custom_call.1} parent=1 // pred_check_branch
      %32 = sbr.rel (0) target = $region29
    $region28: #{tpu_custom_call.1} parent=1 // pred_region
      _
    $region29: #{tpu_custom_call.1} parent=1 // pred_fallthru
      _
    // Predicated region
    $region30: #{tpu_custom_call.1} parent=1 // pred_check
      _
    $region31: #{tpu_custom_call.1} parent=1 // pred_check_branch
      %34 = sbr.rel (0) target = $region33
    $region32: #{tpu_custom_call.1} parent=1 // pred_region
      _
    $region33: #{tpu_custom_call.1} parent=1 // pred_fallthru
      _
    // Predicated region
    $region34: #{tpu_custom_call.1} parent=1 // pred_check
      _
    $region35: #{tpu_custom_call.1} parent=1 // pred_check_branch
      %36 = sbr.rel (0) target = $region37
    $region36: #{tpu_custom_call.1} parent=1 // pred_region
      _
    $region37: #{tpu_custom_call.1} parent=1 // pred_fallthru
      _
    // Predicated region
    $region38: #{tpu_custom_call.1} parent=1 // pred_check
      _
    $region39: #{tpu_custom_call.1} parent=1 // pred_check_branch
      %38 = sbr.rel (0) target = $region41
    $region40: #{tpu_custom_call.1} parent=1 // pred_region
      _
    $region41: #{tpu_custom_call.1} parent=1 // pred_fallthru
      _
    // Predicated region
    $region42: #{tpu_custom_call.1} parent=1 // pred_check
      _
    $region43: #{tpu_custom_call.1} parent=1 // pred_check_branch
      %40 = sbr.rel (0) target = $region45
    $region44: #{tpu_custom_call.1} parent=1 // pred_region
      _
    $region45: #{tpu_custom_call.1} parent=1 // pred_fallthru
      _
    // Predicated region
    $region46: #{tpu_custom_call.1} parent=1 // pred_check
      _
    $region47: #{tpu_custom_call.1} parent=1 // pred_check_branch
      %42 = sbr.rel (0) target = $region49
    $region48: #{tpu_custom_call.1} parent=1 // pred_region
      _
    $region49: #{tpu_custom_call.1} parent=1 // pred_fallthru
      _
    // Predicated region
    $region50: #{tpu_custom_call.1} parent=1 // pred_check
      _
    $region51: #{tpu_custom_call.1} parent=1 // pred_check_branch
      %44 = sbr.rel (0) target = $region53
    $region52: #{tpu_custom_call.1} parent=1 // pred_region
      _
    $region53: #{tpu_custom_call.1} parent=1 // pred_fallthru
      _
    %v46 = vld [vmem:[%s0] sm:$0xf]
    %v47 = vld [vmem:[%s0 + $0x4] sm:$0xf]
    %v48 = vld [vmem:[%s0 + $0x8] sm:$0xf]
    %v49 = vld [vmem:[%s0 + $0xc] sm:$0xf]
    %v50 = vld [vmem:[%s0 + $0x10] sm:$0xf]
    %v51 = vld [vmem:[%s0 + $0x14] sm:$0xf]
    %v52 = vld [vmem:[%s0 + $0x18] sm:$0xf]
    %v53 = vld [vmem:[%s0 + $0x1c] sm:$0xf]
    %v54 = vld [vmem:[%s0 + $0x20] sm:$0xf]
    %v55 = vld [vmem:[%s0 + $0x24] sm:$0xf]
    %v56 = vld [vmem:[%s0 + $0x28] sm:$0xf]
    %v57 = vld [vmem:[%s0 + $0x2c] sm:$0xf]
    %v58 = vld [vmem:[%s0 + $0x30] sm:$0xf]
    %v59 = vld [vmem:[%s0 + $0x34] sm:$0xf]
    %v60 = vld [vmem:[%s0 + $0x38] sm:$0xf]
    %v61 = vld [vmem:[%s0 + $0x3c] sm:$0xf]
    %v62 = vld [vmem:[%s0 + $0x40] sm:$0xf]
    %v63 = vld [vmem:[%s0 + $0x44] sm:$0xf]
    %v64 = vld [vmem:[%s0 + $0x48] sm:$0xf]
    %v65 = vld [vmem:[%s0 + $0x4c] sm:$0xf]
    %v66 = vld [vmem:[%s0 + $0x50] sm:$0xf]
    %v67 = vld [vmem:[%s0 + $0x54] sm:$0xf]
    %v68 = vld [vmem:[%s0 + $0x58] sm:$0xf]
    %v69 = vld [vmem:[%s0 + $0x5c] sm:$0xf]
    %v70 = vld [vmem:[%s0 + $0x60] sm:$0xf]
    %v71 = vld [vmem:[%s0 + $0x64] sm:$0xf]
    %v72 = vld [vmem:[%s0 + $0x68] sm:$0xf]
    %v73 = vld [vmem:[%s0 + $0x6c] sm:$0xf]
    %v74 = vld [vmem:[%s0 + $0x70] sm:$0xf]
    %v75 = vld [vmem:[%s0 + $0x74] sm:$0xf]
    %v76 = vld [vmem:[%s0 + $0x78] sm:$0xf]
    %v77 = vld [vmem:[%s0 + $0x7c] sm:$0xf]
    %v78 = vld [vmem:[%s0 + $0x80] sm:$0xf]
    %v79 = vld [vmem:[%s0 + $0x84] sm:$0xf]
    %v80 = vld [vmem:[%s0 + $0x88] sm:$0xf]
    %v81 = vld [vmem:[%s0 + $0x8c] sm:$0xf]
    %v82 = vld [vmem:[%s0 + $0x90] sm:$0xf]
    %v83 = vld [vmem:[%s0 + $0x94] sm:$0xf]
    %v84 = vld [vmem:[%s0 + $0x98] sm:$0xf]
    %v85 = vld [vmem:[%s0 + $0x9c] sm:$0xf]
    %v86 = vld [vmem:[%s0 + $0xa0] sm:$0xf]
    %v87 = vld [vmem:[%s0 + $0xa4] sm:$0xf]
    %v88 = vld [vmem:[%s0 + $0xa8] sm:$0xf]
    %v89 = vld [vmem:[%s0 + $0xac] sm:$0xf]
    %v90 = vld [vmem:[%s0 + $0xb0] sm:$0xf]
    %v91 = vld [vmem:[%s0 + $0xb4] sm:$0xf]
    %v92 = vld [vmem:[%s0 + $0xb8] sm:$0xf]
    %v93 = vld [vmem:[%s0 + $0xbc] sm:$0xf]
    %v94 = vld [vmem:[%s0 + $0xc0] sm:$0xf]
    %v95 = vld [vmem:[%s0 + $0xc4] sm:$0xf]
    %v96 = vld [vmem:[%s0 + $0xc8] sm:$0xf]
    %v97 = vld [vmem:[%s0 + $0xcc] sm:$0xf]
    %v98 = vld [vmem:[%s0 + $0xd0] sm:$0xf]
    %v99 = vld [vmem:[%s0 + $0xd4] sm:$0xf]
    %v100 = vld [vmem:[%s0 + $0xd8] sm:$0xf]
    %v101 = vld [vmem:[%s0 + $0xdc] sm:$0xf]
    %v102 = vld [vmem:[%s0 + $0xe0] sm:$0xf]
    %v103 = vld [vmem:[%s0 + $0xe4] sm:$0xf]
    %v104 = vld [vmem:[%s0 + $0xe8] sm:$0xf]
    %v105 = vld [vmem:[%s0 + $0xec] sm:$0xf]
    %v106 = vld [vmem:[%s0 + $0xf0] sm:$0xf]
    %v107 = vld [vmem:[%s0 + $0xf4] sm:$0xf]
    %v108 = vld [vmem:[%s0 + $0xf8] sm:$0xf]
    %v109 = vld [vmem:[%s0 + $0xfc] sm:$0xf]
    %v110 = vld [vmem:[%s0 + $0x100] sm:$0xf]
    %v111 = vld [vmem:[%s0 + $0x104] sm:$0xf]
    %v112 = vld [vmem:[%s0 + $0x108] sm:$0xf]
    %v113 = vld [vmem:[%s0 + $0x10c] sm:$0xf]
    %v114 = vld [vmem:[%s0 + $0x110] sm:$0xf]
    %v115 = vld [vmem:[%s0 + $0x114] sm:$0xf]
    %v116 = vld [vmem:[%s0 + $0x118] sm:$0xf]
    %v117 = vld [vmem:[%s0 + $0x11c] sm:$0xf]
    %v118 = vld [vmem:[%s0 + $0x120] sm:$0xf]
    %v119 = vld [vmem:[%s0 + $0x124] sm:$0xf]
    %v120 = vld [vmem:[%s0 + $0x128] sm:$0xf]
    %v121 = vld [vmem:[%s0 + $0x12c] sm:$0xf]
    %v122 = vld [vmem:[%s0 + $0x130] sm:$0xf]
    %v123 = vld [vmem:[%s0 + $0x134] sm:$0xf]
    %v124 = vld [vmem:[%s0 + $0x138] sm:$0xf]
    %v125 = vld [vmem:[%s0 + $0x13c] sm:$0xf]
    %v126 = vld [vmem:[%s0 + $0x140] sm:$0xf]
    %v127 = vld [vmem:[%s0 + $0x144] sm:$0xf]
    %v128 = vld [vmem:[%s0 + $0x148] sm:$0xf]
    %v129 = vld [vmem:[%s0 + $0x14c] sm:$0xf]
    %v130 = vld [vmem:[%s0 + $0x150] sm:$0xf]
    %v131 = vld [vmem:[%s0 + $0x154] sm:$0xf]
    %v132 = vld [vmem:[%s0 + $0x158] sm:$0xf]
    %v133 = vld [vmem:[%s0 + $0x15c] sm:$0xf]
    %v134 = vld [vmem:[%s0 + $0x160] sm:$0xf]
    %v135 = vld [vmem:[%s0 + $0x164] sm:$0xf]
    %v136 = vld [vmem:[%s0 + $0x168] sm:$0xf]
    %v137 = vld [vmem:[%s0 + $0x16c] sm:$0xf]
    %v138 = vld [vmem:[%s0 + $0x170] sm:$0xf]
    %v139 = vld [vmem:[%s0 + $0x174] sm:$0xf]
    %v140 = vld [vmem:[%s0 + $0x178] sm:$0xf]
    %v141 = vld [vmem:[%s0 + $0x17c] sm:$0xf]
    %v142 = vld [vmem:[%s0 + $0x180] sm:$0xf]
    %v143 = vld [vmem:[%s0 + $0x184] sm:$0xf]
    %v144 = vld [vmem:[%s0 + $0x188] sm:$0xf]
    %v145 = vld [vmem:[%s0 + $0x18c] sm:$0xf]
    %v146 = vld [vmem:[%s0 + $0x190] sm:$0xf]
    %v147 = vld [vmem:[%s0 + $0x194] sm:$0xf]
    %v148 = vld [vmem:[%s0 + $0x198] sm:$0xf]
    %v149 = vld [vmem:[%s0 + $0x19c] sm:$0xf]
    %v150 = vld [vmem:[%s0 + $0x1a0] sm:$0xf]
    %v151 = vld [vmem:[%s0 + $0x1a4] sm:$0xf]
    %v152 = vld [vmem:[%s0 + $0x1a8] sm:$0xf]
    %v153 = vld [vmem:[%s0 + $0x1ac] sm:$0xf]
    %v154 = vunpack.c.l.bf16 %v46
    %v155 = vunpack.c.l.bf16 %v47
    %v156 = vunpack.c.l.bf16 %v48
    %v157 = vunpack.c.l.bf16 %v49
    %v158 = vunpack.c.l.bf16 %v50
    %v159 = vunpack.c.l.bf16 %v51
    %v160 = vunpack.c.l.bf16 %v52
    %v161 = vunpack.c.l.bf16 %v53
    %v162 = vunpack.c.l.bf16 %v54
    %v163 = vunpack.c.l.bf16 %v55
    %v164 = vunpack.c.l.bf16 %v56
    %v165 = vunpack.c.l.bf16 %v57
    %v166 = vunpack.c.l.bf16 %v58
    %v167 = vunpack.c.l.bf16 %v59
    %v168 = vunpack.c.l.bf16 %v60
    %v169 = vunpack.c.l.bf16 %v61
    %v170 = vunpack.c.l.bf16 %v62
    %v171 = vunpack.c.l.bf16 %v63
    %v172 = vunpack.c.l.bf16 %v64
    %v173 = vunpack.c.l.bf16 %v65
    %v174 = vunpack.c.l.bf16 %v66
    %v175 = vunpack.c.l.bf16 %v67
    %v176 = vunpack.c.l.bf16 %v68
    %v177 = vunpack.c.l.bf16 %v69
    %v178 = vunpack.c.l.bf16 %v70
    %v179 = vunpack.c.l.bf16 %v71
    %v180 = vunpack.c.l.bf16 %v72
    %v181 = vunpack.c.l.bf16 %v73
    %v182 = vunpack.c.l.bf16 %v74
    %v183 = vunpack.c.l.bf16 %v75
    %v184 = vunpack.c.l.bf16 %v76
    %v185 = vunpack.c.l.bf16 %v77
    %v186 = vunpack.c.l.bf16 %v78
    %v187 = vunpack.c.l.bf16 %v79
    %v188 = vunpack.c.l.bf16 %v80
    %v189 = vunpack.c.l.bf16 %v81
    %v190 = vunpack.c.l.bf16 %v82
    %v191 = vunpack.c.l.bf16 %v83
    %v192 = vunpack.c.l.bf16 %v84
    %v193 = vunpack.c.l.bf16 %v85
    %v194 = vunpack.c.l.bf16 %v86
    %v195 = vunpack.c.l.bf16 %v87
    %v196 = vunpack.c.l.bf16 %v88
    %v197 = vunpack.c.l.bf16 %v89
    %v198 = vunpack.c.l.bf16 %v90
    %v199 = vunpack.c.l.bf16 %v91
    %v200 = vunpack.c.l.bf16 %v92
    %v201 = vunpack.c.l.bf16 %v93
    %v202 = vunpack.c.l.bf16 %v94
    %v203 = vunpack.c.l.bf16 %v95
    %v204 = vunpack.c.l.bf16 %v96
    %v205 = vunpack.c.l.bf16 %v97
    %v206 = vunpack.c.l.bf16 %v98
    %v207 = vunpack.c.l.bf16 %v99
    %v208 = vunpack.c.l.bf16 %v100
    %v209 = vunpack.c.l.bf16 %v101
    %v210 = vunpack.c.l.bf16 %v102
    %v211 = vunpack.c.l.bf16 %v103
    %v212 = vunpack.c.l.bf16 %v104
    %v213 = vunpack.c.l.bf16 %v105
    %v214 = vunpack.c.l.bf16 %v106
    %v215 = vunpack.c.l.bf16 %v107
    %v216 = vunpack.c.l.bf16 %v108
    %v217 = vunpack.c.l.bf16 %v109
    %v218 = vunpack.c.l.bf16 %v110
    %v219 = vunpack.c.l.bf16 %v111
    %v220 = vunpack.c.l.bf16 %v112
    %v221 = vunpack.c.l.bf16 %v113
    %v222 = vunpack.c.l.bf16 %v114
    %v223 = vunpack.c.l.bf16 %v115
    %v224 = vunpack.c.l.bf16 %v116
    %v225 = vunpack.c.l.bf16 %v117
    %v226 = vunpack.c.l.bf16 %v118
    %v227 = vunpack.c.l.bf16 %v119
    %v228 = vunpack.c.l.bf16 %v120
    %v229 = vunpack.c.l.bf16 %v121
    %v230 = vunpack.c.l.bf16 %v122
    %v231 = vunpack.c.l.bf16 %v123
    %v232 = vunpack.c.l.bf16 %v124
    %v233 = vunpack.c.l.bf16 %v125
    %v234 = vunpack.c.l.bf16 %v126
    %v235 = vunpack.c.l.bf16 %v127
    %v236 = vunpack.c.l.bf16 %v128
    %v237 = vunpack.c.l.bf16 %v129
    %v238 = vunpack.c.l.bf16 %v130
    %v239 = vunpack.c.l.bf16 %v131
    %v240 = vunpack.c.l.bf16 %v132
    %v241 = vunpack.c.l.bf16 %v133
    %v242 = vunpack.c.l.bf16 %v134
    %v243 = vunpack.c.l.bf16 %v135
    %v244 = vunpack.c.l.bf16 %v136
    %v245 = vunpack.c.l.bf16 %v137
    %v246 = vunpack.c.l.bf16 %v138
    %v247 = vunpack.c.l.bf16 %v139
    %v248 = vunpack.c.l.bf16 %v140
    %v249 = vunpack.c.l.bf16 %v141
    %v250 = vunpack.c.l.bf16 %v142
    %v251 = vunpack.c.l.bf16 %v143
    %v252 = vunpack.c.l.bf16 %v144
    %v253 = vunpack.c.l.bf16 %v145
    %v254 = vunpack.c.l.bf16 %v146
    %v255 = vunpack.c.l.bf16 %v147
    %v256 = vunpack.c.l.bf16 %v148
    %v257 = vunpack.c.l.bf16 %v149
    %v258 = vunpack.c.l.bf16 %v150
    %v259 = vunpack.c.l.bf16 %v151
    %v260 = vunpack.c.l.bf16 %v152
    %v261 = vunpack.c.l.bf16 %v153
    %v262 = vld [vmem:[%s1] sm:$0xf]
    %v263 = vld [vmem:[%s1 + $0x4] sm:$0x1]
    %v372 = vunpack.c.l.b16 %v46
    %v373 = vunpack.c.l.b16 %v47
    %v374 = vunpack.c.l.b16 %v48
    %v375 = vunpack.c.l.b16 %v49
    %v376 = vunpack.c.l.b16 %v50
    %v377 = vunpack.c.l.b16 %v51
    %v378 = vunpack.c.l.b16 %v52
    %v379 = vunpack.c.l.b16 %v53
    %v380 = vunpack.c.l.b16 %v54
    %v381 = vunpack.c.l.b16 %v55
    %v382 = vunpack.c.l.b16 %v56
    %v383 = vunpack.c.l.b16 %v57
    %v384 = vunpack.c.l.b16 %v58
    %v385 = vunpack.c.l.b16 %v59
    %v386 = vunpack.c.l.b16 %v60
    %v387 = vunpack.c.l.b16 %v61
    %v388 = vunpack.c.l.b16 %v62
    %v389 = vunpack.c.l.b16 %v63
    %v390 = vunpack.c.l.b16 %v64
    %v391 = vunpack.c.l.b16 %v65
    %v392 = vunpack.c.l.b16 %v66
    %v393 = vunpack.c.l.b16 %v67
    %v394 = vunpack.c.l.b16 %v68
    %v395 = vunpack.c.l.b16 %v69
    %v396 = vunpack.c.l.b16 %v70
    %v397 = vunpack.c.l.b16 %v71
    %v398 = vunpack.c.l.b16 %v72
    %v399 = vunpack.c.l.b16 %v73
    %v400 = vunpack.c.l.b16 %v74
    %v401 = vunpack.c.l.b16 %v75
    %v402 = vunpack.c.l.b16 %v76
    %v403 = vunpack.c.l.b16 %v77
    %v404 = vunpack.c.l.b16 %v78
    %v405 = vunpack.c.l.b16 %v79
    %v406 = vunpack.c.l.b16 %v80
    %v407 = vunpack.c.l.b16 %v81
    %v408 = vunpack.c.l.b16 %v82
    %v409 = vunpack.c.l.b16 %v83
    %v410 = vunpack.c.l.b16 %v84
    %v411 = vunpack.c.l.b16 %v85
    %v412 = vunpack.c.l.b16 %v86
    %v413 = vunpack.c.l.b16 %v87
    %v414 = vunpack.c.l.b16 %v88
    %v415 = vunpack.c.l.b16 %v89
    %v416 = vunpack.c.l.b16 %v90
    %v417 = vunpack.c.l.b16 %v91
    %v418 = vunpack.c.l.b16 %v92
    %v419 = vunpack.c.l.b16 %v93
    %v420 = vunpack.c.l.b16 %v94
    %v421 = vunpack.c.l.b16 %v95
    %v422 = vunpack.c.l.b16 %v96
    %v423 = vunpack.c.l.b16 %v97
    %v424 = vunpack.c.l.b16 %v98
    %v425 = vunpack.c.l.b16 %v99
    %v426 = vunpack.c.l.b16 %v100
    %v427 = vunpack.c.l.b16 %v101
    %v428 = vunpack.c.l.b16 %v102
    %v429 = vunpack.c.l.b16 %v103
    %v430 = vunpack.c.l.b16 %v104
    %v431 = vunpack.c.l.b16 %v105
    %v432 = vunpack.c.l.b16 %v106
    %v433 = vunpack.c.l.b16 %v107
    %v434 = vunpack.c.l.b16 %v108
    %v435 = vunpack.c.l.b16 %v109
    %v436 = vunpack.c.l.b16 %v110
    %v437 = vunpack.c.l.b16 %v111
    %v438 = vunpack.c.l.b16 %v112
    %v439 = vunpack.c.l.b16 %v113
    %v440 = vunpack.c.l.b16 %v114
    %v441 = vunpack.c.l.b16 %v115
    %v442 = vunpack.c.l.b16 %v116
    %v443 = vunpack.c.l.b16 %v117
    %v444 = vunpack.c.l.b16 %v118
    %v445 = vunpack.c.l.b16 %v119
    %v446 = vunpack.c.l.b16 %v120
    %v447 = vunpack.c.l.b16 %v121
    %v448 = vunpack.c.l.b16 %v122
    %v449 = vunpack.c.l.b16 %v123
    %v450 = vunpack.c.l.b16 %v124
    %v451 = vunpack.c.l.b16 %v125
    %v452 = vunpack.c.l.b16 %v126
    %v453 = vunpack.c.l.b16 %v127
    %v454 = vunpack.c.l.b16 %v128
    %v455 = vunpack.c.l.b16 %v129
    %v456 = vunpack.c.l.b16 %v130
    %v457 = vunpack.c.l.b16 %v131
    %v458 = vunpack.c.l.b16 %v132
    %v459 = vunpack.c.l.b16 %v133
    %v460 = vunpack.c.l.b16 %v134
    %v461 = vunpack.c.l.b16 %v135
    %v462 = vunpack.c.l.b16 %v136
    %v463 = vunpack.c.l.b16 %v137
    %v464 = vunpack.c.l.b16 %v138
    %v465 = vunpack.c.l.b16 %v139
    %v466 = vunpack.c.l.b16 %v140
    %v467 = vunpack.c.l.b16 %v141
    %v468 = vunpack.c.l.b16 %v142
    %v469 = vunpack.c.l.b16 %v143
    %v470 = vunpack.c.l.b16 %v144
    %v471 = vunpack.c.l.b16 %v145
    %v472 = vunpack.c.l.b16 %v146
    %v473 = vunpack.c.l.b16 %v147
    %v474 = vunpack.c.l.b16 %v148
    %v475 = vunpack.c.l.b16 %v149
    %v476 = vunpack.c.l.b16 %v150
    %v477 = vunpack.c.l.b16 %v151
    %v478 = vunpack.c.l.b16 %v152
    %v479 = vunpack.c.l.b16 %v153
    %v480 = vpack.c.b16 %v373, %v372
    %v481 = vpack.c.b16 %v375, %v374
    %v482 = vpack.c.b16 %v377, %v376
    %v483 = vpack.c.b16 %v379, %v378
    %v484 = vpack.c.b16 %v381, %v380
    %v485 = vpack.c.b16 %v383, %v382
    %v486 = vpack.c.b16 %v385, %v384
    %v487 = vpack.c.b16 %v387, %v386
    %v488 = vpack.c.b16 %v389, %v388
    %v489 = vpack.c.b16 %v391, %v390
    %v490 = vpack.c.b16 %v393, %v392
    %v491 = vpack.c.b16 %v395, %v394
    %v492 = vpack.c.b16 %v397, %v396
    %v493 = vpack.c.b16 %v399, %v398
    %v494 = vpack.c.b16 %v401, %v400
    %v495 = vpack.c.b16 %v403, %v402
    %v496 = vpack.c.b16 %v405, %v404
    %v497 = vpack.c.b16 %v407, %v406
    %v498 = vpack.c.b16 %v409, %v408
    %v499 = vpack.c.b16 %v411, %v410
    %v500 = vpack.c.b16 %v413, %v412
    %v501 = vpack.c.b16 %v415, %v414
    %v502 = vpack.c.b16 %v417, %v416
    %v503 = vpack.c.b16 %v419, %v418
    %v504 = vpack.c.b16 %v421, %v420
    %v505 = vpack.c.b16 %v423, %v422
    %v506 = vpack.c.b16 %v425, %v424
    %v507 = vpack.c.b16 %v427, %v426
    %v508 = vpack.c.b16 %v429, %v428
    %v509 = vpack.c.b16 %v431, %v430
    %v510 = vpack.c.b16 %v433, %v432
    %v511 = vpack.c.b16 %v435, %v434
    %v512 = vpack.c.b16 %v437, %v436
    %v513 = vpack.c.b16 %v439, %v438
    %v514 = vpack.c.b16 %v441, %v440
    %v515 = vpack.c.b16 %v443, %v442
    %v516 = vpack.c.b16 %v445, %v444
    %v517 = vpack.c.b16 %v447, %v446
    %v518 = vpack.c.b16 %v449, %v448
    %v519 = vpack.c.b16 %v451, %v450
    %v520 = vpack.c.b16 %v453, %v452
    %v521 = vpack.c.b16 %v455, %v454
    %v522 = vpack.c.b16 %v457, %v456
    %v523 = vpack.c.b16 %v459, %v458
    %v524 = vpack.c.b16 %v461, %v460
    %v525 = vpack.c.b16 %v463, %v462
    %v526 = vpack.c.b16 %v465, %v464
    %v527 = vpack.c.b16 %v467, %v466
    %v528 = vpack.c.b16 %v469, %v468
    %v529 = vpack.c.b16 %v471, %v470
    %v530 = vpack.c.b16 %v473, %v472
    %v531 = vpack.c.b16 %v475, %v474
    %v532 = vpack.c.b16 %v477, %v476
    %v533 = vpack.c.b16 %v479, %v478
    %v536 = vunpack.c.l.b16 %v262
    %v537 = vunpack.c.l.b16 %v263
    %v538 = vpack.c.b16 %v537, %v536
    %vm539 = vcmask 72704
    %v541 = vsel %vm539, %v480, 0
    %v544 = vsel %vm539, %v481, 0
    %v547 = vsel %vm539, %v482, 0
    %v550 = vsel %vm539, %v483, 0
    %v553 = vsel %vm539, %v484, 0
    %v556 = vsel %vm539, %v485, 0
    %v559 = vsel %vm539, %v486, 0
    %v562 = vsel %vm539, %v487, 0
    %v565 = vsel %vm539, %v488, 0
    %v568 = vsel %vm539, %v489, 0
    %v571 = vsel %vm539, %v490, 0
    %v574 = vsel %vm539, %v491, 0
    %v577 = vsel %vm539, %v492, 0
    %v580 = vsel %vm539, %v493, 0
    %v583 = vsel %vm539, %v494, 0
    %v586 = vsel %vm539, %v495, 0
    %v589 = vsel %vm539, %v496, 0
    %v592 = vsel %vm539, %v497, 0
    %v595 = vsel %vm539, %v498, 0
    %v598 = vsel %vm539, %v499, 0
    %v601 = vsel %vm539, %v500, 0
    %v604 = vsel %vm539, %v501, 0
    %v607 = vsel %vm539, %v502, 0
    %v610 = vsel %vm539, %v503, 0
    %v613 = vsel %vm539, %v504, 0
    %v616 = vsel %vm539, %v505, 0
    %v619 = vsel %vm539, %v506, 0
    %v622 = vsel %vm539, %v507, 0
    %v625 = vsel %vm539, %v508, 0
    %v628 = vsel %vm539, %v509, 0
    %v631 = vsel %vm539, %v510, 0
    %v634 = vsel %vm539, %v511, 0
    %v637 = vsel %vm539, %v512, 0
    %v640 = vsel %vm539, %v513, 0
    %v643 = vsel %vm539, %v514, 0
    %v646 = vsel %vm539, %v515, 0
    %v649 = vsel %vm539, %v516, 0
    %v652 = vsel %vm539, %v517, 0
    %v655 = vsel %vm539, %v518, 0
    %v658 = vsel %vm539, %v519, 0
    %v661 = vsel %vm539, %v520, 0
    %v664 = vsel %vm539, %v521, 0
    %v667 = vsel %vm539, %v522, 0
    %v670 = vsel %vm539, %v523, 0
    %v673 = vsel %vm539, %v524, 0
    %v676 = vsel %vm539, %v525, 0
    %v679 = vsel %vm539, %v526, 0
    %v682 = vsel %vm539, %v527, 0
    %v685 = vsel %vm539, %v528, 0
    %v688 = vsel %vm539, %v529, 0
    %v691 = vsel %vm539, %v530, 0
    %v694 = vsel %vm539, %v531, 0
    %v697 = vsel %vm539, %v532, 0
    %v700 = vsel %vm539, %v533, 0
    %vm702 = vcmask 1043456
    %vm703 = vcmask 1044480
    %v704 = vsel %vm702, 4294967295, 65535
    %v705 = vsel %vm703, %v704, 0
    %v707 = vand.u32 %v538, %v705
    %709 = vmatpush.bf16.msra.mxu0 0
    %710 = vmatpush.bf16.msra.mxu0 0
    %711 = vmatpush.bf16.msra.mxu0 0
    %712 = vmatpush.bf16.msra.mxu0 0
    %713 = vmatpush.bf16.msra.mxu0 0
    %714 = vmatpush.bf16.msra.mxu0 0
    %715 = vmatpush.bf16.msra.mxu0 0
    %716 = vmatpush.bf16.msra.mxu0 %v707
    %717 = vmatmul.bf16.gmra.mxu0 %v541
    %v718 = vpop.f32.mrf.mxu0
    %v719 = vadd.f32 0.0, %v718
    %v720 = vpop.f32.mrf.mxu0
    %v721 = vadd.f32 0.0, %v720
    %722 = vmatmul.bf16.gmra.mxu0 %v544
    %v723 = vpop.f32.mrf.mxu0
    %v724 = vadd.f32 0.0, %v723
    %v725 = vpop.f32.mrf.mxu0
    %v726 = vadd.f32 0.0, %v725
    %727 = vmatmul.bf16.gmra.mxu0 %v547
    %v728 = vpop.f32.mrf.mxu0
    %v729 = vadd.f32 0.0, %v728
    %v730 = vpop.f32.mrf.mxu0
    %v731 = vadd.f32 0.0, %v730
    %732 = vmatmul.bf16.gmra.mxu0 %v550
    %v733 = vpop.f32.mrf.mxu0
    %v734 = vadd.f32 0.0, %v733
    %v735 = vpop.f32.mrf.mxu0
    %v736 = vadd.f32 0.0, %v735
    %737 = vmatmul.bf16.gmra.mxu0 %v553
    %v738 = vpop.f32.mrf.mxu0
    %v739 = vadd.f32 0.0, %v738
    %v740 = vpop.f32.mrf.mxu0
    %v741 = vadd.f32 0.0, %v740
    %742 = vmatmul.bf16.gmra.mxu0 %v556
    %v743 = vpop.f32.mrf.mxu0
    %v744 = vadd.f32 0.0, %v743
    %v745 = vpop.f32.mrf.mxu0
    %v746 = vadd.f32 0.0, %v745
    %747 = vmatmul.bf16.gmra.mxu0 %v559
    %v748 = vpop.f32.mrf.mxu0
    %v749 = vadd.f32 0.0, %v748
    %v750 = vpop.f32.mrf.mxu0
    %v751 = vadd.f32 0.0, %v750
    %752 = vmatmul.bf16.gmra.mxu0 %v562
    %v753 = vpop.f32.mrf.mxu0
    %v754 = vadd.f32 0.0, %v753
    %v755 = vpop.f32.mrf.mxu0
    %v756 = vadd.f32 0.0, %v755
    %757 = vmatmul.bf16.gmra.mxu0 %v565
    %v758 = vpop.f32.mrf.mxu0
    %v759 = vadd.f32 0.0, %v758
    %v760 = vpop.f32.mrf.mxu0
    %v761 = vadd.f32 0.0, %v760
    %762 = vmatmul.bf16.gmra.mxu0 %v568
    %v763 = vpop.f32.mrf.mxu0
    %v764 = vadd.f32 0.0, %v763
    %v765 = vpop.f32.mrf.mxu0
    %v766 = vadd.f32 0.0, %v765
    %767 = vmatmul.bf16.gmra.mxu0 %v571
    %v768 = vpop.f32.mrf.mxu0
    %v769 = vadd.f32 0.0, %v768
    %v770 = vpop.f32.mrf.mxu0
    %v771 = vadd.f32 0.0, %v770
    %772 = vmatmul.bf16.gmra.mxu0 %v574
    %v773 = vpop.f32.mrf.mxu0
    %v774 = vadd.f32 0.0, %v773
    %v775 = vpop.f32.mrf.mxu0
    %v776 = vadd.f32 0.0, %v775
    %777 = vmatmul.bf16.gmra.mxu0 %v577
    %v778 = vpop.f32.mrf.mxu0
    %v779 = vadd.f32 0.0, %v778
    %v780 = vpop.f32.mrf.mxu0
    %v781 = vadd.f32 0.0, %v780
    %782 = vmatmul.bf16.gmra.mxu0 %v580
    %v783 = vpop.f32.mrf.mxu0
    %v784 = vadd.f32 0.0, %v783
    %v785 = vpop.f32.mrf.mxu0
    %v786 = vadd.f32 0.0, %v785
    %787 = vmatmul.bf16.gmra.mxu0 %v583
    %v788 = vpop.f32.mrf.mxu0
    %v789 = vadd.f32 0.0, %v788
    %v790 = vpop.f32.mrf.mxu0
    %v791 = vadd.f32 0.0, %v790
    %792 = vmatmul.bf16.gmra.mxu0 %v586
    %v793 = vpop.f32.mrf.mxu0
    %v794 = vadd.f32 0.0, %v793
    %v795 = vpop.f32.mrf.mxu0
    %v796 = vadd.f32 0.0, %v795
    %797 = vmatmul.bf16.gmra.mxu0 %v589
    %v798 = vpop.f32.mrf.mxu0
    %v799 = vadd.f32 0.0, %v798
    %v800 = vpop.f32.mrf.mxu0
    %v801 = vadd.f32 0.0, %v800
    %802 = vmatmul.bf16.gmra.mxu0 %v592
    %v803 = vpop.f32.mrf.mxu0
    %v804 = vadd.f32 0.0, %v803
    %v805 = vpop.f32.mrf.mxu0
    %v806 = vadd.f32 0.0, %v805
    %807 = vmatmul.bf16.gmra.mxu0 %v595
    %v808 = vpop.f32.mrf.mxu0
    %v809 = vadd.f32 0.0, %v808
    %v810 = vpop.f32.mrf.mxu0
    %v811 = vadd.f32 0.0, %v810
    %812 = vmatmul.bf16.gmra.mxu0 %v598
    %v813 = vpop.f32.mrf.mxu0
    %v814 = vadd.f32 0.0, %v813
    %v815 = vpop.f32.mrf.mxu0
    %v816 = vadd.f32 0.0, %v815
    %817 = vmatmul.bf16.gmra.mxu0 %v601
    %v818 = vpop.f32.mrf.mxu0
    %v819 = vadd.f32 0.0, %v818
    %v820 = vpop.f32.mrf.mxu0
    %v821 = vadd.f32 0.0, %v820
    %822 = vmatmul.bf16.gmra.mxu0 %v604
    %v823 = vpop.f32.mrf.mxu0
    %v824 = vadd.f32 0.0, %v823
    %v825 = vpop.f32.mrf.mxu0
    %v826 = vadd.f32 0.0, %v825
    %827 = vmatmul.bf16.gmra.mxu0 %v607
    %v828 = vpop.f32.mrf.mxu0
    %v829 = vadd.f32 0.0, %v828
    %v830 = vpop.f32.mrf.mxu0
    %v831 = vadd.f32 0.0, %v830
    %832 = vmatmul.bf16.gmra.mxu0 %v610
    %v833 = vpop.f32.mrf.mxu0
    %v834 = vadd.f32 0.0, %v833
    %v835 = vpop.f32.mrf.mxu0
    %v836 = vadd.f32 0.0, %v835
    %837 = vmatmul.bf16.gmra.mxu0 %v613
    %v838 = vpop.f32.mrf.mxu0
    %v839 = vadd.f32 0.0, %v838
    %v840 = vpop.f32.mrf.mxu0
    %v841 = vadd.f32 0.0, %v840
    %842 = vmatmul.bf16.gmra.mxu0 %v616
    %v843 = vpop.f32.mrf.mxu0
    %v844 = vadd.f32 0.0, %v843
    %v845 = vpop.f32.mrf.mxu0
    %v846 = vadd.f32 0.0, %v845
    %847 = vmatmul.bf16.gmra.mxu0 %v619
    %v848 = vpop.f32.mrf.mxu0
    %v849 = vadd.f32 0.0, %v848
    %v850 = vpop.f32.mrf.mxu0
    %v851 = vadd.f32 0.0, %v850
    %852 = vmatmul.bf16.gmra.mxu0 %v622
    %v853 = vpop.f32.mrf.mxu0
    %v854 = vadd.f32 0.0, %v853
    %v855 = vpop.f32.mrf.mxu0
    %v856 = vadd.f32 0.0, %v855
    %857 = vmatmul.bf16.gmra.mxu0 %v625
    %v858 = vpop.f32.mrf.mxu0
    %v859 = vadd.f32 0.0, %v858
    %v860 = vpop.f32.mrf.mxu0
    %v861 = vadd.f32 0.0, %v860
    %862 = vmatmul.bf16.gmra.mxu0 %v628
    %v863 = vpop.f32.mrf.mxu0
    %v864 = vadd.f32 0.0, %v863
    %v865 = vpop.f32.mrf.mxu0
    %v866 = vadd.f32 0.0, %v865
    %867 = vmatmul.bf16.gmra.mxu0 %v631
    %v868 = vpop.f32.mrf.mxu0
    %v869 = vadd.f32 0.0, %v868
    %v870 = vpop.f32.mrf.mxu0
    %v871 = vadd.f32 0.0, %v870
    %872 = vmatmul.bf16.gmra.mxu0 %v634
    %v873 = vpop.f32.mrf.mxu0
    %v874 = vadd.f32 0.0, %v873
    %v875 = vpop.f32.mrf.mxu0
    %v876 = vadd.f32 0.0, %v875
    %877 = vmatmul.bf16.gmra.mxu0 %v637
    %v878 = vpop.f32.mrf.mxu0
    %v879 = vadd.f32 0.0, %v878
    %v880 = vpop.f32.mrf.mxu0
    %v881 = vadd.f32 0.0, %v880
    %882 = vmatmul.bf16.gmra.mxu0 %v640
    %v883 = vpop.f32.mrf.mxu0
    %v884 = vadd.f32 0.0, %v883
    %v885 = vpop.f32.mrf.mxu0
    %v886 = vadd.f32 0.0, %v885
    %887 = vmatmul.bf16.gmra.mxu0 %v643
    %v888 = vpop.f32.mrf.mxu0
    %v889 = vadd.f32 0.0, %v888
    %v890 = vpop.f32.mrf.mxu0
    %v891 = vadd.f32 0.0, %v890
    %892 = vmatmul.bf16.gmra.mxu0 %v646
    %v893 = vpop.f32.mrf.mxu0
    %v894 = vadd.f32 0.0, %v893
    %v895 = vpop.f32.mrf.mxu0
    %v896 = vadd.f32 0.0, %v895
    %897 = vmatmul.bf16.gmra.mxu0 %v649
    %v898 = vpop.f32.mrf.mxu0
    %v899 = vadd.f32 0.0, %v898
    %v900 = vpop.f32.mrf.mxu0
    %v901 = vadd.f32 0.0, %v900
    %902 = vmatmul.bf16.gmra.mxu0 %v652
    %v903 = vpop.f32.mrf.mxu0
    %v904 = vadd.f32 0.0, %v903
    %v905 = vpop.f32.mrf.mxu0
    %v906 = vadd.f32 0.0, %v905
    %907 = vmatmul.bf16.gmra.mxu0 %v655
    %v908 = vpop.f32.mrf.mxu0
    %v909 = vadd.f32 0.0, %v908
    %v910 = vpop.f32.mrf.mxu0
    %v911 = vadd.f32 0.0, %v910
    %912 = vmatmul.bf16.gmra.mxu0 %v658
    %v913 = vpop.f32.mrf.mxu0
    %v914 = vadd.f32 0.0, %v913
    %v915 = vpop.f32.mrf.mxu0
    %v916 = vadd.f32 0.0, %v915
    %917 = vmatmul.bf16.gmra.mxu0 %v661
    %v918 = vpop.f32.mrf.mxu0
    %v919 = vadd.f32 0.0, %v918
    %v920 = vpop.f32.mrf.mxu0
    %v921 = vadd.f32 0.0, %v920
    %922 = vmatmul.bf16.gmra.mxu0 %v664
    %v923 = vpop.f32.mrf.mxu0
    %v924 = vadd.f32 0.0, %v923
    %v925 = vpop.f32.mrf.mxu0
    %v926 = vadd.f32 0.0, %v925
    %927 = vmatmul.bf16.gmra.mxu0 %v667
    %v928 = vpop.f32.mrf.mxu0
    %v929 = vadd.f32 0.0, %v928
    %v930 = vpop.f32.mrf.mxu0
    %v931 = vadd.f32 0.0, %v930
    %932 = vmatmul.bf16.gmra.mxu0 %v670
    %v933 = vpop.f32.mrf.mxu0
    %v934 = vadd.f32 0.0, %v933
    %v935 = vpop.f32.mrf.mxu0
    %v936 = vadd.f32 0.0, %v935
    %937 = vmatmul.bf16.gmra.mxu0 %v673
    %v938 = vpop.f32.mrf.mxu0
    %v939 = vadd.f32 0.0, %v938
    %v940 = vpop.f32.mrf.mxu0
    %v941 = vadd.f32 0.0, %v940
    %942 = vmatmul.bf16.gmra.mxu0 %v676
    %v943 = vpop.f32.mrf.mxu0
    %v944 = vadd.f32 0.0, %v943
    %v945 = vpop.f32.mrf.mxu0
    %v946 = vadd.f32 0.0, %v945
    %947 = vmatmul.bf16.gmra.mxu0 %v679
    %v948 = vpop.f32.mrf.mxu0
    %v949 = vadd.f32 0.0, %v948
    %v950 = vpop.f32.mrf.mxu0
    %v951 = vadd.f32 0.0, %v950
    %952 = vmatmul.bf16.gmra.mxu0 %v682
    %v953 = vpop.f32.mrf.mxu0
    %v954 = vadd.f32 0.0, %v953
    %v955 = vpop.f32.mrf.mxu0
    %v956 = vadd.f32 0.0, %v955
    %957 = vmatmul.bf16.gmra.mxu0 %v685
    %v958 = vpop.f32.mrf.mxu0
    %v959 = vadd.f32 0.0, %v958
    %v960 = vpop.f32.mrf.mxu0
    %v961 = vadd.f32 0.0, %v960
    %962 = vmatmul.bf16.gmra.mxu0 %v688
    %v963 = vpop.f32.mrf.mxu0
    %v964 = vadd.f32 0.0, %v963
    %v965 = vpop.f32.mrf.mxu0
    %v966 = vadd.f32 0.0, %v965
    %967 = vmatmul.bf16.gmra.mxu0 %v691
    %v968 = vpop.f32.mrf.mxu0
    %v969 = vadd.f32 0.0, %v968
    %v970 = vpop.f32.mrf.mxu0
    %v971 = vadd.f32 0.0, %v970
    %972 = vmatmul.bf16.gmra.mxu0 %v694
    %v973 = vpop.f32.mrf.mxu0
    %v974 = vadd.f32 0.0, %v973
    %v975 = vpop.f32.mrf.mxu0
    %v976 = vadd.f32 0.0, %v975
    %977 = vmatmul.bf16.gmra.mxu0 %v697
    %v978 = vpop.f32.mrf.mxu0
    %v979 = vadd.f32 0.0, %v978
    %v980 = vpop.f32.mrf.mxu0
    %v981 = vadd.f32 0.0, %v980
    %982 = vmatmul.bf16.gmra.mxu0 %v700
    %v983 = vpop.f32.mrf.mxu0
    %v984 = vadd.f32 0.0, %v983
    %v985 = vpop.f32.mrf.mxu0
    %v986 = vadd.f32 0.0, %v985
    %987 = vdwg.mxu0
    %vm988 = vcmask 64512
    %v989 = vsel %vm988, %v719, 0.0
    %v990 = vsel %vm988, %v721, 0.0
    %v991 = vadd.f32 %v989, %v990
    %v992 = vsel %vm988, %v724, 0.0
    %v993 = vadd.f32 %v991, %v992
    %v994 = vsel %vm988, %v726, 0.0
    %v995 = vadd.f32 %v993, %v994
    %v996 = vsel %vm988, %v729, 0.0
    %v997 = vadd.f32 %v995, %v996
    %v998 = vsel %vm988, %v731, 0.0
    %v999 = vadd.f32 %v997, %v998
    %v1000 = vsel %vm988, %v734, 0.0
    %v1001 = vadd.f32 %v999, %v1000
    %v1002 = vsel %vm988, %v736, 0.0
    %v1003 = vadd.f32 %v1001, %v1002
    %v1004 = vsel %vm988, %v739, 0.0
    %v1005 = vadd.f32 %v1003, %v1004
    %v1006 = vsel %vm988, %v741, 0.0
    %v1007 = vadd.f32 %v1005, %v1006
    %v1008 = vsel %vm988, %v744, 0.0
    %v1009 = vadd.f32 %v1007, %v1008
    %v1010 = vsel %vm988, %v746, 0.0
    %v1011 = vadd.f32 %v1009, %v1010
    %v1012 = vsel %vm988, %v749, 0.0
    %v1013 = vadd.f32 %v1011, %v1012
    %v1014 = vsel %vm988, %v751, 0.0
    %v1015 = vadd.f32 %v1013, %v1014
    %v1016 = vsel %vm988, %v754, 0.0
    %v1017 = vadd.f32 %v1015, %v1016
    %v1018 = vsel %vm988, %v756, 0.0
    %v1019 = vadd.f32 %v1017, %v1018
    %v1020 = vsel %vm988, %v759, 0.0
    %v1021 = vadd.f32 %v1019, %v1020
    %v1022 = vsel %vm988, %v761, 0.0
    %v1023 = vadd.f32 %v1021, %v1022
    %v1024 = vsel %vm988, %v764, 0.0
    %v1025 = vadd.f32 %v1023, %v1024
    %v1026 = vsel %vm988, %v766, 0.0
    %v1027 = vadd.f32 %v1025, %v1026
    %v1028 = vsel %vm988, %v769, 0.0
    %v1029 = vadd.f32 %v1027, %v1028
    %v1030 = vsel %vm988, %v771, 0.0
    %v1031 = vadd.f32 %v1029, %v1030
    %v1032 = vsel %vm988, %v774, 0.0
    %v1033 = vadd.f32 %v1031, %v1032
    %v1034 = vsel %vm988, %v776, 0.0
    %v1035 = vadd.f32 %v1033, %v1034
    %v1036 = vsel %vm988, %v779, 0.0
    %v1037 = vadd.f32 %v1035, %v1036
    %v1038 = vsel %vm988, %v781, 0.0
    %v1039 = vadd.f32 %v1037, %v1038
    %v1040 = vsel %vm988, %v784, 0.0
    %v1041 = vadd.f32 %v1039, %v1040
    %v1042 = vsel %vm988, %v786, 0.0
    %v1043 = vadd.f32 %v1041, %v1042
    %v1044 = vsel %vm988, %v789, 0.0
    %v1045 = vadd.f32 %v1043, %v1044
    %v1046 = vsel %vm988, %v791, 0.0
    %v1047 = vadd.f32 %v1045, %v1046
    %v1048 = vsel %vm988, %v794, 0.0
    %v1049 = vadd.f32 %v1047, %v1048
    %v1050 = vsel %vm988, %v796, 0.0
    %v1051 = vadd.f32 %v1049, %v1050
    %v1052 = vsel %vm988, %v799, 0.0
    %v1053 = vadd.f32 %v1051, %v1052
    %v1054 = vsel %vm988, %v801, 0.0
    %v1055 = vadd.f32 %v1053, %v1054
    %v1056 = vsel %vm988, %v804, 0.0
    %v1057 = vadd.f32 %v1055, %v1056
    %v1058 = vsel %vm988, %v806, 0.0
    %v1059 = vadd.f32 %v1057, %v1058
    %v1060 = vsel %vm988, %v809, 0.0
    %v1061 = vadd.f32 %v1059, %v1060
    %v1062 = vsel %vm988, %v811, 0.0
    %v1063 = vadd.f32 %v1061, %v1062
    %v1064 = vsel %vm988, %v814, 0.0
    %v1065 = vadd.f32 %v1063, %v1064
    %v1066 = vsel %vm988, %v816, 0.0
    %v1067 = vadd.f32 %v1065, %v1066
    %v1068 = vsel %vm988, %v819, 0.0
    %v1069 = vadd.f32 %v1067, %v1068
    %v1070 = vsel %vm988, %v821, 0.0
    %v1071 = vadd.f32 %v1069, %v1070
    %v1072 = vsel %vm988, %v824, 0.0
    %v1073 = vadd.f32 %v1071, %v1072
    %v1074 = vsel %vm988, %v826, 0.0
    %v1075 = vadd.f32 %v1073, %v1074
    %v1076 = vsel %vm988, %v829, 0.0
    %v1077 = vadd.f32 %v1075, %v1076
    %v1078 = vsel %vm988, %v831, 0.0
    %v1079 = vadd.f32 %v1077, %v1078
    %v1080 = vsel %vm988, %v834, 0.0
    %v1081 = vadd.f32 %v1079, %v1080
    %v1082 = vsel %vm988, %v836, 0.0
    %v1083 = vadd.f32 %v1081, %v1082
    %v1084 = vsel %vm988, %v839, 0.0
    %v1085 = vadd.f32 %v1083, %v1084
    %v1086 = vsel %vm988, %v841, 0.0
    %v1087 = vadd.f32 %v1085, %v1086
    %v1088 = vsel %vm988, %v844, 0.0
    %v1089 = vadd.f32 %v1087, %v1088
    %v1090 = vsel %vm988, %v846, 0.0
    %v1091 = vadd.f32 %v1089, %v1090
    %v1092 = vsel %vm988, %v849, 0.0
    %v1093 = vadd.f32 %v1091, %v1092
    %v1094 = vsel %vm988, %v851, 0.0
    %v1095 = vadd.f32 %v1093, %v1094
    %v1096 = vsel %vm988, %v854, 0.0
    %v1097 = vadd.f32 %v1095, %v1096
    %v1098 = vsel %vm988, %v856, 0.0
    %v1099 = vadd.f32 %v1097, %v1098
    %v1100 = vsel %vm988, %v859, 0.0
    %v1101 = vadd.f32 %v1099, %v1100
    %v1102 = vsel %vm988, %v861, 0.0
    %v1103 = vadd.f32 %v1101, %v1102
    %v1104 = vsel %vm988, %v864, 0.0
    %v1105 = vadd.f32 %v1103, %v1104
    %v1106 = vsel %vm988, %v866, 0.0
    %v1107 = vadd.f32 %v1105, %v1106
    %v1108 = vsel %vm988, %v869, 0.0
    %v1109 = vadd.f32 %v1107, %v1108
    %v1110 = vsel %vm988, %v871, 0.0
    %v1111 = vadd.f32 %v1109, %v1110
    %v1112 = vsel %vm988, %v874, 0.0
    %v1113 = vadd.f32 %v1111, %v1112
    %v1114 = vsel %vm988, %v876, 0.0
    %v1115 = vadd.f32 %v1113, %v1114
    %v1116 = vsel %vm988, %v879, 0.0
    %v1117 = vadd.f32 %v1115, %v1116
    %v1118 = vsel %vm988, %v881, 0.0
    %v1119 = vadd.f32 %v1117, %v1118
    %v1120 = vsel %vm988, %v884, 0.0
    %v1121 = vadd.f32 %v1119, %v1120
    %v1122 = vsel %vm988, %v886, 0.0
    %v1123 = vadd.f32 %v1121, %v1122
    %v1124 = vsel %vm988, %v889, 0.0
    %v1125 = vadd.f32 %v1123, %v1124
    %v1126 = vsel %vm988, %v891, 0.0
    %v1127 = vadd.f32 %v1125, %v1126
    %v1128 = vsel %vm988, %v894, 0.0
    %v1129 = vadd.f32 %v1127, %v1128
    %v1130 = vsel %vm988, %v896, 0.0
    %v1131 = vadd.f32 %v1129, %v1130
    %v1132 = vsel %vm988, %v899, 0.0
    %v1133 = vadd.f32 %v1131, %v1132
    %v1134 = vsel %vm988, %v901, 0.0
    %v1135 = vadd.f32 %v1133, %v1134
    %v1136 = vsel %vm988, %v904, 0.0
    %v1137 = vadd.f32 %v1135, %v1136
    %v1138 = vsel %vm988, %v906, 0.0
    %v1139 = vadd.f32 %v1137, %v1138
    %v1140 = vsel %vm988, %v909, 0.0
    %v1141 = vadd.f32 %v1139, %v1140
    %v1142 = vsel %vm988, %v911, 0.0
    %v1143 = vadd.f32 %v1141, %v1142
    %v1144 = vsel %vm988, %v914, 0.0
    %v1145 = vadd.f32 %v1143, %v1144
    %v1146 = vsel %vm988, %v916, 0.0
    %v1147 = vadd.f32 %v1145, %v1146
    %v1148 = vsel %vm988, %v919, 0.0
    %v1149 = vadd.f32 %v1147, %v1148
    %v1150 = vsel %vm988, %v921, 0.0
    %v1151 = vadd.f32 %v1149, %v1150
    %v1152 = vsel %vm988, %v924, 0.0
    %v1153 = vadd.f32 %v1151, %v1152
    %v1154 = vsel %vm988, %v926, 0.0
    %v1155 = vadd.f32 %v1153, %v1154
    %v1156 = vsel %vm988, %v929, 0.0
    %v1157 = vadd.f32 %v1155, %v1156
    %v1158 = vsel %vm988, %v931, 0.0
    %v1159 = vadd.f32 %v1157, %v1158
    %v1160 = vsel %vm988, %v934, 0.0
    %v1161 = vadd.f32 %v1159, %v1160
    %v1162 = vsel %vm988, %v936, 0.0
    %v1163 = vadd.f32 %v1161, %v1162
    %v1164 = vsel %vm988, %v939, 0.0
    %v1165 = vadd.f32 %v1163, %v1164
    %v1166 = vsel %vm988, %v941, 0.0
    %v1167 = vadd.f32 %v1165, %v1166
    %v1168 = vsel %vm988, %v944, 0.0
    %v1169 = vadd.f32 %v1167, %v1168
    %v1170 = vsel %vm988, %v946, 0.0
    %v1171 = vadd.f32 %v1169, %v1170
    %v1172 = vsel %vm988, %v949, 0.0
    %v1173 = vadd.f32 %v1171, %v1172
    %v1174 = vsel %vm988, %v951, 0.0
    %v1175 = vadd.f32 %v1173, %v1174
    %v1176 = vsel %vm988, %v954, 0.0
    %v1177 = vadd.f32 %v1175, %v1176
    %v1178 = vsel %vm988, %v956, 0.0
    %v1179 = vadd.f32 %v1177, %v1178
    %v1180 = vsel %vm988, %v959, 0.0
    %v1181 = vadd.f32 %v1179, %v1180
    %v1182 = vsel %vm988, %v961, 0.0
    %v1183 = vadd.f32 %v1181, %v1182
    %v1184 = vsel %vm988, %v964, 0.0
    %v1185 = vadd.f32 %v1183, %v1184
    %v1186 = vsel %vm988, %v966, 0.0
    %v1187 = vadd.f32 %v1185, %v1186
    %v1188 = vsel %vm988, %v969, 0.0
    %v1189 = vadd.f32 %v1187, %v1188
    %v1190 = vsel %vm988, %v971, 0.0
    %v1191 = vadd.f32 %v1189, %v1190
    %v1192 = vsel %vm988, %v974, 0.0
    %v1193 = vadd.f32 %v1191, %v1192
    %v1194 = vsel %vm988, %v976, 0.0
    %v1195 = vadd.f32 %v1193, %v1194
    %v1196 = vsel %vm988, %v979, 0.0
    %v1197 = vadd.f32 %v1195, %v1196
    %v1198 = vsel %vm988, %v981, 0.0
    %v1199 = vadd.f32 %v1197, %v1198
    %v1200 = vsel %vm988, %v984, 0.0
    %v1201 = vadd.f32 %v1199, %v1200
    %v1202 = vsel %vm988, %v986, 0.0
    %v1203 = vadd.f32 %v1201, %v1202
    %v1204 = vrot.slane %v1203, 4
    %v1205 = vadd.f32 %v1203, %v1204
    %v1206 = vrot.slane %v1205, 2
    %v1207 = vadd.f32 %v1205, %v1206
    %v1208 = vrot.slane %v1207, 1
    %v1209 = vadd.f32 %v1207, %v1208
    %v1210 = vmul.f32 %v719, %v719
    %v1211 = vmul.f32 %v721, %v721
    %v1212 = vmul.f32 %v724, %v724
    %v1213 = vmul.f32 %v726, %v726
    %v1214 = vmul.f32 %v729, %v729
    %v1215 = vmul.f32 %v731, %v731
    %v1216 = vmul.f32 %v734, %v734
    %v1217 = vmul.f32 %v736, %v736
    %v1218 = vmul.f32 %v739, %v739
    %v1219 = vmul.f32 %v741, %v741
    %v1220 = vmul.f32 %v744, %v744
    %v1221 = vmul.f32 %v746, %v746
    %v1222 = vmul.f32 %v749, %v749
    %v1223 = vmul.f32 %v751, %v751
    %v1224 = vmul.f32 %v754, %v754
    %v1225 = vmul.f32 %v756, %v756
    %v1226 = vmul.f32 %v759, %v759
    %v1227 = vmul.f32 %v761, %v761
    %v1228 = vmul.f32 %v764, %v764
    %v1229 = vmul.f32 %v766, %v766
    %v1230 = vmul.f32 %v769, %v769
    %v1231 = vmul.f32 %v771, %v771
    %v1232 = vmul.f32 %v774, %v774
    %v1233 = vmul.f32 %v776, %v776
    %v1234 = vmul.f32 %v779, %v779
    %v1235 = vmul.f32 %v781, %v781
    %v1236 = vmul.f32 %v784, %v784
    %v1237 = vmul.f32 %v786, %v786
    %v1238 = vmul.f32 %v789, %v789
    %v1239 = vmul.f32 %v791, %v791
    %v1240 = vmul.f32 %v794, %v794
    %v1241 = vmul.f32 %v796, %v796
    %v1242 = vmul.f32 %v799, %v799
    %v1243 = vmul.f32 %v801, %v801
    %v1244 = vmul.f32 %v804, %v804
    %v1245 = vmul.f32 %v806, %v806
    %v1246 = vmul.f32 %v809, %v809
    %v1247 = vmul.f32 %v811, %v811
    %v1248 = vmul.f32 %v814, %v814
    %v1249 = vmul.f32 %v816, %v816
    %v1250 = vmul.f32 %v819, %v819
    %v1251 = vmul.f32 %v821, %v821
    %v1252 = vmul.f32 %v824, %v824
    %v1253 = vmul.f32 %v826, %v826
    %v1254 = vmul.f32 %v829, %v829
    %v1255 = vmul.f32 %v831, %v831
    %v1256 = vmul.f32 %v834, %v834
    %v1257 = vmul.f32 %v836, %v836
    %v1258 = vmul.f32 %v839, %v839
    %v1259 = vmul.f32 %v841, %v841
    %v1260 = vmul.f32 %v844, %v844
    %v1261 = vmul.f32 %v846, %v846
    %v1262 = vmul.f32 %v849, %v849
    %v1263 = vmul.f32 %v851, %v851
    %v1264 = vmul.f32 %v854, %v854
    %v1265 = vmul.f32 %v856, %v856
    %v1266 = vmul.f32 %v859, %v859
    %v1267 = vmul.f32 %v861, %v861
    %v1268 = vmul.f32 %v864, %v864
    %v1269 = vmul.f32 %v866, %v866
    %v1270 = vmul.f32 %v869, %v869
    %v1271 = vmul.f32 %v871, %v871
    %v1272 = vmul.f32 %v874, %v874
    %v1273 = vmul.f32 %v876, %v876
    %v1274 = vmul.f32 %v879, %v879
    %v1275 = vmul.f32 %v881, %v881
    %v1276 = vmul.f32 %v884, %v884
    %v1277 = vmul.f32 %v886, %v886
    %v1278 = vmul.f32 %v889, %v889
    %v1279 = vmul.f32 %v891, %v891
    %v1280 = vmul.f32 %v894, %v894
    %v1281 = vmul.f32 %v896, %v896
    %v1282 = vmul.f32 %v899, %v899
    %v1283 = vmul.f32 %v901, %v901
    %v1284 = vmul.f32 %v904, %v904
    %v1285 = vmul.f32 %v906, %v906
    %v1286 = vmul.f32 %v909, %v909
    %v1287 = vmul.f32 %v911, %v911
    %v1288 = vmul.f32 %v914, %v914
    %v1289 = vmul.f32 %v916, %v916
    %v1290 = vmul.f32 %v919, %v919
    %v1291 = vmul.f32 %v921, %v921
    %v1292 = vmul.f32 %v924, %v924
    %v1293 = vmul.f32 %v926, %v926
    %v1294 = vmul.f32 %v929, %v929
    %v1295 = vmul.f32 %v931, %v931
    %v1296 = vmul.f32 %v934, %v934
    %v1297 = vmul.f32 %v936, %v936
    %v1298 = vmul.f32 %v939, %v939
    %v1299 = vmul.f32 %v941, %v941
    %v1300 = vmul.f32 %v944, %v944
    %v1301 = vmul.f32 %v946, %v946
    %v1302 = vmul.f32 %v949, %v949
    %v1303 = vmul.f32 %v951, %v951
    %v1304 = vmul.f32 %v954, %v954
    %v1305 = vmul.f32 %v956, %v956
    %v1306 = vmul.f32 %v959, %v959
    %v1307 = vmul.f32 %v961, %v961
    %v1308 = vmul.f32 %v964, %v964
    %v1309 = vmul.f32 %v966, %v966
    %v1310 = vmul.f32 %v969, %v969
    %v1311 = vmul.f32 %v971, %v971
    %v1312 = vmul.f32 %v974, %v974
    %v1313 = vmul.f32 %v976, %v976
    %v1314 = vmul.f32 %v979, %v979
    %v1315 = vmul.f32 %v981, %v981
    %v1316 = vmul.f32 %v984, %v984
    %v1317 = vmul.f32 %v986, %v986
    %v1318 = vsel %vm988, %v1210, 0.0
    %v1319 = vsel %vm988, %v1211, 0.0
    %v1320 = vadd.f32 %v1318, %v1319
    %v1321 = vsel %vm988, %v1212, 0.0
    %v1322 = vadd.f32 %v1320, %v1321
    %v1323 = vsel %vm988, %v1213, 0.0
    %v1324 = vadd.f32 %v1322, %v1323
    %v1325 = vsel %vm988, %v1214, 0.0
    %v1326 = vadd.f32 %v1324, %v1325
    %v1327 = vsel %vm988, %v1215, 0.0
    %v1328 = vadd.f32 %v1326, %v1327
    %v1329 = vsel %vm988, %v1216, 0.0
    %v1330 = vadd.f32 %v1328, %v1329
    %v1331 = vsel %vm988, %v1217, 0.0
    %v1332 = vadd.f32 %v1330, %v1331
    %v1333 = vsel %vm988, %v1218, 0.0
    %v1334 = vadd.f32 %v1332, %v1333
    %v1335 = vsel %vm988, %v1219, 0.0
    %v1336 = vadd.f32 %v1334, %v1335
    %v1337 = vsel %vm988, %v1220, 0.0
    %v1338 = vadd.f32 %v1336, %v1337
    %v1339 = vsel %vm988, %v1221, 0.0
    %v1340 = vadd.f32 %v1338, %v1339
    %v1341 = vsel %vm988, %v1222, 0.0
    %v1342 = vadd.f32 %v1340, %v1341
    %v1343 = vsel %vm988, %v1223, 0.0
    %v1344 = vadd.f32 %v1342, %v1343
    %v1345 = vsel %vm988, %v1224, 0.0
    %v1346 = vadd.f32 %v1344, %v1345
    %v1347 = vsel %vm988, %v1225, 0.0
    %v1348 = vadd.f32 %v1346, %v1347
    %v1349 = vsel %vm988, %v1226, 0.0
    %v1350 = vadd.f32 %v1348, %v1349
    %v1351 = vsel %vm988, %v1227, 0.0
    %v1352 = vadd.f32 %v1350, %v1351
    %v1353 = vsel %vm988, %v1228, 0.0
    %v1354 = vadd.f32 %v1352, %v1353
    %v1355 = vsel %vm988, %v1229, 0.0
    %v1356 = vadd.f32 %v1354, %v1355
    %v1357 = vsel %vm988, %v1230, 0.0
    %v1358 = vadd.f32 %v1356, %v1357
    %v1359 = vsel %vm988, %v1231, 0.0
    %v1360 = vadd.f32 %v1358, %v1359
    %v1361 = vsel %vm988, %v1232, 0.0
    %v1362 = vadd.f32 %v1360, %v1361
    %v1363 = vsel %vm988, %v1233, 0.0
    %v1364 = vadd.f32 %v1362, %v1363
    %v1365 = vsel %vm988, %v1234, 0.0
    %v1366 = vadd.f32 %v1364, %v1365
    %v1367 = vsel %vm988, %v1235, 0.0
    %v1368 = vadd.f32 %v1366, %v1367
    %v1369 = vsel %vm988, %v1236, 0.0
    %v1370 = vadd.f32 %v1368, %v1369
    %v1371 = vsel %vm988, %v1237, 0.0
    %v1372 = vadd.f32 %v1370, %v1371
    %v1373 = vsel %vm988, %v1238, 0.0
    %v1374 = vadd.f32 %v1372, %v1373
    %v1375 = vsel %vm988, %v1239, 0.0
    %v1376 = vadd.f32 %v1374, %v1375
    %v1377 = vsel %vm988, %v1240, 0.0
    %v1378 = vadd.f32 %v1376, %v1377
    %v1379 = vsel %vm988, %v1241, 0.0
    %v1380 = vadd.f32 %v1378, %v1379
    %v1381 = vsel %vm988, %v1242, 0.0
    %v1382 = vadd.f32 %v1380, %v1381
    %v1383 = vsel %vm988, %v1243, 0.0
    %v1384 = vadd.f32 %v1382, %v1383
    %v1385 = vsel %vm988, %v1244, 0.0
    %v1386 = vadd.f32 %v1384, %v1385
    %v1387 = vsel %vm988, %v1245, 0.0
    %v1388 = vadd.f32 %v1386, %v1387
    %v1389 = vsel %vm988, %v1246, 0.0
    %v1390 = vadd.f32 %v1388, %v1389
    %v1391 = vsel %vm988, %v1247, 0.0
    %v1392 = vadd.f32 %v1390, %v1391
    %v1393 = vsel %vm988, %v1248, 0.0
    %v1394 = vadd.f32 %v1392, %v1393
    %v1395 = vsel %vm988, %v1249, 0.0
    %v1396 = vadd.f32 %v1394, %v1395
    %v1397 = vsel %vm988, %v1250, 0.0
    %v1398 = vadd.f32 %v1396, %v1397
    %v1399 = vsel %vm988, %v1251, 0.0
    %v1400 = vadd.f32 %v1398, %v1399
    %v1401 = vsel %vm988, %v1252, 0.0
    %v1402 = vadd.f32 %v1400, %v1401
    %v1403 = vsel %vm988, %v1253, 0.0
    %v1404 = vadd.f32 %v1402, %v1403
    %v1405 = vsel %vm988, %v1254, 0.0
    %v1406 = vadd.f32 %v1404, %v1405
    %v1407 = vsel %vm988, %v1255, 0.0
    %v1408 = vadd.f32 %v1406, %v1407
    %v1409 = vsel %vm988, %v1256, 0.0
    %v1410 = vadd.f32 %v1408, %v1409
    %v1411 = vsel %vm988, %v1257, 0.0
    %v1412 = vadd.f32 %v1410, %v1411
    %v1413 = vsel %vm988, %v1258, 0.0
    %v1414 = vadd.f32 %v1412, %v1413
    %v1415 = vsel %vm988, %v1259, 0.0
    %v1416 = vadd.f32 %v1414, %v1415
    %v1417 = vsel %vm988, %v1260, 0.0
    %v1418 = vadd.f32 %v1416, %v1417
    %v1419 = vsel %vm988, %v1261, 0.0
    %v1420 = vadd.f32 %v1418, %v1419
    %v1421 = vsel %vm988, %v1262, 0.0
    %v1422 = vadd.f32 %v1420, %v1421
    %v1423 = vsel %vm988, %v1263, 0.0
    %v1424 = vadd.f32 %v1422, %v1423
    %v1425 = vsel %vm988, %v1264, 0.0
    %v1426 = vadd.f32 %v1424, %v1425
    %v1427 = vsel %vm988, %v1265, 0.0
    %v1428 = vadd.f32 %v1426, %v1427
    %v1429 = vsel %vm988, %v1266, 0.0
    %v1430 = vadd.f32 %v1428, %v1429
    %v1431 = vsel %vm988, %v1267, 0.0
    %v1432 = vadd.f32 %v1430, %v1431
    %v1433 = vsel %vm988, %v1268, 0.0
    %v1434 = vadd.f32 %v1432, %v1433
    %v1435 = vsel %vm988, %v1269, 0.0
    %v1436 = vadd.f32 %v1434, %v1435
    %v1437 = vsel %vm988, %v1270, 0.0
    %v1438 = vadd.f32 %v1436, %v1437
    %v1439 = vsel %vm988, %v1271, 0.0
    %v1440 = vadd.f32 %v1438, %v1439
    %v1441 = vsel %vm988, %v1272, 0.0
    %v1442 = vadd.f32 %v1440, %v1441
    %v1443 = vsel %vm988, %v1273, 0.0
    %v1444 = vadd.f32 %v1442, %v1443
    %v1445 = vsel %vm988, %v1274, 0.0
    %v1446 = vadd.f32 %v1444, %v1445
    %v1447 = vsel %vm988, %v1275, 0.0
    %v1448 = vadd.f32 %v1446, %v1447
    %v1449 = vsel %vm988, %v1276, 0.0
    %v1450 = vadd.f32 %v1448, %v1449
    %v1451 = vsel %vm988, %v1277, 0.0
    %v1452 = vadd.f32 %v1450, %v1451
    %v1453 = vsel %vm988, %v1278, 0.0
    %v1454 = vadd.f32 %v1452, %v1453
    %v1455 = vsel %vm988, %v1279, 0.0
    %v1456 = vadd.f32 %v1454, %v1455
    %v1457 = vsel %vm988, %v1280, 0.0
    %v1458 = vadd.f32 %v1456, %v1457
    %v1459 = vsel %vm988, %v1281, 0.0
    %v1460 = vadd.f32 %v1458, %v1459
    %v1461 = vsel %vm988, %v1282, 0.0
    %v1462 = vadd.f32 %v1460, %v1461
    %v1463 = vsel %vm988, %v1283, 0.0
    %v1464 = vadd.f32 %v1462, %v1463
    %v1465 = vsel %vm988, %v1284, 0.0
    %v1466 = vadd.f32 %v1464, %v1465
    %v1467 = vsel %vm988, %v1285, 0.0
    %v1468 = vadd.f32 %v1466, %v1467
    %v1469 = vsel %vm988, %v1286, 0.0
    %v1470 = vadd.f32 %v1468, %v1469
    %v1471 = vsel %vm988, %v1287, 0.0
    %v1472 = vadd.f32 %v1470, %v1471
    %v1473 = vsel %vm988, %v1288, 0.0
    %v1474 = vadd.f32 %v1472, %v1473
    %v1475 = vsel %vm988, %v1289, 0.0
    %v1476 = vadd.f32 %v1474, %v1475
    %v1477 = vsel %vm988, %v1290, 0.0
    %v1478 = vadd.f32 %v1476, %v1477
    %v1479 = vsel %vm988, %v1291, 0.0
    %v1480 = vadd.f32 %v1478, %v1479
    %v1481 = vsel %vm988, %v1292, 0.0
    %v1482 = vadd.f32 %v1480, %v1481
    %v1483 = vsel %vm988, %v1293, 0.0
    %v1484 = vadd.f32 %v1482, %v1483
    %v1485 = vsel %vm988, %v1294, 0.0
    %v1486 = vadd.f32 %v1484, %v1485
    %v1487 = vsel %vm988, %v1295, 0.0
    %v1488 = vadd.f32 %v1486, %v1487
    %v1489 = vsel %vm988, %v1296, 0.0
    %v1490 = vadd.f32 %v1488, %v1489
    %v1491 = vsel %vm988, %v1297, 0.0
    %v1492 = vadd.f32 %v1490, %v1491
    %v1493 = vsel %vm988, %v1298, 0.0
    %v1494 = vadd.f32 %v1492, %v1493
    %v1495 = vsel %vm988, %v1299, 0.0
    %v1496 = vadd.f32 %v1494, %v1495
    %v1497 = vsel %vm988, %v1300, 0.0
    %v1498 = vadd.f32 %v1496, %v1497
    %v1499 = vsel %vm988, %v1301, 0.0
    %v1500 = vadd.f32 %v1498, %v1499
    %v1501 = vsel %vm988, %v1302, 0.0
    %v1502 = vadd.f32 %v1500, %v1501
    %v1503 = vsel %vm988, %v1303, 0.0
    %v1504 = vadd.f32 %v1502, %v1503
    %v1505 = vsel %vm988, %v1304, 0.0
    %v1506 = vadd.f32 %v1504, %v1505
    %v1507 = vsel %vm988, %v1305, 0.0
    %v1508 = vadd.f32 %v1506, %v1507
    %v1509 = vsel %vm988, %v1306, 0.0
    %v1510 = vadd.f32 %v1508, %v1509
    %v1511 = vsel %vm988, %v1307, 0.0
    %v1512 = vadd.f32 %v1510, %v1511
    %v1513 = vsel %vm988, %v1308, 0.0
    %v1514 = vadd.f32 %v1512, %v1513
    %v1515 = vsel %vm988, %v1309, 0.0
    %v1516 = vadd.f32 %v1514, %v1515
    %v1517 = vsel %vm988, %v1310, 0.0
    %v1518 = vadd.f32 %v1516, %v1517
    %v1519 = vsel %vm988, %v1311, 0.0
    %v1520 = vadd.f32 %v1518, %v1519
    %v1521 = vsel %vm988, %v1312, 0.0
    %v1522 = vadd.f32 %v1520, %v1521
    %v1523 = vsel %vm988, %v1313, 0.0
    %v1524 = vadd.f32 %v1522, %v1523
    %v1525 = vsel %vm988, %v1314, 0.0
    %v1526 = vadd.f32 %v1524, %v1525
    %v1527 = vsel %vm988, %v1315, 0.0
    %v1528 = vadd.f32 %v1526, %v1527
    %v1529 = vsel %vm988, %v1316, 0.0
    %v1530 = vadd.f32 %v1528, %v1529
    %v1531 = vsel %vm988, %v1317, 0.0
    %v1532 = vadd.f32 %v1530, %v1531
    %v1533 = vrot.slane %v1532, 4
    %v1534 = vadd.f32 %v1532, %v1533
    %v1535 = vrot.slane %v1534, 2
    %v1536 = vadd.f32 %v1534, %v1535
    %v1537 = vrot.slane %v1536, 1
    %v1538 = vadd.f32 %v1536, %v1537
    %v1539 = vld [vmem:[%s2] sm:$0x1]
    %v1540 = vld [vmem:[%s3] sm:$0x1]
    %v1541 = vmul.f32 %v1209, 0.001953125
    %v1542 = vmul.f32 %v1538, 0.001953125
    %v1543 = vmul.f32 %v1541, %v1541
    %v1544 = vsub.f32 %v1542, %v1543
    %v1545 = vmax.f32 %v1544, 0.0
    %v1546 = vadd.f32 %v1545, 1e-05
    %v1547 = vrsqrt.pop %v1546
    %v1548 = vmul.f32 %v1547, %v1546
    %v1549 = vmul.f32 %v1548, %v1547
    %v1550 = vmul.f32 0.5, %v1549
    %v1551 = vsub.f32 1.5, %v1550
    %v1552 = vmul.f32 %v1547, %v1551
    %vm1553 = vweird.f32 %v1546
    %vm1554 = vweird.f32 %v1547
    %vm1555 = vmor %vm1553, %vm1554
    %v1556 = vsel %vm1555, %v1547, %v1552
    %v1557 = vmul.f32 %v1539, %v1556
    %v1558 = vmul.f32 %v1541, %v1557
    %v1559 = vsub.f32 %v1540, %v1558
    %v1561 = vperm.slane %v1557, 0
    %v1563 = vmul.f32 %v719, %v1561
    %v1564 = vmul.f32 %v721, %v1561
    %v1565 = vmul.f32 %v724, %v1561
    %v1566 = vmul.f32 %v726, %v1561
    %v1567 = vmul.f32 %v729, %v1561
    %v1568 = vmul.f32 %v731, %v1561
    %v1569 = vmul.f32 %v734, %v1561
    %v1570 = vmul.f32 %v736, %v1561
    %v1571 = vmul.f32 %v739, %v1561
    %v1572 = vmul.f32 %v741, %v1561
    %v1573 = vmul.f32 %v744, %v1561
    %v1574 = vmul.f32 %v746, %v1561
    %v1575 = vmul.f32 %v749, %v1561
    %v1576 = vmul.f32 %v751, %v1561
    %v1577 = vmul.f32 %v754, %v1561
    %v1578 = vmul.f32 %v756, %v1561
    %v1579 = vmul.f32 %v759, %v1561
    %v1580 = vmul.f32 %v761, %v1561
    %v1581 = vmul.f32 %v764, %v1561
    %v1582 = vmul.f32 %v766, %v1561
    %v1583 = vmul.f32 %v769, %v1561
    %v1584 = vmul.f32 %v771, %v1561
    %v1585 = vmul.f32 %v774, %v1561
    %v1586 = vmul.f32 %v776, %v1561
    %v1587 = vmul.f32 %v779, %v1561
    %v1588 = vmul.f32 %v781, %v1561
    %v1589 = vmul.f32 %v784, %v1561
    %v1590 = vmul.f32 %v786, %v1561
    %v1591 = vmul.f32 %v789, %v1561
    %v1592 = vmul.f32 %v791, %v1561
    %v1593 = vmul.f32 %v794, %v1561
    %v1594 = vmul.f32 %v796, %v1561
    %v1595 = vmul.f32 %v799, %v1561
    %v1596 = vmul.f32 %v801, %v1561
    %v1597 = vmul.f32 %v804, %v1561
    %v1598 = vmul.f32 %v806, %v1561
    %v1599 = vmul.f32 %v809, %v1561
    %v1600 = vmul.f32 %v811, %v1561
    %v1601 = vmul.f32 %v814, %v1561
    %v1602 = vmul.f32 %v816, %v1561
    %v1603 = vmul.f32 %v819, %v1561
    %v1604 = vmul.f32 %v821, %v1561
    %v1605 = vmul.f32 %v824, %v1561
    %v1606 = vmul.f32 %v826, %v1561
    %v1607 = vmul.f32 %v829, %v1561
    %v1608 = vmul.f32 %v831, %v1561
    %v1609 = vmul.f32 %v834, %v1561
    %v1610 = vmul.f32 %v836, %v1561
    %v1611 = vmul.f32 %v839, %v1561
    %v1612 = vmul.f32 %v841, %v1561
    %v1613 = vmul.f32 %v844, %v1561
    %v1614 = vmul.f32 %v846, %v1561
    %v1615 = vmul.f32 %v849, %v1561
    %v1616 = vmul.f32 %v851, %v1561
    %v1617 = vmul.f32 %v854, %v1561
    %v1618 = vmul.f32 %v856, %v1561
    %v1619 = vmul.f32 %v859, %v1561
    %v1620 = vmul.f32 %v861, %v1561
    %v1621 = vmul.f32 %v864, %v1561
    %v1622 = vmul.f32 %v866, %v1561
    %v1623 = vmul.f32 %v869, %v1561
    %v1624 = vmul.f32 %v871, %v1561
    %v1625 = vmul.f32 %v874, %v1561
    %v1626 = vmul.f32 %v876, %v1561
    %v1627 = vmul.f32 %v879, %v1561
    %v1628 = vmul.f32 %v881, %v1561
    %v1629 = vmul.f32 %v884, %v1561
    %v1630 = vmul.f32 %v886, %v1561
    %v1631 = vmul.f32 %v889, %v1561
    %v1632 = vmul.f32 %v891, %v1561
    %v1633 = vmul.f32 %v894, %v1561
    %v1634 = vmul.f32 %v896, %v1561
    %v1635 = vmul.f32 %v899, %v1561
    %v1636 = vmul.f32 %v901, %v1561
    %v1637 = vmul.f32 %v904, %v1561
    %v1638 = vmul.f32 %v906, %v1561
    %v1639 = vmul.f32 %v909, %v1561
    %v1640 = vmul.f32 %v911, %v1561
    %v1641 = vmul.f32 %v914, %v1561
    %v1642 = vmul.f32 %v916, %v1561
    %v1643 = vmul.f32 %v919, %v1561
    %v1644 = vmul.f32 %v921, %v1561
    %v1645 = vmul.f32 %v924, %v1561
    %v1646 = vmul.f32 %v926, %v1561
    %v1647 = vmul.f32 %v929, %v1561
    %v1648 = vmul.f32 %v931, %v1561
    %v1649 = vmul.f32 %v934, %v1561
    %v1650 = vmul.f32 %v936, %v1561
    %v1651 = vmul.f32 %v939, %v1561
    %v1652 = vmul.f32 %v941, %v1561
    %v1653 = vmul.f32 %v944, %v1561
    %v1654 = vmul.f32 %v946, %v1561
    %v1655 = vmul.f32 %v949, %v1561
    %v1656 = vmul.f32 %v951, %v1561
    %v1657 = vmul.f32 %v954, %v1561
    %v1658 = vmul.f32 %v956, %v1561
    %v1659 = vmul.f32 %v959, %v1561
    %v1660 = vmul.f32 %v961, %v1561
    %v1661 = vmul.f32 %v964, %v1561
    %v1662 = vmul.f32 %v966, %v1561
    %v1663 = vmul.f32 %v969, %v1561
    %v1664 = vmul.f32 %v971, %v1561
    %v1665 = vmul.f32 %v974, %v1561
    %v1666 = vmul.f32 %v976, %v1561
    %v1667 = vmul.f32 %v979, %v1561
    %v1668 = vmul.f32 %v981, %v1561
    %v1669 = vmul.f32 %v984, %v1561
    %v1670 = vmul.f32 %v986, %v1561
    %v1672 = vperm.slane %v1559, 0
    %v1674 = vadd.f32 %v1563, %v1672
    %v1675 = vadd.f32 %v1564, %v1672
    %v1676 = vadd.f32 %v1565, %v1672
    %v1677 = vadd.f32 %v1566, %v1672
    %v1678 = vadd.f32 %v1567, %v1672
    %v1679 = vadd.f32 %v1568, %v1672
    %v1680 = vadd.f32 %v1569, %v1672
    %v1681 = vadd.f32 %v1570, %v1672
    %v1682 = vadd.f32 %v1571, %v1672
    %v1683 = vadd.f32 %v1572, %v1672
    %v1684 = vadd.f32 %v1573, %v1672
    %v1685 = vadd.f32 %v1574, %v1672
    %v1686 = vadd.f32 %v1575, %v1672
    %v1687 = vadd.f32 %v1576, %v1672
    %v1688 = vadd.f32 %v1577, %v1672
    %v1689 = vadd.f32 %v1578, %v1672
    %v1690 = vadd.f32 %v1579, %v1672
    %v1691 = vadd.f32 %v1580, %v1672
    %v1692 = vadd.f32 %v1581, %v1672
    %v1693 = vadd.f32 %v1582, %v1672
    %v1694 = vadd.f32 %v1583, %v1672
    %v1695 = vadd.f32 %v1584, %v1672
    %v1696 = vadd.f32 %v1585, %v1672
    %v1697 = vadd.f32 %v1586, %v1672
    %v1698 = vadd.f32 %v1587, %v1672
    %v1699 = vadd.f32 %v1588, %v1672
    %v1700 = vadd.f32 %v1589, %v1672
    %v1701 = vadd.f32 %v1590, %v1672
    %v1702 = vadd.f32 %v1591, %v1672
    %v1703 = vadd.f32 %v1592, %v1672
    %v1704 = vadd.f32 %v1593, %v1672
    %v1705 = vadd.f32 %v1594, %v1672
    %v1706 = vadd.f32 %v1595, %v1672
    %v1707 = vadd.f32 %v1596, %v1672
    %v1708 = vadd.f32 %v1597, %v1672
    %v1709 = vadd.f32 %v1598, %v1672
    %v1710 = vadd.f32 %v1599, %v1672
    %v1711 = vadd.f32 %v1600, %v1672
    %v1712 = vadd.f32 %v1601, %v1672
    %v1713 = vadd.f32 %v1602, %v1672
    %v1714 = vadd.f32 %v1603, %v1672
    %v1715 = vadd.f32 %v1604, %v1672
    %v1716 = vadd.f32 %v1605, %v1672
    %v1717 = vadd.f32 %v1606, %v1672
    %v1718 = vadd.f32 %v1607, %v1672
    %v1719 = vadd.f32 %v1608, %v1672
    %v1720 = vadd.f32 %v1609, %v1672
    %v1721 = vadd.f32 %v1610, %v1672
    %v1722 = vadd.f32 %v1611, %v1672
    %v1723 = vadd.f32 %v1612, %v1672
    %v1724 = vadd.f32 %v1613, %v1672
    %v1725 = vadd.f32 %v1614, %v1672
    %v1726 = vadd.f32 %v1615, %v1672
    %v1727 = vadd.f32 %v1616, %v1672
    %v1728 = vadd.f32 %v1617, %v1672
    %v1729 = vadd.f32 %v1618, %v1672
    %v1730 = vadd.f32 %v1619, %v1672
    %v1731 = vadd.f32 %v1620, %v1672
    %v1732 = vadd.f32 %v1621, %v1672
    %v1733 = vadd.f32 %v1622, %v1672
    %v1734 = vadd.f32 %v1623, %v1672
    %v1735 = vadd.f32 %v1624, %v1672
    %v1736 = vadd.f32 %v1625, %v1672
    %v1737 = vadd.f32 %v1626, %v1672
    %v1738 = vadd.f32 %v1627, %v1672
    %v1739 = vadd.f32 %v1628, %v1672
    %v1740 = vadd.f32 %v1629, %v1672
    %v1741 = vadd.f32 %v1630, %v1672
    %v1742 = vadd.f32 %v1631, %v1672
    %v1743 = vadd.f32 %v1632, %v1672
    %v1744 = vadd.f32 %v1633, %v1672
    %v1745 = vadd.f32 %v1634, %v1672
    %v1746 = vadd.f32 %v1635, %v1672
    %v1747 = vadd.f32 %v1636, %v1672
    %v1748 = vadd.f32 %v1637, %v1672
    %v1749 = vadd.f32 %v1638, %v1672
    %v1750 = vadd.f32 %v1639, %v1672
    %v1751 = vadd.f32 %v1640, %v1672
    %v1752 = vadd.f32 %v1641, %v1672
    %v1753 = vadd.f32 %v1642, %v1672
    %v1754 = vadd.f32 %v1643, %v1672
    %v1755 = vadd.f32 %v1644, %v1672
    %v1756 = vadd.f32 %v1645, %v1672
    %v1757 = vadd.f32 %v1646, %v1672
    %v1758 = vadd.f32 %v1647, %v1672
    %v1759 = vadd.f32 %v1648, %v1672
    %v1760 = vadd.f32 %v1649, %v1672
    %v1761 = vadd.f32 %v1650, %v1672
    %v1762 = vadd.f32 %v1651, %v1672
    %v1763 = vadd.f32 %v1652, %v1672
    %v1764 = vadd.f32 %v1653, %v1672
    %v1765 = vadd.f32 %v1654, %v1672
    %v1766 = vadd.f32 %v1655, %v1672
    %v1767 = vadd.f32 %v1656, %v1672
    %v1768 = vadd.f32 %v1657, %v1672
    %v1769 = vadd.f32 %v1658, %v1672
    %v1770 = vadd.f32 %v1659, %v1672
    %v1771 = vadd.f32 %v1660, %v1672
    %v1772 = vadd.f32 %v1661, %v1672
    %v1773 = vadd.f32 %v1662, %v1672
    %v1774 = vadd.f32 %v1663, %v1672
    %v1775 = vadd.f32 %v1664, %v1672
    %v1776 = vadd.f32 %v1665, %v1672
    %v1777 = vadd.f32 %v1666, %v1672
    %v1778 = vadd.f32 %v1667, %v1672
    %v1779 = vadd.f32 %v1668, %v1672
    %v1780 = vadd.f32 %v1669, %v1672
    %v1781 = vadd.f32 %v1670, %v1672
    %v1782 = vmax.f32 %v1674, 0.0
    %v1783 = vmax.f32 %v1675, 0.0
    %v1784 = vmax.f32 %v1676, 0.0
    %v1785 = vmax.f32 %v1677, 0.0
    %v1786 = vmax.f32 %v1678, 0.0
    %v1787 = vmax.f32 %v1679, 0.0
    %v1788 = vmax.f32 %v1680, 0.0
    %v1789 = vmax.f32 %v1681, 0.0
    %v1790 = vmax.f32 %v1682, 0.0
    %v1791 = vmax.f32 %v1683, 0.0
    %v1792 = vmax.f32 %v1684, 0.0
    %v1793 = vmax.f32 %v1685, 0.0
    %v1794 = vmax.f32 %v1686, 0.0
    %v1795 = vmax.f32 %v1687, 0.0
    %v1796 = vmax.f32 %v1688, 0.0
    %v1797 = vmax.f32 %v1689, 0.0
    %v1798 = vmax.f32 %v1690, 0.0
    %v1799 = vmax.f32 %v1691, 0.0
    %v1800 = vmax.f32 %v1692, 0.0
    %v1801 = vmax.f32 %v1693, 0.0
    %v1802 = vmax.f32 %v1694, 0.0
    %v1803 = vmax.f32 %v1695, 0.0
    %v1804 = vmax.f32 %v1696, 0.0
    %v1805 = vmax.f32 %v1697, 0.0
    %v1806 = vmax.f32 %v1698, 0.0
    %v1807 = vmax.f32 %v1699, 0.0
    %v1808 = vmax.f32 %v1700, 0.0
    %v1809 = vmax.f32 %v1701, 0.0
    %v1810 = vmax.f32 %v1702, 0.0
    %v1811 = vmax.f32 %v1703, 0.0
    %v1812 = vmax.f32 %v1704, 0.0
    %v1813 = vmax.f32 %v1705, 0.0
    %v1814 = vmax.f32 %v1706, 0.0
    %v1815 = vmax.f32 %v1707, 0.0
    %v1816 = vmax.f32 %v1708, 0.0
    %v1817 = vmax.f32 %v1709, 0.0
    %v1818 = vmax.f32 %v1710, 0.0
    %v1819 = vmax.f32 %v1711, 0.0
    %v1820 = vmax.f32 %v1712, 0.0
    %v1821 = vmax.f32 %v1713, 0.0
    %v1822 = vmax.f32 %v1714, 0.0
    %v1823 = vmax.f32 %v1715, 0.0
    %v1824 = vmax.f32 %v1716, 0.0
    %v1825 = vmax.f32 %v1717, 0.0
    %v1826 = vmax.f32 %v1718, 0.0
    %v1827 = vmax.f32 %v1719, 0.0
    %v1828 = vmax.f32 %v1720, 0.0
    %v1829 = vmax.f32 %v1721, 0.0
    %v1830 = vmax.f32 %v1722, 0.0
    %v1831 = vmax.f32 %v1723, 0.0
    %v1832 = vmax.f32 %v1724, 0.0
    %v1833 = vmax.f32 %v1725, 0.0
    %v1834 = vmax.f32 %v1726, 0.0
    %v1835 = vmax.f32 %v1727, 0.0
    %v1836 = vmax.f32 %v1728, 0.0
    %v1837 = vmax.f32 %v1729, 0.0
    %v1838 = vmax.f32 %v1730, 0.0
    %v1839 = vmax.f32 %v1731, 0.0
    %v1840 = vmax.f32 %v1732, 0.0
    %v1841 = vmax.f32 %v1733, 0.0
    %v1842 = vmax.f32 %v1734, 0.0
    %v1843 = vmax.f32 %v1735, 0.0
    %v1844 = vmax.f32 %v1736, 0.0
    %v1845 = vmax.f32 %v1737, 0.0
    %v1846 = vmax.f32 %v1738, 0.0
    %v1847 = vmax.f32 %v1739, 0.0
    %v1848 = vmax.f32 %v1740, 0.0
    %v1849 = vmax.f32 %v1741, 0.0
    %v1850 = vmax.f32 %v1742, 0.0
    %v1851 = vmax.f32 %v1743, 0.0
    %v1852 = vmax.f32 %v1744, 0.0
    %v1853 = vmax.f32 %v1745, 0.0
    %v1854 = vmax.f32 %v1746, 0.0
    %v1855 = vmax.f32 %v1747, 0.0
    %v1856 = vmax.f32 %v1748, 0.0
    %v1857 = vmax.f32 %v1749, 0.0
    %v1858 = vmax.f32 %v1750, 0.0
    %v1859 = vmax.f32 %v1751, 0.0
    %v1860 = vmax.f32 %v1752, 0.0
    %v1861 = vmax.f32 %v1753, 0.0
    %v1862 = vmax.f32 %v1754, 0.0
    %v1863 = vmax.f32 %v1755, 0.0
    %v1864 = vmax.f32 %v1756, 0.0
    %v1865 = vmax.f32 %v1757, 0.0
    %v1866 = vmax.f32 %v1758, 0.0
    %v1867 = vmax.f32 %v1759, 0.0
    %v1868 = vmax.f32 %v1760, 0.0
    %v1869 = vmax.f32 %v1761, 0.0
    %v1870 = vmax.f32 %v1762, 0.0
    %v1871 = vmax.f32 %v1763, 0.0
    %v1872 = vmax.f32 %v1764, 0.0
    %v1873 = vmax.f32 %v1765, 0.0
    %v1874 = vmax.f32 %v1766, 0.0
    %v1875 = vmax.f32 %v1767, 0.0
    %v1876 = vmax.f32 %v1768, 0.0
    %v1877 = vmax.f32 %v1769, 0.0
    %v1878 = vmax.f32 %v1770, 0.0
    %v1879 = vmax.f32 %v1771, 0.0
    %v1880 = vmax.f32 %v1772, 0.0
    %v1881 = vmax.f32 %v1773, 0.0
    %v1882 = vmax.f32 %v1774, 0.0
    %v1883 = vmax.f32 %v1775, 0.0
    %v1884 = vmax.f32 %v1776, 0.0
    %v1885 = vmax.f32 %v1777, 0.0
    %v1886 = vmax.f32 %v1778, 0.0
    %v1887 = vmax.f32 %v1779, 0.0
    %v1888 = vmax.f32 %v1780, 0.0
    %v1889 = vmax.f32 %v1781, 0.0
    %1891 = vset.pattern.permute.xlu0 8
    %1892 = vperm.xlu0 %1891, %v154
    %v1893 = vpop.permute.xlu0 %1892
    %1896 = vset.pattern.permute.xlu0 8
    %1897 = vperm.xlu0 %1896, %v155
    %v1898 = vpop.permute.xlu0 %1897
    %1901 = vset.pattern.permute.xlu0 8
    %1902 = vperm.xlu0 %1901, %v156
    %v1903 = vpop.permute.xlu0 %1902
    %1906 = vset.pattern.permute.xlu0 8
    %1907 = vperm.xlu0 %1906, %v157
    %v1908 = vpop.permute.xlu0 %1907
    %1911 = vset.pattern.permute.xlu0 8
    %1912 = vperm.xlu0 %1911, %v158
    %v1913 = vpop.permute.xlu0 %1912
    %1916 = vset.pattern.permute.xlu0 8
    %1917 = vperm.xlu0 %1916, %v159
    %v1918 = vpop.permute.xlu0 %1917
    %1921 = vset.pattern.permute.xlu0 8
    %1922 = vperm.xlu0 %1921, %v160
    %v1923 = vpop.permute.xlu0 %1922
    %1926 = vset.pattern.permute.xlu0 8
    %1927 = vperm.xlu0 %1926, %v161
    %v1928 = vpop.permute.xlu0 %1927
    %1931 = vset.pattern.permute.xlu0 8
    %1932 = vperm.xlu0 %1931, %v162
    %v1933 = vpop.permute.xlu0 %1932
    %1936 = vset.pattern.permute.xlu0 8
    %1937 = vperm.xlu0 %1936, %v163
    %v1938 = vpop.permute.xlu0 %1937
    %1941 = vset.pattern.permute.xlu0 8
    %1942 = vperm.xlu0 %1941, %v164
    %v1943 = vpop.permute.xlu0 %1942
    %1946 = vset.pattern.permute.xlu0 8
    %1947 = vperm.xlu0 %1946, %v165
    %v1948 = vpop.permute.xlu0 %1947
    %1951 = vset.pattern.permute.xlu0 8
    %1952 = vperm.xlu0 %1951, %v166
    %v1953 = vpop.permute.xlu0 %1952
    %1956 = vset.pattern.permute.xlu0 8
    %1957 = vperm.xlu0 %1956, %v167
    %v1958 = vpop.permute.xlu0 %1957
    %1961 = vset.pattern.permute.xlu0 8
    %1962 = vperm.xlu0 %1961, %v168
    %v1963 = vpop.permute.xlu0 %1962
    %1966 = vset.pattern.permute.xlu0 8
    %1967 = vperm.xlu0 %1966, %v169
    %v1968 = vpop.permute.xlu0 %1967
    %1971 = vset.pattern.permute.xlu0 8
    %1972 = vperm.xlu0 %1971, %v170
    %v1973 = vpop.permute.xlu0 %1972
    %1976 = vset.pattern.permute.xlu0 8
    %1977 = vperm.xlu0 %1976, %v171
    %v1978 = vpop.permute.xlu0 %1977
    %1981 = vset.pattern.permute.xlu0 8
    %1982 = vperm.xlu0 %1981, %v172
    %v1983 = vpop.permute.xlu0 %1982
    %1986 = vset.pattern.permute.xlu0 8
    %1987 = vperm.xlu0 %1986, %v173
    %v1988 = vpop.permute.xlu0 %1987
    %1991 = vset.pattern.permute.xlu0 8
    %1992 = vperm.xlu0 %1991, %v174
    %v1993 = vpop.permute.xlu0 %1992
    %1996 = vset.pattern.permute.xlu0 8
    %1997 = vperm.xlu0 %1996, %v175
    %v1998 = vpop.permute.xlu0 %1997
    %2001 = vset.pattern.permute.xlu0 8
    %2002 = vperm.xlu0 %2001, %v176
    %v2003 = vpop.permute.xlu0 %2002
    %2006 = vset.pattern.permute.xlu0 8
    %2007 = vperm.xlu0 %2006, %v177
    %v2008 = vpop.permute.xlu0 %2007
    %2011 = vset.pattern.permute.xlu0 8
    %2012 = vperm.xlu0 %2011, %v178
    %v2013 = vpop.permute.xlu0 %2012
    %2016 = vset.pattern.permute.xlu0 8
    %2017 = vperm.xlu0 %2016, %v179
    %v2018 = vpop.permute.xlu0 %2017
    %2021 = vset.pattern.permute.xlu0 8
    %2022 = vperm.xlu0 %2021, %v180
    %v2023 = vpop.permute.xlu0 %2022
    %2026 = vset.pattern.permute.xlu0 8
    %2027 = vperm.xlu0 %2026, %v181
    %v2028 = vpop.permute.xlu0 %2027
    %2031 = vset.pattern.permute.xlu0 8
    %2032 = vperm.xlu0 %2031, %v182
    %v2033 = vpop.permute.xlu0 %2032
    %2036 = vset.pattern.permute.xlu0 8
    %2037 = vperm.xlu0 %2036, %v183
    %v2038 = vpop.permute.xlu0 %2037
    %2041 = vset.pattern.permute.xlu0 8
    %2042 = vperm.xlu0 %2041, %v184
    %v2043 = vpop.permute.xlu0 %2042
    %2046 = vset.pattern.permute.xlu0 8
    %2047 = vperm.xlu0 %2046, %v185
    %v2048 = vpop.permute.xlu0 %2047
    %2051 = vset.pattern.permute.xlu0 8
    %2052 = vperm.xlu0 %2051, %v186
    %v2053 = vpop.permute.xlu0 %2052
    %2056 = vset.pattern.permute.xlu0 8
    %2057 = vperm.xlu0 %2056, %v187
    %v2058 = vpop.permute.xlu0 %2057
    %2061 = vset.pattern.permute.xlu0 8
    %2062 = vperm.xlu0 %2061, %v188
    %v2063 = vpop.permute.xlu0 %2062
    %2066 = vset.pattern.permute.xlu0 8
    %2067 = vperm.xlu0 %2066, %v189
    %v2068 = vpop.permute.xlu0 %2067
    %2071 = vset.pattern.permute.xlu0 8
    %2072 = vperm.xlu0 %2071, %v190
    %v2073 = vpop.permute.xlu0 %2072
    %2076 = vset.pattern.permute.xlu0 8
    %2077 = vperm.xlu0 %2076, %v191
    %v2078 = vpop.permute.xlu0 %2077
    %2081 = vset.pattern.permute.xlu0 8
    %2082 = vperm.xlu0 %2081, %v192
    %v2083 = vpop.permute.xlu0 %2082
    %2086 = vset.pattern.permute.xlu0 8
    %2087 = vperm.xlu0 %2086, %v193
    %v2088 = vpop.permute.xlu0 %2087
    %2091 = vset.pattern.permute.xlu0 8
    %2092 = vperm.xlu0 %2091, %v194
    %v2093 = vpop.permute.xlu0 %2092
    %2096 = vset.pattern.permute.xlu0 8
    %2097 = vperm.xlu0 %2096, %v195
    %v2098 = vpop.permute.xlu0 %2097
    %2101 = vset.pattern.permute.xlu0 8
    %2102 = vperm.xlu0 %2101, %v196
    %v2103 = vpop.permute.xlu0 %2102
    %2106 = vset.pattern.permute.xlu0 8
    %2107 = vperm.xlu0 %2106, %v197
    %v2108 = vpop.permute.xlu0 %2107
    %2111 = vset.pattern.permute.xlu0 8
    %2112 = vperm.xlu0 %2111, %v198
    %v2113 = vpop.permute.xlu0 %2112
    %2116 = vset.pattern.permute.xlu0 8
    %2117 = vperm.xlu0 %2116, %v199
    %v2118 = vpop.permute.xlu0 %2117
    %2121 = vset.pattern.permute.xlu0 8
    %2122 = vperm.xlu0 %2121, %v200
    %v2123 = vpop.permute.xlu0 %2122
    %2126 = vset.pattern.permute.xlu0 8
    %2127 = vperm.xlu0 %2126, %v201
    %v2128 = vpop.permute.xlu0 %2127
    %2131 = vset.pattern.permute.xlu0 8
    %2132 = vperm.xlu0 %2131, %v202
    %v2133 = vpop.permute.xlu0 %2132
    %2136 = vset.pattern.permute.xlu0 8
    %2137 = vperm.xlu0 %2136, %v203
    %v2138 = vpop.permute.xlu0 %2137
    %2141 = vset.pattern.permute.xlu0 8
    %2142 = vperm.xlu0 %2141, %v204
    %v2143 = vpop.permute.xlu0 %2142
    %2146 = vset.pattern.permute.xlu0 8
    %2147 = vperm.xlu0 %2146, %v205
    %v2148 = vpop.permute.xlu0 %2147
    %2151 = vset.pattern.permute.xlu0 8
    %2152 = vperm.xlu0 %2151, %v206
    %v2153 = vpop.permute.xlu0 %2152
    %2156 = vset.pattern.permute.xlu0 8
    %2157 = vperm.xlu0 %2156, %v207
    %v2158 = vpop.permute.xlu0 %2157
    %2161 = vset.pattern.permute.xlu0 8
    %2162 = vperm.xlu0 %2161, %v208
    %v2163 = vpop.permute.xlu0 %2162
    %2166 = vset.pattern.permute.xlu0 8
    %2167 = vperm.xlu0 %2166, %v209
    %v2168 = vpop.permute.xlu0 %2167
    %2171 = vset.pattern.permute.xlu0 8
    %2172 = vperm.xlu0 %2171, %v210
    %v2173 = vpop.permute.xlu0 %2172
    %2176 = vset.pattern.permute.xlu0 8
    %2177 = vperm.xlu0 %2176, %v211
    %v2178 = vpop.permute.xlu0 %2177
    %2181 = vset.pattern.permute.xlu0 8
    %2182 = vperm.xlu0 %2181, %v212
    %v2183 = vpop.permute.xlu0 %2182
    %2186 = vset.pattern.permute.xlu0 8
    %2187 = vperm.xlu0 %2186, %v213
    %v2188 = vpop.permute.xlu0 %2187
    %2191 = vset.pattern.permute.xlu0 8
    %2192 = vperm.xlu0 %2191, %v214
    %v2193 = vpop.permute.xlu0 %2192
    %2196 = vset.pattern.permute.xlu0 8
    %2197 = vperm.xlu0 %2196, %v215
    %v2198 = vpop.permute.xlu0 %2197
    %2201 = vset.pattern.permute.xlu0 8
    %2202 = vperm.xlu0 %2201, %v216
    %v2203 = vpop.permute.xlu0 %2202
    %2206 = vset.pattern.permute.xlu0 8
    %2207 = vperm.xlu0 %2206, %v217
    %v2208 = vpop.permute.xlu0 %2207
    %2211 = vset.pattern.permute.xlu0 8
    %2212 = vperm.xlu0 %2211, %v218
    %v2213 = vpop.permute.xlu0 %2212
    %2216 = vset.pattern.permute.xlu0 8
    %2217 = vperm.xlu0 %2216, %v219
    %v2218 = vpop.permute.xlu0 %2217
    %2221 = vset.pattern.permute.xlu0 8
    %2222 = vperm.xlu0 %2221, %v220
    %v2223 = vpop.permute.xlu0 %2222
    %2226 = vset.pattern.permute.xlu0 8
    %2227 = vperm.xlu0 %2226, %v221
    %v2228 = vpop.permute.xlu0 %2227
    %2231 = vset.pattern.permute.xlu0 8
    %2232 = vperm.xlu0 %2231, %v222
    %v2233 = vpop.permute.xlu0 %2232
    %2236 = vset.pattern.permute.xlu0 8
    %2237 = vperm.xlu0 %2236, %v223
    %v2238 = vpop.permute.xlu0 %2237
    %2241 = vset.pattern.permute.xlu0 8
    %2242 = vperm.xlu0 %2241, %v224
    %v2243 = vpop.permute.xlu0 %2242
    %2246 = vset.pattern.permute.xlu0 8
    %2247 = vperm.xlu0 %2246, %v225
    %v2248 = vpop.permute.xlu0 %2247
    %2251 = vset.pattern.permute.xlu0 8
    %2252 = vperm.xlu0 %2251, %v226
    %v2253 = vpop.permute.xlu0 %2252
    %2256 = vset.pattern.permute.xlu0 8
    %2257 = vperm.xlu0 %2256, %v227
    %v2258 = vpop.permute.xlu0 %2257
    %2261 = vset.pattern.permute.xlu0 8
    %2262 = vperm.xlu0 %2261, %v228
    %v2263 = vpop.permute.xlu0 %2262
    %2266 = vset.pattern.permute.xlu0 8
    %2267 = vperm.xlu0 %2266, %v229
    %v2268 = vpop.permute.xlu0 %2267
    %2271 = vset.pattern.permute.xlu0 8
    %2272 = vperm.xlu0 %2271, %v230
    %v2273 = vpop.permute.xlu0 %2272
    %2276 = vset.pattern.permute.xlu0 8
    %2277 = vperm.xlu0 %2276, %v231
    %v2278 = vpop.permute.xlu0 %2277
    %2281 = vset.pattern.permute.xlu0 8
    %2282 = vperm.xlu0 %2281, %v232
    %v2283 = vpop.permute.xlu0 %2282
    %2286 = vset.pattern.permute.xlu0 8
    %2287 = vperm.xlu0 %2286, %v233
    %v2288 = vpop.permute.xlu0 %2287
    %2291 = vset.pattern.permute.xlu0 8
    %2292 = vperm.xlu0 %2291, %v234
    %v2293 = vpop.permute.xlu0 %2292
    %2296 = vset.pattern.permute.xlu0 8
    %2297 = vperm.xlu0 %2296, %v235
    %v2298 = vpop.permute.xlu0 %2297
    %2301 = vset.pattern.permute.xlu0 8
    %2302 = vperm.xlu0 %2301, %v236
    %v2303 = vpop.permute.xlu0 %2302
    %2306 = vset.pattern.permute.xlu0 8
    %2307 = vperm.xlu0 %2306, %v237
    %v2308 = vpop.permute.xlu0 %2307
    %2311 = vset.pattern.permute.xlu0 8
    %2312 = vperm.xlu0 %2311, %v238
    %v2313 = vpop.permute.xlu0 %2312
    %2316 = vset.pattern.permute.xlu0 8
    %2317 = vperm.xlu0 %2316, %v239
    %v2318 = vpop.permute.xlu0 %2317
    %2321 = vset.pattern.permute.xlu0 8
    %2322 = vperm.xlu0 %2321, %v240
    %v2323 = vpop.permute.xlu0 %2322
    %2326 = vset.pattern.permute.xlu0 8
    %2327 = vperm.xlu0 %2326, %v241
    %v2328 = vpop.permute.xlu0 %2327
    %2331 = vset.pattern.permute.xlu0 8
    %2332 = vperm.xlu0 %2331, %v242
    %v2333 = vpop.permute.xlu0 %2332
    %2336 = vset.pattern.permute.xlu0 8
    %2337 = vperm.xlu0 %2336, %v243
    %v2338 = vpop.permute.xlu0 %2337
    %2341 = vset.pattern.permute.xlu0 8
    %2342 = vperm.xlu0 %2341, %v244
    %v2343 = vpop.permute.xlu0 %2342
    %2346 = vset.pattern.permute.xlu0 8
    %2347 = vperm.xlu0 %2346, %v245
    %v2348 = vpop.permute.xlu0 %2347
    %2351 = vset.pattern.permute.xlu0 8
    %2352 = vperm.xlu0 %2351, %v246
    %v2353 = vpop.permute.xlu0 %2352
    %2356 = vset.pattern.permute.xlu0 8
    %2357 = vperm.xlu0 %2356, %v247
    %v2358 = vpop.permute.xlu0 %2357
    %2361 = vset.pattern.permute.xlu0 8
    %2362 = vperm.xlu0 %2361, %v248
    %v2363 = vpop.permute.xlu0 %2362
    %2366 = vset.pattern.permute.xlu0 8
    %2367 = vperm.xlu0 %2366, %v249
    %v2368 = vpop.permute.xlu0 %2367
    %2371 = vset.pattern.permute.xlu0 8
    %2372 = vperm.xlu0 %2371, %v250
    %v2373 = vpop.permute.xlu0 %2372
    %2376 = vset.pattern.permute.xlu0 8
    %2377 = vperm.xlu0 %2376, %v251
    %v2378 = vpop.permute.xlu0 %2377
    %2381 = vset.pattern.permute.xlu0 8
    %2382 = vperm.xlu0 %2381, %v252
    %v2383 = vpop.permute.xlu0 %2382
    %2386 = vset.pattern.permute.xlu0 8
    %2387 = vperm.xlu0 %2386, %v253
    %v2388 = vpop.permute.xlu0 %2387
    %2391 = vset.pattern.permute.xlu0 8
    %2392 = vperm.xlu0 %2391, %v254
    %v2393 = vpop.permute.xlu0 %2392
    %2396 = vset.pattern.permute.xlu0 8
    %2397 = vperm.xlu0 %2396, %v255
    %v2398 = vpop.permute.xlu0 %2397
    %2401 = vset.pattern.permute.xlu0 8
    %2402 = vperm.xlu0 %2401, %v256
    %v2403 = vpop.permute.xlu0 %2402
    %2406 = vset.pattern.permute.xlu0 8
    %2407 = vperm.xlu0 %2406, %v257
    %v2408 = vpop.permute.xlu0 %2407
    %2411 = vset.pattern.permute.xlu0 8
    %2412 = vperm.xlu0 %2411, %v258
    %v2413 = vpop.permute.xlu0 %2412
    %2416 = vset.pattern.permute.xlu0 8
    %2417 = vperm.xlu0 %2416, %v259
    %v2418 = vpop.permute.xlu0 %2417
    %2421 = vset.pattern.permute.xlu0 8
    %2422 = vperm.xlu0 %2421, %v260
    %v2423 = vpop.permute.xlu0 %2422
    %2426 = vset.pattern.permute.xlu0 8
    %2427 = vperm.xlu0 %2426, %v261
    %v2428 = vpop.permute.xlu0 %2427
    %v2430 = vmul.f32 %v1782, %v1893
    %v2431 = vmul.f32 %v1783, %v1898
    %v2432 = vmul.f32 %v1784, %v1903
    %v2433 = vmul.f32 %v1785, %v1908
    %v2434 = vmul.f32 %v1786, %v1913
    %v2435 = vmul.f32 %v1787, %v1918
    %v2436 = vmul.f32 %v1788, %v1923
    %v2437 = vmul.f32 %v1789, %v1928
    %v2438 = vmul.f32 %v1790, %v1933
    %v2439 = vmul.f32 %v1791, %v1938
    %v2440 = vmul.f32 %v1792, %v1943
    %v2441 = vmul.f32 %v1793, %v1948
    %v2442 = vmul.f32 %v1794, %v1953
    %v2443 = vmul.f32 %v1795, %v1958
    %v2444 = vmul.f32 %v1796, %v1963
    %v2445 = vmul.f32 %v1797, %v1968
    %v2446 = vmul.f32 %v1798, %v1973
    %v2447 = vmul.f32 %v1799, %v1978
    %v2448 = vmul.f32 %v1800, %v1983
    %v2449 = vmul.f32 %v1801, %v1988
    %v2450 = vmul.f32 %v1802, %v1993
    %v2451 = vmul.f32 %v1803, %v1998
    %v2452 = vmul.f32 %v1804, %v2003
    %v2453 = vmul.f32 %v1805, %v2008
    %v2454 = vmul.f32 %v1806, %v2013
    %v2455 = vmul.f32 %v1807, %v2018
    %v2456 = vmul.f32 %v1808, %v2023
    %v2457 = vmul.f32 %v1809, %v2028
    %v2458 = vmul.f32 %v1810, %v2033
    %v2459 = vmul.f32 %v1811, %v2038
    %v2460 = vmul.f32 %v1812, %v2043
    %v2461 = vmul.f32 %v1813, %v2048
    %v2462 = vmul.f32 %v1814, %v2053
    %v2463 = vmul.f32 %v1815, %v2058
    %v2464 = vmul.f32 %v1816, %v2063
    %v2465 = vmul.f32 %v1817, %v2068
    %v2466 = vmul.f32 %v1818, %v2073
    %v2467 = vmul.f32 %v1819, %v2078
    %v2468 = vmul.f32 %v1820, %v2083
    %v2469 = vmul.f32 %v1821, %v2088
    %v2470 = vmul.f32 %v1822, %v2093
    %v2471 = vmul.f32 %v1823, %v2098
    %v2472 = vmul.f32 %v1824, %v2103
    %v2473 = vmul.f32 %v1825, %v2108
    %v2474 = vmul.f32 %v1826, %v2113
    %v2475 = vmul.f32 %v1827, %v2118
    %v2476 = vmul.f32 %v1828, %v2123
    %v2477 = vmul.f32 %v1829, %v2128
    %v2478 = vmul.f32 %v1830, %v2133
    %v2479 = vmul.f32 %v1831, %v2138
    %v2480 = vmul.f32 %v1832, %v2143
    %v2481 = vmul.f32 %v1833, %v2148
    %v2482 = vmul.f32 %v1834, %v2153
    %v2483 = vmul.f32 %v1835, %v2158
    %v2484 = vmul.f32 %v1836, %v2163
    %v2485 = vmul.f32 %v1837, %v2168
    %v2486 = vmul.f32 %v1838, %v2173
    %v2487 = vmul.f32 %v1839, %v2178
    %v2488 = vmul.f32 %v1840, %v2183
    %v2489 = vmul.f32 %v1841, %v2188
    %v2490 = vmul.f32 %v1842, %v2193
    %v2491 = vmul.f32 %v1843, %v2198
    %v2492 = vmul.f32 %v1844, %v2203
    %v2493 = vmul.f32 %v1845, %v2208
    %v2494 = vmul.f32 %v1846, %v2213
    %v2495 = vmul.f32 %v1847, %v2218
    %v2496 = vmul.f32 %v1848, %v2223
    %v2497 = vmul.f32 %v1849, %v2228
    %v2498 = vmul.f32 %v1850, %v2233
    %v2499 = vmul.f32 %v1851, %v2238
    %v2500 = vmul.f32 %v1852, %v2243
    %v2501 = vmul.f32 %v1853, %v2248
    %v2502 = vmul.f32 %v1854, %v2253
    %v2503 = vmul.f32 %v1855, %v2258
    %v2504 = vmul.f32 %v1856, %v2263
    %v2505 = vmul.f32 %v1857, %v2268
    %v2506 = vmul.f32 %v1858, %v2273
    %v2507 = vmul.f32 %v1859, %v2278
    %v2508 = vmul.f32 %v1860, %v2283
    %v2509 = vmul.f32 %v1861, %v2288
    %v2510 = vmul.f32 %v1862, %v2293
    %v2511 = vmul.f32 %v1863, %v2298
    %v2512 = vmul.f32 %v1864, %v2303
    %v2513 = vmul.f32 %v1865, %v2308
    %v2514 = vmul.f32 %v1866, %v2313
    %v2515 = vmul.f32 %v1867, %v2318
    %v2516 = vmul.f32 %v1868, %v2323
    %v2517 = vmul.f32 %v1869, %v2328
    %v2518 = vmul.f32 %v1870, %v2333
    %v2519 = vmul.f32 %v1871, %v2338
    %v2520 = vmul.f32 %v1872, %v2343
    %v2521 = vmul.f32 %v1873, %v2348
    %v2522 = vmul.f32 %v1874, %v2353
    %v2523 = vmul.f32 %v1875, %v2358
    %v2524 = vmul.f32 %v1876, %v2363
    %v2525 = vmul.f32 %v1877, %v2368
    %v2526 = vmul.f32 %v1878, %v2373
    %v2527 = vmul.f32 %v1879, %v2378
    %v2528 = vmul.f32 %v1880, %v2383
    %v2529 = vmul.f32 %v1881, %v2388
    %v2530 = vmul.f32 %v1882, %v2393
    %v2531 = vmul.f32 %v1883, %v2398
    %v2532 = vmul.f32 %v1884, %v2403
    %v2533 = vmul.f32 %v1885, %v2408
    %v2534 = vmul.f32 %v1886, %v2413
    %v2535 = vmul.f32 %v1887, %v2418
    %v2536 = vmul.f32 %v1888, %v2423
    %v2537 = vmul.f32 %v1889, %v2428
    %v2538 = vpack.c.bf16 %v2430, %v2430
    %v2539 = vpack.c.bf16 %v2431, %v2431
    %v2540 = vpack.c.bf16 %v2432, %v2432
    %v2541 = vpack.c.bf16 %v2433, %v2433
    %v2542 = vpack.c.bf16 %v2434, %v2434
    %v2543 = vpack.c.bf16 %v2435, %v2435
    %v2544 = vpack.c.bf16 %v2436, %v2436
    %v2545 = vpack.c.bf16 %v2437, %v2437
    %v2546 = vpack.c.bf16 %v2438, %v2438
    %v2547 = vpack.c.bf16 %v2439, %v2439
    %v2548 = vpack.c.bf16 %v2440, %v2440
    %v2549 = vpack.c.bf16 %v2441, %v2441
    %v2550 = vpack.c.bf16 %v2442, %v2442
    %v2551 = vpack.c.bf16 %v2443, %v2443
    %v2552 = vpack.c.bf16 %v2444, %v2444
    %v2553 = vpack.c.bf16 %v2445, %v2445
    %v2554 = vpack.c.bf16 %v2446, %v2446
    %v2555 = vpack.c.bf16 %v2447, %v2447
    %v2556 = vpack.c.bf16 %v2448, %v2448
    %v2557 = vpack.c.bf16 %v2449, %v2449
    %v2558 = vpack.c.bf16 %v2450, %v2450
    %v2559 = vpack.c.bf16 %v2451, %v2451
    %v2560 = vpack.c.bf16 %v2452, %v2452
    %v2561 = vpack.c.bf16 %v2453, %v2453
    %v2562 = vpack.c.bf16 %v2454, %v2454
    %v2563 = vpack.c.bf16 %v2455, %v2455
    %v2564 = vpack.c.bf16 %v2456, %v2456
    %v2565 = vpack.c.bf16 %v2457, %v2457
    %v2566 = vpack.c.bf16 %v2458, %v2458
    %v2567 = vpack.c.bf16 %v2459, %v2459
    %v2568 = vpack.c.bf16 %v2460, %v2460
    %v2569 = vpack.c.bf16 %v2461, %v2461
    %v2570 = vpack.c.bf16 %v2462, %v2462
    %v2571 = vpack.c.bf16 %v2463, %v2463
    %v2572 = vpack.c.bf16 %v2464, %v2464
    %v2573 = vpack.c.bf16 %v2465, %v2465
    %v2574 = vpack.c.bf16 %v2466, %v2466
    %v2575 = vpack.c.bf16 %v2467, %v2467
    %v2576 = vpack.c.bf16 %v2468, %v2468
    %v2577 = vpack.c.bf16 %v2469, %v2469
    %v2578 = vpack.c.bf16 %v2470, %v2470
    %v2579 = vpack.c.bf16 %v2471, %v2471
    %v2580 = vpack.c.bf16 %v2472, %v2472
    %v2581 = vpack.c.bf16 %v2473, %v2473
    %v2582 = vpack.c.bf16 %v2474, %v2474
    %v2583 = vpack.c.bf16 %v2475, %v2475
    %v2584 = vpack.c.bf16 %v2476, %v2476
    %v2585 = vpack.c.bf16 %v2477, %v2477
    %v2586 = vpack.c.bf16 %v2478, %v2478
    %v2587 = vpack.c.bf16 %v2479, %v2479
    %v2588 = vpack.c.bf16 %v2480, %v2480
    %v2589 = vpack.c.bf16 %v2481, %v2481
    %v2590 = vpack.c.bf16 %v2482, %v2482
    %v2591 = vpack.c.bf16 %v2483, %v2483
    %v2592 = vpack.c.bf16 %v2484, %v2484
    %v2593 = vpack.c.bf16 %v2485, %v2485
    %v2594 = vpack.c.bf16 %v2486, %v2486
    %v2595 = vpack.c.bf16 %v2487, %v2487
    %v2596 = vpack.c.bf16 %v2488, %v2488
    %v2597 = vpack.c.bf16 %v2489, %v2489
    %v2598 = vpack.c.bf16 %v2490, %v2490
    %v2599 = vpack.c.bf16 %v2491, %v2491
    %v2600 = vpack.c.bf16 %v2492, %v2492
    %v2601 = vpack.c.bf16 %v2493, %v2493
    %v2602 = vpack.c.bf16 %v2494, %v2494
    %v2603 = vpack.c.bf16 %v2495, %v2495
    %v2604 = vpack.c.bf16 %v2496, %v2496
    %v2605 = vpack.c.bf16 %v2497, %v2497
    %v2606 = vpack.c.bf16 %v2498, %v2498
    %v2607 = vpack.c.bf16 %v2499, %v2499
    %v2608 = vpack.c.bf16 %v2500, %v2500
    %v2609 = vpack.c.bf16 %v2501, %v2501
    %v2610 = vpack.c.bf16 %v2502, %v2502
    %v2611 = vpack.c.bf16 %v2503, %v2503
    %v2612 = vpack.c.bf16 %v2504, %v2504
    %v2613 = vpack.c.bf16 %v2505, %v2505
    %v2614 = vpack.c.bf16 %v2506, %v2506
    %v2615 = vpack.c.bf16 %v2507, %v2507
    %v2616 = vpack.c.bf16 %v2508, %v2508
    %v2617 = vpack.c.bf16 %v2509, %v2509
    %v2618 = vpack.c.bf16 %v2510, %v2510
    %v2619 = vpack.c.bf16 %v2511, %v2511
    %v2620 = vpack.c.bf16 %v2512, %v2512
    %v2621 = vpack.c.bf16 %v2513, %v2513
    %v2622 = vpack.c.bf16 %v2514, %v2514
    %v2623 = vpack.c.bf16 %v2515, %v2515
    %v2624 = vpack.c.bf16 %v2516, %v2516
    %v2625 = vpack.c.bf16 %v2517, %v2517
    %v2626 = vpack.c.bf16 %v2518, %v2518
    %v2627 = vpack.c.bf16 %v2519, %v2519
    %v2628 = vpack.c.bf16 %v2520, %v2520
    %v2629 = vpack.c.bf16 %v2521, %v2521
    %v2630 = vpack.c.bf16 %v2522, %v2522
    %v2631 = vpack.c.bf16 %v2523, %v2523
    %v2632 = vpack.c.bf16 %v2524, %v2524
    %v2633 = vpack.c.bf16 %v2525, %v2525
    %v2634 = vpack.c.bf16 %v2526, %v2526
    %v2635 = vpack.c.bf16 %v2527, %v2527
    %v2636 = vpack.c.bf16 %v2528, %v2528
    %v2637 = vpack.c.bf16 %v2529, %v2529
    %v2638 = vpack.c.bf16 %v2530, %v2530
    %v2639 = vpack.c.bf16 %v2531, %v2531
    %v2640 = vpack.c.bf16 %v2532, %v2532
    %v2641 = vpack.c.bf16 %v2533, %v2533
    %v2642 = vpack.c.bf16 %v2534, %v2534
    %v2643 = vpack.c.bf16 %v2535, %v2535
    %v2644 = vpack.c.bf16 %v2536, %v2536
    %v2645 = vpack.c.bf16 %v2537, %v2537
    %vm2646 = vsmask.f32 3328
    %vm2647 = vsmask.f32 7440
    %vm2648 = vmor %vm2646, %vm2647
    %v2650 = vshrl.u32 %v2538, 16
    %v2652 = vrot.slane %v2650, 4
    %v2653 = vshll.u32 %v2538, 16
    %v2655 = vrot.slane %v2653, 5
    %v2656 = vor.u32 %v2652, %v2655
    %v2657 = vrot.slane %v2656, 4
    %v2659 = vshll.u32 %v2539, 16
    %v2661 = vrot.slane %v2659, 5
    %v2662 = vsel %vm2648, %v2657, %v2661
    %v2663 = vshrl.u32 %v2539, 16
    %v2665 = vrot.slane %v2663, 4
    %v2666 = vor.u32 %v2665, %v2661
    %v2667 = vrot.slane %v2666, 4
    %v2669 = vshll.u32 %v2540, 16
    %v2671 = vrot.slane %v2669, 5
    %v2672 = vsel %vm2648, %v2667, %v2671
    %v2674 = vshrl.u32 %v2541, 16
    %v2676 = vrot.slane %v2674, 4
    %v2677 = vshll.u32 %v2541, 16
    %v2679 = vrot.slane %v2677, 5
    %v2680 = vor.u32 %v2676, %v2679
    %v2681 = vrot.slane %v2680, 4
    %v2683 = vshll.u32 %v2542, 16
    %v2685 = vrot.slane %v2683, 5
    %v2686 = vsel %vm2648, %v2681, %v2685
    %v2687 = vshrl.u32 %v2542, 16
    %v2689 = vrot.slane %v2687, 4
    %v2690 = vor.u32 %v2689, %v2685
    %v2691 = vrot.slane %v2690, 4
    %v2693 = vshll.u32 %v2543, 16
    %v2695 = vrot.slane %v2693, 5
    %v2696 = vsel %vm2648, %v2691, %v2695
    %v2698 = vshrl.u32 %v2544, 16
    %v2700 = vrot.slane %v2698, 4
    %v2701 = vshll.u32 %v2544, 16
    %v2703 = vrot.slane %v2701, 5
    %v2704 = vor.u32 %v2700, %v2703
    %v2705 = vrot.slane %v2704, 4
    %v2707 = vshll.u32 %v2545, 16
    %v2709 = vrot.slane %v2707, 5
    %v2710 = vsel %vm2648, %v2705, %v2709
    %v2711 = vshrl.u32 %v2545, 16
    %v2713 = vrot.slane %v2711, 4
    %v2714 = vor.u32 %v2713, %v2709
    %v2715 = vrot.slane %v2714, 4
    %v2717 = vshll.u32 %v2546, 16
    %v2719 = vrot.slane %v2717, 5
    %v2720 = vsel %vm2648, %v2715, %v2719
    %v2722 = vshrl.u32 %v2547, 16
    %v2724 = vrot.slane %v2722, 4
    %v2725 = vshll.u32 %v2547, 16
    %v2727 = vrot.slane %v2725, 5
    %v2728 = vor.u32 %v2724, %v2727
    %v2729 = vrot.slane %v2728, 4
    %v2731 = vshll.u32 %v2548, 16
    %v2733 = vrot.slane %v2731, 5
    %v2734 = vsel %vm2648, %v2729, %v2733
    %v2735 = vshrl.u32 %v2548, 16
    %v2737 = vrot.slane %v2735, 4
    %v2738 = vor.u32 %v2737, %v2733
    %v2739 = vrot.slane %v2738, 4
    %v2741 = vshll.u32 %v2549, 16
    %v2743 = vrot.slane %v2741, 5
    %v2744 = vsel %vm2648, %v2739, %v2743
    %v2746 = vshrl.u32 %v2550, 16
    %v2748 = vrot.slane %v2746, 4
    %v2749 = vshll.u32 %v2550, 16
    %v2751 = vrot.slane %v2749, 5
    %v2752 = vor.u32 %v2748, %v2751
    %v2753 = vrot.slane %v2752, 4
    %v2755 = vshll.u32 %v2551, 16
    %v2757 = vrot.slane %v2755, 5
    %v2758 = vsel %vm2648, %v2753, %v2757
    %v2759 = vshrl.u32 %v2551, 16
    %v2761 = vrot.slane %v2759, 4
    %v2762 = vor.u32 %v2761, %v2757
    %v2763 = vrot.slane %v2762, 4
    %v2765 = vshll.u32 %v2552, 16
    %v2767 = vrot.slane %v2765, 5
    %v2768 = vsel %vm2648, %v2763, %v2767
    %v2770 = vshrl.u32 %v2553, 16
    %v2772 = vrot.slane %v2770, 4
    %v2773 = vshll.u32 %v2553, 16
    %v2775 = vrot.slane %v2773, 5
    %v2776 = vor.u32 %v2772, %v2775
    %v2777 = vrot.slane %v2776, 4
    %v2779 = vshll.u32 %v2554, 16
    %v2781 = vrot.slane %v2779, 5
    %v2782 = vsel %vm2648, %v2777, %v2781
    %v2783 = vshrl.u32 %v2554, 16
    %v2785 = vrot.slane %v2783, 4
    %v2786 = vor.u32 %v2785, %v2781
    %v2787 = vrot.slane %v2786, 4
    %v2789 = vshll.u32 %v2555, 16
    %v2791 = vrot.slane %v2789, 5
    %v2792 = vsel %vm2648, %v2787, %v2791
    %v2794 = vshrl.u32 %v2556, 16
    %v2796 = vrot.slane %v2794, 4
    %v2797 = vshll.u32 %v2556, 16
    %v2799 = vrot.slane %v2797, 5
    %v2800 = vor.u32 %v2796, %v2799
    %v2801 = vrot.slane %v2800, 4
    %v2803 = vshll.u32 %v2557, 16
    %v2805 = vrot.slane %v2803, 5
    %v2806 = vsel %vm2648, %v2801, %v2805
    %v2807 = vshrl.u32 %v2557, 16
    %v2809 = vrot.slane %v2807, 4
    %v2810 = vor.u32 %v2809, %v2805
    %v2811 = vrot.slane %v2810, 4
    %v2813 = vshll.u32 %v2558, 16
    %v2815 = vrot.slane %v2813, 5
    %v2816 = vsel %vm2648, %v2811, %v2815
    %v2818 = vshrl.u32 %v2559, 16
    %v2820 = vrot.slane %v2818, 4
    %v2821 = vshll.u32 %v2559, 16
    %v2823 = vrot.slane %v2821, 5
    %v2824 = vor.u32 %v2820, %v2823
    %v2825 = vrot.slane %v2824, 4
    %v2827 = vshll.u32 %v2560, 16
    %v2829 = vrot.slane %v2827, 5
    %v2830 = vsel %vm2648, %v2825, %v2829
    %v2831 = vshrl.u32 %v2560, 16
    %v2833 = vrot.slane %v2831, 4
    %v2834 = vor.u32 %v2833, %v2829
    %v2835 = vrot.slane %v2834, 4
    %v2837 = vshll.u32 %v2561, 16
    %v2839 = vrot.slane %v2837, 5
    %v2840 = vsel %vm2648, %v2835, %v2839
    %v2842 = vshrl.u32 %v2562, 16
    %v2844 = vrot.slane %v2842, 4
    %v2845 = vshll.u32 %v2562, 16
    %v2847 = vrot.slane %v2845, 5
    %v2848 = vor.u32 %v2844, %v2847
    %v2849 = vrot.slane %v2848, 4
    %v2851 = vshll.u32 %v2563, 16
    %v2853 = vrot.slane %v2851, 5
    %v2854 = vsel %vm2648, %v2849, %v2853
    %v2855 = vshrl.u32 %v2563, 16
    %v2857 = vrot.slane %v2855, 4
    %v2858 = vor.u32 %v2857, %v2853
    %v2859 = vrot.slane %v2858, 4
    %v2861 = vshll.u32 %v2564, 16
    %v2863 = vrot.slane %v2861, 5
    %v2864 = vsel %vm2648, %v2859, %v2863
    %v2866 = vshrl.u32 %v2565, 16
    %v2868 = vrot.slane %v2866, 4
    %v2869 = vshll.u32 %v2565, 16
    %v2871 = vrot.slane %v2869, 5
    %v2872 = vor.u32 %v2868, %v2871
    %v2873 = vrot.slane %v2872, 4
    %v2875 = vshll.u32 %v2566, 16
    %v2877 = vrot.slane %v2875, 5
    %v2878 = vsel %vm2648, %v2873, %v2877
    %v2879 = vshrl.u32 %v2566, 16
    %v2881 = vrot.slane %v2879, 4
    %v2882 = vor.u32 %v2881, %v2877
    %v2883 = vrot.slane %v2882, 4
    %v2885 = vshll.u32 %v2567, 16
    %v2887 = vrot.slane %v2885, 5
    %v2888 = vsel %vm2648, %v2883, %v2887
    %v2890 = vshrl.u32 %v2568, 16
    %v2892 = vrot.slane %v2890, 4
    %v2893 = vshll.u32 %v2568, 16
    %v2895 = vrot.slane %v2893, 5
    %v2896 = vor.u32 %v2892, %v2895
    %v2897 = vrot.slane %v2896, 4
    %v2899 = vshll.u32 %v2569, 16
    %v2901 = vrot.slane %v2899, 5
    %v2902 = vsel %vm2648, %v2897, %v2901
    %v2903 = vshrl.u32 %v2569, 16
    %v2905 = vrot.slane %v2903, 4
    %v2906 = vor.u32 %v2905, %v2901
    %v2907 = vrot.slane %v2906, 4
    %v2909 = vshll.u32 %v2570, 16
    %v2911 = vrot.slane %v2909, 5
    %v2912 = vsel %vm2648, %v2907, %v2911
    %v2914 = vshrl.u32 %v2571, 16
    %v2916 = vrot.slane %v2914, 4
    %v2917 = vshll.u32 %v2571, 16
    %v2919 = vrot.slane %v2917, 5
    %v2920 = vor.u32 %v2916, %v2919
    %v2921 = vrot.slane %v2920, 4
    %v2923 = vshll.u32 %v2572, 16
    %v2925 = vrot.slane %v2923, 5
    %v2926 = vsel %vm2648, %v2921, %v2925
    %v2927 = vshrl.u32 %v2572, 16
    %v2929 = vrot.slane %v2927, 4
    %v2930 = vor.u32 %v2929, %v2925
    %v2931 = vrot.slane %v2930, 4
    %v2933 = vshll.u32 %v2573, 16
    %v2935 = vrot.slane %v2933, 5
    %v2936 = vsel %vm2648, %v2931, %v2935
    %v2938 = vshrl.u32 %v2574, 16
    %v2940 = vrot.slane %v2938, 4
    %v2941 = vshll.u32 %v2574, 16
    %v2943 = vrot.slane %v2941, 5
    %v2944 = vor.u32 %v2940, %v2943
    %v2945 = vrot.slane %v2944, 4
    %v2947 = vshll.u32 %v2575, 16
    %v2949 = vrot.slane %v2947, 5
    %v2950 = vsel %vm2648, %v2945, %v2949
    %v2951 = vshrl.u32 %v2575, 16
    %v2953 = vrot.slane %v2951, 4
    %v2954 = vor.u32 %v2953, %v2949
    %v2955 = vrot.slane %v2954, 4
    %v2957 = vshll.u32 %v2576, 16
    %v2959 = vrot.slane %v2957, 5
    %v2960 = vsel %vm2648, %v2955, %v2959
    %v2962 = vshrl.u32 %v2577, 16
    %v2964 = vrot.slane %v2962, 4
    %v2965 = vshll.u32 %v2577, 16
    %v2967 = vrot.slane %v2965, 5
    %v2968 = vor.u32 %v2964, %v2967
    %v2969 = vrot.slane %v2968, 4
    %v2971 = vshll.u32 %v2578, 16
    %v2973 = vrot.slane %v2971, 5
    %v2974 = vsel %vm2648, %v2969, %v2973
    %v2975 = vshrl.u32 %v2578, 16
    %v2977 = vrot.slane %v2975, 4
    %v2978 = vor.u32 %v2977, %v2973
    %v2979 = vrot.slane %v2978, 4
    %v2981 = vshll.u32 %v2579, 16
    %v2983 = vrot.slane %v2981, 5
    %v2984 = vsel %vm2648, %v2979, %v2983
    %v2986 = vshrl.u32 %v2580, 16
    %v2988 = vrot.slane %v2986, 4
    %v2989 = vshll.u32 %v2580, 16
    %v2991 = vrot.slane %v2989, 5
    %v2992 = vor.u32 %v2988, %v2991
    %v2993 = vrot.slane %v2992, 4
    %v2995 = vshll.u32 %v2581, 16
    %v2997 = vrot.slane %v2995, 5
    %v2998 = vsel %vm2648, %v2993, %v2997
    %v2999 = vshrl.u32 %v2581, 16
    %v3001 = vrot.slane %v2999, 4
    %v3002 = vor.u32 %v3001, %v2997
    %v3003 = vrot.slane %v3002, 4
    %v3005 = vshll.u32 %v2582, 16
    %v3007 = vrot.slane %v3005, 5
    %v3008 = vsel %vm2648, %v3003, %v3007
    %v3010 = vshrl.u32 %v2583, 16
    %v3012 = vrot.slane %v3010, 4
    %v3013 = vshll.u32 %v2583, 16
    %v3015 = vrot.slane %v3013, 5
    %v3016 = vor.u32 %v3012, %v3015
    %v3017 = vrot.slane %v3016, 4
    %v3019 = vshll.u32 %v2584, 16
    %v3021 = vrot.slane %v3019, 5
    %v3022 = vsel %vm2648, %v3017, %v3021
    %v3023 = vshrl.u32 %v2584, 16
    %v3025 = vrot.slane %v3023, 4
    %v3026 = vor.u32 %v3025, %v3021
    %v3027 = vrot.slane %v3026, 4
    %v3029 = vshll.u32 %v2585, 16
    %v3031 = vrot.slane %v3029, 5
    %v3032 = vsel %vm2648, %v3027, %v3031
    %v3034 = vshrl.u32 %v2592, 16
    %v3036 = vrot.slane %v3034, 4
    %v3037 = vshll.u32 %v2592, 16
    %v3039 = vrot.slane %v3037, 5
    %v3040 = vor.u32 %v3036, %v3039
    %v3041 = vrot.slane %v3040, 4
    %v3043 = vshll.u32 %v2593, 16
    %v3045 = vrot.slane %v3043, 5
    %v3046 = vsel %vm2648, %v3041, %v3045
    %v3047 = vshrl.u32 %v2593, 16
    %v3049 = vrot.slane %v3047, 4
    %v3050 = vor.u32 %v3049, %v3045
    %v3051 = vrot.slane %v3050, 4
    %v3053 = vshll.u32 %v2594, 16
    %v3055 = vrot.slane %v3053, 5
    %v3056 = vsel %vm2648, %v3051, %v3055
    %v3058 = vshrl.u32 %v2595, 16
    %v3060 = vrot.slane %v3058, 4
    %v3061 = vshll.u32 %v2595, 16
    %v3063 = vrot.slane %v3061, 5
    %v3064 = vor.u32 %v3060, %v3063
    %v3065 = vrot.slane %v3064, 4
    %v3067 = vshll.u32 %v2596, 16
    %v3069 = vrot.slane %v3067, 5
    %v3070 = vsel %vm2648, %v3065, %v3069
    %v3071 = vshrl.u32 %v2596, 16
    %v3073 = vrot.slane %v3071, 4
    %v3074 = vor.u32 %v3073, %v3069
    %v3075 = vrot.slane %v3074, 4
    %v3077 = vshll.u32 %v2597, 16
    %v3079 = vrot.slane %v3077, 5
    %v3080 = vsel %vm2648, %v3075, %v3079
    %v3082 = vshrl.u32 %v2598, 16
    %v3084 = vrot.slane %v3082, 4
    %v3085 = vshll.u32 %v2598, 16
    %v3087 = vrot.slane %v3085, 5
    %v3088 = vor.u32 %v3084, %v3087
    %v3089 = vrot.slane %v3088, 4
    %v3091 = vshll.u32 %v2599, 16
    %v3093 = vrot.slane %v3091, 5
    %v3094 = vsel %vm2648, %v3089, %v3093
    %v3095 = vshrl.u32 %v2599, 16
    %v3097 = vrot.slane %v3095, 4
    %v3098 = vor.u32 %v3097, %v3093
    %v3099 = vrot.slane %v3098, 4
    %v3101 = vshll.u32 %v2600, 16
    %v3103 = vrot.slane %v3101, 5
    %v3104 = vsel %vm2648, %v3099, %v3103
    %v3106 = vshrl.u32 %v2601, 16
    %v3108 = vrot.slane %v3106, 4
    %v3109 = vshll.u32 %v2601, 16
    %v3111 = vrot.slane %v3109, 5
    %v3112 = vor.u32 %v3108, %v3111
    %v3113 = vrot.slane %v3112, 4
    %v3115 = vshll.u32 %v2602, 16
    %v3117 = vrot.slane %v3115, 5
    %v3118 = vsel %vm2648, %v3113, %v3117
    %v3119 = vshrl.u32 %v2602, 16
    %v3121 = vrot.slane %v3119, 4
    %v3122 = vor.u32 %v3121, %v3117
    %v3123 = vrot.slane %v3122, 4
    %v3125 = vshll.u32 %v2603, 16
    %v3127 = vrot.slane %v3125, 5
    %v3128 = vsel %vm2648, %v3123, %v3127
    %v3130 = vshrl.u32 %v2604, 16
    %v3132 = vrot.slane %v3130, 4
    %v3133 = vshll.u32 %v2604, 16
    %v3135 = vrot.slane %v3133, 5
    %v3136 = vor.u32 %v3132, %v3135
    %v3137 = vrot.slane %v3136, 4
    %v3139 = vshll.u32 %v2605, 16
    %v3141 = vrot.slane %v3139, 5
    %v3142 = vsel %vm2648, %v3137, %v3141
    %v3143 = vshrl.u32 %v2605, 16
    %v3145 = vrot.slane %v3143, 4
    %v3146 = vor.u32 %v3145, %v3141
    %v3147 = vrot.slane %v3146, 4
    %v3149 = vshll.u32 %v2606, 16
    %v3151 = vrot.slane %v3149, 5
    %v3152 = vsel %vm2648, %v3147, %v3151
    %v3154 = vshrl.u32 %v2607, 16
    %v3156 = vrot.slane %v3154, 4
    %v3157 = vshll.u32 %v2607, 16
    %v3159 = vrot.slane %v3157, 5
    %v3160 = vor.u32 %v3156, %v3159
    %v3161 = vrot.slane %v3160, 4
    %v3163 = vshll.u32 %v2608, 16
    %v3165 = vrot.slane %v3163, 5
    %v3166 = vsel %vm2648, %v3161, %v3165
    %v3167 = vshrl.u32 %v2608, 16
    %v3169 = vrot.slane %v3167, 4
    %v3170 = vor.u32 %v3169, %v3165
    %v3171 = vrot.slane %v3170, 4
    %v3173 = vshll.u32 %v2609, 16
    %v3175 = vrot.slane %v3173, 5
    %v3176 = vsel %vm2648, %v3171, %v3175
    %v3178 = vshrl.u32 %v2610, 16
    %v3180 = vrot.slane %v3178, 4
    %v3181 = vshll.u32 %v2610, 16
    %v3183 = vrot.slane %v3181, 5
    %v3184 = vor.u32 %v3180, %v3183
    %v3185 = vrot.slane %v3184, 4
    %v3187 = vshll.u32 %v2611, 16
    %v3189 = vrot.slane %v3187, 5
    %v3190 = vsel %vm2648, %v3185, %v3189
    %v3191 = vshrl.u32 %v2611, 16
    %v3193 = vrot.slane %v3191, 4
    %v3194 = vor.u32 %v3193, %v3189
    %v3195 = vrot.slane %v3194, 4
    %v3197 = vshll.u32 %v2612, 16
    %v3199 = vrot.slane %v3197, 5
    %v3200 = vsel %vm2648, %v3195, %v3199
    %v3202 = vshrl.u32 %v2613, 16
    %v3204 = vrot.slane %v3202, 4
    %v3205 = vshll.u32 %v2613, 16
    %v3207 = vrot.slane %v3205, 5
    %v3208 = vor.u32 %v3204, %v3207
    %v3209 = vrot.slane %v3208, 4
    %v3211 = vshll.u32 %v2614, 16
    %v3213 = vrot.slane %v3211, 5
    %v3214 = vsel %vm2648, %v3209, %v3213
    %v3215 = vshrl.u32 %v2614, 16
    %v3217 = vrot.slane %v3215, 4
    %v3218 = vor.u32 %v3217, %v3213
    %v3219 = vrot.slane %v3218, 4
    %v3221 = vshll.u32 %v2615, 16
    %v3223 = vrot.slane %v3221, 5
    %v3224 = vsel %vm2648, %v3219, %v3223
    %v3226 = vshrl.u32 %v2616, 16
    %v3228 = vrot.slane %v3226, 4
    %v3229 = vshll.u32 %v2616, 16
    %v3231 = vrot.slane %v3229, 5
    %v3232 = vor.u32 %v3228, %v3231
    %v3233 = vrot.slane %v3232, 4
    %v3235 = vshll.u32 %v2617, 16
    %v3237 = vrot.slane %v3235, 5
    %v3238 = vsel %vm2648, %v3233, %v3237
    %v3239 = vshrl.u32 %v2617, 16
    %v3241 = vrot.slane %v3239, 4
    %v3242 = vor.u32 %v3241, %v3237
    %v3243 = vrot.slane %v3242, 4
    %v3245 = vshll.u32 %v2618, 16
    %v3247 = vrot.slane %v3245, 5
    %v3248 = vsel %vm2648, %v3243, %v3247
    %v3250 = vshrl.u32 %v2619, 16
    %v3252 = vrot.slane %v3250, 4
    %v3253 = vshll.u32 %v2619, 16
    %v3255 = vrot.slane %v3253, 5
    %v3256 = vor.u32 %v3252, %v3255
    %v3257 = vrot.slane %v3256, 4
    %v3259 = vshll.u32 %v2620, 16
    %v3261 = vrot.slane %v3259, 5
    %v3262 = vsel %vm2648, %v3257, %v3261
    %v3263 = vshrl.u32 %v2620, 16
    %v3265 = vrot.slane %v3263, 4
    %v3266 = vor.u32 %v3265, %v3261
    %v3267 = vrot.slane %v3266, 4
    %v3269 = vshll.u32 %v2621, 16
    %v3271 = vrot.slane %v3269, 5
    %v3272 = vsel %vm2648, %v3267, %v3271
    %v3274 = vshrl.u32 %v2622, 16
    %v3276 = vrot.slane %v3274, 4
    %v3277 = vshll.u32 %v2622, 16
    %v3279 = vrot.slane %v3277, 5
    %v3280 = vor.u32 %v3276, %v3279
    %v3281 = vrot.slane %v3280, 4
    %v3283 = vshll.u32 %v2623, 16
    %v3285 = vrot.slane %v3283, 5
    %v3286 = vsel %vm2648, %v3281, %v3285
    %v3287 = vshrl.u32 %v2623, 16
    %v3289 = vrot.slane %v3287, 4
    %v3290 = vor.u32 %v3289, %v3285
    %v3291 = vrot.slane %v3290, 4
    %v3293 = vshll.u32 %v2624, 16
    %v3295 = vrot.slane %v3293, 5
    %v3296 = vsel %vm2648, %v3291, %v3295
    %v3298 = vshrl.u32 %v2625, 16
    %v3300 = vrot.slane %v3298, 4
    %v3301 = vshll.u32 %v2625, 16
    %v3303 = vrot.slane %v3301, 5
    %v3304 = vor.u32 %v3300, %v3303
    %v3305 = vrot.slane %v3304, 4
    %v3307 = vshll.u32 %v2626, 16
    %v3309 = vrot.slane %v3307, 5
    %v3310 = vsel %vm2648, %v3305, %v3309
    %v3311 = vshrl.u32 %v2626, 16
    %v3313 = vrot.slane %v3311, 4
    %v3314 = vor.u32 %v3313, %v3309
    %v3315 = vrot.slane %v3314, 4
    %v3317 = vshll.u32 %v2627, 16
    %v3319 = vrot.slane %v3317, 5
    %v3320 = vsel %vm2648, %v3315, %v3319
    %v3322 = vshrl.u32 %v2628, 16
    %v3324 = vrot.slane %v3322, 4
    %v3325 = vshll.u32 %v2628, 16
    %v3327 = vrot.slane %v3325, 5
    %v3328 = vor.u32 %v3324, %v3327
    %v3329 = vrot.slane %v3328, 4
    %v3331 = vshll.u32 %v2629, 16
    %v3333 = vrot.slane %v3331, 5
    %v3334 = vsel %vm2648, %v3329, %v3333
    %v3335 = vshrl.u32 %v2629, 16
    %v3337 = vrot.slane %v3335, 4
    %v3338 = vor.u32 %v3337, %v3333
    %v3339 = vrot.slane %v3338, 4
    %v3341 = vshll.u32 %v2630, 16
    %v3343 = vrot.slane %v3341, 5
    %v3344 = vsel %vm2648, %v3339, %v3343
    %v3346 = vshrl.u32 %v2631, 16
    %v3348 = vrot.slane %v3346, 4
    %v3349 = vshll.u32 %v2631, 16
    %v3351 = vrot.slane %v3349, 5
    %v3352 = vor.u32 %v3348, %v3351
    %v3353 = vrot.slane %v3352, 4
    %v3355 = vshll.u32 %v2632, 16
    %v3357 = vrot.slane %v3355, 5
    %v3358 = vsel %vm2648, %v3353, %v3357
    %v3359 = vshrl.u32 %v2632, 16
    %v3361 = vrot.slane %v3359, 4
    %v3362 = vor.u32 %v3361, %v3357
    %v3363 = vrot.slane %v3362, 4
    %v3365 = vshll.u32 %v2633, 16
    %v3367 = vrot.slane %v3365, 5
    %v3368 = vsel %vm2648, %v3363, %v3367
    %v3370 = vshrl.u32 %v2634, 16
    %v3372 = vrot.slane %v3370, 4
    %v3373 = vshll.u32 %v2634, 16
    %v3375 = vrot.slane %v3373, 5
    %v3376 = vor.u32 %v3372, %v3375
    %v3377 = vrot.slane %v3376, 4
    %v3379 = vshll.u32 %v2635, 16
    %v3381 = vrot.slane %v3379, 5
    %v3382 = vsel %vm2648, %v3377, %v3381
    %v3383 = vshrl.u32 %v2635, 16
    %v3385 = vrot.slane %v3383, 4
    %v3386 = vor.u32 %v3385, %v3381
    %v3387 = vrot.slane %v3386, 4
    %v3389 = vshll.u32 %v2636, 16
    %v3391 = vrot.slane %v3389, 5
    %v3392 = vsel %vm2648, %v3387, %v3391
    %v3394 = vshrl.u32 %v2637, 16
    %v3396 = vrot.slane %v3394, 4
    %v3397 = vshll.u32 %v2637, 16
    %v3399 = vrot.slane %v3397, 5
    %v3400 = vor.u32 %v3396, %v3399
    %v3401 = vrot.slane %v3400, 4
    %v3403 = vshll.u32 %v2638, 16
    %v3405 = vrot.slane %v3403, 5
    %v3406 = vsel %vm2648, %v3401, %v3405
    %v3407 = vshrl.u32 %v2638, 16
    %v3409 = vrot.slane %v3407, 4
    %v3410 = vor.u32 %v3409, %v3405
    %v3411 = vrot.slane %v3410, 4
    %v3413 = vshll.u32 %v2639, 16
    %v3415 = vrot.slane %v3413, 5
    %v3416 = vsel %vm2648, %v3411, %v3415
    %vm3513 = vcmask 1042432
    %vm3514 = vcmask 1046532
    %vm3515 = vmor %vm3513, %vm3514
    %v3516 = vrot.slane %v2538, 5
    %v3517 = vrot.slane %v3516, 4
    %v3518 = vrot.slane %v2539, 5
    %v3519 = vsel %vm3515, %v3517, %v3518
    %v3520 = vrot.slane %v3518, 4
    %v3521 = vrot.slane %v2540, 5
    %v3522 = vsel %vm3515, %v3520, %v3521
    %v3523 = vrot.slane %v2541, 5
    %v3524 = vrot.slane %v3523, 4
    %v3525 = vrot.slane %v2542, 5
    %v3526 = vsel %vm3515, %v3524, %v3525
    %v3527 = vrot.slane %v3525, 4
    %v3528 = vrot.slane %v2543, 5
    %v3529 = vsel %vm3515, %v3527, %v3528
    %v3530 = vrot.slane %v2544, 5
    %v3531 = vrot.slane %v3530, 4
    %v3532 = vrot.slane %v2545, 5
    %v3533 = vsel %vm3515, %v3531, %v3532
    %v3534 = vrot.slane %v3532, 4
    %v3535 = vrot.slane %v2546, 5
    %v3536 = vsel %vm3515, %v3534, %v3535
    %v3537 = vrot.slane %v2547, 5
    %v3538 = vrot.slane %v3537, 4
    %v3539 = vrot.slane %v2548, 5
    %v3540 = vsel %vm3515, %v3538, %v3539
    %v3541 = vrot.slane %v3539, 4
    %v3542 = vrot.slane %v2549, 5
    %v3543 = vsel %vm3515, %v3541, %v3542
    %v3544 = vrot.slane %v2550, 5
    %v3545 = vrot.slane %v3544, 4
    %v3546 = vrot.slane %v2551, 5
    %v3547 = vsel %vm3515, %v3545, %v3546
    %v3548 = vrot.slane %v3546, 4
    %v3549 = vrot.slane %v2552, 5
    %v3550 = vsel %vm3515, %v3548, %v3549
    %v3551 = vrot.slane %v2553, 5
    %v3552 = vrot.slane %v3551, 4
    %v3553 = vrot.slane %v2554, 5
    %v3554 = vsel %vm3515, %v3552, %v3553
    %v3555 = vrot.slane %v3553, 4
    %v3556 = vrot.slane %v2555, 5
    %v3557 = vsel %vm3515, %v3555, %v3556
    %v3558 = vrot.slane %v2556, 5
    %v3559 = vrot.slane %v3558, 4
    %v3560 = vrot.slane %v2557, 5
    %v3561 = vsel %vm3515, %v3559, %v3560
    %v3562 = vrot.slane %v3560, 4
    %v3563 = vrot.slane %v2558, 5
    %v3564 = vsel %vm3515, %v3562, %v3563
    %v3565 = vrot.slane %v2559, 5
    %v3566 = vrot.slane %v3565, 4
    %v3567 = vrot.slane %v2560, 5
    %v3568 = vsel %vm3515, %v3566, %v3567
    %v3569 = vrot.slane %v3567, 4
    %v3570 = vrot.slane %v2561, 5
    %v3571 = vsel %vm3515, %v3569, %v3570
    %v3572 = vrot.slane %v2562, 5
    %v3573 = vrot.slane %v3572, 4
    %v3574 = vrot.slane %v2563, 5
    %v3575 = vsel %vm3515, %v3573, %v3574
    %v3576 = vrot.slane %v3574, 4
    %v3577 = vrot.slane %v2564, 5
    %v3578 = vsel %vm3515, %v3576, %v3577
    %v3579 = vrot.slane %v2565, 5
    %v3580 = vrot.slane %v3579, 4
    %v3581 = vrot.slane %v2566, 5
    %v3582 = vsel %vm3515, %v3580, %v3581
    %v3583 = vrot.slane %v3581, 4
    %v3584 = vrot.slane %v2567, 5
    %v3585 = vsel %vm3515, %v3583, %v3584
    %v3586 = vrot.slane %v2568, 5
    %v3587 = vrot.slane %v3586, 4
    %v3588 = vrot.slane %v2569, 5
    %v3589 = vsel %vm3515, %v3587, %v3588
    %v3590 = vrot.slane %v3588, 4
    %v3591 = vrot.slane %v2570, 5
    %v3592 = vsel %vm3515, %v3590, %v3591
    %v3593 = vrot.slane %v2571, 5
    %v3594 = vrot.slane %v3593, 4
    %v3595 = vrot.slane %v2572, 5
    %v3596 = vsel %vm3515, %v3594, %v3595
    %v3597 = vrot.slane %v3595, 4
    %v3598 = vrot.slane %v2573, 5
    %v3599 = vsel %vm3515, %v3597, %v3598
    %v3600 = vrot.slane %v2574, 5
    %v3601 = vrot.slane %v3600, 4
    %v3602 = vrot.slane %v2575, 5
    %v3603 = vsel %vm3515, %v3601, %v3602
    %v3604 = vrot.slane %v3602, 4
    %v3605 = vrot.slane %v2576, 5
    %v3606 = vsel %vm3515, %v3604, %v3605
    %v3607 = vrot.slane %v2577, 5
    %v3608 = vrot.slane %v3607, 4
    %v3609 = vrot.slane %v2578, 5
    %v3610 = vsel %vm3515, %v3608, %v3609
    %v3611 = vrot.slane %v3609, 4
    %v3612 = vrot.slane %v2579, 5
    %v3613 = vsel %vm3515, %v3611, %v3612
    %v3614 = vrot.slane %v2580, 5
    %v3615 = vrot.slane %v3614, 4
    %v3616 = vrot.slane %v2581, 5
    %v3617 = vsel %vm3515, %v3615, %v3616
    %v3618 = vrot.slane %v3616, 4
    %v3619 = vrot.slane %v2582, 5
    %v3620 = vsel %vm3515, %v3618, %v3619
    %v3621 = vrot.slane %v2583, 5
    %v3622 = vrot.slane %v3621, 4
    %v3623 = vrot.slane %v2584, 5
    %v3624 = vsel %vm3515, %v3622, %v3623
    %v3625 = vrot.slane %v3623, 4
    %v3626 = vrot.slane %v2585, 5
    %v3627 = vsel %vm3515, %v3625, %v3626
    %v3628 = vrot.slane %v2592, 5
    %v3629 = vrot.slane %v3628, 4
    %v3630 = vrot.slane %v2593, 5
    %v3631 = vsel %vm3515, %v3629, %v3630
    %v3632 = vrot.slane %v3630, 4
    %v3633 = vrot.slane %v2594, 5
    %v3634 = vsel %vm3515, %v3632, %v3633
    %v3635 = vrot.slane %v2595, 5
    %v3636 = vrot.slane %v3635, 4
    %v3637 = vrot.slane %v2596, 5
    %v3638 = vsel %vm3515, %v3636, %v3637
    %v3639 = vrot.slane %v3637, 4
    %v3640 = vrot.slane %v2597, 5
    %v3641 = vsel %vm3515, %v3639, %v3640
    %v3642 = vrot.slane %v2598, 5
    %v3643 = vrot.slane %v3642, 4
    %v3644 = vrot.slane %v2599, 5
    %v3645 = vsel %vm3515, %v3643, %v3644
    %v3646 = vrot.slane %v3644, 4
    %v3647 = vrot.slane %v2600, 5
    %v3648 = vsel %vm3515, %v3646, %v3647
    %v3649 = vrot.slane %v2601, 5
    %v3650 = vrot.slane %v3649, 4
    %v3651 = vrot.slane %v2602, 5
    %v3652 = vsel %vm3515, %v3650, %v3651
    %v3653 = vrot.slane %v3651, 4
    %v3654 = vrot.slane %v2603, 5
    %v3655 = vsel %vm3515, %v3653, %v3654
    %v3656 = vrot.slane %v2604, 5
    %v3657 = vrot.slane %v3656, 4
    %v3658 = vrot.slane %v2605, 5
    %v3659 = vsel %vm3515, %v3657, %v3658
    %v3660 = vrot.slane %v3658, 4
    %v3661 = vrot.slane %v2606, 5
    %v3662 = vsel %vm3515, %v3660, %v3661
    %v3663 = vrot.slane %v2607, 5
    %v3664 = vrot.slane %v3663, 4
    %v3665 = vrot.slane %v2608, 5
    %v3666 = vsel %vm3515, %v3664, %v3665
    %v3667 = vrot.slane %v3665, 4
    %v3668 = vrot.slane %v2609, 5
    %v3669 = vsel %vm3515, %v3667, %v3668
    %v3670 = vrot.slane %v2610, 5
    %v3671 = vrot.slane %v3670, 4
    %v3672 = vrot.slane %v2611, 5
    %v3673 = vsel %vm3515, %v3671, %v3672
    %v3674 = vrot.slane %v3672, 4
    %v3675 = vrot.slane %v2612, 5
    %v3676 = vsel %vm3515, %v3674, %v3675
    %v3677 = vrot.slane %v2613, 5
    %v3678 = vrot.slane %v3677, 4
    %v3679 = vrot.slane %v2614, 5
    %v3680 = vsel %vm3515, %v3678, %v3679
    %v3681 = vrot.slane %v3679, 4
    %v3682 = vrot.slane %v2615, 5
    %v3683 = vsel %vm3515, %v3681, %v3682
    %v3684 = vrot.slane %v2616, 5
    %v3685 = vrot.slane %v3684, 4
    %v3686 = vrot.slane %v2617, 5
    %v3687 = vsel %vm3515, %v3685, %v3686
    %v3688 = vrot.slane %v3686, 4
    %v3689 = vrot.slane %v2618, 5
    %v3690 = vsel %vm3515, %v3688, %v3689
    %v3691 = vrot.slane %v2619, 5
    %v3692 = vrot.slane %v3691, 4
    %v3693 = vrot.slane %v2620, 5
    %v3694 = vsel %vm3515, %v3692, %v3693
    %v3695 = vrot.slane %v3693, 4
    %v3696 = vrot.slane %v2621, 5
    %v3697 = vsel %vm3515, %v3695, %v3696
    %v3698 = vrot.slane %v2622, 5
    %v3699 = vrot.slane %v3698, 4
    %v3700 = vrot.slane %v2623, 5
    %v3701 = vsel %vm3515, %v3699, %v3700
    %v3702 = vrot.slane %v3700, 4
    %v3703 = vrot.slane %v2624, 5
    %v3704 = vsel %vm3515, %v3702, %v3703
    %v3705 = vrot.slane %v2625, 5
    %v3706 = vrot.slane %v3705, 4
    %v3707 = vrot.slane %v2626, 5
    %v3708 = vsel %vm3515, %v3706, %v3707
    %v3709 = vrot.slane %v3707, 4
    %v3710 = vrot.slane %v2627, 5
    %v3711 = vsel %vm3515, %v3709, %v3710
    %v3712 = vrot.slane %v2628, 5
    %v3713 = vrot.slane %v3712, 4
    %v3714 = vrot.slane %v2629, 5
    %v3715 = vsel %vm3515, %v3713, %v3714
    %v3716 = vrot.slane %v3714, 4
    %v3717 = vrot.slane %v2630, 5
    %v3718 = vsel %vm3515, %v3716, %v3717
    %v3719 = vrot.slane %v2631, 5
    %v3720 = vrot.slane %v3719, 4
    %v3721 = vrot.slane %v2632, 5
    %v3722 = vsel %vm3515, %v3720, %v3721
    %v3723 = vrot.slane %v3721, 4
    %v3724 = vrot.slane %v2633, 5
    %v3725 = vsel %vm3515, %v3723, %v3724
    %v3726 = vrot.slane %v2634, 5
    %v3727 = vrot.slane %v3726, 4
    %v3728 = vrot.slane %v2635, 5
    %v3729 = vsel %vm3515, %v3727, %v3728
    %v3730 = vrot.slane %v3728, 4
    %v3731 = vrot.slane %v2636, 5
    %v3732 = vsel %vm3515, %v3730, %v3731
    %v3733 = vrot.slane %v2637, 5
    %v3734 = vrot.slane %v3733, 4
    %v3735 = vrot.slane %v2638, 5
    %v3736 = vsel %vm3515, %v3734, %v3735
    %v3737 = vrot.slane %v3735, 4
    %v3738 = vrot.slane %v2639, 5
    %v3739 = vsel %vm3515, %v3737, %v3738
    %v3741 = vshrl.u32 %v2586, 16
    %v3743 = vrot.slane %v3741, 4
    %v3744 = vshll.u32 %v2586, 16
    %v3746 = vrot.slane %v3744, 5
    %v3747 = vor.u32 %v3743, %v3746
    %v3748 = vrot.slane %v3747, 4
    %v3750 = vshll.u32 %v2587, 16
    %v3752 = vrot.slane %v3750, 5
    %v3753 = vsel %vm2648, %v3748, %v3752
    %v3754 = vshrl.u32 %v2587, 16
    %v3756 = vrot.slane %v3754, 4
    %v3757 = vor.u32 %v3756, %v3752
    %v3758 = vrot.slane %v3757, 4
    %v3760 = vshll.u32 %v2588, 16
    %v3762 = vrot.slane %v3760, 5
    %v3763 = vsel %vm2648, %v3758, %v3762
    %v3765 = vshrl.u32 %v2640, 16
    %v3767 = vrot.slane %v3765, 4
    %v3768 = vshll.u32 %v2640, 16
    %v3770 = vrot.slane %v3768, 5
    %v3771 = vor.u32 %v3767, %v3770
    %v3772 = vrot.slane %v3771, 4
    %v3774 = vshll.u32 %v2641, 16
    %v3776 = vrot.slane %v3774, 5
    %v3777 = vsel %vm2648, %v3772, %v3776
    %v3778 = vshrl.u32 %v2641, 16
    %v3780 = vrot.slane %v3778, 4
    %v3781 = vor.u32 %v3780, %v3776
    %v3782 = vrot.slane %v3781, 4
    %v3784 = vshll.u32 %v2642, 16
    %v3786 = vrot.slane %v3784, 5
    %v3787 = vsel %vm2648, %v3782, %v3786
    %v3794 = vrot.slane %v2586, 5
    %v3795 = vrot.slane %v3794, 4
    %v3796 = vrot.slane %v2587, 5
    %v3797 = vsel %vm3515, %v3795, %v3796
    %v3798 = vrot.slane %v3796, 4
    %v3799 = vrot.slane %v2588, 5
    %v3800 = vsel %vm3515, %v3798, %v3799
    %v3801 = vrot.slane %v2640, 5
    %v3802 = vrot.slane %v3801, 4
    %v3803 = vrot.slane %v2641, 5
    %v3804 = vsel %vm3515, %v3802, %v3803
    %v3805 = vrot.slane %v3803, 4
    %v3806 = vrot.slane %v2642, 5
    %v3807 = vsel %vm3515, %v3805, %v3806
    %v3809 = vshrl.u32 %v2589, 16
    %v3811 = vrot.slane %v3809, 4
    %v3812 = vshll.u32 %v2589, 16
    %v3814 = vrot.slane %v3812, 5
    %v3815 = vor.u32 %v3811, %v3814
    %v3816 = vrot.slane %v3815, 4
    %v3818 = vshll.u32 %v2590, 16
    %v3820 = vrot.slane %v3818, 5
    %v3821 = vsel %vm2648, %v3816, %v3820
    %v3822 = vshrl.u32 %v2590, 16
    %v3824 = vrot.slane %v3822, 4
    %v3825 = vor.u32 %v3824, %v3820
    %v3826 = vrot.slane %v3825, 4
    %v3828 = vshll.u32 %v2591, 16
    %v3830 = vrot.slane %v3828, 5
    %v3831 = vsel %vm2648, %v3826, %v3830
    %v3833 = vshrl.u32 %v2643, 16
    %v3835 = vrot.slane %v3833, 4
    %v3836 = vshll.u32 %v2643, 16
    %v3838 = vrot.slane %v3836, 5
    %v3839 = vor.u32 %v3835, %v3838
    %v3840 = vrot.slane %v3839, 4
    %v3842 = vshll.u32 %v2644, 16
    %v3844 = vrot.slane %v3842, 5
    %v3845 = vsel %vm2648, %v3840, %v3844
    %v3846 = vshrl.u32 %v2644, 16
    %v3848 = vrot.slane %v3846, 4
    %v3849 = vor.u32 %v3848, %v3844
    %v3850 = vrot.slane %v3849, 4
    %v3852 = vshll.u32 %v2645, 16
    %v3854 = vrot.slane %v3852, 5
    %v3855 = vsel %vm2648, %v3850, %v3854
    %v3862 = vrot.slane %v2589, 5
    %v3863 = vrot.slane %v3862, 4
    %v3864 = vrot.slane %v2590, 5
    %v3865 = vsel %vm3515, %v3863, %v3864
    %v3866 = vrot.slane %v3864, 4
    %v3867 = vrot.slane %v2591, 5
    %v3868 = vsel %vm3515, %v3866, %v3867
    %v3869 = vrot.slane %v2643, 5
    %v3870 = vrot.slane %v3869, 4
    %v3871 = vrot.slane %v2644, 5
    %v3872 = vsel %vm3515, %v3870, %v3871
    %v3873 = vrot.slane %v3871, 4
    %v3874 = vrot.slane %v2645, 5
    %v3875 = vsel %vm3515, %v3873, %v3874
    %v3876 = vunpack.c.l.b16 %v2538
    %v3877 = vunpack.c.l.b16 %v2539
    %v3878 = vunpack.c.l.b16 %v2541
    %v3879 = vunpack.c.l.b16 %v2542
    %v3880 = vunpack.c.l.b16 %v2544
    %v3881 = vunpack.c.l.b16 %v2545
    %v3882 = vunpack.c.l.b16 %v2547
    %v3883 = vunpack.c.l.b16 %v2548
    %v3884 = vunpack.c.l.b16 %v2550
    %v3885 = vunpack.c.l.b16 %v2551
    %v3886 = vunpack.c.l.b16 %v2553
    %v3887 = vunpack.c.l.b16 %v2554
    %v3888 = vunpack.c.l.b16 %v2556
    %v3889 = vunpack.c.l.b16 %v2557
    %v3890 = vunpack.c.l.b16 %v2559
    %v3891 = vunpack.c.l.b16 %v2560
    %v3892 = vunpack.c.l.b16 %v2562
    %v3893 = vunpack.c.l.b16 %v2563
    %v3894 = vunpack.c.l.b16 %v2565
    %v3895 = vunpack.c.l.b16 %v2566
    %v3896 = vunpack.c.l.b16 %v2568
    %v3897 = vunpack.c.l.b16 %v2569
    %v3898 = vunpack.c.l.b16 %v2571
    %v3899 = vunpack.c.l.b16 %v2572
    %v3900 = vunpack.c.l.b16 %v2574
    %v3901 = vunpack.c.l.b16 %v2575
    %v3902 = vunpack.c.l.b16 %v2577
    %v3903 = vunpack.c.l.b16 %v2578
    %v3904 = vunpack.c.l.b16 %v2580
    %v3905 = vunpack.c.l.b16 %v2581
    %v3906 = vunpack.c.l.b16 %v2583
    %v3907 = vunpack.c.l.b16 %v2584
    %v3908 = vunpack.c.l.b16 %v2592
    %v3909 = vunpack.c.l.b16 %v2593
    %v3910 = vunpack.c.l.b16 %v2595
    %v3911 = vunpack.c.l.b16 %v2596
    %v3912 = vunpack.c.l.b16 %v2598
    %v3913 = vunpack.c.l.b16 %v2599
    %v3914 = vunpack.c.l.b16 %v2601
    %v3915 = vunpack.c.l.b16 %v2602
    %v3916 = vunpack.c.l.b16 %v2604
    %v3917 = vunpack.c.l.b16 %v2605
    %v3918 = vunpack.c.l.b16 %v2607
    %v3919 = vunpack.c.l.b16 %v2608
    %v3920 = vunpack.c.l.b16 %v2610
    %v3921 = vunpack.c.l.b16 %v2611
    %v3922 = vunpack.c.l.b16 %v2613
    %v3923 = vunpack.c.l.b16 %v2614
    %v3924 = vunpack.c.l.b16 %v2616
    %v3925 = vunpack.c.l.b16 %v2617
    %v3926 = vunpack.c.l.b16 %v2619
    %v3927 = vunpack.c.l.b16 %v2620
    %v3928 = vunpack.c.l.b16 %v2622
    %v3929 = vunpack.c.l.b16 %v2623
    %v3930 = vunpack.c.l.b16 %v2625
    %v3931 = vunpack.c.l.b16 %v2626
    %v3932 = vunpack.c.l.b16 %v2628
    %v3933 = vunpack.c.l.b16 %v2629
    %v3934 = vunpack.c.l.b16 %v2631
    %v3935 = vunpack.c.l.b16 %v2632
    %v3936 = vunpack.c.l.b16 %v2634
    %v3937 = vunpack.c.l.b16 %v2635
    %v3938 = vunpack.c.l.b16 %v2637
    %v3939 = vunpack.c.l.b16 %v2638
    %v3940 = vpack.c.b16 %v3877, %v3876
    %v3941 = vpack.c.b16 %v3879, %v3878
    %v3942 = vpack.c.b16 %v3881, %v3880
    %v3943 = vpack.c.b16 %v3883, %v3882
    %v3944 = vpack.c.b16 %v3885, %v3884
    %v3945 = vpack.c.b16 %v3887, %v3886
    %v3946 = vpack.c.b16 %v3889, %v3888
    %v3947 = vpack.c.b16 %v3891, %v3890
    %v3948 = vpack.c.b16 %v3893, %v3892
    %v3949 = vpack.c.b16 %v3895, %v3894
    %v3950 = vpack.c.b16 %v3897, %v3896
    %v3951 = vpack.c.b16 %v3899, %v3898
    %v3952 = vpack.c.b16 %v3901, %v3900
    %v3953 = vpack.c.b16 %v3903, %v3902
    %v3954 = vpack.c.b16 %v3905, %v3904
    %v3955 = vpack.c.b16 %v3907, %v3906
    %v3956 = vpack.c.b16 %v3909, %v3908
    %v3957 = vpack.c.b16 %v3911, %v3910
    %v3958 = vpack.c.b16 %v3913, %v3912
    %v3959 = vpack.c.b16 %v3915, %v3914
    %v3960 = vpack.c.b16 %v3917, %v3916
    %v3961 = vpack.c.b16 %v3919, %v3918
    %v3962 = vpack.c.b16 %v3921, %v3920
    %v3963 = vpack.c.b16 %v3923, %v3922
    %v3964 = vpack.c.b16 %v3925, %v3924
    %v3965 = vpack.c.b16 %v3927, %v3926
    %v3966 = vpack.c.b16 %v3929, %v3928
    %v3967 = vpack.c.b16 %v3931, %v3930
    %v3968 = vpack.c.b16 %v3933, %v3932
    %v3969 = vpack.c.b16 %v3935, %v3934
    %v3970 = vpack.c.b16 %v3937, %v3936
    %v3971 = vpack.c.b16 %v3939, %v3938
    %v3972 = vunpack.c.l.b16 %v2662
    %v3973 = vunpack.c.l.b16 %v2672
    %v3974 = vunpack.c.l.b16 %v2686
    %v3975 = vunpack.c.l.b16 %v2696
    %v3976 = vunpack.c.l.b16 %v2710
    %v3977 = vunpack.c.l.b16 %v2720
    %v3978 = vunpack.c.l.b16 %v2734
    %v3979 = vunpack.c.l.b16 %v2744
    %v3980 = vunpack.c.l.b16 %v2758
    %v3981 = vunpack.c.l.b16 %v2768
    %v3982 = vunpack.c.l.b16 %v2782
    %v3983 = vunpack.c.l.b16 %v2792
    %v3984 = vunpack.c.l.b16 %v2806
    %v3985 = vunpack.c.l.b16 %v2816
    %v3986 = vunpack.c.l.b16 %v2830
    %v3987 = vunpack.c.l.b16 %v2840
    %v3988 = vunpack.c.l.b16 %v2854
    %v3989 = vunpack.c.l.b16 %v2864
    %v3990 = vunpack.c.l.b16 %v2878
    %v3991 = vunpack.c.l.b16 %v2888
    %v3992 = vunpack.c.l.b16 %v2902
    %v3993 = vunpack.c.l.b16 %v2912
    %v3994 = vunpack.c.l.b16 %v2926
    %v3995 = vunpack.c.l.b16 %v2936
    %v3996 = vunpack.c.l.b16 %v2950
    %v3997 = vunpack.c.l.b16 %v2960
    %v3998 = vunpack.c.l.b16 %v2974
    %v3999 = vunpack.c.l.b16 %v2984
    %v4000 = vunpack.c.l.b16 %v2998
    %v4001 = vunpack.c.l.b16 %v3008
    %v4002 = vunpack.c.l.b16 %v3022
    %v4003 = vunpack.c.l.b16 %v3032
    %v4004 = vunpack.c.l.b16 %v3046
    %v4005 = vunpack.c.l.b16 %v3056
    %v4006 = vunpack.c.l.b16 %v3070
    %v4007 = vunpack.c.l.b16 %v3080
    %v4008 = vunpack.c.l.b16 %v3094
    %v4009 = vunpack.c.l.b16 %v3104
    %v4010 = vunpack.c.l.b16 %v3118
    %v4011 = vunpack.c.l.b16 %v3128
    %v4012 = vunpack.c.l.b16 %v3142
    %v4013 = vunpack.c.l.b16 %v3152
    %v4014 = vunpack.c.l.b16 %v3166
    %v4015 = vunpack.c.l.b16 %v3176
    %v4016 = vunpack.c.l.b16 %v3190
    %v4017 = vunpack.c.l.b16 %v3200
    %v4018 = vunpack.c.l.b16 %v3214
    %v4019 = vunpack.c.l.b16 %v3224
    %v4020 = vunpack.c.l.b16 %v3238
    %v4021 = vunpack.c.l.b16 %v3248
    %v4022 = vunpack.c.l.b16 %v3262
    %v4023 = vunpack.c.l.b16 %v3272
    %v4024 = vunpack.c.l.b16 %v3286
    %v4025 = vunpack.c.l.b16 %v3296
    %v4026 = vunpack.c.l.b16 %v3310
    %v4027 = vunpack.c.l.b16 %v3320
    %v4028 = vunpack.c.l.b16 %v3334
    %v4029 = vunpack.c.l.b16 %v3344
    %v4030 = vunpack.c.l.b16 %v3358
    %v4031 = vunpack.c.l.b16 %v3368
    %v4032 = vunpack.c.l.b16 %v3382
    %v4033 = vunpack.c.l.b16 %v3392
    %v4034 = vunpack.c.l.b16 %v3406
    %v4035 = vunpack.c.l.b16 %v3416
    %v4036 = vpack.c.b16 %v3973, %v3972
    %v4037 = vpack.c.b16 %v3975, %v3974
    %v4038 = vpack.c.b16 %v3977, %v3976
    %v4039 = vpack.c.b16 %v3979, %v3978
    %v4040 = vpack.c.b16 %v3981, %v3980
    %v4041 = vpack.c.b16 %v3983, %v3982
    %v4042 = vpack.c.b16 %v3985, %v3984
    %v4043 = vpack.c.b16 %v3987, %v3986
    %v4044 = vpack.c.b16 %v3989, %v3988
    %v4045 = vpack.c.b16 %v3991, %v3990
    %v4046 = vpack.c.b16 %v3993, %v3992
    %v4047 = vpack.c.b16 %v3995, %v3994
    %v4048 = vpack.c.b16 %v3997, %v3996
    %v4049 = vpack.c.b16 %v3999, %v3998
    %v4050 = vpack.c.b16 %v4001, %v4000
    %v4051 = vpack.c.b16 %v4003, %v4002
    %v4052 = vpack.c.b16 %v4005, %v4004
    %v4053 = vpack.c.b16 %v4007, %v4006
    %v4054 = vpack.c.b16 %v4009, %v4008
    %v4055 = vpack.c.b16 %v4011, %v4010
    %v4056 = vpack.c.b16 %v4013, %v4012
    %v4057 = vpack.c.b16 %v4015, %v4014
    %v4058 = vpack.c.b16 %v4017, %v4016
    %v4059 = vpack.c.b16 %v4019, %v4018
    %v4060 = vpack.c.b16 %v4021, %v4020
    %v4061 = vpack.c.b16 %v4023, %v4022
    %v4062 = vpack.c.b16 %v4025, %v4024
    %v4063 = vpack.c.b16 %v4027, %v4026
    %v4064 = vpack.c.b16 %v4029, %v4028
    %v4065 = vpack.c.b16 %v4031, %v4030
    %v4066 = vpack.c.b16 %v4033, %v4032
    %v4067 = vpack.c.b16 %v4035, %v4034
    %4068 = vrot.lane.b32.xlu0 %v4036, 8
    %v4069 = vpop.permute.xlu0 %4068
    %4070 = vrot.lane.b32.xlu0 %v4037, 8
    %v4071 = vpop.permute.xlu0 %4070
    %4072 = vrot.lane.b32.xlu0 %v4038, 8
    %v4073 = vpop.permute.xlu0 %4072
    %4074 = vrot.lane.b32.xlu0 %v4039, 8
    %v4075 = vpop.permute.xlu0 %4074
    %4076 = vrot.lane.b32.xlu0 %v4040, 8
    %v4077 = vpop.permute.xlu0 %4076
    %4078 = vrot.lane.b32.xlu0 %v4041, 8
    %v4079 = vpop.permute.xlu0 %4078
    %4080 = vrot.lane.b32.xlu0 %v4042, 8
    %v4081 = vpop.permute.xlu0 %4080
    %4082 = vrot.lane.b32.xlu0 %v4043, 8
    %v4083 = vpop.permute.xlu0 %4082
    %4084 = vrot.lane.b32.xlu0 %v4044, 8
    %v4085 = vpop.permute.xlu0 %4084
    %4086 = vrot.lane.b32.xlu0 %v4045, 8
    %v4087 = vpop.permute.xlu0 %4086
    %4088 = vrot.lane.b32.xlu0 %v4046, 8
    %v4089 = vpop.permute.xlu0 %4088
    %4090 = vrot.lane.b32.xlu0 %v4047, 8
    %v4091 = vpop.permute.xlu0 %4090
    %4092 = vrot.lane.b32.xlu0 %v4048, 8
    %v4093 = vpop.permute.xlu0 %4092
    %4094 = vrot.lane.b32.xlu0 %v4049, 8
    %v4095 = vpop.permute.xlu0 %4094
    %4096 = vrot.lane.b32.xlu0 %v4050, 8
    %v4097 = vpop.permute.xlu0 %4096
    %4098 = vrot.lane.b32.xlu0 %v4051, 8
    %v4099 = vpop.permute.xlu0 %4098
    %4100 = vrot.lane.b32.xlu0 %v4052, 8
    %v4101 = vpop.permute.xlu0 %4100
    %4102 = vrot.lane.b32.xlu0 %v4053, 8
    %v4103 = vpop.permute.xlu0 %4102
    %4104 = vrot.lane.b32.xlu0 %v4054, 8
    %v4105 = vpop.permute.xlu0 %4104
    %4106 = vrot.lane.b32.xlu0 %v4055, 8
    %v4107 = vpop.permute.xlu0 %4106
    %4108 = vrot.lane.b32.xlu0 %v4056, 8
    %v4109 = vpop.permute.xlu0 %4108
    %4110 = vrot.lane.b32.xlu0 %v4057, 8
    %v4111 = vpop.permute.xlu0 %4110
    %4112 = vrot.lane.b32.xlu0 %v4058, 8
    %v4113 = vpop.permute.xlu0 %4112
    %4114 = vrot.lane.b32.xlu0 %v4059, 8
    %v4115 = vpop.permute.xlu0 %4114
    %4116 = vrot.lane.b32.xlu0 %v4060, 8
    %v4117 = vpop.permute.xlu0 %4116
    %4118 = vrot.lane.b32.xlu0 %v4061, 8
    %v4119 = vpop.permute.xlu0 %4118
    %4120 = vrot.lane.b32.xlu0 %v4062, 8
    %v4121 = vpop.permute.xlu0 %4120
    %4122 = vrot.lane.b32.xlu0 %v4063, 8
    %v4123 = vpop.permute.xlu0 %4122
    %4124 = vrot.lane.b32.xlu0 %v4064, 8
    %v4125 = vpop.permute.xlu0 %4124
    %4126 = vrot.lane.b32.xlu0 %v4065, 8
    %v4127 = vpop.permute.xlu0 %4126
    %4128 = vrot.lane.b32.xlu0 %v4066, 8
    %v4129 = vpop.permute.xlu0 %4128
    %4130 = vrot.lane.b32.xlu0 %v4067, 8
    %v4131 = vpop.permute.xlu0 %4130
    %v4132 = vunpack.c.l.b16 %v3519
    %v4133 = vunpack.c.l.b16 %v3522
    %v4134 = vunpack.c.l.b16 %v3526
    %v4135 = vunpack.c.l.b16 %v3529
    %v4136 = vunpack.c.l.b16 %v3533
    %v4137 = vunpack.c.l.b16 %v3536
    %v4138 = vunpack.c.l.b16 %v3540
    %v4139 = vunpack.c.l.b16 %v3543
    %v4140 = vunpack.c.l.b16 %v3547
    %v4141 = vunpack.c.l.b16 %v3550
    %v4142 = vunpack.c.l.b16 %v3554
    %v4143 = vunpack.c.l.b16 %v3557
    %v4144 = vunpack.c.l.b16 %v3561
    %v4145 = vunpack.c.l.b16 %v3564
    %v4146 = vunpack.c.l.b16 %v3568
    %v4147 = vunpack.c.l.b16 %v3571
    %v4148 = vunpack.c.l.b16 %v3575
    %v4149 = vunpack.c.l.b16 %v3578
    %v4150 = vunpack.c.l.b16 %v3582
    %v4151 = vunpack.c.l.b16 %v3585
    %v4152 = vunpack.c.l.b16 %v3589
    %v4153 = vunpack.c.l.b16 %v3592
    %v4154 = vunpack.c.l.b16 %v3596
    %v4155 = vunpack.c.l.b16 %v3599
    %v4156 = vunpack.c.l.b16 %v3603
    %v4157 = vunpack.c.l.b16 %v3606
    %v4158 = vunpack.c.l.b16 %v3610
    %v4159 = vunpack.c.l.b16 %v3613
    %v4160 = vunpack.c.l.b16 %v3617
    %v4161 = vunpack.c.l.b16 %v3620
    %v4162 = vunpack.c.l.b16 %v3624
    %v4163 = vunpack.c.l.b16 %v3627
    %v4164 = vunpack.c.l.b16 %v3631
    %v4165 = vunpack.c.l.b16 %v3634
    %v4166 = vunpack.c.l.b16 %v3638
    %v4167 = vunpack.c.l.b16 %v3641
    %v4168 = vunpack.c.l.b16 %v3645
    %v4169 = vunpack.c.l.b16 %v3648
    %v4170 = vunpack.c.l.b16 %v3652
    %v4171 = vunpack.c.l.b16 %v3655
    %v4172 = vunpack.c.l.b16 %v3659
    %v4173 = vunpack.c.l.b16 %v3662
    %v4174 = vunpack.c.l.b16 %v3666
    %v4175 = vunpack.c.l.b16 %v3669
    %v4176 = vunpack.c.l.b16 %v3673
    %v4177 = vunpack.c.l.b16 %v3676
    %v4178 = vunpack.c.l.b16 %v3680
    %v4179 = vunpack.c.l.b16 %v3683
    %v4180 = vunpack.c.l.b16 %v3687
    %v4181 = vunpack.c.l.b16 %v3690
    %v4182 = vunpack.c.l.b16 %v3694
    %v4183 = vunpack.c.l.b16 %v3697
    %v4184 = vunpack.c.l.b16 %v3701
    %v4185 = vunpack.c.l.b16 %v3704
    %v4186 = vunpack.c.l.b16 %v3708
    %v4187 = vunpack.c.l.b16 %v3711
    %v4188 = vunpack.c.l.b16 %v3715
    %v4189 = vunpack.c.l.b16 %v3718
    %v4190 = vunpack.c.l.b16 %v3722
    %v4191 = vunpack.c.l.b16 %v3725
    %v4192 = vunpack.c.l.b16 %v3729
    %v4193 = vunpack.c.l.b16 %v3732
    %v4194 = vunpack.c.l.b16 %v3736
    %v4195 = vunpack.c.l.b16 %v3739
    %v4196 = vpack.c.b16 %v4133, %v4132
    %v4197 = vpack.c.b16 %v4135, %v4134
    %v4198 = vpack.c.b16 %v4137, %v4136
    %v4199 = vpack.c.b16 %v4139, %v4138
    %v4200 = vpack.c.b16 %v4141, %v4140
    %v4201 = vpack.c.b16 %v4143, %v4142
    %v4202 = vpack.c.b16 %v4145, %v4144
    %v4203 = vpack.c.b16 %v4147, %v4146
    %v4204 = vpack.c.b16 %v4149, %v4148
    %v4205 = vpack.c.b16 %v4151, %v4150
    %v4206 = vpack.c.b16 %v4153, %v4152
    %v4207 = vpack.c.b16 %v4155, %v4154
    %v4208 = vpack.c.b16 %v4157, %v4156
    %v4209 = vpack.c.b16 %v4159, %v4158
    %v4210 = vpack.c.b16 %v4161, %v4160
    %v4211 = vpack.c.b16 %v4163, %v4162
    %v4212 = vpack.c.b16 %v4165, %v4164
    %v4213 = vpack.c.b16 %v4167, %v4166
    %v4214 = vpack.c.b16 %v4169, %v4168
    %v4215 = vpack.c.b16 %v4171, %v4170
    %v4216 = vpack.c.b16 %v4173, %v4172
    %v4217 = vpack.c.b16 %v4175, %v4174
    %v4218 = vpack.c.b16 %v4177, %v4176
    %v4219 = vpack.c.b16 %v4179, %v4178
    %v4220 = vpack.c.b16 %v4181, %v4180
    %v4221 = vpack.c.b16 %v4183, %v4182
    %v4222 = vpack.c.b16 %v4185, %v4184
    %v4223 = vpack.c.b16 %v4187, %v4186
    %v4224 = vpack.c.b16 %v4189, %v4188
    %v4225 = vpack.c.b16 %v4191, %v4190
    %v4226 = vpack.c.b16 %v4193, %v4192
    %v4227 = vpack.c.b16 %v4195, %v4194
    %4228 = vrot.lane.b32.xlu0 %v4196, 16
    %v4229 = vpop.permute.xlu0 %4228
    %4230 = vrot.lane.b32.xlu0 %v4197, 16
    %v4231 = vpop.permute.xlu0 %4230
    %4232 = vrot.lane.b32.xlu0 %v4198, 16
    %v4233 = vpop.permute.xlu0 %4232
    %4234 = vrot.lane.b32.xlu0 %v4199, 16
    %v4235 = vpop.permute.xlu0 %4234
    %4236 = vrot.lane.b32.xlu0 %v4200, 16
    %v4237 = vpop.permute.xlu0 %4236
    %4238 = vrot.lane.b32.xlu0 %v4201, 16
    %v4239 = vpop.permute.xlu0 %4238
    %4240 = vrot.lane.b32.xlu0 %v4202, 16
    %v4241 = vpop.permute.xlu0 %4240
    %4242 = vrot.lane.b32.xlu0 %v4203, 16
    %v4243 = vpop.permute.xlu0 %4242
    %4244 = vrot.lane.b32.xlu0 %v4204, 16
    %v4245 = vpop.permute.xlu0 %4244
    %4246 = vrot.lane.b32.xlu0 %v4205, 16
    %v4247 = vpop.permute.xlu0 %4246
    %4248 = vrot.lane.b32.xlu0 %v4206, 16
    %v4249 = vpop.permute.xlu0 %4248
    %4250 = vrot.lane.b32.xlu0 %v4207, 16
    %v4251 = vpop.permute.xlu0 %4250
    %4252 = vrot.lane.b32.xlu0 %v4208, 16
    %v4253 = vpop.permute.xlu0 %4252
    %4254 = vrot.lane.b32.xlu0 %v4209, 16
    %v4255 = vpop.permute.xlu0 %4254
    %4256 = vrot.lane.b32.xlu0 %v4210, 16
    %v4257 = vpop.permute.xlu0 %4256
    %4258 = vrot.lane.b32.xlu0 %v4211, 16
    %v4259 = vpop.permute.xlu0 %4258
    %4260 = vrot.lane.b32.xlu0 %v4212, 16
    %v4261 = vpop.permute.xlu0 %4260
    %4262 = vrot.lane.b32.xlu0 %v4213, 16
    %v4263 = vpop.permute.xlu0 %4262
    %4264 = vrot.lane.b32.xlu0 %v4214, 16
    %v4265 = vpop.permute.xlu0 %4264
    %4266 = vrot.lane.b32.xlu0 %v4215, 16
    %v4267 = vpop.permute.xlu0 %4266
    %4268 = vrot.lane.b32.xlu0 %v4216, 16
    %v4269 = vpop.permute.xlu0 %4268
    %4270 = vrot.lane.b32.xlu0 %v4217, 16
    %v4271 = vpop.permute.xlu0 %4270
    %4272 = vrot.lane.b32.xlu0 %v4218, 16
    %v4273 = vpop.permute.xlu0 %4272
    %4274 = vrot.lane.b32.xlu0 %v4219, 16
    %v4275 = vpop.permute.xlu0 %4274
    %4276 = vrot.lane.b32.xlu0 %v4220, 16
    %v4277 = vpop.permute.xlu0 %4276
    %4278 = vrot.lane.b32.xlu0 %v4221, 16
    %v4279 = vpop.permute.xlu0 %4278
    %4280 = vrot.lane.b32.xlu0 %v4222, 16
    %v4281 = vpop.permute.xlu0 %4280
    %4282 = vrot.lane.b32.xlu0 %v4223, 16
    %v4283 = vpop.permute.xlu0 %4282
    %4284 = vrot.lane.b32.xlu0 %v4224, 16
    %v4285 = vpop.permute.xlu0 %4284
    %4286 = vrot.lane.b32.xlu0 %v4225, 16
    %v4287 = vpop.permute.xlu0 %4286
    %4288 = vrot.lane.b32.xlu0 %v4226, 16
    %v4289 = vpop.permute.xlu0 %4288
    %4290 = vrot.lane.b32.xlu0 %v4227, 16
    %v4291 = vpop.permute.xlu0 %4290
    %v4292 = vunpack.c.l.b16 %v2586
    %v4293 = vunpack.c.l.b16 %v2587
    %v4294 = vunpack.c.l.b16 %v2640
    %v4295 = vunpack.c.l.b16 %v2641
    %v4296 = vpack.c.b16 %v4293, %v4292
    %v4297 = vpack.c.b16 %v4295, %v4294
    %4298 = vrot.lane.b32.xlu0 %v3941, 24
    %v4299 = vpop.permute.xlu0 %4298
    %4300 = vrot.lane.b32.xlu0 %v3942, 24
    %v4301 = vpop.permute.xlu0 %4300
    %4302 = vrot.lane.b32.xlu0 %v3943, 24
    %v4303 = vpop.permute.xlu0 %4302
    %4304 = vrot.lane.b32.xlu0 %v3944, 24
    %v4305 = vpop.permute.xlu0 %4304
    %4306 = vrot.lane.b32.xlu0 %v3945, 24
    %v4307 = vpop.permute.xlu0 %4306
    %4308 = vrot.lane.b32.xlu0 %v3946, 24
    %v4309 = vpop.permute.xlu0 %4308
    %4310 = vrot.lane.b32.xlu0 %v3947, 24
    %v4311 = vpop.permute.xlu0 %4310
    %4312 = vrot.lane.b32.xlu0 %v3948, 24
    %v4313 = vpop.permute.xlu0 %4312
    %4314 = vrot.lane.b32.xlu0 %v3949, 24
    %v4315 = vpop.permute.xlu0 %4314
    %4316 = vrot.lane.b32.xlu0 %v3950, 24
    %v4317 = vpop.permute.xlu0 %4316
    %4318 = vrot.lane.b32.xlu0 %v3951, 24
    %v4319 = vpop.permute.xlu0 %4318
    %4320 = vrot.lane.b32.xlu0 %v3952, 24
    %v4321 = vpop.permute.xlu0 %4320
    %4322 = vrot.lane.b32.xlu0 %v3953, 24
    %v4323 = vpop.permute.xlu0 %4322
    %4324 = vrot.lane.b32.xlu0 %v3954, 24
    %v4325 = vpop.permute.xlu0 %4324
    %4326 = vrot.lane.b32.xlu0 %v3955, 24
    %v4327 = vpop.permute.xlu0 %4326
    %4328 = vrot.lane.b32.xlu0 %v4296, 24
    %v4329 = vpop.permute.xlu0 %4328
    %4330 = vrot.lane.b32.xlu0 %v3957, 24
    %v4331 = vpop.permute.xlu0 %4330
    %4332 = vrot.lane.b32.xlu0 %v3958, 24
    %v4333 = vpop.permute.xlu0 %4332
    %4334 = vrot.lane.b32.xlu0 %v3959, 24
    %v4335 = vpop.permute.xlu0 %4334
    %4336 = vrot.lane.b32.xlu0 %v3960, 24
    %v4337 = vpop.permute.xlu0 %4336
    %4338 = vrot.lane.b32.xlu0 %v3961, 24
    %v4339 = vpop.permute.xlu0 %4338
    %4340 = vrot.lane.b32.xlu0 %v3962, 24
    %v4341 = vpop.permute.xlu0 %4340
    %4342 = vrot.lane.b32.xlu0 %v3963, 24
    %v4343 = vpop.permute.xlu0 %4342
    %4344 = vrot.lane.b32.xlu0 %v3964, 24
    %v4345 = vpop.permute.xlu0 %4344
    %4346 = vrot.lane.b32.xlu0 %v3965, 24
    %v4347 = vpop.permute.xlu0 %4346
    %4348 = vrot.lane.b32.xlu0 %v3966, 24
    %v4349 = vpop.permute.xlu0 %4348
    %4350 = vrot.lane.b32.xlu0 %v3967, 24
    %v4351 = vpop.permute.xlu0 %4350
    %4352 = vrot.lane.b32.xlu0 %v3968, 24
    %v4353 = vpop.permute.xlu0 %4352
    %4354 = vrot.lane.b32.xlu0 %v3969, 24
    %v4355 = vpop.permute.xlu0 %4354
    %4356 = vrot.lane.b32.xlu0 %v3970, 24
    %v4357 = vpop.permute.xlu0 %4356
    %4358 = vrot.lane.b32.xlu0 %v3971, 24
    %v4359 = vpop.permute.xlu0 %4358
    %4360 = vrot.lane.b32.xlu0 %v4297, 24
    %v4361 = vpop.permute.xlu0 %4360
    %v4362 = vunpack.c.l.b16 %v3753
    %v4363 = vunpack.c.l.b16 %v3763
    %v4364 = vunpack.c.l.b16 %v3777
    %v4365 = vunpack.c.l.b16 %v3787
    %v4366 = vpack.c.b16 %v4363, %v4362
    %v4367 = vpack.c.b16 %v4365, %v4364
    %4368 = vrot.lane.b32.xlu0 %v4037, 32
    %v4369 = vpop.permute.xlu0 %4368
    %4370 = vrot.lane.b32.xlu0 %v4038, 32
    %v4371 = vpop.permute.xlu0 %4370
    %4372 = vrot.lane.b32.xlu0 %v4039, 32
    %v4373 = vpop.permute.xlu0 %4372
    %4374 = vrot.lane.b32.xlu0 %v4040, 32
    %v4375 = vpop.permute.xlu0 %4374
    %4376 = vrot.lane.b32.xlu0 %v4041, 32
    %v4377 = vpop.permute.xlu0 %4376
    %4378 = vrot.lane.b32.xlu0 %v4042, 32
    %v4379 = vpop.permute.xlu0 %4378
    %4380 = vrot.lane.b32.xlu0 %v4043, 32
    %v4381 = vpop.permute.xlu0 %4380
    %4382 = vrot.lane.b32.xlu0 %v4044, 32
    %v4383 = vpop.permute.xlu0 %4382
    %4384 = vrot.lane.b32.xlu0 %v4045, 32
    %v4385 = vpop.permute.xlu0 %4384
    %4386 = vrot.lane.b32.xlu0 %v4046, 32
    %v4387 = vpop.permute.xlu0 %4386
    %4388 = vrot.lane.b32.xlu0 %v4047, 32
    %v4389 = vpop.permute.xlu0 %4388
    %4390 = vrot.lane.b32.xlu0 %v4048, 32
    %v4391 = vpop.permute.xlu0 %4390
    %4392 = vrot.lane.b32.xlu0 %v4049, 32
    %v4393 = vpop.permute.xlu0 %4392
    %4394 = vrot.lane.b32.xlu0 %v4050, 32
    %v4395 = vpop.permute.xlu0 %4394
    %4396 = vrot.lane.b32.xlu0 %v4051, 32
    %v4397 = vpop.permute.xlu0 %4396
    %4398 = vrot.lane.b32.xlu0 %v4366, 32
    %v4399 = vpop.permute.xlu0 %4398
    %4400 = vrot.lane.b32.xlu0 %v4053, 32
    %v4401 = vpop.permute.xlu0 %4400
    %4402 = vrot.lane.b32.xlu0 %v4054, 32
    %v4403 = vpop.permute.xlu0 %4402
    %4404 = vrot.lane.b32.xlu0 %v4055, 32
    %v4405 = vpop.permute.xlu0 %4404
    %4406 = vrot.lane.b32.xlu0 %v4056, 32
    %v4407 = vpop.permute.xlu0 %4406
    %4408 = vrot.lane.b32.xlu0 %v4057, 32
    %v4409 = vpop.permute.xlu0 %4408
    %4410 = vrot.lane.b32.xlu0 %v4058, 32
    %v4411 = vpop.permute.xlu0 %4410
    %4412 = vrot.lane.b32.xlu0 %v4059, 32
    %v4413 = vpop.permute.xlu0 %4412
    %4414 = vrot.lane.b32.xlu0 %v4060, 32
    %v4415 = vpop.permute.xlu0 %4414
    %4416 = vrot.lane.b32.xlu0 %v4061, 32
    %v4417 = vpop.permute.xlu0 %4416
    %4418 = vrot.lane.b32.xlu0 %v4062, 32
    %v4419 = vpop.permute.xlu0 %4418
    %4420 = vrot.lane.b32.xlu0 %v4063, 32
    %v4421 = vpop.permute.xlu0 %4420
    %4422 = vrot.lane.b32.xlu0 %v4064, 32
    %v4423 = vpop.permute.xlu0 %4422
    %4424 = vrot.lane.b32.xlu0 %v4065, 32
    %v4425 = vpop.permute.xlu0 %4424
    %4426 = vrot.lane.b32.xlu0 %v4066, 32
    %v4427 = vpop.permute.xlu0 %4426
    %4428 = vrot.lane.b32.xlu0 %v4067, 32
    %v4429 = vpop.permute.xlu0 %4428
    %4430 = vrot.lane.b32.xlu0 %v4367, 32
    %v4431 = vpop.permute.xlu0 %4430
    %v4432 = vunpack.c.l.b16 %v3797
    %v4433 = vunpack.c.l.b16 %v3800
    %v4434 = vunpack.c.l.b16 %v3804
    %v4435 = vunpack.c.l.b16 %v3807
    %v4436 = vpack.c.b16 %v4433, %v4432
    %v4437 = vpack.c.b16 %v4435, %v4434
    %4438 = vrot.lane.b32.xlu0 %v4197, 40
    %v4439 = vpop.permute.xlu0 %4438
    %4440 = vrot.lane.b32.xlu0 %v4198, 40
    %v4441 = vpop.permute.xlu0 %4440
    %4442 = vrot.lane.b32.xlu0 %v4199, 40
    %v4443 = vpop.permute.xlu0 %4442
    %4444 = vrot.lane.b32.xlu0 %v4200, 40
    %v4445 = vpop.permute.xlu0 %4444
    %4446 = vrot.lane.b32.xlu0 %v4201, 40
    %v4447 = vpop.permute.xlu0 %4446
    %4448 = vrot.lane.b32.xlu0 %v4202, 40
    %v4449 = vpop.permute.xlu0 %4448
    %4450 = vrot.lane.b32.xlu0 %v4203, 40
    %v4451 = vpop.permute.xlu0 %4450
    %4452 = vrot.lane.b32.xlu0 %v4204, 40
    %v4453 = vpop.permute.xlu0 %4452
    %4454 = vrot.lane.b32.xlu0 %v4205, 40
    %v4455 = vpop.permute.xlu0 %4454
    %4456 = vrot.lane.b32.xlu0 %v4206, 40
    %v4457 = vpop.permute.xlu0 %4456
    %4458 = vrot.lane.b32.xlu0 %v4207, 40
    %v4459 = vpop.permute.xlu0 %4458
    %4460 = vrot.lane.b32.xlu0 %v4208, 40
    %v4461 = vpop.permute.xlu0 %4460
    %4462 = vrot.lane.b32.xlu0 %v4209, 40
    %v4463 = vpop.permute.xlu0 %4462
    %4464 = vrot.lane.b32.xlu0 %v4210, 40
    %v4465 = vpop.permute.xlu0 %4464
    %4466 = vrot.lane.b32.xlu0 %v4211, 40
    %v4467 = vpop.permute.xlu0 %4466
    %4468 = vrot.lane.b32.xlu0 %v4436, 40
    %v4469 = vpop.permute.xlu0 %4468
    %4470 = vrot.lane.b32.xlu0 %v4213, 40
    %v4471 = vpop.permute.xlu0 %4470
    %4472 = vrot.lane.b32.xlu0 %v4214, 40
    %v4473 = vpop.permute.xlu0 %4472
    %4474 = vrot.lane.b32.xlu0 %v4215, 40
    %v4475 = vpop.permute.xlu0 %4474
    %4476 = vrot.lane.b32.xlu0 %v4216, 40
    %v4477 = vpop.permute.xlu0 %4476
    %4478 = vrot.lane.b32.xlu0 %v4217, 40
    %v4479 = vpop.permute.xlu0 %4478
    %4480 = vrot.lane.b32.xlu0 %v4218, 40
    %v4481 = vpop.permute.xlu0 %4480
    %4482 = vrot.lane.b32.xlu0 %v4219, 40
    %v4483 = vpop.permute.xlu0 %4482
    %4484 = vrot.lane.b32.xlu0 %v4220, 40
    %v4485 = vpop.permute.xlu0 %4484
    %4486 = vrot.lane.b32.xlu0 %v4221, 40
    %v4487 = vpop.permute.xlu0 %4486
    %4488 = vrot.lane.b32.xlu0 %v4222, 40
    %v4489 = vpop.permute.xlu0 %4488
    %4490 = vrot.lane.b32.xlu0 %v4223, 40
    %v4491 = vpop.permute.xlu0 %4490
    %4492 = vrot.lane.b32.xlu0 %v4224, 40
    %v4493 = vpop.permute.xlu0 %4492
    %4494 = vrot.lane.b32.xlu0 %v4225, 40
    %v4495 = vpop.permute.xlu0 %4494
    %4496 = vrot.lane.b32.xlu0 %v4226, 40
    %v4497 = vpop.permute.xlu0 %4496
    %4498 = vrot.lane.b32.xlu0 %v4227, 40
    %v4499 = vpop.permute.xlu0 %4498
    %4500 = vrot.lane.b32.xlu0 %v4437, 40
    %v4501 = vpop.permute.xlu0 %4500
    %v4502 = vunpack.c.l.b16 %v2589
    %v4503 = vunpack.c.l.b16 %v2590
    %v4504 = vunpack.c.l.b16 %v2643
    %v4505 = vunpack.c.l.b16 %v2644
    %v4506 = vpack.c.b16 %v4503, %v4502
    %v4507 = vpack.c.b16 %v4505, %v4504
    %4508 = vrot.lane.b32.xlu0 %v3942, 48
    %v4509 = vpop.permute.xlu0 %4508
    %4510 = vrot.lane.b32.xlu0 %v3943, 48
    %v4511 = vpop.permute.xlu0 %4510
    %4512 = vrot.lane.b32.xlu0 %v3944, 48
    %v4513 = vpop.permute.xlu0 %4512
    %4514 = vrot.lane.b32.xlu0 %v3945, 48
    %v4515 = vpop.permute.xlu0 %4514
    %4516 = vrot.lane.b32.xlu0 %v3946, 48
    %v4517 = vpop.permute.xlu0 %4516
    %4518 = vrot.lane.b32.xlu0 %v3947, 48
    %v4519 = vpop.permute.xlu0 %4518
    %4520 = vrot.lane.b32.xlu0 %v3948, 48
    %v4521 = vpop.permute.xlu0 %4520
    %4522 = vrot.lane.b32.xlu0 %v3949, 48
    %v4523 = vpop.permute.xlu0 %4522
    %4524 = vrot.lane.b32.xlu0 %v3950, 48
    %v4525 = vpop.permute.xlu0 %4524
    %4526 = vrot.lane.b32.xlu0 %v3951, 48
    %v4527 = vpop.permute.xlu0 %4526
    %4528 = vrot.lane.b32.xlu0 %v3952, 48
    %v4529 = vpop.permute.xlu0 %4528
    %4530 = vrot.lane.b32.xlu0 %v3953, 48
    %v4531 = vpop.permute.xlu0 %4530
    %4532 = vrot.lane.b32.xlu0 %v3954, 48
    %v4533 = vpop.permute.xlu0 %4532
    %4534 = vrot.lane.b32.xlu0 %v3955, 48
    %v4535 = vpop.permute.xlu0 %4534
    %4536 = vrot.lane.b32.xlu0 %v4296, 48
    %v4537 = vpop.permute.xlu0 %4536
    %4538 = vrot.lane.b32.xlu0 %v4506, 48
    %v4539 = vpop.permute.xlu0 %4538
    %4540 = vrot.lane.b32.xlu0 %v3958, 48
    %v4541 = vpop.permute.xlu0 %4540
    %4542 = vrot.lane.b32.xlu0 %v3959, 48
    %v4543 = vpop.permute.xlu0 %4542
    %4544 = vrot.lane.b32.xlu0 %v3960, 48
    %v4545 = vpop.permute.xlu0 %4544
    %4546 = vrot.lane.b32.xlu0 %v3961, 48
    %v4547 = vpop.permute.xlu0 %4546
    %4548 = vrot.lane.b32.xlu0 %v3962, 48
    %v4549 = vpop.permute.xlu0 %4548
    %4550 = vrot.lane.b32.xlu0 %v3963, 48
    %v4551 = vpop.permute.xlu0 %4550
    %4552 = vrot.lane.b32.xlu0 %v3964, 48
    %v4553 = vpop.permute.xlu0 %4552
    %4554 = vrot.lane.b32.xlu0 %v3965, 48
    %v4555 = vpop.permute.xlu0 %4554
    %4556 = vrot.lane.b32.xlu0 %v3966, 48
    %v4557 = vpop.permute.xlu0 %4556
    %4558 = vrot.lane.b32.xlu0 %v3967, 48
    %v4559 = vpop.permute.xlu0 %4558
    %4560 = vrot.lane.b32.xlu0 %v3968, 48
    %v4561 = vpop.permute.xlu0 %4560
    %4562 = vrot.lane.b32.xlu0 %v3969, 48
    %v4563 = vpop.permute.xlu0 %4562
    %4564 = vrot.lane.b32.xlu0 %v3970, 48
    %v4565 = vpop.permute.xlu0 %4564
    %4566 = vrot.lane.b32.xlu0 %v3971, 48
    %v4567 = vpop.permute.xlu0 %4566
    %4568 = vrot.lane.b32.xlu0 %v4297, 48
    %v4569 = vpop.permute.xlu0 %4568
    %4570 = vrot.lane.b32.xlu0 %v4507, 48
    %v4571 = vpop.permute.xlu0 %4570
    %v4572 = vunpack.c.l.b16 %v3821
    %v4573 = vunpack.c.l.b16 %v3831
    %v4574 = vunpack.c.l.b16 %v3845
    %v4575 = vunpack.c.l.b16 %v3855
    %v4576 = vpack.c.b16 %v4573, %v4572
    %v4577 = vpack.c.b16 %v4575, %v4574
    %4578 = vrot.lane.b32.xlu0 %v4038, 56
    %v4579 = vpop.permute.xlu0 %4578
    %4580 = vrot.lane.b32.xlu0 %v4039, 56
    %v4581 = vpop.permute.xlu0 %4580
    %4582 = vrot.lane.b32.xlu0 %v4040, 56
    %v4583 = vpop.permute.xlu0 %4582
    %4584 = vrot.lane.b32.xlu0 %v4041, 56
    %v4585 = vpop.permute.xlu0 %4584
    %4586 = vrot.lane.b32.xlu0 %v4042, 56
    %v4587 = vpop.permute.xlu0 %4586
    %4588 = vrot.lane.b32.xlu0 %v4043, 56
    %v4589 = vpop.permute.xlu0 %4588
    %4590 = vrot.lane.b32.xlu0 %v4044, 56
    %v4591 = vpop.permute.xlu0 %4590
    %4592 = vrot.lane.b32.xlu0 %v4045, 56
    %v4593 = vpop.permute.xlu0 %4592
    %4594 = vrot.lane.b32.xlu0 %v4046, 56
    %v4595 = vpop.permute.xlu0 %4594
    %4596 = vrot.lane.b32.xlu0 %v4047, 56
    %v4597 = vpop.permute.xlu0 %4596
    %4598 = vrot.lane.b32.xlu0 %v4048, 56
    %v4599 = vpop.permute.xlu0 %4598
    %4600 = vrot.lane.b32.xlu0 %v4049, 56
    %v4601 = vpop.permute.xlu0 %4600
    %4602 = vrot.lane.b32.xlu0 %v4050, 56
    %v4603 = vpop.permute.xlu0 %4602
    %4604 = vrot.lane.b32.xlu0 %v4051, 56
    %v4605 = vpop.permute.xlu0 %4604
    %4606 = vrot.lane.b32.xlu0 %v4366, 56
    %v4607 = vpop.permute.xlu0 %4606
    %4608 = vrot.lane.b32.xlu0 %v4576, 56
    %v4609 = vpop.permute.xlu0 %4608
    %4610 = vrot.lane.b32.xlu0 %v4054, 56
    %v4611 = vpop.permute.xlu0 %4610
    %4612 = vrot.lane.b32.xlu0 %v4055, 56
    %v4613 = vpop.permute.xlu0 %4612
    %4614 = vrot.lane.b32.xlu0 %v4056, 56
    %v4615 = vpop.permute.xlu0 %4614
    %4616 = vrot.lane.b32.xlu0 %v4057, 56
    %v4617 = vpop.permute.xlu0 %4616
    %4618 = vrot.lane.b32.xlu0 %v4058, 56
    %v4619 = vpop.permute.xlu0 %4618
    %4620 = vrot.lane.b32.xlu0 %v4059, 56
    %v4621 = vpop.permute.xlu0 %4620
    %4622 = vrot.lane.b32.xlu0 %v4060, 56
    %v4623 = vpop.permute.xlu0 %4622
    %4624 = vrot.lane.b32.xlu0 %v4061, 56
    %v4625 = vpop.permute.xlu0 %4624
    %4626 = vrot.lane.b32.xlu0 %v4062, 56
    %v4627 = vpop.permute.xlu0 %4626
    %4628 = vrot.lane.b32.xlu0 %v4063, 56
    %v4629 = vpop.permute.xlu0 %4628
    %4630 = vrot.lane.b32.xlu0 %v4064, 56
    %v4631 = vpop.permute.xlu0 %4630
    %4632 = vrot.lane.b32.xlu0 %v4065, 56
    %v4633 = vpop.permute.xlu0 %4632
    %4634 = vrot.lane.b32.xlu0 %v4066, 56
    %v4635 = vpop.permute.xlu0 %4634
    %4636 = vrot.lane.b32.xlu0 %v4067, 56
    %v4637 = vpop.permute.xlu0 %4636
    %4638 = vrot.lane.b32.xlu0 %v4367, 56
    %v4639 = vpop.permute.xlu0 %4638
    %4640 = vrot.lane.b32.xlu0 %v4577, 56
    %v4641 = vpop.permute.xlu0 %4640
    %v4642 = vunpack.c.l.b16 %v3865
    %v4643 = vunpack.c.l.b16 %v3868
    %v4644 = vunpack.c.l.b16 %v3872
    %v4645 = vunpack.c.l.b16 %v3875
    %v4646 = vpack.c.b16 %v4643, %v4642
    %v4647 = vpack.c.b16 %v4645, %v4644
    %4648 = vrot.lane.b32.xlu0 %v4198, 64
    %v4649 = vpop.permute.xlu0 %4648
    %4650 = vrot.lane.b32.xlu0 %v4199, 64
    %v4651 = vpop.permute.xlu0 %4650
    %4652 = vrot.lane.b32.xlu0 %v4200, 64
    %v4653 = vpop.permute.xlu0 %4652
    %4654 = vrot.lane.b32.xlu0 %v4201, 64
    %v4655 = vpop.permute.xlu0 %4654
    %4656 = vrot.lane.b32.xlu0 %v4202, 64
    %v4657 = vpop.permute.xlu0 %4656
    %4658 = vrot.lane.b32.xlu0 %v4203, 64
    %v4659 = vpop.permute.xlu0 %4658
    %4660 = vrot.lane.b32.xlu0 %v4204, 64
    %v4661 = vpop.permute.xlu0 %4660
    %4662 = vrot.lane.b32.xlu0 %v4205, 64
    %v4663 = vpop.permute.xlu0 %4662
    %4664 = vrot.lane.b32.xlu0 %v4206, 64
    %v4665 = vpop.permute.xlu0 %4664
    %4666 = vrot.lane.b32.xlu0 %v4207, 64
    %v4667 = vpop.permute.xlu0 %4666
    %4668 = vrot.lane.b32.xlu0 %v4208, 64
    %v4669 = vpop.permute.xlu0 %4668
    %4670 = vrot.lane.b32.xlu0 %v4209, 64
    %v4671 = vpop.permute.xlu0 %4670
    %4672 = vrot.lane.b32.xlu0 %v4210, 64
    %v4673 = vpop.permute.xlu0 %4672
    %4674 = vrot.lane.b32.xlu0 %v4211, 64
    %v4675 = vpop.permute.xlu0 %4674
    %4676 = vrot.lane.b32.xlu0 %v4436, 64
    %v4677 = vpop.permute.xlu0 %4676
    %4678 = vrot.lane.b32.xlu0 %v4646, 64
    %v4679 = vpop.permute.xlu0 %4678
    %4680 = vrot.lane.b32.xlu0 %v4214, 64
    %v4681 = vpop.permute.xlu0 %4680
    %4682 = vrot.lane.b32.xlu0 %v4215, 64
    %v4683 = vpop.permute.xlu0 %4682
    %4684 = vrot.lane.b32.xlu0 %v4216, 64
    %v4685 = vpop.permute.xlu0 %4684
    %4686 = vrot.lane.b32.xlu0 %v4217, 64
    %v4687 = vpop.permute.xlu0 %4686
    %4688 = vrot.lane.b32.xlu0 %v4218, 64
    %v4689 = vpop.permute.xlu0 %4688
    %4690 = vrot.lane.b32.xlu0 %v4219, 64
    %v4691 = vpop.permute.xlu0 %4690
    %4692 = vrot.lane.b32.xlu0 %v4220, 64
    %v4693 = vpop.permute.xlu0 %4692
    %4694 = vrot.lane.b32.xlu0 %v4221, 64
    %v4695 = vpop.permute.xlu0 %4694
    %4696 = vrot.lane.b32.xlu0 %v4222, 64
    %v4697 = vpop.permute.xlu0 %4696
    %4698 = vrot.lane.b32.xlu0 %v4223, 64
    %v4699 = vpop.permute.xlu0 %4698
    %4700 = vrot.lane.b32.xlu0 %v4224, 64
    %v4701 = vpop.permute.xlu0 %4700
    %4702 = vrot.lane.b32.xlu0 %v4225, 64
    %v4703 = vpop.permute.xlu0 %4702
    %4704 = vrot.lane.b32.xlu0 %v4226, 64
    %v4705 = vpop.permute.xlu0 %4704
    %4706 = vrot.lane.b32.xlu0 %v4227, 64
    %v4707 = vpop.permute.xlu0 %4706
    %4708 = vrot.lane.b32.xlu0 %v4437, 64
    %v4709 = vpop.permute.xlu0 %4708
    %4710 = vrot.lane.b32.xlu0 %v4647, 64
    %v4711 = vpop.permute.xlu0 %4710
    %v4714 = vsel %vm988, %v3940, %v4069
    %v4717 = vsel %vm988, %v3941, %v4071
    %v4720 = vsel %vm988, %v3942, %v4073
    %v4723 = vsel %vm988, %v3943, %v4075
    %v4726 = vsel %vm988, %v3944, %v4077
    %v4729 = vsel %vm988, %v3945, %v4079
    %v4732 = vsel %vm988, %v3946, %v4081
    %v4735 = vsel %vm988, %v3947, %v4083
    %v4738 = vsel %vm988, %v3948, %v4085
    %v4741 = vsel %vm988, %v3949, %v4087
    %v4744 = vsel %vm988, %v3950, %v4089
    %v4747 = vsel %vm988, %v3951, %v4091
    %v4750 = vsel %vm988, %v3952, %v4093
    %v4753 = vsel %vm988, %v3953, %v4095
    %v4756 = vsel %vm988, %v3954, %v4097
    %v4759 = vsel %vm988, %v3955, %v4099
    %v4762 = vsel %vm988, %v3956, %v4101
    %v4765 = vsel %vm988, %v3957, %v4103
    %v4768 = vsel %vm988, %v3958, %v4105
    %v4771 = vsel %vm988, %v3959, %v4107
    %v4774 = vsel %vm988, %v3960, %v4109
    %v4777 = vsel %vm988, %v3961, %v4111
    %v4780 = vsel %vm988, %v3962, %v4113
    %v4783 = vsel %vm988, %v3963, %v4115
    %v4786 = vsel %vm988, %v3964, %v4117
    %v4789 = vsel %vm988, %v3965, %v4119
    %v4792 = vsel %vm988, %v3966, %v4121
    %v4795 = vsel %vm988, %v3967, %v4123
    %v4798 = vsel %vm988, %v3968, %v4125
    %v4801 = vsel %vm988, %v3969, %v4127
    %v4804 = vsel %vm988, %v3970, %v4129
    %v4807 = vsel %vm988, %v3971, %v4131
    %vm4808 = vcmask 130048
    %v4810 = vsel %vm4808, %v4714, %v4229
    %v4812 = vsel %vm4808, %v4717, %v4231
    %v4814 = vsel %vm4808, %v4720, %v4233
    %v4816 = vsel %vm4808, %v4723, %v4235
    %v4818 = vsel %vm4808, %v4726, %v4237
    %v4820 = vsel %vm4808, %v4729, %v4239
    %v4822 = vsel %vm4808, %v4732, %v4241
    %v4824 = vsel %vm4808, %v4735, %v4243
    %v4826 = vsel %vm4808, %v4738, %v4245
    %v4828 = vsel %vm4808, %v4741, %v4247
    %v4830 = vsel %vm4808, %v4744, %v4249
    %v4832 = vsel %vm4808, %v4747, %v4251
    %v4834 = vsel %vm4808, %v4750, %v4253
    %v4836 = vsel %vm4808, %v4753, %v4255
    %v4838 = vsel %vm4808, %v4756, %v4257
    %v4840 = vsel %vm4808, %v4759, %v4259
    %v4842 = vsel %vm4808, %v4762, %v4261
    %v4844 = vsel %vm4808, %v4765, %v4263
    %v4846 = vsel %vm4808, %v4768, %v4265
    %v4848 = vsel %vm4808, %v4771, %v4267
    %v4850 = vsel %vm4808, %v4774, %v4269
    %v4852 = vsel %vm4808, %v4777, %v4271
    %v4854 = vsel %vm4808, %v4780, %v4273
    %v4856 = vsel %vm4808, %v4783, %v4275
    %v4858 = vsel %vm4808, %v4786, %v4277
    %v4860 = vsel %vm4808, %v4789, %v4279
    %v4862 = vsel %vm4808, %v4792, %v4281
    %v4864 = vsel %vm4808, %v4795, %v4283
    %v4866 = vsel %vm4808, %v4798, %v4285
    %v4868 = vsel %vm4808, %v4801, %v4287
    %v4870 = vsel %vm4808, %v4804, %v4289
    %v4872 = vsel %vm4808, %v4807, %v4291
    %vm4873 = vcmask 195584
    %v4875 = vsel %vm4873, %v4810, %v4299
    %v4877 = vsel %vm4873, %v4812, %v4301
    %v4879 = vsel %vm4873, %v4814, %v4303
    %v4881 = vsel %vm4873, %v4816, %v4305
    %v4883 = vsel %vm4873, %v4818, %v4307
    %v4885 = vsel %vm4873, %v4820, %v4309
    %v4887 = vsel %vm4873, %v4822, %v4311
    %v4889 = vsel %vm4873, %v4824, %v4313
    %v4891 = vsel %vm4873, %v4826, %v4315
    %v4893 = vsel %vm4873, %v4828, %v4317
    %v4895 = vsel %vm4873, %v4830, %v4319
    %v4897 = vsel %vm4873, %v4832, %v4321
    %v4899 = vsel %vm4873, %v4834, %v4323
    %v4901 = vsel %vm4873, %v4836, %v4325
    %v4903 = vsel %vm4873, %v4838, %v4327
    %v4905 = vsel %vm4873, %v4840, %v4329
    %v4907 = vsel %vm4873, %v4842, %v4331
    %v4909 = vsel %vm4873, %v4844, %v4333
    %v4911 = vsel %vm4873, %v4846, %v4335
    %v4913 = vsel %vm4873, %v4848, %v4337
    %v4915 = vsel %vm4873, %v4850, %v4339
    %v4917 = vsel %vm4873, %v4852, %v4341
    %v4919 = vsel %vm4873, %v4854, %v4343
    %v4921 = vsel %vm4873, %v4856, %v4345
    %v4923 = vsel %vm4873, %v4858, %v4347
    %v4925 = vsel %vm4873, %v4860, %v4349
    %v4927 = vsel %vm4873, %v4862, %v4351
    %v4929 = vsel %vm4873, %v4864, %v4353
    %v4931 = vsel %vm4873, %v4866, %v4355
    %v4933 = vsel %vm4873, %v4868, %v4357
    %v4935 = vsel %vm4873, %v4870, %v4359
    %v4937 = vsel %vm4873, %v4872, %v4361
    %vm4938 = vcmask 261120
    %v4940 = vsel %vm4938, %v4875, %v4369
    %v4942 = vsel %vm4938, %v4877, %v4371
    %v4944 = vsel %vm4938, %v4879, %v4373
    %v4946 = vsel %vm4938, %v4881, %v4375
    %v4948 = vsel %vm4938, %v4883, %v4377
    %v4950 = vsel %vm4938, %v4885, %v4379
    %v4952 = vsel %vm4938, %v4887, %v4381
    %v4954 = vsel %vm4938, %v4889, %v4383
    %v4956 = vsel %vm4938, %v4891, %v4385
    %v4958 = vsel %vm4938, %v4893, %v4387
    %v4960 = vsel %vm4938, %v4895, %v4389
    %v4962 = vsel %vm4938, %v4897, %v4391
    %v4964 = vsel %vm4938, %v4899, %v4393
    %v4966 = vsel %vm4938, %v4901, %v4395
    %v4968 = vsel %vm4938, %v4903, %v4397
    %v4970 = vsel %vm4938, %v4905, %v4399
    %v4972 = vsel %vm4938, %v4907, %v4401
    %v4974 = vsel %vm4938, %v4909, %v4403
    %v4976 = vsel %vm4938, %v4911, %v4405
    %v4978 = vsel %vm4938, %v4913, %v4407
    %v4980 = vsel %vm4938, %v4915, %v4409
    %v4982 = vsel %vm4938, %v4917, %v4411
    %v4984 = vsel %vm4938, %v4919, %v4413
    %v4986 = vsel %vm4938, %v4921, %v4415
    %v4988 = vsel %vm4938, %v4923, %v4417
    %v4990 = vsel %vm4938, %v4925, %v4419
    %v4992 = vsel %vm4938, %v4927, %v4421
    %v4994 = vsel %vm4938, %v4929, %v4423
    %v4996 = vsel %vm4938, %v4931, %v4425
    %v4998 = vsel %vm4938, %v4933, %v4427
    %v5000 = vsel %vm4938, %v4935, %v4429
    %v5002 = vsel %vm4938, %v4937, %v4431
    %vm5003 = vcmask 326656
    %v5005 = vsel %vm5003, %v4940, %v4439
    %v5007 = vsel %vm5003, %v4942, %v4441
    %v5009 = vsel %vm5003, %v4944, %v4443
    %v5011 = vsel %vm5003, %v4946, %v4445
    %v5013 = vsel %vm5003, %v4948, %v4447
    %v5015 = vsel %vm5003, %v4950, %v4449
    %v5017 = vsel %vm5003, %v4952, %v4451
    %v5019 = vsel %vm5003, %v4954, %v4453
    %v5021 = vsel %vm5003, %v4956, %v4455
    %v5023 = vsel %vm5003, %v4958, %v4457
    %v5025 = vsel %vm5003, %v4960, %v4459
    %v5027 = vsel %vm5003, %v4962, %v4461
    %v5029 = vsel %vm5003, %v4964, %v4463
    %v5031 = vsel %vm5003, %v4966, %v4465
    %v5033 = vsel %vm5003, %v4968, %v4467
    %v5035 = vsel %vm5003, %v4970, %v4469
    %v5037 = vsel %vm5003, %v4972, %v4471
    %v5039 = vsel %vm5003, %v4974, %v4473
    %v5041 = vsel %vm5003, %v4976, %v4475
    %v5043 = vsel %vm5003, %v4978, %v4477
    %v5045 = vsel %vm5003, %v4980, %v4479
    %v5047 = vsel %vm5003, %v4982, %v4481
    %v5049 = vsel %vm5003, %v4984, %v4483
    %v5051 = vsel %vm5003, %v4986, %v4485
    %v5053 = vsel %vm5003, %v4988, %v4487
    %v5055 = vsel %vm5003, %v4990, %v4489
    %v5057 = vsel %vm5003, %v4992, %v4491
    %v5059 = vsel %vm5003, %v4994, %v4493
    %v5061 = vsel %vm5003, %v4996, %v4495
    %v5063 = vsel %vm5003, %v4998, %v4497
    %v5065 = vsel %vm5003, %v5000, %v4499
    %v5067 = vsel %vm5003, %v5002, %v4501
    %vm5068 = vcmask 392192
    %v5070 = vsel %vm5068, %v5005, %v4509
    %v5072 = vsel %vm5068, %v5007, %v4511
    %v5074 = vsel %vm5068, %v5009, %v4513
    %v5076 = vsel %vm5068, %v5011, %v4515
    %v5078 = vsel %vm5068, %v5013, %v4517
    %v5080 = vsel %vm5068, %v5015, %v4519
    %v5082 = vsel %vm5068, %v5017, %v4521
    %v5084 = vsel %vm5068, %v5019, %v4523
    %v5086 = vsel %vm5068, %v5021, %v4525
    %v5088 = vsel %vm5068, %v5023, %v4527
    %v5090 = vsel %vm5068, %v5025, %v4529
    %v5092 = vsel %vm5068, %v5027, %v4531
    %v5094 = vsel %vm5068, %v5029, %v4533
    %v5096 = vsel %vm5068, %v5031, %v4535
    %v5098 = vsel %vm5068, %v5033, %v4537
    %v5100 = vsel %vm5068, %v5035, %v4539
    %v5102 = vsel %vm5068, %v5037, %v4541
    %v5104 = vsel %vm5068, %v5039, %v4543
    %v5106 = vsel %vm5068, %v5041, %v4545
    %v5108 = vsel %vm5068, %v5043, %v4547
    %v5110 = vsel %vm5068, %v5045, %v4549
    %v5112 = vsel %vm5068, %v5047, %v4551
    %v5114 = vsel %vm5068, %v5049, %v4553
    %v5116 = vsel %vm5068, %v5051, %v4555
    %v5118 = vsel %vm5068, %v5053, %v4557
    %v5120 = vsel %vm5068, %v5055, %v4559
    %v5122 = vsel %vm5068, %v5057, %v4561
    %v5124 = vsel %vm5068, %v5059, %v4563
    %v5126 = vsel %vm5068, %v5061, %v4565
    %v5128 = vsel %vm5068, %v5063, %v4567
    %v5130 = vsel %vm5068, %v5065, %v4569
    %v5132 = vsel %vm5068, %v5067, %v4571
    %vm5133 = vcmask 457728
    %v5135 = vsel %vm5133, %v5070, %v4579
    %v5137 = vsel %vm5133, %v5072, %v4581
    %v5139 = vsel %vm5133, %v5074, %v4583
    %v5141 = vsel %vm5133, %v5076, %v4585
    %v5143 = vsel %vm5133, %v5078, %v4587
    %v5145 = vsel %vm5133, %v5080, %v4589
    %v5147 = vsel %vm5133, %v5082, %v4591
    %v5149 = vsel %vm5133, %v5084, %v4593
    %v5151 = vsel %vm5133, %v5086, %v4595
    %v5153 = vsel %vm5133, %v5088, %v4597
    %v5155 = vsel %vm5133, %v5090, %v4599
    %v5157 = vsel %vm5133, %v5092, %v4601
    %v5159 = vsel %vm5133, %v5094, %v4603
    %v5161 = vsel %vm5133, %v5096, %v4605
    %v5163 = vsel %vm5133, %v5098, %v4607
    %v5165 = vsel %vm5133, %v5100, %v4609
    %v5167 = vsel %vm5133, %v5102, %v4611
    %v5169 = vsel %vm5133, %v5104, %v4613
    %v5171 = vsel %vm5133, %v5106, %v4615
    %v5173 = vsel %vm5133, %v5108, %v4617
    %v5175 = vsel %vm5133, %v5110, %v4619
    %v5177 = vsel %vm5133, %v5112, %v4621
    %v5179 = vsel %vm5133, %v5114, %v4623
    %v5181 = vsel %vm5133, %v5116, %v4625
    %v5183 = vsel %vm5133, %v5118, %v4627
    %v5185 = vsel %vm5133, %v5120, %v4629
    %v5187 = vsel %vm5133, %v5122, %v4631
    %v5189 = vsel %vm5133, %v5124, %v4633
    %v5191 = vsel %vm5133, %v5126, %v4635
    %v5193 = vsel %vm5133, %v5128, %v4637
    %v5195 = vsel %vm5133, %v5130, %v4639
    %v5197 = vsel %vm5133, %v5132, %v4641
    %vm5198 = vcmask 523264
    %v5200 = vsel %vm5198, %v5135, %v4649
    %v5202 = vsel %vm5198, %v5137, %v4651
    %v5204 = vsel %vm5198, %v5139, %v4653
    %v5206 = vsel %vm5198, %v5141, %v4655
    %v5208 = vsel %vm5198, %v5143, %v4657
    %v5210 = vsel %vm5198, %v5145, %v4659
    %v5212 = vsel %vm5198, %v5147, %v4661
    %v5214 = vsel %vm5198, %v5149, %v4663
    %v5216 = vsel %vm5198, %v5151, %v4665
    %v5218 = vsel %vm5198, %v5153, %v4667
    %v5220 = vsel %vm5198, %v5155, %v4669
    %v5222 = vsel %vm5198, %v5157, %v4671
    %v5224 = vsel %vm5198, %v5159, %v4673
    %v5226 = vsel %vm5198, %v5161, %v4675
    %v5228 = vsel %vm5198, %v5163, %v4677
    %v5230 = vsel %vm5198, %v5165, %v4679
    %v5232 = vsel %vm5198, %v5167, %v4681
    %v5234 = vsel %vm5198, %v5169, %v4683
    %v5236 = vsel %vm5198, %v5171, %v4685
    %v5238 = vsel %vm5198, %v5173, %v4687
    %v5240 = vsel %vm5198, %v5175, %v4689
    %v5242 = vsel %vm5198, %v5177, %v4691
    %v5244 = vsel %vm5198, %v5179, %v4693
    %v5246 = vsel %vm5198, %v5181, %v4695
    %v5248 = vsel %vm5198, %v5183, %v4697
    %v5250 = vsel %vm5198, %v5185, %v4699
    %v5252 = vsel %vm5198, %v5187, %v4701
    %v5254 = vsel %vm5198, %v5189, %v4703
    %v5256 = vsel %vm5198, %v5191, %v4705
    %v5258 = vsel %vm5198, %v5193, %v4707
    %v5260 = vsel %vm5198, %v5195, %v4709
    %v5262 = vsel %vm5198, %v5197, %v4711
    %v5263 = vld [vmem:[%s4] sm:$0xf]
    %v5264 = vld [vmem:[%s4 + $0x4] sm:$0xf]
    %v5265 = vld [vmem:[%s4 + $0x8] sm:$0xf]
    %v5266 = vld [vmem:[%s4 + $0xc] sm:$0xf]
    %v5267 = vld [vmem:[%s4 + $0x10] sm:$0xf]
    %v5268 = vld [vmem:[%s4 + $0x14] sm:$0xf]
    %v5269 = vld [vmem:[%s4 + $0x18] sm:$0xf]
    %v5270 = vld [vmem:[%s4 + $0x1c] sm:$0xf]
    %v5271 = vld [vmem:[%s4 + $0x20] sm:$0xf]
    %v5281 = vunpack.c.l.b16 %v5263
    %v5282 = vunpack.c.l.b16 %v5264
    %v5283 = vunpack.c.l.b16 %v5265
    %v5284 = vunpack.c.l.b16 %v5266
    %v5285 = vunpack.c.l.b16 %v5267
    %v5286 = vunpack.c.l.b16 %v5268
    %v5287 = vunpack.c.l.b16 %v5269
    %v5288 = vunpack.c.l.b16 %v5270
    %v5289 = vunpack.c.l.b16 %v5271
    %v5290 = vpack.c.b16 %v5282, %v5281
    %v5291 = vpack.c.b16 %v5284, %v5283
    %v5292 = vpack.c.b16 %v5286, %v5285
    %v5293 = vpack.c.b16 %v5288, %v5287
    %v5294 = vpack.c.b16 %v5289, %v5289
    %vm5299 = vcmask 588800
    %v5300 = vsel %vm5299, %v5200, 0
    %v5302 = vsel %vm5299, %v5202, 0
    %v5304 = vsel %vm5299, %v5204, 0
    %v5306 = vsel %vm5299, %v5206, 0
    %v5308 = vsel %vm5299, %v5208, 0
    %v5310 = vsel %vm5299, %v5210, 0
    %v5312 = vsel %vm5299, %v5212, 0
    %v5314 = vsel %vm5299, %v5214, 0
    %v5316 = vsel %vm5299, %v5216, 0
    %v5318 = vsel %vm5299, %v5218, 0
    %v5320 = vsel %vm5299, %v5220, 0
    %v5322 = vsel %vm5299, %v5222, 0
    %v5324 = vsel %vm5299, %v5224, 0
    %v5326 = vsel %vm5299, %v5226, 0
    %v5328 = vsel %vm5299, %v5228, 0
    %v5330 = vsel %vm5299, %v5230, 0
    %v5332 = vsel %vm5299, %v5232, 0
    %v5334 = vsel %vm5299, %v5234, 0
    %v5336 = vsel %vm5299, %v5236, 0
    %v5338 = vsel %vm5299, %v5238, 0
    %v5340 = vsel %vm5299, %v5240, 0
    %v5342 = vsel %vm5299, %v5242, 0
    %v5344 = vsel %vm5299, %v5244, 0
    %v5346 = vsel %vm5299, %v5246, 0
    %v5348 = vsel %vm5299, %v5248, 0
    %v5350 = vsel %vm5299, %v5250, 0
    %v5352 = vsel %vm5299, %v5252, 0
    %v5354 = vsel %vm5299, %v5254, 0
    %v5356 = vsel %vm5299, %v5256, 0
    %v5358 = vsel %vm5299, %v5258, 0
    %v5360 = vsel %vm5299, %v5260, 0
    %v5362 = vsel %vm5299, %v5262, 0
    %v5365 = vsel %vm702, %v5294, 0
    %5367 = vmatpush.bf16.msra.mxu0 0
    %5368 = vmatpush.bf16.msra.mxu0 0
    %5369 = vmatpush.bf16.msra.mxu0 0
    %5370 = vmatpush.bf16.msra.mxu0 %v5365
    %5371 = vmatpush.bf16.msra.mxu0 %v5293
    %5372 = vmatpush.bf16.msra.mxu0 %v5292
    %5373 = vmatpush.bf16.msra.mxu0 %v5291
    %5374 = vmatpush.bf16.msra.mxu0 %v5290
    %5375 = vmatmul.bf16.gmra.mxu0 %v5300
    %v5376 = vpop.f32.mrf.mxu0
    %v5377 = vadd.f32 0.0, %v5376
    %v5378 = vpop.f32.mrf.mxu0
    %v5379 = vadd.f32 0.0, %v5378
    %5380 = vmatmul.bf16.gmra.mxu0 %v5302
    %v5381 = vpop.f32.mrf.mxu0
    %v5382 = vadd.f32 0.0, %v5381
    %v5383 = vpop.f32.mrf.mxu0
    %v5384 = vadd.f32 0.0, %v5383
    %5385 = vmatmul.bf16.gmra.mxu0 %v5304
    %v5386 = vpop.f32.mrf.mxu0
    %v5387 = vadd.f32 0.0, %v5386
    %v5388 = vpop.f32.mrf.mxu0
    %v5389 = vadd.f32 0.0, %v5388
    %5390 = vmatmul.bf16.gmra.mxu0 %v5306
    %v5391 = vpop.f32.mrf.mxu0
    %v5392 = vadd.f32 0.0, %v5391
    %v5393 = vpop.f32.mrf.mxu0
    %v5394 = vadd.f32 0.0, %v5393
    %5395 = vmatmul.bf16.gmra.mxu0 %v5308
    %v5396 = vpop.f32.mrf.mxu0
    %v5397 = vadd.f32 0.0, %v5396
    %v5398 = vpop.f32.mrf.mxu0
    %v5399 = vadd.f32 0.0, %v5398
    %5400 = vmatmul.bf16.gmra.mxu0 %v5310
    %v5401 = vpop.f32.mrf.mxu0
    %v5402 = vadd.f32 0.0, %v5401
    %v5403 = vpop.f32.mrf.mxu0
    %v5404 = vadd.f32 0.0, %v5403
    %5405 = vmatmul.bf16.gmra.mxu0 %v5312
    %v5406 = vpop.f32.mrf.mxu0
    %v5407 = vadd.f32 0.0, %v5406
    %v5408 = vpop.f32.mrf.mxu0
    %v5409 = vadd.f32 0.0, %v5408
    %5410 = vmatmul.bf16.gmra.mxu0 %v5314
    %v5411 = vpop.f32.mrf.mxu0
    %v5412 = vadd.f32 0.0, %v5411
    %v5413 = vpop.f32.mrf.mxu0
    %v5414 = vadd.f32 0.0, %v5413
    %5415 = vmatmul.bf16.gmra.mxu0 %v5316
    %v5416 = vpop.f32.mrf.mxu0
    %v5417 = vadd.f32 0.0, %v5416
    %v5418 = vpop.f32.mrf.mxu0
    %v5419 = vadd.f32 0.0, %v5418
    %5420 = vmatmul.bf16.gmra.mxu0 %v5318
    %v5421 = vpop.f32.mrf.mxu0
    %v5422 = vadd.f32 0.0, %v5421
    %v5423 = vpop.f32.mrf.mxu0
    %v5424 = vadd.f32 0.0, %v5423
    %5425 = vmatmul.bf16.gmra.mxu0 %v5320
    %v5426 = vpop.f32.mrf.mxu0
    %v5427 = vadd.f32 0.0, %v5426
    %v5428 = vpop.f32.mrf.mxu0
    %v5429 = vadd.f32 0.0, %v5428
    %5430 = vmatmul.bf16.gmra.mxu0 %v5322
    %v5431 = vpop.f32.mrf.mxu0
    %v5432 = vadd.f32 0.0, %v5431
    %v5433 = vpop.f32.mrf.mxu0
    %v5434 = vadd.f32 0.0, %v5433
    %5435 = vmatmul.bf16.gmra.mxu0 %v5324
    %v5436 = vpop.f32.mrf.mxu0
    %v5437 = vadd.f32 0.0, %v5436
    %v5438 = vpop.f32.mrf.mxu0
    %v5439 = vadd.f32 0.0, %v5438
    %5440 = vmatmul.bf16.gmra.mxu0 %v5326
    %v5441 = vpop.f32.mrf.mxu0
    %v5442 = vadd.f32 0.0, %v5441
    %v5443 = vpop.f32.mrf.mxu0
    %v5444 = vadd.f32 0.0, %v5443
    %5445 = vmatmul.bf16.gmra.mxu0 %v5328
    %v5446 = vpop.f32.mrf.mxu0
    %v5447 = vadd.f32 0.0, %v5446
    %v5448 = vpop.f32.mrf.mxu0
    %v5449 = vadd.f32 0.0, %v5448
    %5450 = vmatmul.bf16.gmra.mxu0 %v5330
    %v5451 = vpop.f32.mrf.mxu0
    %v5452 = vadd.f32 0.0, %v5451
    %v5453 = vpop.f32.mrf.mxu0
    %v5454 = vadd.f32 0.0, %v5453
    %5455 = vmatmul.bf16.gmra.mxu0 %v5332
    %v5456 = vpop.f32.mrf.mxu0
    %v5457 = vadd.f32 0.0, %v5456
    %v5458 = vpop.f32.mrf.mxu0
    %v5459 = vadd.f32 0.0, %v5458
    %5460 = vmatmul.bf16.gmra.mxu0 %v5334
    %v5461 = vpop.f32.mrf.mxu0
    %v5462 = vadd.f32 0.0, %v5461
    %v5463 = vpop.f32.mrf.mxu0
    %v5464 = vadd.f32 0.0, %v5463
    %5465 = vmatmul.bf16.gmra.mxu0 %v5336
    %v5466 = vpop.f32.mrf.mxu0
    %v5467 = vadd.f32 0.0, %v5466
    %v5468 = vpop.f32.mrf.mxu0
    %v5469 = vadd.f32 0.0, %v5468
    %5470 = vmatmul.bf16.gmra.mxu0 %v5338
    %v5471 = vpop.f32.mrf.mxu0
    %v5472 = vadd.f32 0.0, %v5471
    %v5473 = vpop.f32.mrf.mxu0
    %v5474 = vadd.f32 0.0, %v5473
    %5475 = vmatmul.bf16.gmra.mxu0 %v5340
    %v5476 = vpop.f32.mrf.mxu0
    %v5477 = vadd.f32 0.0, %v5476
    %v5478 = vpop.f32.mrf.mxu0
    %v5479 = vadd.f32 0.0, %v5478
    %5480 = vmatmul.bf16.gmra.mxu0 %v5342
    %v5481 = vpop.f32.mrf.mxu0
    %v5482 = vadd.f32 0.0, %v5481
    %v5483 = vpop.f32.mrf.mxu0
    %v5484 = vadd.f32 0.0, %v5483
    %5485 = vmatmul.bf16.gmra.mxu0 %v5344
    %v5486 = vpop.f32.mrf.mxu0
    %v5487 = vadd.f32 0.0, %v5486
    %v5488 = vpop.f32.mrf.mxu0
    %v5489 = vadd.f32 0.0, %v5488
    %5490 = vmatmul.bf16.gmra.mxu0 %v5346
    %v5491 = vpop.f32.mrf.mxu0
    %v5492 = vadd.f32 0.0, %v5491
    %v5493 = vpop.f32.mrf.mxu0
    %v5494 = vadd.f32 0.0, %v5493
    %5495 = vmatmul.bf16.gmra.mxu0 %v5348
    %v5496 = vpop.f32.mrf.mxu0
    %v5497 = vadd.f32 0.0, %v5496
    %v5498 = vpop.f32.mrf.mxu0
    %v5499 = vadd.f32 0.0, %v5498
    %5500 = vmatmul.bf16.gmra.mxu0 %v5350
    %v5501 = vpop.f32.mrf.mxu0
    %v5502 = vadd.f32 0.0, %v5501
    %v5503 = vpop.f32.mrf.mxu0
    %v5504 = vadd.f32 0.0, %v5503
    %5505 = vmatmul.bf16.gmra.mxu0 %v5352
    %v5506 = vpop.f32.mrf.mxu0
    %v5507 = vadd.f32 0.0, %v5506
    %v5508 = vpop.f32.mrf.mxu0
    %v5509 = vadd.f32 0.0, %v5508
    %5510 = vmatmul.bf16.gmra.mxu0 %v5354
    %v5511 = vpop.f32.mrf.mxu0
    %v5512 = vadd.f32 0.0, %v5511
    %v5513 = vpop.f32.mrf.mxu0
    %v5514 = vadd.f32 0.0, %v5513
    %5515 = vmatmul.bf16.gmra.mxu0 %v5356
    %v5516 = vpop.f32.mrf.mxu0
    %v5517 = vadd.f32 0.0, %v5516
    %v5518 = vpop.f32.mrf.mxu0
    %v5519 = vadd.f32 0.0, %v5518
    %5520 = vmatmul.bf16.gmra.mxu0 %v5358
    %v5521 = vpop.f32.mrf.mxu0
    %v5522 = vadd.f32 0.0, %v5521
    %v5523 = vpop.f32.mrf.mxu0
    %v5524 = vadd.f32 0.0, %v5523
    %5525 = vmatmul.bf16.gmra.mxu0 %v5360
    %v5526 = vpop.f32.mrf.mxu0
    %v5527 = vadd.f32 0.0, %v5526
    %v5528 = vpop.f32.mrf.mxu0
    %v5529 = vadd.f32 0.0, %v5528
    %5530 = vmatmul.bf16.gmra.mxu0 %v5362
    %v5531 = vpop.f32.mrf.mxu0
    %v5532 = vadd.f32 0.0, %v5531
    %v5533 = vpop.f32.mrf.mxu0
    %v5534 = vadd.f32 0.0, %v5533
    %5535 = vdwg.mxu0
    %v5536 = vld [vmem:[%s5] sm:$0x1]
    %v5537 = vld [vmem:[%s6] sm:$0x1]
    %v5538 = vsel %vm988, %v5377, 0.0
    %v5539 = vsel %vm988, %v5379, 0.0
    %v5540 = vadd.f32 %v5538, %v5539
    %v5541 = vsel %vm988, %v5382, 0.0
    %v5542 = vadd.f32 %v5540, %v5541
    %v5543 = vsel %vm988, %v5384, 0.0
    %v5544 = vadd.f32 %v5542, %v5543
    %v5545 = vsel %vm988, %v5387, 0.0
    %v5546 = vadd.f32 %v5544, %v5545
    %v5547 = vsel %vm988, %v5389, 0.0
    %v5548 = vadd.f32 %v5546, %v5547
    %v5549 = vsel %vm988, %v5392, 0.0
    %v5550 = vadd.f32 %v5548, %v5549
    %v5551 = vsel %vm988, %v5394, 0.0
    %v5552 = vadd.f32 %v5550, %v5551
    %v5553 = vsel %vm988, %v5397, 0.0
    %v5554 = vadd.f32 %v5552, %v5553
    %v5555 = vsel %vm988, %v5399, 0.0
    %v5556 = vadd.f32 %v5554, %v5555
    %v5557 = vsel %vm988, %v5402, 0.0
    %v5558 = vadd.f32 %v5556, %v5557
    %v5559 = vsel %vm988, %v5404, 0.0
    %v5560 = vadd.f32 %v5558, %v5559
    %v5561 = vsel %vm988, %v5407, 0.0
    %v5562 = vadd.f32 %v5560, %v5561
    %v5563 = vsel %vm988, %v5409, 0.0
    %v5564 = vadd.f32 %v5562, %v5563
    %v5565 = vsel %vm988, %v5412, 0.0
    %v5566 = vadd.f32 %v5564, %v5565
    %v5567 = vsel %vm988, %v5414, 0.0
    %v5568 = vadd.f32 %v5566, %v5567
    %v5569 = vsel %vm988, %v5417, 0.0
    %v5570 = vadd.f32 %v5568, %v5569
    %v5571 = vsel %vm988, %v5419, 0.0
    %v5572 = vadd.f32 %v5570, %v5571
    %v5573 = vsel %vm988, %v5422, 0.0
    %v5574 = vadd.f32 %v5572, %v5573
    %v5575 = vsel %vm988, %v5424, 0.0
    %v5576 = vadd.f32 %v5574, %v5575
    %v5577 = vsel %vm988, %v5427, 0.0
    %v5578 = vadd.f32 %v5576, %v5577
    %v5579 = vsel %vm988, %v5429, 0.0
    %v5580 = vadd.f32 %v5578, %v5579
    %v5581 = vsel %vm988, %v5432, 0.0
    %v5582 = vadd.f32 %v5580, %v5581
    %v5583 = vsel %vm988, %v5434, 0.0
    %v5584 = vadd.f32 %v5582, %v5583
    %v5585 = vsel %vm988, %v5437, 0.0
    %v5586 = vadd.f32 %v5584, %v5585
    %v5587 = vsel %vm988, %v5439, 0.0
    %v5588 = vadd.f32 %v5586, %v5587
    %v5589 = vsel %vm988, %v5442, 0.0
    %v5590 = vadd.f32 %v5588, %v5589
    %v5591 = vsel %vm988, %v5444, 0.0
    %v5592 = vadd.f32 %v5590, %v5591
    %v5593 = vsel %vm988, %v5447, 0.0
    %v5594 = vadd.f32 %v5592, %v5593
    %v5595 = vsel %vm988, %v5449, 0.0
    %v5596 = vadd.f32 %v5594, %v5595
    %v5597 = vsel %vm988, %v5452, 0.0
    %v5598 = vadd.f32 %v5596, %v5597
    %v5599 = vsel %vm988, %v5454, 0.0
    %v5600 = vadd.f32 %v5598, %v5599
    %v5601 = vsel %vm988, %v5457, 0.0
    %v5602 = vadd.f32 %v5600, %v5601
    %v5603 = vsel %vm988, %v5459, 0.0
    %v5604 = vadd.f32 %v5602, %v5603
    %v5605 = vsel %vm988, %v5462, 0.0
    %v5606 = vadd.f32 %v5604, %v5605
    %v5607 = vsel %vm988, %v5464, 0.0
    %v5608 = vadd.f32 %v5606, %v5607
    %v5609 = vsel %vm988, %v5467, 0.0
    %v5610 = vadd.f32 %v5608, %v5609
    %v5611 = vsel %vm988, %v5469, 0.0
    %v5612 = vadd.f32 %v5610, %v5611
    %v5613 = vsel %vm988, %v5472, 0.0
    %v5614 = vadd.f32 %v5612, %v5613
    %v5615 = vsel %vm988, %v5474, 0.0
    %v5616 = vadd.f32 %v5614, %v5615
    %v5617 = vsel %vm988, %v5477, 0.0
    %v5618 = vadd.f32 %v5616, %v5617
    %v5619 = vsel %vm988, %v5479, 0.0
    %v5620 = vadd.f32 %v5618, %v5619
    %v5621 = vsel %vm988, %v5482, 0.0
    %v5622 = vadd.f32 %v5620, %v5621
    %v5623 = vsel %vm988, %v5484, 0.0
    %v5624 = vadd.f32 %v5622, %v5623
    %v5625 = vsel %vm988, %v5487, 0.0
    %v5626 = vadd.f32 %v5624, %v5625
    %v5627 = vsel %vm988, %v5489, 0.0
    %v5628 = vadd.f32 %v5626, %v5627
    %v5629 = vsel %vm988, %v5492, 0.0
    %v5630 = vadd.f32 %v5628, %v5629
    %v5631 = vsel %vm988, %v5494, 0.0
    %v5632 = vadd.f32 %v5630, %v5631
    %v5633 = vsel %vm988, %v5497, 0.0
    %v5634 = vadd.f32 %v5632, %v5633
    %v5635 = vsel %vm988, %v5499, 0.0
    %v5636 = vadd.f32 %v5634, %v5635
    %v5637 = vsel %vm988, %v5502, 0.0
    %v5638 = vadd.f32 %v5636, %v5637
    %v5639 = vsel %vm988, %v5504, 0.0
    %v5640 = vadd.f32 %v5638, %v5639
    %v5641 = vsel %vm988, %v5507, 0.0
    %v5642 = vadd.f32 %v5640, %v5641
    %v5643 = vsel %vm988, %v5509, 0.0
    %v5644 = vadd.f32 %v5642, %v5643
    %v5645 = vsel %vm988, %v5512, 0.0
    %v5646 = vadd.f32 %v5644, %v5645
    %v5647 = vsel %vm988, %v5514, 0.0
    %v5648 = vadd.f32 %v5646, %v5647
    %v5649 = vsel %vm988, %v5517, 0.0
    %v5650 = vadd.f32 %v5648, %v5649
    %v5651 = vsel %vm988, %v5519, 0.0
    %v5652 = vadd.f32 %v5650, %v5651
    %v5653 = vsel %vm988, %v5522, 0.0
    %v5654 = vadd.f32 %v5652, %v5653
    %v5655 = vsel %vm988, %v5524, 0.0
    %v5656 = vadd.f32 %v5654, %v5655
    %v5657 = vsel %vm988, %v5527, 0.0
    %v5658 = vadd.f32 %v5656, %v5657
    %v5659 = vsel %vm988, %v5529, 0.0
    %v5660 = vadd.f32 %v5658, %v5659
    %v5661 = vsel %vm988, %v5532, 0.0
    %v5662 = vadd.f32 %v5660, %v5661
    %v5663 = vsel %vm988, %v5534, 0.0
    %v5664 = vadd.f32 %v5662, %v5663
    %v5665 = vrot.slane %v5664, 4
    %v5666 = vadd.f32 %v5664, %v5665
    %v5667 = vrot.slane %v5666, 2
    %v5668 = vadd.f32 %v5666, %v5667
    %v5669 = vrot.slane %v5668, 1
    %v5670 = vadd.f32 %v5668, %v5669
    %v5671 = vmul.f32 %v5377, %v5377
    %v5672 = vmul.f32 %v5379, %v5379
    %v5673 = vmul.f32 %v5382, %v5382
    %v5674 = vmul.f32 %v5384, %v5384
    %v5675 = vmul.f32 %v5387, %v5387
    %v5676 = vmul.f32 %v5389, %v5389
    %v5677 = vmul.f32 %v5392, %v5392
    %v5678 = vmul.f32 %v5394, %v5394
    %v5679 = vmul.f32 %v5397, %v5397
    %v5680 = vmul.f32 %v5399, %v5399
    %v5681 = vmul.f32 %v5402, %v5402
    %v5682 = vmul.f32 %v5404, %v5404
    %v5683 = vmul.f32 %v5407, %v5407
    %v5684 = vmul.f32 %v5409, %v5409
    %v5685 = vmul.f32 %v5412, %v5412
    %v5686 = vmul.f32 %v5414, %v5414
    %v5687 = vmul.f32 %v5417, %v5417
    %v5688 = vmul.f32 %v5419, %v5419
    %v5689 = vmul.f32 %v5422, %v5422
    %v5690 = vmul.f32 %v5424, %v5424
    %v5691 = vmul.f32 %v5427, %v5427
    %v5692 = vmul.f32 %v5429, %v5429
    %v5693 = vmul.f32 %v5432, %v5432
    %v5694 = vmul.f32 %v5434, %v5434
    %v5695 = vmul.f32 %v5437, %v5437
    %v5696 = vmul.f32 %v5439, %v5439
    %v5697 = vmul.f32 %v5442, %v5442
    %v5698 = vmul.f32 %v5444, %v5444
    %v5699 = vmul.f32 %v5447, %v5447
    %v5700 = vmul.f32 %v5449, %v5449
    %v5701 = vmul.f32 %v5452, %v5452
    %v5702 = vmul.f32 %v5454, %v5454
    %v5703 = vmul.f32 %v5457, %v5457
    %v5704 = vmul.f32 %v5459, %v5459
    %v5705 = vmul.f32 %v5462, %v5462
    %v5706 = vmul.f32 %v5464, %v5464
    %v5707 = vmul.f32 %v5467, %v5467
    %v5708 = vmul.f32 %v5469, %v5469
    %v5709 = vmul.f32 %v5472, %v5472
    %v5710 = vmul.f32 %v5474, %v5474
    %v5711 = vmul.f32 %v5477, %v5477
    %v5712 = vmul.f32 %v5479, %v5479
    %v5713 = vmul.f32 %v5482, %v5482
    %v5714 = vmul.f32 %v5484, %v5484
    %v5715 = vmul.f32 %v5487, %v5487
    %v5716 = vmul.f32 %v5489, %v5489
    %v5717 = vmul.f32 %v5492, %v5492
    %v5718 = vmul.f32 %v5494, %v5494
    %v5719 = vmul.f32 %v5497, %v5497
    %v5720 = vmul.f32 %v5499, %v5499
    %v5721 = vmul.f32 %v5502, %v5502
    %v5722 = vmul.f32 %v5504, %v5504
    %v5723 = vmul.f32 %v5507, %v5507
    %v5724 = vmul.f32 %v5509, %v5509
    %v5725 = vmul.f32 %v5512, %v5512
    %v5726 = vmul.f32 %v5514, %v5514
    %v5727 = vmul.f32 %v5517, %v5517
    %v5728 = vmul.f32 %v5519, %v5519
    %v5729 = vmul.f32 %v5522, %v5522
    %v5730 = vmul.f32 %v5524, %v5524
    %v5731 = vmul.f32 %v5527, %v5527
    %v5732 = vmul.f32 %v5529, %v5529
    %v5733 = vmul.f32 %v5532, %v5532
    %v5734 = vmul.f32 %v5534, %v5534
    %v5735 = vsel %vm988, %v5671, 0.0
    %v5736 = vsel %vm988, %v5672, 0.0
    %v5737 = vadd.f32 %v5735, %v5736
    %v5738 = vsel %vm988, %v5673, 0.0
    %v5739 = vadd.f32 %v5737, %v5738
    %v5740 = vsel %vm988, %v5674, 0.0
    %v5741 = vadd.f32 %v5739, %v5740
    %v5742 = vsel %vm988, %v5675, 0.0
    %v5743 = vadd.f32 %v5741, %v5742
    %v5744 = vsel %vm988, %v5676, 0.0
    %v5745 = vadd.f32 %v5743, %v5744
    %v5746 = vsel %vm988, %v5677, 0.0
    %v5747 = vadd.f32 %v5745, %v5746
    %v5748 = vsel %vm988, %v5678, 0.0
    %v5749 = vadd.f32 %v5747, %v5748
    %v5750 = vsel %vm988, %v5679, 0.0
    %v5751 = vadd.f32 %v5749, %v5750
    %v5752 = vsel %vm988, %v5680, 0.0
    %v5753 = vadd.f32 %v5751, %v5752
    %v5754 = vsel %vm988, %v5681, 0.0
    %v5755 = vadd.f32 %v5753, %v5754
    %v5756 = vsel %vm988, %v5682, 0.0
    %v5757 = vadd.f32 %v5755, %v5756
    %v5758 = vsel %vm988, %v5683, 0.0
    %v5759 = vadd.f32 %v5757, %v5758
    %v5760 = vsel %vm988, %v5684, 0.0
    %v5761 = vadd.f32 %v5759, %v5760
    %v5762 = vsel %vm988, %v5685, 0.0
    %v5763 = vadd.f32 %v5761, %v5762
    %v5764 = vsel %vm988, %v5686, 0.0
    %v5765 = vadd.f32 %v5763, %v5764
    %v5766 = vsel %vm988, %v5687, 0.0
    %v5767 = vadd.f32 %v5765, %v5766
    %v5768 = vsel %vm988, %v5688, 0.0
    %v5769 = vadd.f32 %v5767, %v5768
    %v5770 = vsel %vm988, %v5689, 0.0
    %v5771 = vadd.f32 %v5769, %v5770
    %v5772 = vsel %vm988, %v5690, 0.0
    %v5773 = vadd.f32 %v5771, %v5772
    %v5774 = vsel %vm988, %v5691, 0.0
    %v5775 = vadd.f32 %v5773, %v5774
    %v5776 = vsel %vm988, %v5692, 0.0
    %v5777 = vadd.f32 %v5775, %v5776
    %v5778 = vsel %vm988, %v5693, 0.0
    %v5779 = vadd.f32 %v5777, %v5778
    %v5780 = vsel %vm988, %v5694, 0.0
    %v5781 = vadd.f32 %v5779, %v5780
    %v5782 = vsel %vm988, %v5695, 0.0
    %v5783 = vadd.f32 %v5781, %v5782
    %v5784 = vsel %vm988, %v5696, 0.0
    %v5785 = vadd.f32 %v5783, %v5784
    %v5786 = vsel %vm988, %v5697, 0.0
    %v5787 = vadd.f32 %v5785, %v5786
    %v5788 = vsel %vm988, %v5698, 0.0
    %v5789 = vadd.f32 %v5787, %v5788
    %v5790 = vsel %vm988, %v5699, 0.0
    %v5791 = vadd.f32 %v5789, %v5790
    %v5792 = vsel %vm988, %v5700, 0.0
    %v5793 = vadd.f32 %v5791, %v5792
    %v5794 = vsel %vm988, %v5701, 0.0
    %v5795 = vadd.f32 %v5793, %v5794
    %v5796 = vsel %vm988, %v5702, 0.0
    %v5797 = vadd.f32 %v5795, %v5796
    %v5798 = vsel %vm988, %v5703, 0.0
    %v5799 = vadd.f32 %v5797, %v5798
    %v5800 = vsel %vm988, %v5704, 0.0
    %v5801 = vadd.f32 %v5799, %v5800
    %v5802 = vsel %vm988, %v5705, 0.0
    %v5803 = vadd.f32 %v5801, %v5802
    %v5804 = vsel %vm988, %v5706, 0.0
    %v5805 = vadd.f32 %v5803, %v5804
    %v5806 = vsel %vm988, %v5707, 0.0
    %v5807 = vadd.f32 %v5805, %v5806
    %v5808 = vsel %vm988, %v5708, 0.0
    %v5809 = vadd.f32 %v5807, %v5808
    %v5810 = vsel %vm988, %v5709, 0.0
    %v5811 = vadd.f32 %v5809, %v5810
    %v5812 = vsel %vm988, %v5710, 0.0
    %v5813 = vadd.f32 %v5811, %v5812
    %v5814 = vsel %vm988, %v5711, 0.0
    %v5815 = vadd.f32 %v5813, %v5814
    %v5816 = vsel %vm988, %v5712, 0.0
    %v5817 = vadd.f32 %v5815, %v5816
    %v5818 = vsel %vm988, %v5713, 0.0
    %v5819 = vadd.f32 %v5817, %v5818
    %v5820 = vsel %vm988, %v5714, 0.0
    %v5821 = vadd.f32 %v5819, %v5820
    %v5822 = vsel %vm988, %v5715, 0.0
    %v5823 = vadd.f32 %v5821, %v5822
    %v5824 = vsel %vm988, %v5716, 0.0
    %v5825 = vadd.f32 %v5823, %v5824
    %v5826 = vsel %vm988, %v5717, 0.0
    %v5827 = vadd.f32 %v5825, %v5826
    %v5828 = vsel %vm988, %v5718, 0.0
    %v5829 = vadd.f32 %v5827, %v5828
    %v5830 = vsel %vm988, %v5719, 0.0
    %v5831 = vadd.f32 %v5829, %v5830
    %v5832 = vsel %vm988, %v5720, 0.0
    %v5833 = vadd.f32 %v5831, %v5832
    %v5834 = vsel %vm988, %v5721, 0.0
    %v5835 = vadd.f32 %v5833, %v5834
    %v5836 = vsel %vm988, %v5722, 0.0
    %v5837 = vadd.f32 %v5835, %v5836
    %v5838 = vsel %vm988, %v5723, 0.0
    %v5839 = vadd.f32 %v5837, %v5838
    %v5840 = vsel %vm988, %v5724, 0.0
    %v5841 = vadd.f32 %v5839, %v5840
    %v5842 = vsel %vm988, %v5725, 0.0
    %v5843 = vadd.f32 %v5841, %v5842
    %v5844 = vsel %vm988, %v5726, 0.0
    %v5845 = vadd.f32 %v5843, %v5844
    %v5846 = vsel %vm988, %v5727, 0.0
    %v5847 = vadd.f32 %v5845, %v5846
    %v5848 = vsel %vm988, %v5728, 0.0
    %v5849 = vadd.f32 %v5847, %v5848
    %v5850 = vsel %vm988, %v5729, 0.0
    %v5851 = vadd.f32 %v5849, %v5850
    %v5852 = vsel %vm988, %v5730, 0.0
    %v5853 = vadd.f32 %v5851, %v5852
    %v5854 = vsel %vm988, %v5731, 0.0
    %v5855 = vadd.f32 %v5853, %v5854
    %v5856 = vsel %vm988, %v5732, 0.0
    %v5857 = vadd.f32 %v5855, %v5856
    %v5858 = vsel %vm988, %v5733, 0.0
    %v5859 = vadd.f32 %v5857, %v5858
    %v5860 = vsel %vm988, %v5734, 0.0
    %v5861 = vadd.f32 %v5859, %v5860
    %v5862 = vrot.slane %v5861, 4
    %v5863 = vadd.f32 %v5861, %v5862
    %v5864 = vrot.slane %v5863, 2
    %v5865 = vadd.f32 %v5863, %v5864
    %v5866 = vrot.slane %v5865, 1
    %v5867 = vadd.f32 %v5865, %v5866
    %v5868 = vmul.f32 %v5670, 0.001953125
    %v5869 = vmul.f32 %v5867, 0.001953125
    %v5870 = vmul.f32 %v5868, %v5868
    %v5871 = vsub.f32 %v5869, %v5870
    %v5872 = vmax.f32 %v5871, 0.0
    %v5873 = vadd.f32 %v5872, 1e-05
    %v5874 = vrsqrt.pop %v5873
    %v5875 = vmul.f32 %v5874, %v5873
    %v5876 = vmul.f32 %v5875, %v5874
    %v5877 = vmul.f32 0.5, %v5876
    %v5878 = vsub.f32 1.5, %v5877
    %v5879 = vmul.f32 %v5874, %v5878
    %vm5880 = vweird.f32 %v5873
    %vm5881 = vweird.f32 %v5874
    %vm5882 = vmor %vm5880, %vm5881
    %v5883 = vsel %vm5882, %v5874, %v5879
    %v5884 = vmul.f32 %v5536, %v5883
    %v5885 = vmul.f32 %v5868, %v5884
    %v5886 = vsub.f32 %v5537, %v5885
    %v5888 = vperm.slane %v5884, 0
    %v5890 = vmul.f32 %v5377, %v5888
    %v5891 = vmul.f32 %v5379, %v5888
    %v5892 = vmul.f32 %v5382, %v5888
    %v5893 = vmul.f32 %v5384, %v5888
    %v5894 = vmul.f32 %v5387, %v5888
    %v5895 = vmul.f32 %v5389, %v5888
    %v5896 = vmul.f32 %v5392, %v5888
    %v5897 = vmul.f32 %v5394, %v5888
    %v5898 = vmul.f32 %v5397, %v5888
    %v5899 = vmul.f32 %v5399, %v5888
    %v5900 = vmul.f32 %v5402, %v5888
    %v5901 = vmul.f32 %v5404, %v5888
    %v5902 = vmul.f32 %v5407, %v5888
    %v5903 = vmul.f32 %v5409, %v5888
    %v5904 = vmul.f32 %v5412, %v5888
    %v5905 = vmul.f32 %v5414, %v5888
    %v5906 = vmul.f32 %v5417, %v5888
    %v5907 = vmul.f32 %v5419, %v5888
    %v5908 = vmul.f32 %v5422, %v5888
    %v5909 = vmul.f32 %v5424, %v5888
    %v5910 = vmul.f32 %v5427, %v5888
    %v5911 = vmul.f32 %v5429, %v5888
    %v5912 = vmul.f32 %v5432, %v5888
    %v5913 = vmul.f32 %v5434, %v5888
    %v5914 = vmul.f32 %v5437, %v5888
    %v5915 = vmul.f32 %v5439, %v5888
    %v5916 = vmul.f32 %v5442, %v5888
    %v5917 = vmul.f32 %v5444, %v5888
    %v5918 = vmul.f32 %v5447, %v5888
    %v5919 = vmul.f32 %v5449, %v5888
    %v5920 = vmul.f32 %v5452, %v5888
    %v5921 = vmul.f32 %v5454, %v5888
    %v5922 = vmul.f32 %v5457, %v5888
    %v5923 = vmul.f32 %v5459, %v5888
    %v5924 = vmul.f32 %v5462, %v5888
    %v5925 = vmul.f32 %v5464, %v5888
    %v5926 = vmul.f32 %v5467, %v5888
    %v5927 = vmul.f32 %v5469, %v5888
    %v5928 = vmul.f32 %v5472, %v5888
    %v5929 = vmul.f32 %v5474, %v5888
    %v5930 = vmul.f32 %v5477, %v5888
    %v5931 = vmul.f32 %v5479, %v5888
    %v5932 = vmul.f32 %v5482, %v5888
    %v5933 = vmul.f32 %v5484, %v5888
    %v5934 = vmul.f32 %v5487, %v5888
    %v5935 = vmul.f32 %v5489, %v5888
    %v5936 = vmul.f32 %v5492, %v5888
    %v5937 = vmul.f32 %v5494, %v5888
    %v5938 = vmul.f32 %v5497, %v5888
    %v5939 = vmul.f32 %v5499, %v5888
    %v5940 = vmul.f32 %v5502, %v5888
    %v5941 = vmul.f32 %v5504, %v5888
    %v5942 = vmul.f32 %v5507, %v5888
    %v5943 = vmul.f32 %v5509, %v5888
    %v5944 = vmul.f32 %v5512, %v5888
    %v5945 = vmul.f32 %v5514, %v5888
    %v5946 = vmul.f32 %v5517, %v5888
    %v5947 = vmul.f32 %v5519, %v5888
    %v5948 = vmul.f32 %v5522, %v5888
    %v5949 = vmul.f32 %v5524, %v5888
    %v5950 = vmul.f32 %v5527, %v5888
    %v5951 = vmul.f32 %v5529, %v5888
    %v5952 = vmul.f32 %v5532, %v5888
    %v5953 = vmul.f32 %v5534, %v5888
    %v5955 = vperm.slane %v5886, 0
    %v5957 = vadd.f32 %v5890, %v5955
    %v5958 = vadd.f32 %v5891, %v5955
    %v5959 = vadd.f32 %v5892, %v5955
    %v5960 = vadd.f32 %v5893, %v5955
    %v5961 = vadd.f32 %v5894, %v5955
    %v5962 = vadd.f32 %v5895, %v5955
    %v5963 = vadd.f32 %v5896, %v5955
    %v5964 = vadd.f32 %v5897, %v5955
    %v5965 = vadd.f32 %v5898, %v5955
    %v5966 = vadd.f32 %v5899, %v5955
    %v5967 = vadd.f32 %v5900, %v5955
    %v5968 = vadd.f32 %v5901, %v5955
    %v5969 = vadd.f32 %v5902, %v5955
    %v5970 = vadd.f32 %v5903, %v5955
    %v5971 = vadd.f32 %v5904, %v5955
    %v5972 = vadd.f32 %v5905, %v5955
    %v5973 = vadd.f32 %v5906, %v5955
    %v5974 = vadd.f32 %v5907, %v5955
    %v5975 = vadd.f32 %v5908, %v5955
    %v5976 = vadd.f32 %v5909, %v5955
    %v5977 = vadd.f32 %v5910, %v5955
    %v5978 = vadd.f32 %v5911, %v5955
    %v5979 = vadd.f32 %v5912, %v5955
    %v5980 = vadd.f32 %v5913, %v5955
    %v5981 = vadd.f32 %v5914, %v5955
    %v5982 = vadd.f32 %v5915, %v5955
    %v5983 = vadd.f32 %v5916, %v5955
    %v5984 = vadd.f32 %v5917, %v5955
    %v5985 = vadd.f32 %v5918, %v5955
    %v5986 = vadd.f32 %v5919, %v5955
    %v5987 = vadd.f32 %v5920, %v5955
    %v5988 = vadd.f32 %v5921, %v5955
    %v5989 = vadd.f32 %v5922, %v5955
    %v5990 = vadd.f32 %v5923, %v5955
    %v5991 = vadd.f32 %v5924, %v5955
    %v5992 = vadd.f32 %v5925, %v5955
    %v5993 = vadd.f32 %v5926, %v5955
    %v5994 = vadd.f32 %v5927, %v5955
    %v5995 = vadd.f32 %v5928, %v5955
    %v5996 = vadd.f32 %v5929, %v5955
    %v5997 = vadd.f32 %v5930, %v5955
    %v5998 = vadd.f32 %v5931, %v5955
    %v5999 = vadd.f32 %v5932, %v5955
    %v6000 = vadd.f32 %v5933, %v5955
    %v6001 = vadd.f32 %v5934, %v5955
    %v6002 = vadd.f32 %v5935, %v5955
    %v6003 = vadd.f32 %v5936, %v5955
    %v6004 = vadd.f32 %v5937, %v5955
    %v6005 = vadd.f32 %v5938, %v5955
    %v6006 = vadd.f32 %v5939, %v5955
    %v6007 = vadd.f32 %v5940, %v5955
    %v6008 = vadd.f32 %v5941, %v5955
    %v6009 = vadd.f32 %v5942, %v5955
    %v6010 = vadd.f32 %v5943, %v5955
    %v6011 = vadd.f32 %v5944, %v5955
    %v6012 = vadd.f32 %v5945, %v5955
    %v6013 = vadd.f32 %v5946, %v5955
    %v6014 = vadd.f32 %v5947, %v5955
    %v6015 = vadd.f32 %v5948, %v5955
    %v6016 = vadd.f32 %v5949, %v5955
    %v6017 = vadd.f32 %v5950, %v5955
    %v6018 = vadd.f32 %v5951, %v5955
    %v6019 = vadd.f32 %v5952, %v5955
    %v6020 = vadd.f32 %v5953, %v5955
    %v6021 = vmax.f32 %v5957, 0.0
    %v6022 = vmax.f32 %v5958, 0.0
    %v6023 = vmax.f32 %v5959, 0.0
    %v6024 = vmax.f32 %v5960, 0.0
    %v6025 = vmax.f32 %v5961, 0.0
    %v6026 = vmax.f32 %v5962, 0.0
    %v6027 = vmax.f32 %v5963, 0.0
    %v6028 = vmax.f32 %v5964, 0.0
    %v6029 = vmax.f32 %v5965, 0.0
    %v6030 = vmax.f32 %v5966, 0.0
    %v6031 = vmax.f32 %v5967, 0.0
    %v6032 = vmax.f32 %v5968, 0.0
    %v6033 = vmax.f32 %v5969, 0.0
    %v6034 = vmax.f32 %v5970, 0.0
    %v6035 = vmax.f32 %v5971, 0.0
    %v6036 = vmax.f32 %v5972, 0.0
    %v6037 = vmax.f32 %v5973, 0.0
    %v6038 = vmax.f32 %v5974, 0.0
    %v6039 = vmax.f32 %v5975, 0.0
    %v6040 = vmax.f32 %v5976, 0.0
    %v6041 = vmax.f32 %v5977, 0.0
    %v6042 = vmax.f32 %v5978, 0.0
    %v6043 = vmax.f32 %v5979, 0.0
    %v6044 = vmax.f32 %v5980, 0.0
    %v6045 = vmax.f32 %v5981, 0.0
    %v6046 = vmax.f32 %v5982, 0.0
    %v6047 = vmax.f32 %v5983, 0.0
    %v6048 = vmax.f32 %v5984, 0.0
    %v6049 = vmax.f32 %v5985, 0.0
    %v6050 = vmax.f32 %v5986, 0.0
    %v6051 = vmax.f32 %v5987, 0.0
    %v6052 = vmax.f32 %v5988, 0.0
    %v6053 = vmax.f32 %v5989, 0.0
    %v6054 = vmax.f32 %v5990, 0.0
    %v6055 = vmax.f32 %v5991, 0.0
    %v6056 = vmax.f32 %v5992, 0.0
    %v6057 = vmax.f32 %v5993, 0.0
    %v6058 = vmax.f32 %v5994, 0.0
    %v6059 = vmax.f32 %v5995, 0.0
    %v6060 = vmax.f32 %v5996, 0.0
    %v6061 = vmax.f32 %v5997, 0.0
    %v6062 = vmax.f32 %v5998, 0.0
    %v6063 = vmax.f32 %v5999, 0.0
    %v6064 = vmax.f32 %v6000, 0.0
    %v6065 = vmax.f32 %v6001, 0.0
    %v6066 = vmax.f32 %v6002, 0.0
    %v6067 = vmax.f32 %v6003, 0.0
    %v6068 = vmax.f32 %v6004, 0.0
    %v6069 = vmax.f32 %v6005, 0.0
    %v6070 = vmax.f32 %v6006, 0.0
    %v6071 = vmax.f32 %v6007, 0.0
    %v6072 = vmax.f32 %v6008, 0.0
    %v6073 = vmax.f32 %v6009, 0.0
    %v6074 = vmax.f32 %v6010, 0.0
    %v6075 = vmax.f32 %v6011, 0.0
    %v6076 = vmax.f32 %v6012, 0.0
    %v6077 = vmax.f32 %v6013, 0.0
    %v6078 = vmax.f32 %v6014, 0.0
    %v6079 = vmax.f32 %v6015, 0.0
    %v6080 = vmax.f32 %v6016, 0.0
    %v6081 = vmax.f32 %v6017, 0.0
    %v6082 = vmax.f32 %v6018, 0.0
    %v6083 = vmax.f32 %v6019, 0.0
    %v6084 = vmax.f32 %v6020, 0.0
    %v6085 = vpack.c.bf16 %v6022, %v6021
    %v6086 = vpack.c.bf16 %v6024, %v6023
    %v6087 = vpack.c.bf16 %v6026, %v6025
    %v6088 = vpack.c.bf16 %v6028, %v6027
    %v6089 = vpack.c.bf16 %v6030, %v6029
    %v6090 = vpack.c.bf16 %v6032, %v6031
    %v6091 = vpack.c.bf16 %v6034, %v6033
    %v6092 = vpack.c.bf16 %v6036, %v6035
    %v6093 = vpack.c.bf16 %v6038, %v6037
    %v6094 = vpack.c.bf16 %v6040, %v6039
    %v6095 = vpack.c.bf16 %v6042, %v6041
    %v6096 = vpack.c.bf16 %v6044, %v6043
    %v6097 = vpack.c.bf16 %v6046, %v6045
    %v6098 = vpack.c.bf16 %v6048, %v6047
    %v6099 = vpack.c.bf16 %v6050, %v6049
    %v6100 = vpack.c.bf16 %v6052, %v6051
    %v6101 = vpack.c.bf16 %v6054, %v6053
    %v6102 = vpack.c.bf16 %v6056, %v6055
    %v6103 = vpack.c.bf16 %v6058, %v6057
    %v6104 = vpack.c.bf16 %v6060, %v6059
    %v6105 = vpack.c.bf16 %v6062, %v6061
    %v6106 = vpack.c.bf16 %v6064, %v6063
    %v6107 = vpack.c.bf16 %v6066, %v6065
    %v6108 = vpack.c.bf16 %v6068, %v6067
    %v6109 = vpack.c.bf16 %v6070, %v6069
    %v6110 = vpack.c.bf16 %v6072, %v6071
    %v6111 = vpack.c.bf16 %v6074, %v6073
    %v6112 = vpack.c.bf16 %v6076, %v6075
    %v6113 = vpack.c.bf16 %v6078, %v6077
    %v6114 = vpack.c.bf16 %v6080, %v6079
    %v6115 = vpack.c.bf16 %v6082, %v6081
    %v6116 = vpack.c.bf16 %v6084, %v6083
    %v6117 = vld [vmem:[%s7] sm:$0xf]
    %v6119 = vsel %vm988, %v6085, 0
    %v6122 = vsel %vm988, %v6086, 0
    %v6125 = vsel %vm988, %v6087, 0
    %v6128 = vsel %vm988, %v6088, 0
    %v6131 = vsel %vm988, %v6089, 0
    %v6134 = vsel %vm988, %v6090, 0
    %v6137 = vsel %vm988, %v6091, 0
    %v6140 = vsel %vm988, %v6092, 0
    %v6143 = vsel %vm988, %v6093, 0
    %v6146 = vsel %vm988, %v6094, 0
    %v6149 = vsel %vm988, %v6095, 0
    %v6152 = vsel %vm988, %v6096, 0
    %v6155 = vsel %vm988, %v6097, 0
    %v6158 = vsel %vm988, %v6098, 0
    %v6161 = vsel %vm988, %v6099, 0
    %v6164 = vsel %vm988, %v6100, 0
    %v6167 = vsel %vm988, %v6101, 0
    %v6170 = vsel %vm988, %v6102, 0
    %v6173 = vsel %vm988, %v6103, 0
    %v6176 = vsel %vm988, %v6104, 0
    %v6179 = vsel %vm988, %v6105, 0
    %v6182 = vsel %vm988, %v6106, 0
    %v6185 = vsel %vm988, %v6107, 0
    %v6188 = vsel %vm988, %v6108, 0
    %v6191 = vsel %vm988, %v6109, 0
    %v6194 = vsel %vm988, %v6110, 0
    %v6197 = vsel %vm988, %v6111, 0
    %v6200 = vsel %vm988, %v6112, 0
    %v6203 = vsel %vm988, %v6113, 0
    %v6206 = vsel %vm988, %v6114, 0
    %v6209 = vsel %vm988, %v6115, 0
    %v6212 = vsel %vm988, %v6116, 0
    %v6215 = vsel %vm702, %v6117, 0
    %6217 = vmatpush.bf16.msra.mxu0 0
    %6218 = vmatpush.bf16.msra.mxu0 0
    %6219 = vmatpush.bf16.msra.mxu0 0
    %6220 = vmatpush.bf16.msra.mxu0 0
    %6221 = vmatpush.bf16.msra.mxu0 0
    %6222 = vmatpush.bf16.msra.mxu0 0
    %6223 = vmatpush.bf16.msra.mxu0 0
    %6224 = vmatpush.bf16.msra.mxu0 %v6215
    %6225 = vmatmul.bf16.gmra.mxu0 %v6119
    %v6226 = vpop.f32.mrf.mxu0
    %v6227 = vadd.f32 0.0, %v6226
    %v6228 = vpop.f32.mrf.mxu0
    %v6229 = vadd.f32 0.0, %v6228
    %6230 = vmatmul.bf16.gmra.mxu0 %v6122
    %v6231 = vpop.f32.mrf.mxu0
    %v6232 = vadd.f32 0.0, %v6231
    %v6233 = vpop.f32.mrf.mxu0
    %v6234 = vadd.f32 0.0, %v6233
    %6235 = vmatmul.bf16.gmra.mxu0 %v6125
    %v6236 = vpop.f32.mrf.mxu0
    %v6237 = vadd.f32 0.0, %v6236
    %v6238 = vpop.f32.mrf.mxu0
    %v6239 = vadd.f32 0.0, %v6238
    %6240 = vmatmul.bf16.gmra.mxu0 %v6128
    %v6241 = vpop.f32.mrf.mxu0
    %v6242 = vadd.f32 0.0, %v6241
    %v6243 = vpop.f32.mrf.mxu0
    %v6244 = vadd.f32 0.0, %v6243
    %6245 = vmatmul.bf16.gmra.mxu0 %v6131
    %v6246 = vpop.f32.mrf.mxu0
    %v6247 = vadd.f32 0.0, %v6246
    %v6248 = vpop.f32.mrf.mxu0
    %v6249 = vadd.f32 0.0, %v6248
    %6250 = vmatmul.bf16.gmra.mxu0 %v6134
    %v6251 = vpop.f32.mrf.mxu0
    %v6252 = vadd.f32 0.0, %v6251
    %v6253 = vpop.f32.mrf.mxu0
    %v6254 = vadd.f32 0.0, %v6253
    %6255 = vmatmul.bf16.gmra.mxu0 %v6137
    %v6256 = vpop.f32.mrf.mxu0
    %v6257 = vadd.f32 0.0, %v6256
    %v6258 = vpop.f32.mrf.mxu0
    %v6259 = vadd.f32 0.0, %v6258
    %6260 = vmatmul.bf16.gmra.mxu0 %v6140
    %v6261 = vpop.f32.mrf.mxu0
    %v6262 = vadd.f32 0.0, %v6261
    %v6263 = vpop.f32.mrf.mxu0
    %v6264 = vadd.f32 0.0, %v6263
    %6265 = vmatmul.bf16.gmra.mxu0 %v6143
    %v6266 = vpop.f32.mrf.mxu0
    %v6267 = vadd.f32 0.0, %v6266
    %v6268 = vpop.f32.mrf.mxu0
    %v6269 = vadd.f32 0.0, %v6268
    %6270 = vmatmul.bf16.gmra.mxu0 %v6146
    %v6271 = vpop.f32.mrf.mxu0
    %v6272 = vadd.f32 0.0, %v6271
    %v6273 = vpop.f32.mrf.mxu0
    %v6274 = vadd.f32 0.0, %v6273
    %6275 = vmatmul.bf16.gmra.mxu0 %v6149
    %v6276 = vpop.f32.mrf.mxu0
    %v6277 = vadd.f32 0.0, %v6276
    %v6278 = vpop.f32.mrf.mxu0
    %v6279 = vadd.f32 0.0, %v6278
    %6280 = vmatmul.bf16.gmra.mxu0 %v6152
    %v6281 = vpop.f32.mrf.mxu0
    %v6282 = vadd.f32 0.0, %v6281
    %v6283 = vpop.f32.mrf.mxu0
    %v6284 = vadd.f32 0.0, %v6283
    %6285 = vmatmul.bf16.gmra.mxu0 %v6155
    %v6286 = vpop.f32.mrf.mxu0
    %v6287 = vadd.f32 0.0, %v6286
    %v6288 = vpop.f32.mrf.mxu0
    %v6289 = vadd.f32 0.0, %v6288
    %6290 = vmatmul.bf16.gmra.mxu0 %v6158
    %v6291 = vpop.f32.mrf.mxu0
    %v6292 = vadd.f32 0.0, %v6291
    %v6293 = vpop.f32.mrf.mxu0
    %v6294 = vadd.f32 0.0, %v6293
    %6295 = vmatmul.bf16.gmra.mxu0 %v6161
    %v6296 = vpop.f32.mrf.mxu0
    %v6297 = vadd.f32 0.0, %v6296
    %v6298 = vpop.f32.mrf.mxu0
    %v6299 = vadd.f32 0.0, %v6298
    %6300 = vmatmul.bf16.gmra.mxu0 %v6164
    %v6301 = vpop.f32.mrf.mxu0
    %v6302 = vadd.f32 0.0, %v6301
    %v6303 = vpop.f32.mrf.mxu0
    %v6304 = vadd.f32 0.0, %v6303
    %6305 = vmatmul.bf16.gmra.mxu0 %v6167
    %v6306 = vpop.f32.mrf.mxu0
    %v6307 = vadd.f32 0.0, %v6306
    %v6308 = vpop.f32.mrf.mxu0
    %v6309 = vadd.f32 0.0, %v6308
    %6310 = vmatmul.bf16.gmra.mxu0 %v6170
    %v6311 = vpop.f32.mrf.mxu0
    %v6312 = vadd.f32 0.0, %v6311
    %v6313 = vpop.f32.mrf.mxu0
    %v6314 = vadd.f32 0.0, %v6313
    %6315 = vmatmul.bf16.gmra.mxu0 %v6173
    %v6316 = vpop.f32.mrf.mxu0
    %v6317 = vadd.f32 0.0, %v6316
    %v6318 = vpop.f32.mrf.mxu0
    %v6319 = vadd.f32 0.0, %v6318
    %6320 = vmatmul.bf16.gmra.mxu0 %v6176
    %v6321 = vpop.f32.mrf.mxu0
    %v6322 = vadd.f32 0.0, %v6321
    %v6323 = vpop.f32.mrf.mxu0
    %v6324 = vadd.f32 0.0, %v6323
    %6325 = vmatmul.bf16.gmra.mxu0 %v6179
    %v6326 = vpop.f32.mrf.mxu0
    %v6327 = vadd.f32 0.0, %v6326
    %v6328 = vpop.f32.mrf.mxu0
    %v6329 = vadd.f32 0.0, %v6328
    %6330 = vmatmul.bf16.gmra.mxu0 %v6182
    %v6331 = vpop.f32.mrf.mxu0
    %v6332 = vadd.f32 0.0, %v6331
    %v6333 = vpop.f32.mrf.mxu0
    %v6334 = vadd.f32 0.0, %v6333
    %6335 = vmatmul.bf16.gmra.mxu0 %v6185
    %v6336 = vpop.f32.mrf.mxu0
    %v6337 = vadd.f32 0.0, %v6336
    %v6338 = vpop.f32.mrf.mxu0
    %v6339 = vadd.f32 0.0, %v6338
    %6340 = vmatmul.bf16.gmra.mxu0 %v6188
    %v6341 = vpop.f32.mrf.mxu0
    %v6342 = vadd.f32 0.0, %v6341
    %v6343 = vpop.f32.mrf.mxu0
    %v6344 = vadd.f32 0.0, %v6343
    %6345 = vmatmul.bf16.gmra.mxu0 %v6191
    %v6346 = vpop.f32.mrf.mxu0
    %v6347 = vadd.f32 0.0, %v6346
    %v6348 = vpop.f32.mrf.mxu0
    %v6349 = vadd.f32 0.0, %v6348
    %6350 = vmatmul.bf16.gmra.mxu0 %v6194
    %v6351 = vpop.f32.mrf.mxu0
    %v6352 = vadd.f32 0.0, %v6351
    %v6353 = vpop.f32.mrf.mxu0
    %v6354 = vadd.f32 0.0, %v6353
    %6355 = vmatmul.bf16.gmra.mxu0 %v6197
    %v6356 = vpop.f32.mrf.mxu0
    %v6357 = vadd.f32 0.0, %v6356
    %v6358 = vpop.f32.mrf.mxu0
    %v6359 = vadd.f32 0.0, %v6358
    %6360 = vmatmul.bf16.gmra.mxu0 %v6200
    %v6361 = vpop.f32.mrf.mxu0
    %v6362 = vadd.f32 0.0, %v6361
    %v6363 = vpop.f32.mrf.mxu0
    %v6364 = vadd.f32 0.0, %v6363
    %6365 = vmatmul.bf16.gmra.mxu0 %v6203
    %v6366 = vpop.f32.mrf.mxu0
    %v6367 = vadd.f32 0.0, %v6366
    %v6368 = vpop.f32.mrf.mxu0
    %v6369 = vadd.f32 0.0, %v6368
    %6370 = vmatmul.bf16.gmra.mxu0 %v6206
    %v6371 = vpop.f32.mrf.mxu0
    %v6372 = vadd.f32 0.0, %v6371
    %v6373 = vpop.f32.mrf.mxu0
    %v6374 = vadd.f32 0.0, %v6373
    %6375 = vmatmul.bf16.gmra.mxu0 %v6209
    %v6376 = vpop.f32.mrf.mxu0
    %v6377 = vadd.f32 0.0, %v6376
    %v6378 = vpop.f32.mrf.mxu0
    %v6379 = vadd.f32 0.0, %v6378
    %6380 = vmatmul.bf16.gmra.mxu0 %v6212
    %v6381 = vpop.f32.mrf.mxu0
    %v6382 = vadd.f32 0.0, %v6381
    %v6383 = vpop.f32.mrf.mxu0
    %v6384 = vadd.f32 0.0, %v6383
    %6385 = vdwg.mxu0
    %v6386 = vld [vmem:[%s8] sm:$0x1]
    %v6387 = vld [vmem:[%s9] sm:$0x1]
    %v6388 = vadd.f32 %v6227, %v6229
    %v6389 = vadd.f32 %v6388, %v6232
    %v6390 = vadd.f32 %v6389, %v6234
    %v6391 = vadd.f32 %v6390, %v6237
    %v6392 = vadd.f32 %v6391, %v6239
    %v6393 = vadd.f32 %v6392, %v6242
    %v6394 = vadd.f32 %v6393, %v6244
    %v6395 = vadd.f32 %v6394, %v6247
    %v6396 = vadd.f32 %v6395, %v6249
    %v6397 = vadd.f32 %v6396, %v6252
    %v6398 = vadd.f32 %v6397, %v6254
    %v6399 = vadd.f32 %v6398, %v6257
    %v6400 = vadd.f32 %v6399, %v6259
    %v6401 = vadd.f32 %v6400, %v6262
    %v6402 = vadd.f32 %v6401, %v6264
    %v6403 = vadd.f32 %v6402, %v6267
    %v6404 = vadd.f32 %v6403, %v6269
    %v6405 = vadd.f32 %v6404, %v6272
    %v6406 = vadd.f32 %v6405, %v6274
    %v6407 = vadd.f32 %v6406, %v6277
    %v6408 = vadd.f32 %v6407, %v6279
    %v6409 = vadd.f32 %v6408, %v6282
    %v6410 = vadd.f32 %v6409, %v6284
    %v6411 = vadd.f32 %v6410, %v6287
    %v6412 = vadd.f32 %v6411, %v6289
    %v6413 = vadd.f32 %v6412, %v6292
    %v6414 = vadd.f32 %v6413, %v6294
    %v6415 = vadd.f32 %v6414, %v6297
    %v6416 = vadd.f32 %v6415, %v6299
    %v6417 = vadd.f32 %v6416, %v6302
    %v6418 = vadd.f32 %v6417, %v6304
    %v6419 = vadd.f32 %v6418, %v6307
    %v6420 = vadd.f32 %v6419, %v6309
    %v6421 = vadd.f32 %v6420, %v6312
    %v6422 = vadd.f32 %v6421, %v6314
    %v6423 = vadd.f32 %v6422, %v6317
    %v6424 = vadd.f32 %v6423, %v6319
    %v6425 = vadd.f32 %v6424, %v6322
    %v6426 = vadd.f32 %v6425, %v6324
    %v6427 = vadd.f32 %v6426, %v6327
    %v6428 = vadd.f32 %v6427, %v6329
    %v6429 = vadd.f32 %v6428, %v6332
    %v6430 = vadd.f32 %v6429, %v6334
    %v6431 = vadd.f32 %v6430, %v6337
    %v6432 = vadd.f32 %v6431, %v6339
    %v6433 = vadd.f32 %v6432, %v6342
    %v6434 = vadd.f32 %v6433, %v6344
    %v6435 = vadd.f32 %v6434, %v6347
    %v6436 = vadd.f32 %v6435, %v6349
    %v6437 = vadd.f32 %v6436, %v6352
    %v6438 = vadd.f32 %v6437, %v6354
    %v6439 = vadd.f32 %v6438, %v6357
    %v6440 = vadd.f32 %v6439, %v6359
    %v6441 = vadd.f32 %v6440, %v6362
    %v6442 = vadd.f32 %v6441, %v6364
    %v6443 = vadd.f32 %v6442, %v6367
    %v6444 = vadd.f32 %v6443, %v6369
    %v6445 = vadd.f32 %v6444, %v6372
    %v6446 = vadd.f32 %v6445, %v6374
    %v6447 = vadd.f32 %v6446, %v6377
    %v6448 = vadd.f32 %v6447, %v6379
    %v6449 = vadd.f32 %v6448, %v6382
    %v6450 = vadd.f32 %v6449, %v6384
    %v6451 = vrot.slane %v6450, 4
    %v6452 = vadd.f32 %v6450, %v6451
    %v6453 = vrot.slane %v6452, 2
    %v6454 = vadd.f32 %v6452, %v6453
    %v6455 = vrot.slane %v6454, 1
    %v6456 = vadd.f32 %v6454, %v6455
    %v6457 = vmul.f32 %v6227, %v6227
    %v6458 = vmul.f32 %v6229, %v6229
    %v6459 = vmul.f32 %v6232, %v6232
    %v6460 = vmul.f32 %v6234, %v6234
    %v6461 = vmul.f32 %v6237, %v6237
    %v6462 = vmul.f32 %v6239, %v6239
    %v6463 = vmul.f32 %v6242, %v6242
    %v6464 = vmul.f32 %v6244, %v6244
    %v6465 = vmul.f32 %v6247, %v6247
    %v6466 = vmul.f32 %v6249, %v6249
    %v6467 = vmul.f32 %v6252, %v6252
    %v6468 = vmul.f32 %v6254, %v6254
    %v6469 = vmul.f32 %v6257, %v6257
    %v6470 = vmul.f32 %v6259, %v6259
    %v6471 = vmul.f32 %v6262, %v6262
    %v6472 = vmul.f32 %v6264, %v6264
    %v6473 = vmul.f32 %v6267, %v6267
    %v6474 = vmul.f32 %v6269, %v6269
    %v6475 = vmul.f32 %v6272, %v6272
    %v6476 = vmul.f32 %v6274, %v6274
    %v6477 = vmul.f32 %v6277, %v6277
    %v6478 = vmul.f32 %v6279, %v6279
    %v6479 = vmul.f32 %v6282, %v6282
    %v6480 = vmul.f32 %v6284, %v6284
    %v6481 = vmul.f32 %v6287, %v6287
    %v6482 = vmul.f32 %v6289, %v6289
    %v6483 = vmul.f32 %v6292, %v6292
    %v6484 = vmul.f32 %v6294, %v6294
    %v6485 = vmul.f32 %v6297, %v6297
    %v6486 = vmul.f32 %v6299, %v6299
    %v6487 = vmul.f32 %v6302, %v6302
    %v6488 = vmul.f32 %v6304, %v6304
    %v6489 = vmul.f32 %v6307, %v6307
    %v6490 = vmul.f32 %v6309, %v6309
    %v6491 = vmul.f32 %v6312, %v6312
    %v6492 = vmul.f32 %v6314, %v6314
    %v6493 = vmul.f32 %v6317, %v6317
    %v6494 = vmul.f32 %v6319, %v6319
    %v6495 = vmul.f32 %v6322, %v6322
    %v6496 = vmul.f32 %v6324, %v6324
    %v6497 = vmul.f32 %v6327, %v6327
    %v6498 = vmul.f32 %v6329, %v6329
    %v6499 = vmul.f32 %v6332, %v6332
    %v6500 = vmul.f32 %v6334, %v6334
    %v6501 = vmul.f32 %v6337, %v6337
    %v6502 = vmul.f32 %v6339, %v6339
    %v6503 = vmul.f32 %v6342, %v6342
    %v6504 = vmul.f32 %v6344, %v6344
    %v6505 = vmul.f32 %v6347, %v6347
    %v6506 = vmul.f32 %v6349, %v6349
    %v6507 = vmul.f32 %v6352, %v6352
    %v6508 = vmul.f32 %v6354, %v6354
    %v6509 = vmul.f32 %v6357, %v6357
    %v6510 = vmul.f32 %v6359, %v6359
    %v6511 = vmul.f32 %v6362, %v6362
    %v6512 = vmul.f32 %v6364, %v6364
    %v6513 = vmul.f32 %v6367, %v6367
    %v6514 = vmul.f32 %v6369, %v6369
    %v6515 = vmul.f32 %v6372, %v6372
    %v6516 = vmul.f32 %v6374, %v6374
    %v6517 = vmul.f32 %v6377, %v6377
    %v6518 = vmul.f32 %v6379, %v6379
    %v6519 = vmul.f32 %v6382, %v6382
    %v6520 = vmul.f32 %v6384, %v6384
    %v6521 = vadd.f32 %v6457, %v6458
    %v6522 = vadd.f32 %v6521, %v6459
    %v6523 = vadd.f32 %v6522, %v6460
    %v6524 = vadd.f32 %v6523, %v6461
    %v6525 = vadd.f32 %v6524, %v6462
    %v6526 = vadd.f32 %v6525, %v6463
    %v6527 = vadd.f32 %v6526, %v6464
    %v6528 = vadd.f32 %v6527, %v6465
    %v6529 = vadd.f32 %v6528, %v6466
    %v6530 = vadd.f32 %v6529, %v6467
    %v6531 = vadd.f32 %v6530, %v6468
    %v6532 = vadd.f32 %v6531, %v6469
    %v6533 = vadd.f32 %v6532, %v6470
    %v6534 = vadd.f32 %v6533, %v6471
    %v6535 = vadd.f32 %v6534, %v6472
    %v6536 = vadd.f32 %v6535, %v6473
    %v6537 = vadd.f32 %v6536, %v6474
    %v6538 = vadd.f32 %v6537, %v6475
    %v6539 = vadd.f32 %v6538, %v6476
    %v6540 = vadd.f32 %v6539, %v6477
    %v6541 = vadd.f32 %v6540, %v6478
    %v6542 = vadd.f32 %v6541, %v6479
    %v6543 = vadd.f32 %v6542, %v6480
    %v6544 = vadd.f32 %v6543, %v6481
    %v6545 = vadd.f32 %v6544, %v6482
    %v6546 = vadd.f32 %v6545, %v6483
    %v6547 = vadd.f32 %v6546, %v6484
    %v6548 = vadd.f32 %v6547, %v6485
    %v6549 = vadd.f32 %v6548, %v6486
    %v6550 = vadd.f32 %v6549, %v6487
    %v6551 = vadd.f32 %v6550, %v6488
    %v6552 = vadd.f32 %v6551, %v6489
    %v6553 = vadd.f32 %v6552, %v6490
    %v6554 = vadd.f32 %v6553, %v6491
    %v6555 = vadd.f32 %v6554, %v6492
    %v6556 = vadd.f32 %v6555, %v6493
    %v6557 = vadd.f32 %v6556, %v6494
    %v6558 = vadd.f32 %v6557, %v6495
    %v6559 = vadd.f32 %v6558, %v6496
    %v6560 = vadd.f32 %v6559, %v6497
    %v6561 = vadd.f32 %v6560, %v6498
    %v6562 = vadd.f32 %v6561, %v6499
    %v6563 = vadd.f32 %v6562, %v6500
    %v6564 = vadd.f32 %v6563, %v6501
    %v6565 = vadd.f32 %v6564, %v6502
    %v6566 = vadd.f32 %v6565, %v6503
    %v6567 = vadd.f32 %v6566, %v6504
    %v6568 = vadd.f32 %v6567, %v6505
    %v6569 = vadd.f32 %v6568, %v6506
    %v6570 = vadd.f32 %v6569, %v6507
    %v6571 = vadd.f32 %v6570, %v6508
    %v6572 = vadd.f32 %v6571, %v6509
    %v6573 = vadd.f32 %v6572, %v6510
    %v6574 = vadd.f32 %v6573, %v6511
    %v6575 = vadd.f32 %v6574, %v6512
    %v6576 = vadd.f32 %v6575, %v6513
    %v6577 = vadd.f32 %v6576, %v6514
    %v6578 = vadd.f32 %v6577, %v6515
    %v6579 = vadd.f32 %v6578, %v6516
    %v6580 = vadd.f32 %v6579, %v6517
    %v6581 = vadd.f32 %v6580, %v6518
    %v6582 = vadd.f32 %v6581, %v6519
    %v6583 = vadd.f32 %v6582, %v6520
    %v6584 = vrot.slane %v6583, 4
    %v6585 = vadd.f32 %v6583, %v6584
    %v6586 = vrot.slane %v6585, 2
    %v6587 = vadd.f32 %v6585, %v6586
    %v6588 = vrot.slane %v6587, 1
    %v6589 = vadd.f32 %v6587, %v6588
    %v6590 = vmul.f32 %v6456, 0.001953125
    %v6591 = vmul.f32 %v6589, 0.001953125
    %v6592 = vmul.f32 %v6590, %v6590
    %v6593 = vsub.f32 %v6591, %v6592
    %v6594 = vmax.f32 %v6593, 0.0
    %v6595 = vadd.f32 %v6594, 1e-05
    %v6596 = vrsqrt.pop %v6595
    %v6597 = vmul.f32 %v6596, %v6595
    %v6598 = vmul.f32 %v6597, %v6596
    %v6599 = vmul.f32 0.5, %v6598
    %v6600 = vsub.f32 1.5, %v6599
    %v6601 = vmul.f32 %v6596, %v6600
    %vm6602 = vweird.f32 %v6595
    %vm6603 = vweird.f32 %v6596
    %vm6604 = vmor %vm6602, %vm6603
    %v6605 = vsel %vm6604, %v6596, %v6601
    %v6606 = vmul.f32 %v6386, %v6605
    %v6607 = vmul.f32 %v6590, %v6606
    %v6608 = vsub.f32 %v6387, %v6607
    %v6610 = vperm.slane %v6606, 0
    %v6612 = vmul.f32 %v6227, %v6610
    %v6613 = vmul.f32 %v6229, %v6610
    %v6614 = vmul.f32 %v6232, %v6610
    %v6615 = vmul.f32 %v6234, %v6610
    %v6616 = vmul.f32 %v6237, %v6610
    %v6617 = vmul.f32 %v6239, %v6610
    %v6618 = vmul.f32 %v6242, %v6610
    %v6619 = vmul.f32 %v6244, %v6610
    %v6620 = vmul.f32 %v6247, %v6610
    %v6621 = vmul.f32 %v6249, %v6610
    %v6622 = vmul.f32 %v6252, %v6610
    %v6623 = vmul.f32 %v6254, %v6610
    %v6624 = vmul.f32 %v6257, %v6610
    %v6625 = vmul.f32 %v6259, %v6610
    %v6626 = vmul.f32 %v6262, %v6610
    %v6627 = vmul.f32 %v6264, %v6610
    %v6628 = vmul.f32 %v6267, %v6610
    %v6629 = vmul.f32 %v6269, %v6610
    %v6630 = vmul.f32 %v6272, %v6610
    %v6631 = vmul.f32 %v6274, %v6610
    %v6632 = vmul.f32 %v6277, %v6610
    %v6633 = vmul.f32 %v6279, %v6610
    %v6634 = vmul.f32 %v6282, %v6610
    %v6635 = vmul.f32 %v6284, %v6610
    %v6636 = vmul.f32 %v6287, %v6610
    %v6637 = vmul.f32 %v6289, %v6610
    %v6638 = vmul.f32 %v6292, %v6610
    %v6639 = vmul.f32 %v6294, %v6610
    %v6640 = vmul.f32 %v6297, %v6610
    %v6641 = vmul.f32 %v6299, %v6610
    %v6642 = vmul.f32 %v6302, %v6610
    %v6643 = vmul.f32 %v6304, %v6610
    %v6644 = vmul.f32 %v6307, %v6610
    %v6645 = vmul.f32 %v6309, %v6610
    %v6646 = vmul.f32 %v6312, %v6610
    %v6647 = vmul.f32 %v6314, %v6610
    %v6648 = vmul.f32 %v6317, %v6610
    %v6649 = vmul.f32 %v6319, %v6610
    %v6650 = vmul.f32 %v6322, %v6610
    %v6651 = vmul.f32 %v6324, %v6610
    %v6652 = vmul.f32 %v6327, %v6610
    %v6653 = vmul.f32 %v6329, %v6610
    %v6654 = vmul.f32 %v6332, %v6610
    %v6655 = vmul.f32 %v6334, %v6610
    %v6656 = vmul.f32 %v6337, %v6610
    %v6657 = vmul.f32 %v6339, %v6610
    %v6658 = vmul.f32 %v6342, %v6610
    %v6659 = vmul.f32 %v6344, %v6610
    %v6660 = vmul.f32 %v6347, %v6610
    %v6661 = vmul.f32 %v6349, %v6610
    %v6662 = vmul.f32 %v6352, %v6610
    %v6663 = vmul.f32 %v6354, %v6610
    %v6664 = vmul.f32 %v6357, %v6610
    %v6665 = vmul.f32 %v6359, %v6610
    %v6666 = vmul.f32 %v6362, %v6610
    %v6667 = vmul.f32 %v6364, %v6610
    %v6668 = vmul.f32 %v6367, %v6610
    %v6669 = vmul.f32 %v6369, %v6610
    %v6670 = vmul.f32 %v6372, %v6610
    %v6671 = vmul.f32 %v6374, %v6610
    %v6672 = vmul.f32 %v6377, %v6610
    %v6673 = vmul.f32 %v6379, %v6610
    %v6674 = vmul.f32 %v6382, %v6610
    %v6675 = vmul.f32 %v6384, %v6610
    %v6677 = vperm.slane %v6608, 0
    %v6679 = vadd.f32 %v6612, %v6677
    %v6680 = vadd.f32 %v6613, %v6677
    %v6681 = vadd.f32 %v6614, %v6677
    %v6682 = vadd.f32 %v6615, %v6677
    %v6683 = vadd.f32 %v6616, %v6677
    %v6684 = vadd.f32 %v6617, %v6677
    %v6685 = vadd.f32 %v6618, %v6677
    %v6686 = vadd.f32 %v6619, %v6677
    %v6687 = vadd.f32 %v6620, %v6677
    %v6688 = vadd.f32 %v6621, %v6677
    %v6689 = vadd.f32 %v6622, %v6677
    %v6690 = vadd.f32 %v6623, %v6677
    %v6691 = vadd.f32 %v6624, %v6677
    %v6692 = vadd.f32 %v6625, %v6677
    %v6693 = vadd.f32 %v6626, %v6677
    %v6694 = vadd.f32 %v6627, %v6677
    %v6695 = vadd.f32 %v6628, %v6677
    %v6696 = vadd.f32 %v6629, %v6677
    %v6697 = vadd.f32 %v6630, %v6677
    %v6698 = vadd.f32 %v6631, %v6677
    %v6699 = vadd.f32 %v6632, %v6677
    %v6700 = vadd.f32 %v6633, %v6677
    %v6701 = vadd.f32 %v6634, %v6677
    %v6702 = vadd.f32 %v6635, %v6677
    %v6703 = vadd.f32 %v6636, %v6677
    %v6704 = vadd.f32 %v6637, %v6677
    %v6705 = vadd.f32 %v6638, %v6677
    %v6706 = vadd.f32 %v6639, %v6677
    %v6707 = vadd.f32 %v6640, %v6677
    %v6708 = vadd.f32 %v6641, %v6677
    %v6709 = vadd.f32 %v6642, %v6677
    %v6710 = vadd.f32 %v6643, %v6677
    %v6711 = vadd.f32 %v6644, %v6677
    %v6712 = vadd.f32 %v6645, %v6677
    %v6713 = vadd.f32 %v6646, %v6677
    %v6714 = vadd.f32 %v6647, %v6677
    %v6715 = vadd.f32 %v6648, %v6677
    %v6716 = vadd.f32 %v6649, %v6677
    %v6717 = vadd.f32 %v6650, %v6677
    %v6718 = vadd.f32 %v6651, %v6677
    %v6719 = vadd.f32 %v6652, %v6677
    %v6720 = vadd.f32 %v6653, %v6677
    %v6721 = vadd.f32 %v6654, %v6677
    %v6722 = vadd.f32 %v6655, %v6677
    %v6723 = vadd.f32 %v6656, %v6677
    %v6724 = vadd.f32 %v6657, %v6677
    %v6725 = vadd.f32 %v6658, %v6677
    %v6726 = vadd.f32 %v6659, %v6677
    %v6727 = vadd.f32 %v6660, %v6677
    %v6728 = vadd.f32 %v6661, %v6677
    %v6729 = vadd.f32 %v6662, %v6677
    %v6730 = vadd.f32 %v6663, %v6677
    %v6731 = vadd.f32 %v6664, %v6677
    %v6732 = vadd.f32 %v6665, %v6677
    %v6733 = vadd.f32 %v6666, %v6677
    %v6734 = vadd.f32 %v6667, %v6677
    %v6735 = vadd.f32 %v6668, %v6677
    %v6736 = vadd.f32 %v6669, %v6677
    %v6737 = vadd.f32 %v6670, %v6677
    %v6738 = vadd.f32 %v6671, %v6677
    %v6739 = vadd.f32 %v6672, %v6677
    %v6740 = vadd.f32 %v6673, %v6677
    %v6741 = vadd.f32 %v6674, %v6677
    %v6742 = vadd.f32 %v6675, %v6677
    %v6744 = vshrl.u32 %v49, 16
    %v6746 = vrot.slane %v6744, 4
    %v6747 = vshll.u32 %v49, 16
    %v6749 = vrot.slane %v6747, 5
    %v6750 = vor.u32 %v6746, %v6749
    %v6751 = vrot.slane %v6750, 4
    %v6753 = vshll.u32 %v50, 16
    %v6755 = vrot.slane %v6753, 5
    %v6756 = vsel %vm2648, %v6751, %v6755
    %v6757 = vshrl.u32 %v50, 16
    %v6759 = vrot.slane %v6757, 4
    %v6760 = vor.u32 %v6759, %v6755
    %v6761 = vrot.slane %v6760, 4
    %v6763 = vshll.u32 %v51, 16
    %v6765 = vrot.slane %v6763, 5
    %v6766 = vsel %vm2648, %v6761, %v6765
    %v6768 = vshrl.u32 %v52, 16
    %v6770 = vrot.slane %v6768, 4
    %v6771 = vshll.u32 %v52, 16
    %v6773 = vrot.slane %v6771, 5
    %v6774 = vor.u32 %v6770, %v6773
    %v6775 = vrot.slane %v6774, 4
    %v6777 = vshll.u32 %v53, 16
    %v6779 = vrot.slane %v6777, 5
    %v6780 = vsel %vm2648, %v6775, %v6779
    %v6781 = vshrl.u32 %v53, 16
    %v6783 = vrot.slane %v6781, 4
    %v6784 = vor.u32 %v6783, %v6779
    %v6785 = vrot.slane %v6784, 4
    %v6787 = vshll.u32 %v54, 16
    %v6789 = vrot.slane %v6787, 5
    %v6790 = vsel %vm2648, %v6785, %v6789
    %v6792 = vshrl.u32 %v55, 16
    %v6794 = vrot.slane %v6792, 4
    %v6795 = vshll.u32 %v55, 16
    %v6797 = vrot.slane %v6795, 5
    %v6798 = vor.u32 %v6794, %v6797
    %v6799 = vrot.slane %v6798, 4
    %v6801 = vshll.u32 %v56, 16
    %v6803 = vrot.slane %v6801, 5
    %v6804 = vsel %vm2648, %v6799, %v6803
    %v6805 = vshrl.u32 %v56, 16
    %v6807 = vrot.slane %v6805, 4
    %v6808 = vor.u32 %v6807, %v6803
    %v6809 = vrot.slane %v6808, 4
    %v6811 = vshll.u32 %v57, 16
    %v6813 = vrot.slane %v6811, 5
    %v6814 = vsel %vm2648, %v6809, %v6813
    %v6816 = vshrl.u32 %v58, 16
    %v6818 = vrot.slane %v6816, 4
    %v6819 = vshll.u32 %v58, 16
    %v6821 = vrot.slane %v6819, 5
    %v6822 = vor.u32 %v6818, %v6821
    %v6823 = vrot.slane %v6822, 4
    %v6825 = vshll.u32 %v59, 16
    %v6827 = vrot.slane %v6825, 5
    %v6828 = vsel %vm2648, %v6823, %v6827
    %v6829 = vshrl.u32 %v59, 16
    %v6831 = vrot.slane %v6829, 4
    %v6832 = vor.u32 %v6831, %v6827
    %v6833 = vrot.slane %v6832, 4
    %v6835 = vshll.u32 %v60, 16
    %v6837 = vrot.slane %v6835, 5
    %v6838 = vsel %vm2648, %v6833, %v6837
    %v6840 = vshrl.u32 %v61, 16
    %v6842 = vrot.slane %v6840, 4
    %v6843 = vshll.u32 %v61, 16
    %v6845 = vrot.slane %v6843, 5
    %v6846 = vor.u32 %v6842, %v6845
    %v6847 = vrot.slane %v6846, 4
    %v6849 = vshll.u32 %v62, 16
    %v6851 = vrot.slane %v6849, 5
    %v6852 = vsel %vm2648, %v6847, %v6851
    %v6853 = vshrl.u32 %v62, 16
    %v6855 = vrot.slane %v6853, 4
    %v6856 = vor.u32 %v6855, %v6851
    %v6857 = vrot.slane %v6856, 4
    %v6859 = vshll.u32 %v63, 16
    %v6861 = vrot.slane %v6859, 5
    %v6862 = vsel %vm2648, %v6857, %v6861
    %v6864 = vshrl.u32 %v64, 16
    %v6866 = vrot.slane %v6864, 4
    %v6867 = vshll.u32 %v64, 16
    %v6869 = vrot.slane %v6867, 5
    %v6870 = vor.u32 %v6866, %v6869
    %v6871 = vrot.slane %v6870, 4
    %v6873 = vshll.u32 %v65, 16
    %v6875 = vrot.slane %v6873, 5
    %v6876 = vsel %vm2648, %v6871, %v6875
    %v6877 = vshrl.u32 %v65, 16
    %v6879 = vrot.slane %v6877, 4
    %v6880 = vor.u32 %v6879, %v6875
    %v6881 = vrot.slane %v6880, 4
    %v6883 = vshll.u32 %v66, 16
    %v6885 = vrot.slane %v6883, 5
    %v6886 = vsel %vm2648, %v6881, %v6885
    %v6888 = vshrl.u32 %v67, 16
    %v6890 = vrot.slane %v6888, 4
    %v6891 = vshll.u32 %v67, 16
    %v6893 = vrot.slane %v6891, 5
    %v6894 = vor.u32 %v6890, %v6893
    %v6895 = vrot.slane %v6894, 4
    %v6897 = vshll.u32 %v68, 16
    %v6899 = vrot.slane %v6897, 5
    %v6900 = vsel %vm2648, %v6895, %v6899
    %v6901 = vshrl.u32 %v68, 16
    %v6903 = vrot.slane %v6901, 4
    %v6904 = vor.u32 %v6903, %v6899
    %v6905 = vrot.slane %v6904, 4
    %v6907 = vshll.u32 %v69, 16
    %v6909 = vrot.slane %v6907, 5
    %v6910 = vsel %vm2648, %v6905, %v6909
    %v6912 = vshrl.u32 %v70, 16
    %v6914 = vrot.slane %v6912, 4
    %v6915 = vshll.u32 %v70, 16
    %v6917 = vrot.slane %v6915, 5
    %v6918 = vor.u32 %v6914, %v6917
    %v6919 = vrot.slane %v6918, 4
    %v6921 = vshll.u32 %v71, 16
    %v6923 = vrot.slane %v6921, 5
    %v6924 = vsel %vm2648, %v6919, %v6923
    %v6925 = vshrl.u32 %v71, 16
    %v6927 = vrot.slane %v6925, 4
    %v6928 = vor.u32 %v6927, %v6923
    %v6929 = vrot.slane %v6928, 4
    %v6931 = vshll.u32 %v72, 16
    %v6933 = vrot.slane %v6931, 5
    %v6934 = vsel %vm2648, %v6929, %v6933
    %v6936 = vshrl.u32 %v73, 16
    %v6938 = vrot.slane %v6936, 4
    %v6939 = vshll.u32 %v73, 16
    %v6941 = vrot.slane %v6939, 5
    %v6942 = vor.u32 %v6938, %v6941
    %v6943 = vrot.slane %v6942, 4
    %v6945 = vshll.u32 %v74, 16
    %v6947 = vrot.slane %v6945, 5
    %v6948 = vsel %vm2648, %v6943, %v6947
    %v6949 = vshrl.u32 %v74, 16
    %v6951 = vrot.slane %v6949, 4
    %v6952 = vor.u32 %v6951, %v6947
    %v6953 = vrot.slane %v6952, 4
    %v6955 = vshll.u32 %v75, 16
    %v6957 = vrot.slane %v6955, 5
    %v6958 = vsel %vm2648, %v6953, %v6957
    %v6960 = vshrl.u32 %v76, 16
    %v6962 = vrot.slane %v6960, 4
    %v6963 = vshll.u32 %v76, 16
    %v6965 = vrot.slane %v6963, 5
    %v6966 = vor.u32 %v6962, %v6965
    %v6967 = vrot.slane %v6966, 4
    %v6969 = vshll.u32 %v77, 16
    %v6971 = vrot.slane %v6969, 5
    %v6972 = vsel %vm2648, %v6967, %v6971
    %v6973 = vshrl.u32 %v77, 16
    %v6975 = vrot.slane %v6973, 4
    %v6976 = vor.u32 %v6975, %v6971
    %v6977 = vrot.slane %v6976, 4
    %v6979 = vshll.u32 %v78, 16
    %v6981 = vrot.slane %v6979, 5
    %v6982 = vsel %vm2648, %v6977, %v6981
    %v6984 = vshrl.u32 %v79, 16
    %v6986 = vrot.slane %v6984, 4
    %v6987 = vshll.u32 %v79, 16
    %v6989 = vrot.slane %v6987, 5
    %v6990 = vor.u32 %v6986, %v6989
    %v6991 = vrot.slane %v6990, 4
    %v6993 = vshll.u32 %v80, 16
    %v6995 = vrot.slane %v6993, 5
    %v6996 = vsel %vm2648, %v6991, %v6995
    %v6997 = vshrl.u32 %v80, 16
    %v6999 = vrot.slane %v6997, 4
    %v7000 = vor.u32 %v6999, %v6995
    %v7001 = vrot.slane %v7000, 4
    %v7003 = vshll.u32 %v81, 16
    %v7005 = vrot.slane %v7003, 5
    %v7006 = vsel %vm2648, %v7001, %v7005
    %v7008 = vshrl.u32 %v82, 16
    %v7010 = vrot.slane %v7008, 4
    %v7011 = vshll.u32 %v82, 16
    %v7013 = vrot.slane %v7011, 5
    %v7014 = vor.u32 %v7010, %v7013
    %v7015 = vrot.slane %v7014, 4
    %v7017 = vshll.u32 %v83, 16
    %v7019 = vrot.slane %v7017, 5
    %v7020 = vsel %vm2648, %v7015, %v7019
    %v7021 = vshrl.u32 %v83, 16
    %v7023 = vrot.slane %v7021, 4
    %v7024 = vor.u32 %v7023, %v7019
    %v7025 = vrot.slane %v7024, 4
    %v7027 = vshll.u32 %v84, 16
    %v7029 = vrot.slane %v7027, 5
    %v7030 = vsel %vm2648, %v7025, %v7029
    %v7032 = vshrl.u32 %v85, 16
    %v7034 = vrot.slane %v7032, 4
    %v7035 = vshll.u32 %v85, 16
    %v7037 = vrot.slane %v7035, 5
    %v7038 = vor.u32 %v7034, %v7037
    %v7039 = vrot.slane %v7038, 4
    %v7041 = vshll.u32 %v86, 16
    %v7043 = vrot.slane %v7041, 5
    %v7044 = vsel %vm2648, %v7039, %v7043
    %v7045 = vshrl.u32 %v86, 16
    %v7047 = vrot.slane %v7045, 4
    %v7048 = vor.u32 %v7047, %v7043
    %v7049 = vrot.slane %v7048, 4
    %v7051 = vshll.u32 %v87, 16
    %v7053 = vrot.slane %v7051, 5
    %v7054 = vsel %vm2648, %v7049, %v7053
    %v7056 = vshrl.u32 %v88, 16
    %v7058 = vrot.slane %v7056, 4
    %v7059 = vshll.u32 %v88, 16
    %v7061 = vrot.slane %v7059, 5
    %v7062 = vor.u32 %v7058, %v7061
    %v7063 = vrot.slane %v7062, 4
    %v7065 = vshll.u32 %v89, 16
    %v7067 = vrot.slane %v7065, 5
    %v7068 = vsel %vm2648, %v7063, %v7067
    %v7069 = vshrl.u32 %v89, 16
    %v7071 = vrot.slane %v7069, 4
    %v7072 = vor.u32 %v7071, %v7067
    %v7073 = vrot.slane %v7072, 4
    %v7075 = vshll.u32 %v90, 16
    %v7077 = vrot.slane %v7075, 5
    %v7078 = vsel %vm2648, %v7073, %v7077
    %v7080 = vshrl.u32 %v91, 16
    %v7082 = vrot.slane %v7080, 4
    %v7083 = vshll.u32 %v91, 16
    %v7085 = vrot.slane %v7083, 5
    %v7086 = vor.u32 %v7082, %v7085
    %v7087 = vrot.slane %v7086, 4
    %v7089 = vshll.u32 %v92, 16
    %v7091 = vrot.slane %v7089, 5
    %v7092 = vsel %vm2648, %v7087, %v7091
    %v7093 = vshrl.u32 %v92, 16
    %v7095 = vrot.slane %v7093, 4
    %v7096 = vor.u32 %v7095, %v7091
    %v7097 = vrot.slane %v7096, 4
    %v7099 = vshll.u32 %v93, 16
    %v7101 = vrot.slane %v7099, 5
    %v7102 = vsel %vm2648, %v7097, %v7101
    %v7104 = vshrl.u32 %v94, 16
    %v7106 = vrot.slane %v7104, 4
    %v7107 = vshll.u32 %v94, 16
    %v7109 = vrot.slane %v7107, 5
    %v7110 = vor.u32 %v7106, %v7109
    %v7111 = vrot.slane %v7110, 4
    %v7113 = vshll.u32 %v95, 16
    %v7115 = vrot.slane %v7113, 5
    %v7116 = vsel %vm2648, %v7111, %v7115
    %v7117 = vshrl.u32 %v95, 16
    %v7119 = vrot.slane %v7117, 4
    %v7120 = vor.u32 %v7119, %v7115
    %v7121 = vrot.slane %v7120, 4
    %v7123 = vshll.u32 %v96, 16
    %v7125 = vrot.slane %v7123, 5
    %v7126 = vsel %vm2648, %v7121, %v7125
    %v7128 = vshrl.u32 %v103, 16
    %v7130 = vrot.slane %v7128, 4
    %v7131 = vshll.u32 %v103, 16
    %v7133 = vrot.slane %v7131, 5
    %v7134 = vor.u32 %v7130, %v7133
    %v7135 = vrot.slane %v7134, 4
    %v7137 = vshll.u32 %v104, 16
    %v7139 = vrot.slane %v7137, 5
    %v7140 = vsel %vm2648, %v7135, %v7139
    %v7141 = vshrl.u32 %v104, 16
    %v7143 = vrot.slane %v7141, 4
    %v7144 = vor.u32 %v7143, %v7139
    %v7145 = vrot.slane %v7144, 4
    %v7147 = vshll.u32 %v105, 16
    %v7149 = vrot.slane %v7147, 5
    %v7150 = vsel %vm2648, %v7145, %v7149
    %v7152 = vshrl.u32 %v106, 16
    %v7154 = vrot.slane %v7152, 4
    %v7155 = vshll.u32 %v106, 16
    %v7157 = vrot.slane %v7155, 5
    %v7158 = vor.u32 %v7154, %v7157
    %v7159 = vrot.slane %v7158, 4
    %v7161 = vshll.u32 %v107, 16
    %v7163 = vrot.slane %v7161, 5
    %v7164 = vsel %vm2648, %v7159, %v7163
    %v7165 = vshrl.u32 %v107, 16
    %v7167 = vrot.slane %v7165, 4
    %v7168 = vor.u32 %v7167, %v7163
    %v7169 = vrot.slane %v7168, 4
    %v7171 = vshll.u32 %v108, 16
    %v7173 = vrot.slane %v7171, 5
    %v7174 = vsel %vm2648, %v7169, %v7173
    %v7176 = vshrl.u32 %v109, 16
    %v7178 = vrot.slane %v7176, 4
    %v7179 = vshll.u32 %v109, 16
    %v7181 = vrot.slane %v7179, 5
    %v7182 = vor.u32 %v7178, %v7181
    %v7183 = vrot.slane %v7182, 4
    %v7185 = vshll.u32 %v110, 16
    %v7187 = vrot.slane %v7185, 5
    %v7188 = vsel %vm2648, %v7183, %v7187
    %v7189 = vshrl.u32 %v110, 16
    %v7191 = vrot.slane %v7189, 4
    %v7192 = vor.u32 %v7191, %v7187
    %v7193 = vrot.slane %v7192, 4
    %v7195 = vshll.u32 %v111, 16
    %v7197 = vrot.slane %v7195, 5
    %v7198 = vsel %vm2648, %v7193, %v7197
    %v7200 = vshrl.u32 %v112, 16
    %v7202 = vrot.slane %v7200, 4
    %v7203 = vshll.u32 %v112, 16
    %v7205 = vrot.slane %v7203, 5
    %v7206 = vor.u32 %v7202, %v7205
    %v7207 = vrot.slane %v7206, 4
    %v7209 = vshll.u32 %v113, 16
    %v7211 = vrot.slane %v7209, 5
    %v7212 = vsel %vm2648, %v7207, %v7211
    %v7213 = vshrl.u32 %v113, 16
    %v7215 = vrot.slane %v7213, 4
    %v7216 = vor.u32 %v7215, %v7211
    %v7217 = vrot.slane %v7216, 4
    %v7219 = vshll.u32 %v114, 16
    %v7221 = vrot.slane %v7219, 5
    %v7222 = vsel %vm2648, %v7217, %v7221
    %v7224 = vshrl.u32 %v115, 16
    %v7226 = vrot.slane %v7224, 4
    %v7227 = vshll.u32 %v115, 16
    %v7229 = vrot.slane %v7227, 5
    %v7230 = vor.u32 %v7226, %v7229
    %v7231 = vrot.slane %v7230, 4
    %v7233 = vshll.u32 %v116, 16
    %v7235 = vrot.slane %v7233, 5
    %v7236 = vsel %vm2648, %v7231, %v7235
    %v7237 = vshrl.u32 %v116, 16
    %v7239 = vrot.slane %v7237, 4
    %v7240 = vor.u32 %v7239, %v7235
    %v7241 = vrot.slane %v7240, 4
    %v7243 = vshll.u32 %v117, 16
    %v7245 = vrot.slane %v7243, 5
    %v7246 = vsel %vm2648, %v7241, %v7245
    %v7248 = vshrl.u32 %v118, 16
    %v7250 = vrot.slane %v7248, 4
    %v7251 = vshll.u32 %v118, 16
    %v7253 = vrot.slane %v7251, 5
    %v7254 = vor.u32 %v7250, %v7253
    %v7255 = vrot.slane %v7254, 4
    %v7257 = vshll.u32 %v119, 16
    %v7259 = vrot.slane %v7257, 5
    %v7260 = vsel %vm2648, %v7255, %v7259
    %v7261 = vshrl.u32 %v119, 16
    %v7263 = vrot.slane %v7261, 4
    %v7264 = vor.u32 %v7263, %v7259
    %v7265 = vrot.slane %v7264, 4
    %v7267 = vshll.u32 %v120, 16
    %v7269 = vrot.slane %v7267, 5
    %v7270 = vsel %vm2648, %v7265, %v7269
    %v7272 = vshrl.u32 %v121, 16
    %v7274 = vrot.slane %v7272, 4
    %v7275 = vshll.u32 %v121, 16
    %v7277 = vrot.slane %v7275, 5
    %v7278 = vor.u32 %v7274, %v7277
    %v7279 = vrot.slane %v7278, 4
    %v7281 = vshll.u32 %v122, 16
    %v7283 = vrot.slane %v7281, 5
    %v7284 = vsel %vm2648, %v7279, %v7283
    %v7285 = vshrl.u32 %v122, 16
    %v7287 = vrot.slane %v7285, 4
    %v7288 = vor.u32 %v7287, %v7283
    %v7289 = vrot.slane %v7288, 4
    %v7291 = vshll.u32 %v123, 16
    %v7293 = vrot.slane %v7291, 5
    %v7294 = vsel %vm2648, %v7289, %v7293
    %v7296 = vshrl.u32 %v124, 16
    %v7298 = vrot.slane %v7296, 4
    %v7299 = vshll.u32 %v124, 16
    %v7301 = vrot.slane %v7299, 5
    %v7302 = vor.u32 %v7298, %v7301
    %v7303 = vrot.slane %v7302, 4
    %v7305 = vshll.u32 %v125, 16
    %v7307 = vrot.slane %v7305, 5
    %v7308 = vsel %vm2648, %v7303, %v7307
    %v7309 = vshrl.u32 %v125, 16
    %v7311 = vrot.slane %v7309, 4
    %v7312 = vor.u32 %v7311, %v7307
    %v7313 = vrot.slane %v7312, 4
    %v7315 = vshll.u32 %v126, 16
    %v7317 = vrot.slane %v7315, 5
    %v7318 = vsel %vm2648, %v7313, %v7317
    %v7320 = vshrl.u32 %v127, 16
    %v7322 = vrot.slane %v7320, 4
    %v7323 = vshll.u32 %v127, 16
    %v7325 = vrot.slane %v7323, 5
    %v7326 = vor.u32 %v7322, %v7325
    %v7327 = vrot.slane %v7326, 4
    %v7329 = vshll.u32 %v128, 16
    %v7331 = vrot.slane %v7329, 5
    %v7332 = vsel %vm2648, %v7327, %v7331
    %v7333 = vshrl.u32 %v128, 16
    %v7335 = vrot.slane %v7333, 4
    %v7336 = vor.u32 %v7335, %v7331
    %v7337 = vrot.slane %v7336, 4
    %v7339 = vshll.u32 %v129, 16
    %v7341 = vrot.slane %v7339, 5
    %v7342 = vsel %vm2648, %v7337, %v7341
    %v7344 = vshrl.u32 %v130, 16
    %v7346 = vrot.slane %v7344, 4
    %v7347 = vshll.u32 %v130, 16
    %v7349 = vrot.slane %v7347, 5
    %v7350 = vor.u32 %v7346, %v7349
    %v7351 = vrot.slane %v7350, 4
    %v7353 = vshll.u32 %v131, 16
    %v7355 = vrot.slane %v7353, 5
    %v7356 = vsel %vm2648, %v7351, %v7355
    %v7357 = vshrl.u32 %v131, 16
    %v7359 = vrot.slane %v7357, 4
    %v7360 = vor.u32 %v7359, %v7355
    %v7361 = vrot.slane %v7360, 4
    %v7363 = vshll.u32 %v132, 16
    %v7365 = vrot.slane %v7363, 5
    %v7366 = vsel %vm2648, %v7361, %v7365
    %v7368 = vshrl.u32 %v133, 16
    %v7370 = vrot.slane %v7368, 4
    %v7371 = vshll.u32 %v133, 16
    %v7373 = vrot.slane %v7371, 5
    %v7374 = vor.u32 %v7370, %v7373
    %v7375 = vrot.slane %v7374, 4
    %v7377 = vshll.u32 %v134, 16
    %v7379 = vrot.slane %v7377, 5
    %v7380 = vsel %vm2648, %v7375, %v7379
    %v7381 = vshrl.u32 %v134, 16
    %v7383 = vrot.slane %v7381, 4
    %v7384 = vor.u32 %v7383, %v7379
    %v7385 = vrot.slane %v7384, 4
    %v7387 = vshll.u32 %v135, 16
    %v7389 = vrot.slane %v7387, 5
    %v7390 = vsel %vm2648, %v7385, %v7389
    %v7392 = vshrl.u32 %v136, 16
    %v7394 = vrot.slane %v7392, 4
    %v7395 = vshll.u32 %v136, 16
    %v7397 = vrot.slane %v7395, 5
    %v7398 = vor.u32 %v7394, %v7397
    %v7399 = vrot.slane %v7398, 4
    %v7401 = vshll.u32 %v137, 16
    %v7403 = vrot.slane %v7401, 5
    %v7404 = vsel %vm2648, %v7399, %v7403
    %v7405 = vshrl.u32 %v137, 16
    %v7407 = vrot.slane %v7405, 4
    %v7408 = vor.u32 %v7407, %v7403
    %v7409 = vrot.slane %v7408, 4
    %v7411 = vshll.u32 %v138, 16
    %v7413 = vrot.slane %v7411, 5
    %v7414 = vsel %vm2648, %v7409, %v7413
    %v7416 = vshrl.u32 %v139, 16
    %v7418 = vrot.slane %v7416, 4
    %v7419 = vshll.u32 %v139, 16
    %v7421 = vrot.slane %v7419, 5
    %v7422 = vor.u32 %v7418, %v7421
    %v7423 = vrot.slane %v7422, 4
    %v7425 = vshll.u32 %v140, 16
    %v7427 = vrot.slane %v7425, 5
    %v7428 = vsel %vm2648, %v7423, %v7427
    %v7429 = vshrl.u32 %v140, 16
    %v7431 = vrot.slane %v7429, 4
    %v7432 = vor.u32 %v7431, %v7427
    %v7433 = vrot.slane %v7432, 4
    %v7435 = vshll.u32 %v141, 16
    %v7437 = vrot.slane %v7435, 5
    %v7438 = vsel %vm2648, %v7433, %v7437
    %v7440 = vshrl.u32 %v142, 16
    %v7442 = vrot.slane %v7440, 4
    %v7443 = vshll.u32 %v142, 16
    %v7445 = vrot.slane %v7443, 5
    %v7446 = vor.u32 %v7442, %v7445
    %v7447 = vrot.slane %v7446, 4
    %v7449 = vshll.u32 %v143, 16
    %v7451 = vrot.slane %v7449, 5
    %v7452 = vsel %vm2648, %v7447, %v7451
    %v7453 = vshrl.u32 %v143, 16
    %v7455 = vrot.slane %v7453, 4
    %v7456 = vor.u32 %v7455, %v7451
    %v7457 = vrot.slane %v7456, 4
    %v7459 = vshll.u32 %v144, 16
    %v7461 = vrot.slane %v7459, 5
    %v7462 = vsel %vm2648, %v7457, %v7461
    %v7464 = vshrl.u32 %v145, 16
    %v7466 = vrot.slane %v7464, 4
    %v7467 = vshll.u32 %v145, 16
    %v7469 = vrot.slane %v7467, 5
    %v7470 = vor.u32 %v7466, %v7469
    %v7471 = vrot.slane %v7470, 4
    %v7473 = vshll.u32 %v146, 16
    %v7475 = vrot.slane %v7473, 5
    %v7476 = vsel %vm2648, %v7471, %v7475
    %v7477 = vshrl.u32 %v146, 16
    %v7479 = vrot.slane %v7477, 4
    %v7480 = vor.u32 %v7479, %v7475
    %v7481 = vrot.slane %v7480, 4
    %v7483 = vshll.u32 %v147, 16
    %v7485 = vrot.slane %v7483, 5
    %v7486 = vsel %vm2648, %v7481, %v7485
    %v7488 = vshrl.u32 %v148, 16
    %v7490 = vrot.slane %v7488, 4
    %v7491 = vshll.u32 %v148, 16
    %v7493 = vrot.slane %v7491, 5
    %v7494 = vor.u32 %v7490, %v7493
    %v7495 = vrot.slane %v7494, 4
    %v7497 = vshll.u32 %v149, 16
    %v7499 = vrot.slane %v7497, 5
    %v7500 = vsel %vm2648, %v7495, %v7499
    %v7501 = vshrl.u32 %v149, 16
    %v7503 = vrot.slane %v7501, 4
    %v7504 = vor.u32 %v7503, %v7499
    %v7505 = vrot.slane %v7504, 4
    %v7507 = vshll.u32 %v150, 16
    %v7509 = vrot.slane %v7507, 5
    %v7510 = vsel %vm2648, %v7505, %v7509
    %v7511 = vld [vmem:[%s10] sm:$0xf]
    %v7512 = vld [vmem:[%s10 + $0x4] sm:$0x1]
    %v7513 = vunpack.c.l.b16 %v6756
    %v7514 = vunpack.c.l.b16 %v6766
    %v7515 = vunpack.c.l.b16 %v6780
    %v7516 = vunpack.c.l.b16 %v6790
    %v7517 = vunpack.c.l.b16 %v6804
    %v7518 = vunpack.c.l.b16 %v6814
    %v7519 = vunpack.c.l.b16 %v6828
    %v7520 = vunpack.c.l.b16 %v6838
    %v7521 = vunpack.c.l.b16 %v6852
    %v7522 = vunpack.c.l.b16 %v6862
    %v7523 = vunpack.c.l.b16 %v6876
    %v7524 = vunpack.c.l.b16 %v6886
    %v7525 = vunpack.c.l.b16 %v6900
    %v7526 = vunpack.c.l.b16 %v6910
    %v7527 = vunpack.c.l.b16 %v6924
    %v7528 = vunpack.c.l.b16 %v6934
    %v7529 = vunpack.c.l.b16 %v6948
    %v7530 = vunpack.c.l.b16 %v6958
    %v7531 = vunpack.c.l.b16 %v6972
    %v7532 = vunpack.c.l.b16 %v6982
    %v7533 = vunpack.c.l.b16 %v6996
    %v7534 = vunpack.c.l.b16 %v7006
    %v7535 = vunpack.c.l.b16 %v7020
    %v7536 = vunpack.c.l.b16 %v7030
    %v7537 = vunpack.c.l.b16 %v7044
    %v7538 = vunpack.c.l.b16 %v7054
    %v7539 = vunpack.c.l.b16 %v7068
    %v7540 = vunpack.c.l.b16 %v7078
    %v7541 = vunpack.c.l.b16 %v7092
    %v7542 = vunpack.c.l.b16 %v7102
    %v7543 = vunpack.c.l.b16 %v7116
    %v7544 = vunpack.c.l.b16 %v7126
    %v7545 = vunpack.c.l.b16 %v7140
    %v7546 = vunpack.c.l.b16 %v7150
    %v7547 = vunpack.c.l.b16 %v7164
    %v7548 = vunpack.c.l.b16 %v7174
    %v7549 = vunpack.c.l.b16 %v7188
    %v7550 = vunpack.c.l.b16 %v7198
    %v7551 = vunpack.c.l.b16 %v7212
    %v7552 = vunpack.c.l.b16 %v7222
    %v7553 = vunpack.c.l.b16 %v7236
    %v7554 = vunpack.c.l.b16 %v7246
    %v7555 = vunpack.c.l.b16 %v7260
    %v7556 = vunpack.c.l.b16 %v7270
    %v7557 = vunpack.c.l.b16 %v7284
    %v7558 = vunpack.c.l.b16 %v7294
    %v7559 = vunpack.c.l.b16 %v7308
    %v7560 = vunpack.c.l.b16 %v7318
    %v7561 = vunpack.c.l.b16 %v7332
    %v7562 = vunpack.c.l.b16 %v7342
    %v7563 = vunpack.c.l.b16 %v7356
    %v7564 = vunpack.c.l.b16 %v7366
    %v7565 = vunpack.c.l.b16 %v7380
    %v7566 = vunpack.c.l.b16 %v7390
    %v7567 = vunpack.c.l.b16 %v7404
    %v7568 = vunpack.c.l.b16 %v7414
    %v7569 = vunpack.c.l.b16 %v7428
    %v7570 = vunpack.c.l.b16 %v7438
    %v7571 = vunpack.c.l.b16 %v7452
    %v7572 = vunpack.c.l.b16 %v7462
    %v7573 = vunpack.c.l.b16 %v7476
    %v7574 = vunpack.c.l.b16 %v7486
    %v7575 = vunpack.c.l.b16 %v7500
    %v7576 = vunpack.c.l.b16 %v7510
    %v7577 = vpack.c.b16 %v7514, %v7513
    %v7578 = vpack.c.b16 %v7516, %v7515
    %v7579 = vpack.c.b16 %v7518, %v7517
    %v7580 = vpack.c.b16 %v7520, %v7519
    %v7581 = vpack.c.b16 %v7522, %v7521
    %v7582 = vpack.c.b16 %v7524, %v7523
    %v7583 = vpack.c.b16 %v7526, %v7525
    %v7584 = vpack.c.b16 %v7528, %v7527
    %v7585 = vpack.c.b16 %v7530, %v7529
    %v7586 = vpack.c.b16 %v7532, %v7531
    %v7587 = vpack.c.b16 %v7534, %v7533
    %v7588 = vpack.c.b16 %v7536, %v7535
    %v7589 = vpack.c.b16 %v7538, %v7537
    %v7590 = vpack.c.b16 %v7540, %v7539
    %v7591 = vpack.c.b16 %v7542, %v7541
    %v7592 = vpack.c.b16 %v7544, %v7543
    %v7593 = vpack.c.b16 %v7546, %v7545
    %v7594 = vpack.c.b16 %v7548, %v7547
    %v7595 = vpack.c.b16 %v7550, %v7549
    %v7596 = vpack.c.b16 %v7552, %v7551
    %v7597 = vpack.c.b16 %v7554, %v7553
    %v7598 = vpack.c.b16 %v7556, %v7555
    %v7599 = vpack.c.b16 %v7558, %v7557
    %v7600 = vpack.c.b16 %v7560, %v7559
    %v7601 = vpack.c.b16 %v7562, %v7561
    %v7602 = vpack.c.b16 %v7564, %v7563
    %v7603 = vpack.c.b16 %v7566, %v7565
    %v7604 = vpack.c.b16 %v7568, %v7567
    %v7605 = vpack.c.b16 %v7570, %v7569
    %v7606 = vpack.c.b16 %v7572, %v7571
    %v7607 = vpack.c.b16 %v7574, %v7573
    %v7608 = vpack.c.b16 %v7576, %v7575
    %v7611 = vunpack.c.l.b16 %v7511
    %v7612 = vunpack.c.l.b16 %v7512
    %v7613 = vpack.c.b16 %v7612, %v7611
    %v7615 = vsel %vm539, %v7577, 0
    %v7618 = vsel %vm539, %v7578, 0
    %v7621 = vsel %vm539, %v7579, 0
    %v7624 = vsel %vm539, %v7580, 0
    %v7627 = vsel %vm539, %v7581, 0
    %v7630 = vsel %vm539, %v7582, 0
    %v7633 = vsel %vm539, %v7583, 0
    %v7636 = vsel %vm539, %v7584, 0
    %v7639 = vsel %vm539, %v7585, 0
    %v7642 = vsel %vm539, %v7586, 0
    %v7645 = vsel %vm539, %v7587, 0
    %v7648 = vsel %vm539, %v7588, 0
    %v7651 = vsel %vm539, %v7589, 0
    %v7654 = vsel %vm539, %v7590, 0
    %v7657 = vsel %vm539, %v7591, 0
    %v7660 = vsel %vm539, %v7592, 0
    %v7663 = vsel %vm539, %v7593, 0
    %v7666 = vsel %vm539, %v7594, 0
    %v7669 = vsel %vm539, %v7595, 0
    %v7672 = vsel %vm539, %v7596, 0
    %v7675 = vsel %vm539, %v7597, 0
    %v7678 = vsel %vm539, %v7598, 0
    %v7681 = vsel %vm539, %v7599, 0
    %v7684 = vsel %vm539, %v7600, 0
    %v7687 = vsel %vm539, %v7601, 0
    %v7690 = vsel %vm539, %v7602, 0
    %v7693 = vsel %vm539, %v7603, 0
    %v7696 = vsel %vm539, %v7604, 0
    %v7699 = vsel %vm539, %v7605, 0
    %v7702 = vsel %vm539, %v7606, 0
    %v7705 = vsel %vm539, %v7607, 0
    %v7708 = vsel %vm539, %v7608, 0
    %v7711 = vand.u32 %v7613, %v705
    %7713 = vmatpush.bf16.msra.mxu0 0
    %7714 = vmatpush.bf16.msra.mxu0 0
    %7715 = vmatpush.bf16.msra.mxu0 0
    %7716 = vmatpush.bf16.msra.mxu0 0
    %7717 = vmatpush.bf16.msra.mxu0 0
    %7718 = vmatpush.bf16.msra.mxu0 0
    %7719 = vmatpush.bf16.msra.mxu0 0
    %7720 = vmatpush.bf16.msra.mxu0 %v7711
    %7721 = vmatmul.bf16.gmra.mxu0 %v7615
    %v7722 = vpop.f32.mrf.mxu0
    %v7723 = vadd.f32 0.0, %v7722
    %v7724 = vpop.f32.mrf.mxu0
    %v7725 = vadd.f32 0.0, %v7724
    %7726 = vmatmul.bf16.gmra.mxu0 %v7618
    %v7727 = vpop.f32.mrf.mxu0
    %v7728 = vadd.f32 0.0, %v7727
    %v7729 = vpop.f32.mrf.mxu0
    %v7730 = vadd.f32 0.0, %v7729
    %7731 = vmatmul.bf16.gmra.mxu0 %v7621
    %v7732 = vpop.f32.mrf.mxu0
    %v7733 = vadd.f32 0.0, %v7732
    %v7734 = vpop.f32.mrf.mxu0
    %v7735 = vadd.f32 0.0, %v7734
    %7736 = vmatmul.bf16.gmra.mxu0 %v7624
    %v7737 = vpop.f32.mrf.mxu0
    %v7738 = vadd.f32 0.0, %v7737
    %v7739 = vpop.f32.mrf.mxu0
    %v7740 = vadd.f32 0.0, %v7739
    %7741 = vmatmul.bf16.gmra.mxu0 %v7627
    %v7742 = vpop.f32.mrf.mxu0
    %v7743 = vadd.f32 0.0, %v7742
    %v7744 = vpop.f32.mrf.mxu0
    %v7745 = vadd.f32 0.0, %v7744
    %7746 = vmatmul.bf16.gmra.mxu0 %v7630
    %v7747 = vpop.f32.mrf.mxu0
    %v7748 = vadd.f32 0.0, %v7747
    %v7749 = vpop.f32.mrf.mxu0
    %v7750 = vadd.f32 0.0, %v7749
    %7751 = vmatmul.bf16.gmra.mxu0 %v7633
    %v7752 = vpop.f32.mrf.mxu0
    %v7753 = vadd.f32 0.0, %v7752
    %v7754 = vpop.f32.mrf.mxu0
    %v7755 = vadd.f32 0.0, %v7754
    %7756 = vmatmul.bf16.gmra.mxu0 %v7636
    %v7757 = vpop.f32.mrf.mxu0
    %v7758 = vadd.f32 0.0, %v7757
    %v7759 = vpop.f32.mrf.mxu0
    %v7760 = vadd.f32 0.0, %v7759
    %7761 = vmatmul.bf16.gmra.mxu0 %v7639
    %v7762 = vpop.f32.mrf.mxu0
    %v7763 = vadd.f32 0.0, %v7762
    %v7764 = vpop.f32.mrf.mxu0
    %v7765 = vadd.f32 0.0, %v7764
    %7766 = vmatmul.bf16.gmra.mxu0 %v7642
    %v7767 = vpop.f32.mrf.mxu0
    %v7768 = vadd.f32 0.0, %v7767
    %v7769 = vpop.f32.mrf.mxu0
    %v7770 = vadd.f32 0.0, %v7769
    %7771 = vmatmul.bf16.gmra.mxu0 %v7645
    %v7772 = vpop.f32.mrf.mxu0
    %v7773 = vadd.f32 0.0, %v7772
    %v7774 = vpop.f32.mrf.mxu0
    %v7775 = vadd.f32 0.0, %v7774
    %7776 = vmatmul.bf16.gmra.mxu0 %v7648
    %v7777 = vpop.f32.mrf.mxu0
    %v7778 = vadd.f32 0.0, %v7777
    %v7779 = vpop.f32.mrf.mxu0
    %v7780 = vadd.f32 0.0, %v7779
    %7781 = vmatmul.bf16.gmra.mxu0 %v7651
    %v7782 = vpop.f32.mrf.mxu0
    %v7783 = vadd.f32 0.0, %v7782
    %v7784 = vpop.f32.mrf.mxu0
    %v7785 = vadd.f32 0.0, %v7784
    %7786 = vmatmul.bf16.gmra.mxu0 %v7654
    %v7787 = vpop.f32.mrf.mxu0
    %v7788 = vadd.f32 0.0, %v7787
    %v7789 = vpop.f32.mrf.mxu0
    %v7790 = vadd.f32 0.0, %v7789
    %7791 = vmatmul.bf16.gmra.mxu0 %v7657
    %v7792 = vpop.f32.mrf.mxu0
    %v7793 = vadd.f32 0.0, %v7792
    %v7794 = vpop.f32.mrf.mxu0
    %v7795 = vadd.f32 0.0, %v7794
    %7796 = vmatmul.bf16.gmra.mxu0 %v7660
    %v7797 = vpop.f32.mrf.mxu0
    %v7798 = vadd.f32 0.0, %v7797
    %v7799 = vpop.f32.mrf.mxu0
    %v7800 = vadd.f32 0.0, %v7799
    %7801 = vmatmul.bf16.gmra.mxu0 %v7663
    %v7802 = vpop.f32.mrf.mxu0
    %v7803 = vadd.f32 0.0, %v7802
    %v7804 = vpop.f32.mrf.mxu0
    %v7805 = vadd.f32 0.0, %v7804
    %7806 = vmatmul.bf16.gmra.mxu0 %v7666
    %v7807 = vpop.f32.mrf.mxu0
    %v7808 = vadd.f32 0.0, %v7807
    %v7809 = vpop.f32.mrf.mxu0
    %v7810 = vadd.f32 0.0, %v7809
    %7811 = vmatmul.bf16.gmra.mxu0 %v7669
    %v7812 = vpop.f32.mrf.mxu0
    %v7813 = vadd.f32 0.0, %v7812
    %v7814 = vpop.f32.mrf.mxu0
    %v7815 = vadd.f32 0.0, %v7814
    %7816 = vmatmul.bf16.gmra.mxu0 %v7672
    %v7817 = vpop.f32.mrf.mxu0
    %v7818 = vadd.f32 0.0, %v7817
    %v7819 = vpop.f32.mrf.mxu0
    %v7820 = vadd.f32 0.0, %v7819
    %7821 = vmatmul.bf16.gmra.mxu0 %v7675
    %v7822 = vpop.f32.mrf.mxu0
    %v7823 = vadd.f32 0.0, %v7822
    %v7824 = vpop.f32.mrf.mxu0
    %v7825 = vadd.f32 0.0, %v7824
    %7826 = vmatmul.bf16.gmra.mxu0 %v7678
    %v7827 = vpop.f32.mrf.mxu0
    %v7828 = vadd.f32 0.0, %v7827
    %v7829 = vpop.f32.mrf.mxu0
    %v7830 = vadd.f32 0.0, %v7829
    %7831 = vmatmul.bf16.gmra.mxu0 %v7681
    %v7832 = vpop.f32.mrf.mxu0
    %v7833 = vadd.f32 0.0, %v7832
    %v7834 = vpop.f32.mrf.mxu0
    %v7835 = vadd.f32 0.0, %v7834
    %7836 = vmatmul.bf16.gmra.mxu0 %v7684
    %v7837 = vpop.f32.mrf.mxu0
    %v7838 = vadd.f32 0.0, %v7837
    %v7839 = vpop.f32.mrf.mxu0
    %v7840 = vadd.f32 0.0, %v7839
    %7841 = vmatmul.bf16.gmra.mxu0 %v7687
    %v7842 = vpop.f32.mrf.mxu0
    %v7843 = vadd.f32 0.0, %v7842
    %v7844 = vpop.f32.mrf.mxu0
    %v7845 = vadd.f32 0.0, %v7844
    %7846 = vmatmul.bf16.gmra.mxu0 %v7690
    %v7847 = vpop.f32.mrf.mxu0
    %v7848 = vadd.f32 0.0, %v7847
    %v7849 = vpop.f32.mrf.mxu0
    %v7850 = vadd.f32 0.0, %v7849
    %7851 = vmatmul.bf16.gmra.mxu0 %v7693
    %v7852 = vpop.f32.mrf.mxu0
    %v7853 = vadd.f32 0.0, %v7852
    %v7854 = vpop.f32.mrf.mxu0
    %v7855 = vadd.f32 0.0, %v7854
    %7856 = vmatmul.bf16.gmra.mxu0 %v7696
    %v7857 = vpop.f32.mrf.mxu0
    %v7858 = vadd.f32 0.0, %v7857
    %v7859 = vpop.f32.mrf.mxu0
    %v7860 = vadd.f32 0.0, %v7859
    %7861 = vmatmul.bf16.gmra.mxu0 %v7699
    %v7862 = vpop.f32.mrf.mxu0
    %v7863 = vadd.f32 0.0, %v7862
    %v7864 = vpop.f32.mrf.mxu0
    %v7865 = vadd.f32 0.0, %v7864
    %7866 = vmatmul.bf16.gmra.mxu0 %v7702
    %v7867 = vpop.f32.mrf.mxu0
    %v7868 = vadd.f32 0.0, %v7867
    %v7869 = vpop.f32.mrf.mxu0
    %v7870 = vadd.f32 0.0, %v7869
    %7871 = vmatmul.bf16.gmra.mxu0 %v7705
    %v7872 = vpop.f32.mrf.mxu0
    %v7873 = vadd.f32 0.0, %v7872
    %v7874 = vpop.f32.mrf.mxu0
    %v7875 = vadd.f32 0.0, %v7874
    %7876 = vmatmul.bf16.gmra.mxu0 %v7708
    %v7877 = vpop.f32.mrf.mxu0
    %v7878 = vadd.f32 0.0, %v7877
    %v7879 = vpop.f32.mrf.mxu0
    %v7880 = vadd.f32 0.0, %v7879
    %7881 = vdwg.mxu0
    %v7882 = vld [vmem:[%s11] sm:$0x1]
    %v7883 = vld [vmem:[%s12] sm:$0x1]
    %v7884 = vadd.f32 %v7723, %v7725
    %v7885 = vadd.f32 %v7884, %v7728
    %v7886 = vadd.f32 %v7885, %v7730
    %v7887 = vadd.f32 %v7886, %v7733
    %v7888 = vadd.f32 %v7887, %v7735
    %v7889 = vadd.f32 %v7888, %v7738
    %v7890 = vadd.f32 %v7889, %v7740
    %v7891 = vadd.f32 %v7890, %v7743
    %v7892 = vadd.f32 %v7891, %v7745
    %v7893 = vadd.f32 %v7892, %v7748
    %v7894 = vadd.f32 %v7893, %v7750
    %v7895 = vadd.f32 %v7894, %v7753
    %v7896 = vadd.f32 %v7895, %v7755
    %v7897 = vadd.f32 %v7896, %v7758
    %v7898 = vadd.f32 %v7897, %v7760
    %v7899 = vadd.f32 %v7898, %v7763
    %v7900 = vadd.f32 %v7899, %v7765
    %v7901 = vadd.f32 %v7900, %v7768
    %v7902 = vadd.f32 %v7901, %v7770
    %v7903 = vadd.f32 %v7902, %v7773
    %v7904 = vadd.f32 %v7903, %v7775
    %v7905 = vadd.f32 %v7904, %v7778
    %v7906 = vadd.f32 %v7905, %v7780
    %v7907 = vadd.f32 %v7906, %v7783
    %v7908 = vadd.f32 %v7907, %v7785
    %v7909 = vadd.f32 %v7908, %v7788
    %v7910 = vadd.f32 %v7909, %v7790
    %v7911 = vadd.f32 %v7910, %v7793
    %v7912 = vadd.f32 %v7911, %v7795
    %v7913 = vadd.f32 %v7912, %v7798
    %v7914 = vadd.f32 %v7913, %v7800
    %v7915 = vadd.f32 %v7914, %v7803
    %v7916 = vadd.f32 %v7915, %v7805
    %v7917 = vadd.f32 %v7916, %v7808
    %v7918 = vadd.f32 %v7917, %v7810
    %v7919 = vadd.f32 %v7918, %v7813
    %v7920 = vadd.f32 %v7919, %v7815
    %v7921 = vadd.f32 %v7920, %v7818
    %v7922 = vadd.f32 %v7921, %v7820
    %v7923 = vadd.f32 %v7922, %v7823
    %v7924 = vadd.f32 %v7923, %v7825
    %v7925 = vadd.f32 %v7924, %v7828
    %v7926 = vadd.f32 %v7925, %v7830
    %v7927 = vadd.f32 %v7926, %v7833
    %v7928 = vadd.f32 %v7927, %v7835
    %v7929 = vadd.f32 %v7928, %v7838
    %v7930 = vadd.f32 %v7929, %v7840
    %v7931 = vadd.f32 %v7930, %v7843
    %v7932 = vadd.f32 %v7931, %v7845
    %v7933 = vadd.f32 %v7932, %v7848
    %v7934 = vadd.f32 %v7933, %v7850
    %v7935 = vadd.f32 %v7934, %v7853
    %v7936 = vadd.f32 %v7935, %v7855
    %v7937 = vadd.f32 %v7936, %v7858
    %v7938 = vadd.f32 %v7937, %v7860
    %v7939 = vadd.f32 %v7938, %v7863
    %v7940 = vadd.f32 %v7939, %v7865
    %v7941 = vadd.f32 %v7940, %v7868
    %v7942 = vadd.f32 %v7941, %v7870
    %v7943 = vadd.f32 %v7942, %v7873
    %v7944 = vadd.f32 %v7943, %v7875
    %v7945 = vadd.f32 %v7944, %v7878
    %v7946 = vadd.f32 %v7945, %v7880
    %v7947 = vrot.slane %v7946, 4
    %v7948 = vadd.f32 %v7946, %v7947
    %v7949 = vrot.slane %v7948, 2
    %v7950 = vadd.f32 %v7948, %v7949
    %v7951 = vrot.slane %v7950, 1
    %v7952 = vadd.f32 %v7950, %v7951
    %v7953 = vmul.f32 %v7723, %v7723
    %v7954 = vmul.f32 %v7725, %v7725
    %v7955 = vmul.f32 %v7728, %v7728
    %v7956 = vmul.f32 %v7730, %v7730
    %v7957 = vmul.f32 %v7733, %v7733
    %v7958 = vmul.f32 %v7735, %v7735
    %v7959 = vmul.f32 %v7738, %v7738
    %v7960 = vmul.f32 %v7740, %v7740
    %v7961 = vmul.f32 %v7743, %v7743
    %v7962 = vmul.f32 %v7745, %v7745
    %v7963 = vmul.f32 %v7748, %v7748
    %v7964 = vmul.f32 %v7750, %v7750
    %v7965 = vmul.f32 %v7753, %v7753
    %v7966 = vmul.f32 %v7755, %v7755
    %v7967 = vmul.f32 %v7758, %v7758
    %v7968 = vmul.f32 %v7760, %v7760
    %v7969 = vmul.f32 %v7763, %v7763
    %v7970 = vmul.f32 %v7765, %v7765
    %v7971 = vmul.f32 %v7768, %v7768
    %v7972 = vmul.f32 %v7770, %v7770
    %v7973 = vmul.f32 %v7773, %v7773
    %v7974 = vmul.f32 %v7775, %v7775
    %v7975 = vmul.f32 %v7778, %v7778
    %v7976 = vmul.f32 %v7780, %v7780
    %v7977 = vmul.f32 %v7783, %v7783
    %v7978 = vmul.f32 %v7785, %v7785
    %v7979 = vmul.f32 %v7788, %v7788
    %v7980 = vmul.f32 %v7790, %v7790
    %v7981 = vmul.f32 %v7793, %v7793
    %v7982 = vmul.f32 %v7795, %v7795
    %v7983 = vmul.f32 %v7798, %v7798
    %v7984 = vmul.f32 %v7800, %v7800
    %v7985 = vmul.f32 %v7803, %v7803
    %v7986 = vmul.f32 %v7805, %v7805
    %v7987 = vmul.f32 %v7808, %v7808
    %v7988 = vmul.f32 %v7810, %v7810
    %v7989 = vmul.f32 %v7813, %v7813
    %v7990 = vmul.f32 %v7815, %v7815
    %v7991 = vmul.f32 %v7818, %v7818
    %v7992 = vmul.f32 %v7820, %v7820
    %v7993 = vmul.f32 %v7823, %v7823
    %v7994 = vmul.f32 %v7825, %v7825
    %v7995 = vmul.f32 %v7828, %v7828
    %v7996 = vmul.f32 %v7830, %v7830
    %v7997 = vmul.f32 %v7833, %v7833
    %v7998 = vmul.f32 %v7835, %v7835
    %v7999 = vmul.f32 %v7838, %v7838
    %v8000 = vmul.f32 %v7840, %v7840
    %v8001 = vmul.f32 %v7843, %v7843
    %v8002 = vmul.f32 %v7845, %v7845
    %v8003 = vmul.f32 %v7848, %v7848
    %v8004 = vmul.f32 %v7850, %v7850
    %v8005 = vmul.f32 %v7853, %v7853
    %v8006 = vmul.f32 %v7855, %v7855
    %v8007 = vmul.f32 %v7858, %v7858
    %v8008 = vmul.f32 %v7860, %v7860
    %v8009 = vmul.f32 %v7863, %v7863
    %v8010 = vmul.f32 %v7865, %v7865
    %v8011 = vmul.f32 %v7868, %v7868
    %v8012 = vmul.f32 %v7870, %v7870
    %v8013 = vmul.f32 %v7873, %v7873
    %v8014 = vmul.f32 %v7875, %v7875
    %v8015 = vmul.f32 %v7878, %v7878
    %v8016 = vmul.f32 %v7880, %v7880
    %v8017 = vadd.f32 %v7953, %v7954
    %v8018 = vadd.f32 %v8017, %v7955
    %v8019 = vadd.f32 %v8018, %v7956
    %v8020 = vadd.f32 %v8019, %v7957
    %v8021 = vadd.f32 %v8020, %v7958
    %v8022 = vadd.f32 %v8021, %v7959
    %v8023 = vadd.f32 %v8022, %v7960
    %v8024 = vadd.f32 %v8023, %v7961
    %v8025 = vadd.f32 %v8024, %v7962
    %v8026 = vadd.f32 %v8025, %v7963
    %v8027 = vadd.f32 %v8026, %v7964
    %v8028 = vadd.f32 %v8027, %v7965
    %v8029 = vadd.f32 %v8028, %v7966
    %v8030 = vadd.f32 %v8029, %v7967
    %v8031 = vadd.f32 %v8030, %v7968
    %v8032 = vadd.f32 %v8031, %v7969
    %v8033 = vadd.f32 %v8032, %v7970
    %v8034 = vadd.f32 %v8033, %v7971
    %v8035 = vadd.f32 %v8034, %v7972
    %v8036 = vadd.f32 %v8035, %v7973
    %v8037 = vadd.f32 %v8036, %v7974
    %v8038 = vadd.f32 %v8037, %v7975
    %v8039 = vadd.f32 %v8038, %v7976
    %v8040 = vadd.f32 %v8039, %v7977
    %v8041 = vadd.f32 %v8040, %v7978
    %v8042 = vadd.f32 %v8041, %v7979
    %v8043 = vadd.f32 %v8042, %v7980
    %v8044 = vadd.f32 %v8043, %v7981
    %v8045 = vadd.f32 %v8044, %v7982
    %v8046 = vadd.f32 %v8045, %v7983
    %v8047 = vadd.f32 %v8046, %v7984
    %v8048 = vadd.f32 %v8047, %v7985
    %v8049 = vadd.f32 %v8048, %v7986
    %v8050 = vadd.f32 %v8049, %v7987
    %v8051 = vadd.f32 %v8050, %v7988
    %v8052 = vadd.f32 %v8051, %v7989
    %v8053 = vadd.f32 %v8052, %v7990
    %v8054 = vadd.f32 %v8053, %v7991
    %v8055 = vadd.f32 %v8054, %v7992
    %v8056 = vadd.f32 %v8055, %v7993
    %v8057 = vadd.f32 %v8056, %v7994
    %v8058 = vadd.f32 %v8057, %v7995
    %v8059 = vadd.f32 %v8058, %v7996
    %v8060 = vadd.f32 %v8059, %v7997
    %v8061 = vadd.f32 %v8060, %v7998
    %v8062 = vadd.f32 %v8061, %v7999
    %v8063 = vadd.f32 %v8062, %v8000
    %v8064 = vadd.f32 %v8063, %v8001
    %v8065 = vadd.f32 %v8064, %v8002
    %v8066 = vadd.f32 %v8065, %v8003
    %v8067 = vadd.f32 %v8066, %v8004
    %v8068 = vadd.f32 %v8067, %v8005
    %v8069 = vadd.f32 %v8068, %v8006
    %v8070 = vadd.f32 %v8069, %v8007
    %v8071 = vadd.f32 %v8070, %v8008
    %v8072 = vadd.f32 %v8071, %v8009
    %v8073 = vadd.f32 %v8072, %v8010
    %v8074 = vadd.f32 %v8073, %v8011
    %v8075 = vadd.f32 %v8074, %v8012
    %v8076 = vadd.f32 %v8075, %v8013
    %v8077 = vadd.f32 %v8076, %v8014
    %v8078 = vadd.f32 %v8077, %v8015
    %v8079 = vadd.f32 %v8078, %v8016
    %v8080 = vrot.slane %v8079, 4
    %v8081 = vadd.f32 %v8079, %v8080
    %v8082 = vrot.slane %v8081, 2
    %v8083 = vadd.f32 %v8081, %v8082
    %v8084 = vrot.slane %v8083, 1
    %v8085 = vadd.f32 %v8083, %v8084
    %v8086 = vmul.f32 %v7952, 0.001953125
    %v8087 = vmul.f32 %v8085, 0.001953125
    %v8088 = vmul.f32 %v8086, %v8086
    %v8089 = vsub.f32 %v8087, %v8088
    %v8090 = vmax.f32 %v8089, 0.0
    %v8091 = vadd.f32 %v8090, 1e-05
    %v8092 = vrsqrt.pop %v8091
    %v8093 = vmul.f32 %v8092, %v8091
    %v8094 = vmul.f32 %v8093, %v8092
    %v8095 = vmul.f32 0.5, %v8094
    %v8096 = vsub.f32 1.5, %v8095
    %v8097 = vmul.f32 %v8092, %v8096
    %vm8098 = vweird.f32 %v8091
    %vm8099 = vweird.f32 %v8092
    %vm8100 = vmor %vm8098, %vm8099
    %v8101 = vsel %vm8100, %v8092, %v8097
    %v8102 = vmul.f32 %v7882, %v8101
    %v8103 = vmul.f32 %v8086, %v8102
    %v8104 = vsub.f32 %v7883, %v8103
    %v8106 = vperm.slane %v8102, 0
    %v8108 = vmul.f32 %v7723, %v8106
    %v8109 = vmul.f32 %v7725, %v8106
    %v8110 = vmul.f32 %v7728, %v8106
    %v8111 = vmul.f32 %v7730, %v8106
    %v8112 = vmul.f32 %v7733, %v8106
    %v8113 = vmul.f32 %v7735, %v8106
    %v8114 = vmul.f32 %v7738, %v8106
    %v8115 = vmul.f32 %v7740, %v8106
    %v8116 = vmul.f32 %v7743, %v8106
    %v8117 = vmul.f32 %v7745, %v8106
    %v8118 = vmul.f32 %v7748, %v8106
    %v8119 = vmul.f32 %v7750, %v8106
    %v8120 = vmul.f32 %v7753, %v8106
    %v8121 = vmul.f32 %v7755, %v8106
    %v8122 = vmul.f32 %v7758, %v8106
    %v8123 = vmul.f32 %v7760, %v8106
    %v8124 = vmul.f32 %v7763, %v8106
    %v8125 = vmul.f32 %v7765, %v8106
    %v8126 = vmul.f32 %v7768, %v8106
    %v8127 = vmul.f32 %v7770, %v8106
    %v8128 = vmul.f32 %v7773, %v8106
    %v8129 = vmul.f32 %v7775, %v8106
    %v8130 = vmul.f32 %v7778, %v8106
    %v8131 = vmul.f32 %v7780, %v8106
    %v8132 = vmul.f32 %v7783, %v8106
    %v8133 = vmul.f32 %v7785, %v8106
    %v8134 = vmul.f32 %v7788, %v8106
    %v8135 = vmul.f32 %v7790, %v8106
    %v8136 = vmul.f32 %v7793, %v8106
    %v8137 = vmul.f32 %v7795, %v8106
    %v8138 = vmul.f32 %v7798, %v8106
    %v8139 = vmul.f32 %v7800, %v8106
    %v8140 = vmul.f32 %v7803, %v8106
    %v8141 = vmul.f32 %v7805, %v8106
    %v8142 = vmul.f32 %v7808, %v8106
    %v8143 = vmul.f32 %v7810, %v8106
    %v8144 = vmul.f32 %v7813, %v8106
    %v8145 = vmul.f32 %v7815, %v8106
    %v8146 = vmul.f32 %v7818, %v8106
    %v8147 = vmul.f32 %v7820, %v8106
    %v8148 = vmul.f32 %v7823, %v8106
    %v8149 = vmul.f32 %v7825, %v8106
    %v8150 = vmul.f32 %v7828, %v8106
    %v8151 = vmul.f32 %v7830, %v8106
    %v8152 = vmul.f32 %v7833, %v8106
    %v8153 = vmul.f32 %v7835, %v8106
    %v8154 = vmul.f32 %v7838, %v8106
    %v8155 = vmul.f32 %v7840, %v8106
    %v8156 = vmul.f32 %v7843, %v8106
    %v8157 = vmul.f32 %v7845, %v8106
    %v8158 = vmul.f32 %v7848, %v8106
    %v8159 = vmul.f32 %v7850, %v8106
    %v8160 = vmul.f32 %v7853, %v8106
    %v8161 = vmul.f32 %v7855, %v8106
    %v8162 = vmul.f32 %v7858, %v8106
    %v8163 = vmul.f32 %v7860, %v8106
    %v8164 = vmul.f32 %v7863, %v8106
    %v8165 = vmul.f32 %v7865, %v8106
    %v8166 = vmul.f32 %v7868, %v8106
    %v8167 = vmul.f32 %v7870, %v8106
    %v8168 = vmul.f32 %v7873, %v8106
    %v8169 = vmul.f32 %v7875, %v8106
    %v8170 = vmul.f32 %v7878, %v8106
    %v8171 = vmul.f32 %v7880, %v8106
    %v8173 = vperm.slane %v8104, 0
    %v8175 = vadd.f32 %v8108, %v8173
    %v8176 = vadd.f32 %v8109, %v8173
    %v8177 = vadd.f32 %v8110, %v8173
    %v8178 = vadd.f32 %v8111, %v8173
    %v8179 = vadd.f32 %v8112, %v8173
    %v8180 = vadd.f32 %v8113, %v8173
    %v8181 = vadd.f32 %v8114, %v8173
    %v8182 = vadd.f32 %v8115, %v8173
    %v8183 = vadd.f32 %v8116, %v8173
    %v8184 = vadd.f32 %v8117, %v8173
    %v8185 = vadd.f32 %v8118, %v8173
    %v8186 = vadd.f32 %v8119, %v8173
    %v8187 = vadd.f32 %v8120, %v8173
    %v8188 = vadd.f32 %v8121, %v8173
    %v8189 = vadd.f32 %v8122, %v8173
    %v8190 = vadd.f32 %v8123, %v8173
    %v8191 = vadd.f32 %v8124, %v8173
    %v8192 = vadd.f32 %v8125, %v8173
    %v8193 = vadd.f32 %v8126, %v8173
    %v8194 = vadd.f32 %v8127, %v8173
    %v8195 = vadd.f32 %v8128, %v8173
    %v8196 = vadd.f32 %v8129, %v8173
    %v8197 = vadd.f32 %v8130, %v8173
    %v8198 = vadd.f32 %v8131, %v8173
    %v8199 = vadd.f32 %v8132, %v8173
    %v8200 = vadd.f32 %v8133, %v8173
    %v8201 = vadd.f32 %v8134, %v8173
    %v8202 = vadd.f32 %v8135, %v8173
    %v8203 = vadd.f32 %v8136, %v8173
    %v8204 = vadd.f32 %v8137, %v8173
    %v8205 = vadd.f32 %v8138, %v8173
    %v8206 = vadd.f32 %v8139, %v8173
    %v8207 = vadd.f32 %v8140, %v8173
    %v8208 = vadd.f32 %v8141, %v8173
    %v8209 = vadd.f32 %v8142, %v8173
    %v8210 = vadd.f32 %v8143, %v8173
    %v8211 = vadd.f32 %v8144, %v8173
    %v8212 = vadd.f32 %v8145, %v8173
    %v8213 = vadd.f32 %v8146, %v8173
    %v8214 = vadd.f32 %v8147, %v8173
    %v8215 = vadd.f32 %v8148, %v8173
    %v8216 = vadd.f32 %v8149, %v8173
    %v8217 = vadd.f32 %v8150, %v8173
    %v8218 = vadd.f32 %v8151, %v8173
    %v8219 = vadd.f32 %v8152, %v8173
    %v8220 = vadd.f32 %v8153, %v8173
    %v8221 = vadd.f32 %v8154, %v8173
    %v8222 = vadd.f32 %v8155, %v8173
    %v8223 = vadd.f32 %v8156, %v8173
    %v8224 = vadd.f32 %v8157, %v8173
    %v8225 = vadd.f32 %v8158, %v8173
    %v8226 = vadd.f32 %v8159, %v8173
    %v8227 = vadd.f32 %v8160, %v8173
    %v8228 = vadd.f32 %v8161, %v8173
    %v8229 = vadd.f32 %v8162, %v8173
    %v8230 = vadd.f32 %v8163, %v8173
    %v8231 = vadd.f32 %v8164, %v8173
    %v8232 = vadd.f32 %v8165, %v8173
    %v8233 = vadd.f32 %v8166, %v8173
    %v8234 = vadd.f32 %v8167, %v8173
    %v8235 = vadd.f32 %v8168, %v8173
    %v8236 = vadd.f32 %v8169, %v8173
    %v8237 = vadd.f32 %v8170, %v8173
    %v8238 = vadd.f32 %v8171, %v8173
    %v8239 = vadd.f32 %v6679, %v8175
    %v8240 = vadd.f32 %v6680, %v8176
    %v8241 = vadd.f32 %v6681, %v8177
    %v8242 = vadd.f32 %v6682, %v8178
    %v8243 = vadd.f32 %v6683, %v8179
    %v8244 = vadd.f32 %v6684, %v8180
    %v8245 = vadd.f32 %v6685, %v8181
    %v8246 = vadd.f32 %v6686, %v8182
    %v8247 = vadd.f32 %v6687, %v8183
    %v8248 = vadd.f32 %v6688, %v8184
    %v8249 = vadd.f32 %v6689, %v8185
    %v8250 = vadd.f32 %v6690, %v8186
    %v8251 = vadd.f32 %v6691, %v8187
    %v8252 = vadd.f32 %v6692, %v8188
    %v8253 = vadd.f32 %v6693, %v8189
    %v8254 = vadd.f32 %v6694, %v8190
    %v8255 = vadd.f32 %v6695, %v8191
    %v8256 = vadd.f32 %v6696, %v8192
    %v8257 = vadd.f32 %v6697, %v8193
    %v8258 = vadd.f32 %v6698, %v8194
    %v8259 = vadd.f32 %v6699, %v8195
    %v8260 = vadd.f32 %v6700, %v8196
    %v8261 = vadd.f32 %v6701, %v8197
    %v8262 = vadd.f32 %v6702, %v8198
    %v8263 = vadd.f32 %v6703, %v8199
    %v8264 = vadd.f32 %v6704, %v8200
    %v8265 = vadd.f32 %v6705, %v8201
    %v8266 = vadd.f32 %v6706, %v8202
    %v8267 = vadd.f32 %v6707, %v8203
    %v8268 = vadd.f32 %v6708, %v8204
    %v8269 = vadd.f32 %v6709, %v8205
    %v8270 = vadd.f32 %v6710, %v8206
    %v8271 = vadd.f32 %v6711, %v8207
    %v8272 = vadd.f32 %v6712, %v8208
    %v8273 = vadd.f32 %v6713, %v8209
    %v8274 = vadd.f32 %v6714, %v8210
    %v8275 = vadd.f32 %v6715, %v8211
    %v8276 = vadd.f32 %v6716, %v8212
    %v8277 = vadd.f32 %v6717, %v8213
    %v8278 = vadd.f32 %v6718, %v8214
    %v8279 = vadd.f32 %v6719, %v8215
    %v8280 = vadd.f32 %v6720, %v8216
    %v8281 = vadd.f32 %v6721, %v8217
    %v8282 = vadd.f32 %v6722, %v8218
    %v8283 = vadd.f32 %v6723, %v8219
    %v8284 = vadd.f32 %v6724, %v8220
    %v8285 = vadd.f32 %v6725, %v8221
    %v8286 = vadd.f32 %v6726, %v8222
    %v8287 = vadd.f32 %v6727, %v8223
    %v8288 = vadd.f32 %v6728, %v8224
    %v8289 = vadd.f32 %v6729, %v8225
    %v8290 = vadd.f32 %v6730, %v8226
    %v8291 = vadd.f32 %v6731, %v8227
    %v8292 = vadd.f32 %v6732, %v8228
    %v8293 = vadd.f32 %v6733, %v8229
    %v8294 = vadd.f32 %v6734, %v8230
    %v8295 = vadd.f32 %v6735, %v8231
    %v8296 = vadd.f32 %v6736, %v8232
    %v8297 = vadd.f32 %v6737, %v8233
    %v8298 = vadd.f32 %v6738, %v8234
    %v8299 = vadd.f32 %v6739, %v8235
    %v8300 = vadd.f32 %v6740, %v8236
    %v8301 = vadd.f32 %v6741, %v8237
    %v8302 = vadd.f32 %v6742, %v8238
    %8303 = vst [vmem:[#allocation2] sm:$0xff] %v8239
    %8304 = vst [vmem:[#allocation2 + $0x8] sm:$0xff] %v8240
    %8305 = vst [vmem:[#allocation2 + $0x10] sm:$0xff] %v8241
    %8306 = vst [vmem:[#allocation2 + $0x18] sm:$0xff] %v8242
    %8307 = vst [vmem:[#allocation2 + $0x20] sm:$0xff] %v8243
    %8308 = vst [vmem:[#allocation2 + $0x28] sm:$0xff] %v8244
    %8309 = vst [vmem:[#allocation2 + $0x30] sm:$0xff] %v8245
    %8310 = vst [vmem:[#allocation2 + $0x38] sm:$0xff] %v8246
    %8311 = vst [vmem:[#allocation2 + $0x40] sm:$0xff] %v8247
    %8312 = vst [vmem:[#allocation2 + $0x48] sm:$0xff] %v8248
    %8313 = vst [vmem:[#allocation2 + $0x50] sm:$0xff] %v8249
    %8314 = vst [vmem:[#allocation2 + $0x58] sm:$0xff] %v8250
    %8315 = vst [vmem:[#allocation2 + $0x60] sm:$0xff] %v8251
    %8316 = vst [vmem:[#allocation2 + $0x68] sm:$0xff] %v8252
    %8317 = vst [vmem:[#allocation2 + $0x70] sm:$0xff] %v8253
    %8318 = vst [vmem:[#allocation2 + $0x78] sm:$0xff] %v8254
    %8319 = vst [vmem:[#allocation2 + $0x80] sm:$0xff] %v8255
    %8320 = vst [vmem:[#allocation2 + $0x88] sm:$0xff] %v8256
    %8321 = vst [vmem:[#allocation2 + $0x90] sm:$0xff] %v8257
    %8322 = vst [vmem:[#allocation2 + $0x98] sm:$0xff] %v8258
    %8323 = vst [vmem:[#allocation2 + $0xa0] sm:$0xff] %v8259
    %8324 = vst [vmem:[#allocation2 + $0xa8] sm:$0xff] %v8260
    %8325 = vst [vmem:[#allocation2 + $0xb0] sm:$0xff] %v8261
    %8326 = vst [vmem:[#allocation2 + $0xb8] sm:$0xff] %v8262
    %8327 = vst [vmem:[#allocation2 + $0xc0] sm:$0xff] %v8263
    %8328 = vst [vmem:[#allocation2 + $0xc8] sm:$0xff] %v8264
    %8329 = vst [vmem:[#allocation2 + $0xd0] sm:$0xff] %v8265
    %8330 = vst [vmem:[#allocation2 + $0xd8] sm:$0xff] %v8266
    %8331 = vst [vmem:[#allocation2 + $0xe0] sm:$0xff] %v8267
    %8332 = vst [vmem:[#allocation2 + $0xe8] sm:$0xff] %v8268
    %8333 = vst [vmem:[#allocation2 + $0xf0] sm:$0xff] %v8269
    %8334 = vst [vmem:[#allocation2 + $0xf8] sm:$0xff] %v8270
    %8335 = vst [vmem:[#allocation2 + $0x100] sm:$0xff] %v8271
    %8336 = vst [vmem:[#allocation2 + $0x108] sm:$0xff] %v8272
    %8337 = vst [vmem:[#allocation2 + $0x110] sm:$0xff] %v8273
    %8338 = vst [vmem:[#allocation2 + $0x118] sm:$0xff] %v8274
    %8339 = vst [vmem:[#allocation2 + $0x120] sm:$0xff] %v8275
    %8340 = vst [vmem:[#allocation2 + $0x128] sm:$0xff] %v8276
    %8341 = vst [vmem:[#allocation2 + $0x130] sm:$0xff] %v8277
    %8342 = vst [vmem:[#allocation2 + $0x138] sm:$0xff] %v8278
    %8343 = vst [vmem:[#allocation2 + $0x140] sm:$0xff] %v8279
    %8344 = vst [vmem:[#allocation2 + $0x148] sm:$0xff] %v8280
    %8345 = vst [vmem:[#allocation2 + $0x150] sm:$0xff] %v8281
    %8346 = vst [vmem:[#allocation2 + $0x158] sm:$0xff] %v8282
    %8347 = vst [vmem:[#allocation2 + $0x160] sm:$0xff] %v8283
    %8348 = vst [vmem:[#allocation2 + $0x168] sm:$0xff] %v8284
    %8349 = vst [vmem:[#allocation2 + $0x170] sm:$0xff] %v8285
    %8350 = vst [vmem:[#allocation2 + $0x178] sm:$0xff] %v8286
    %8351 = vst [vmem:[#allocation2 + $0x180] sm:$0xff] %v8287
    %8352 = vst [vmem:[#allocation2 + $0x188] sm:$0xff] %v8288
    %8353 = vst [vmem:[#allocation2 + $0x190] sm:$0xff] %v8289
    %8354 = vst [vmem:[#allocation2 + $0x198] sm:$0xff] %v8290
    %8355 = vst [vmem:[#allocation2 + $0x1a0] sm:$0xff] %v8291
    %8356 = vst [vmem:[#allocation2 + $0x1a8] sm:$0xff] %v8292
    %8357 = vst [vmem:[#allocation2 + $0x1b0] sm:$0xff] %v8293
    %8358 = vst [vmem:[#allocation2 + $0x1b8] sm:$0xff] %v8294
    %8359 = vst [vmem:[#allocation2 + $0x1c0] sm:$0xff] %v8295
    %8360 = vst [vmem:[#allocation2 + $0x1c8] sm:$0xff] %v8296
    %8361 = vst [vmem:[#allocation2 + $0x1d0] sm:$0xff] %v8297
    %8362 = vst [vmem:[#allocation2 + $0x1d8] sm:$0xff] %v8298
    %8363 = vst [vmem:[#allocation2 + $0x1e0] sm:$0xff] %v8299
    %8364 = vst [vmem:[#allocation2 + $0x1e8] sm:$0xff] %v8300
    %8365 = vst [vmem:[#allocation2 + $0x1f0] sm:$0xff] %v8301
    %8366 = vst [vmem:[#allocation2 + $0x1f8] sm:$0xff] %v8302
    // Predicated region
    $region54: #{tpu_custom_call.1} parent=1 // pred_check
      _
    $region55: #{tpu_custom_call.1} parent=1 // pred_check_branch
      %8368 = sbr.rel (0) target = $region57
    $region56: #{tpu_custom_call.1} parent=1 // pred_region
      %8370 = vsyncadd [#allocation3], 0
      %s8371 = sshll.u32 [#allocation2], 4
      %s8372 = int_to_ptr.vmem [resolvable:$true] %s8371
      %s8373 = sshll.u32 %s13, 4
      %s8374 = int_to_ptr.hbm [resolvable:$true] %s8373
      %8379 = dma.vmem_to_hbm [thread:$0]  %s8372, 8192, %s8374, [#allocation3], 128, 128, 8
    $region57: #{tpu_custom_call.1} parent=1 // pred_fallthru
      _
    // Predicated region
    $region58: #{tpu_custom_call.1} parent=1 // pred_check
      _
    $region59: #{tpu_custom_call.1} parent=1 // pred_check_branch
      %8381 = sbr.rel (0) target = $region61
    $region60: #{tpu_custom_call.1} parent=1 // pred_region
      %8383 = dma.done [#allocation3], 8192
    $region61: #{tpu_custom_call.1} parent=1 // pred_fallthru
      _
    %8384 = vsyncpa [#allocation3], 1

</llo_original>
